<compile_context>
chip_gen: v5e
topology: v5e:2x2
jax: 0.10.0
libtpu: 0.0.40
codegen_flags: <defaults>
</compile_context>

<pallas_src>
import functools

import jax
import jax.numpy as jnp
from jax.experimental import pallas as pl
from jax.experimental.pallas import tpu as pltpu

_EPS = 1e-5
_LANE = 128


def _round_up(x, m):
    return (x + m - 1) // m * m


# --------------------------------------------------------------------------
# in-kernel helpers
# --------------------------------------------------------------------------
def _zero_halo(xpad_ref, H, W, Cp):
    """Zero only the 1-pixel border of the (nb, H+2, W+2, Cp) scratch."""
    nb = xpad_ref.shape[0]
    dt = xpad_ref.dtype
    zrow = jnp.zeros((nb, 1, W + 2, Cp), dt)
    xpad_ref[:, 0:1, :, :] = zrow
    xpad_ref[:, H + 1:H + 2, :, :] = zrow
    zcol = jnp.zeros((nb, H, 1, Cp), dt)
    xpad_ref[:, 1:H + 1, 0:1, :] = zcol
    xpad_ref[:, 1:H + 1, W + 1:W + 2, :] = zcol


def _conv3x3_acc(xpad_ref, w_ref, H, W, Cp):
    """3x3 'same' cross-correlation as 9 accumulating bf16 MXU matmuls.

    xpad_ref : (nb, H+2, W+2, Cp) bf16 scratch (zero border, interior filled)
    w_ref    : (9, Cp, Cp) bf16 weights, tap index = dh*3 + dw
    returns  : (nb*H*W, Cp) f32 accumulator
    """
    nb = xpad_ref.shape[0]
    M = nb * H * W
    acc = None
    for dh in range(3):
        for dw in range(3):
            window = xpad_ref[:, dh:dh + H, dw:dw + W, :].reshape(M, Cp)
            part = jnp.dot(window, w_ref[dh * 3 + dw],
                           preferred_element_type=jnp.float32)
            acc = part if acc is None else acc + part
    return acc


# --------------------------------------------------------------------------
# kernels
# --------------------------------------------------------------------------
def _conv_stats_kernel(x_ref, w_ref, yraw_ref, sum_ref, sq_ref, xpad_ref,
                       *, H, W, Cp):
    """Stage 1: 3x3 conv (bias-free, bf16 MXU) + per-tile BN partial sums."""
    nb = x_ref.shape[0]
    _zero_halo(xpad_ref, H, W, Cp)
    xpad_ref[:, 1:H + 1, 1:W + 1, :] = x_ref[...]
    acc = _conv3x3_acc(xpad_ref, w_ref, H, W, Cp)            # (M, Cp) f32
    yraw_ref[...] = acc.reshape(nb, H * W, Cp).astype(yraw_ref.dtype)
    sum_ref[...] = jnp.sum(acc, axis=0).reshape(1, 1, Cp)
    sq_ref[...] = jnp.sum(acc * acc, axis=0).reshape(1, 1, Cp)


def _bn_relu_conv_stats_kernel(yprev_ref, scale_ref, shift_ref, w_ref,
                               yraw_ref, sum_ref, sq_ref, xpad_ref,
                               *, H, W, Cp):
    """Stage 2: previous-stage folded BN (one FMA) + ReLU, then 3x3 conv
    (bias-free, bf16 MXU) + per-tile BN partial sums for this stage."""
    nb = yprev_ref.shape[0]
    y = (yprev_ref[...].astype(jnp.float32) * scale_ref[...][None]
         + shift_ref[...][None])
    y = jnp.maximum(y, 0.0).astype(xpad_ref.dtype)           # (nb, H*W, Cp)
    _zero_halo(xpad_ref, H, W, Cp)
    xpad_ref[:, 1:H + 1, 1:W + 1, :] = y.reshape(nb, H, W, Cp)
    acc = _conv3x3_acc(xpad_ref, w_ref, H, W, Cp)
    yraw_ref[...] = acc.reshape(nb, H * W, Cp).astype(yraw_ref.dtype)
    sum_ref[...] = jnp.sum(acc, axis=0).reshape(1, 1, Cp)
    sq_ref[...] = jnp.sum(acc * acc, axis=0).reshape(1, 1, Cp)


def _bn_relu_kernel(y_ref, scale_ref, shift_ref, o_ref):
    """Stage 3: folded BN affine (one FMA) + ReLU, in-place (aliased)."""
    y = (y_ref[...].astype(jnp.float32) * scale_ref[...][None]
         + shift_ref[...][None])
    o_ref[...] = jnp.maximum(y, 0.0).astype(o_ref.dtype)


# --------------------------------------------------------------------------
# pallas_call wrappers
# --------------------------------------------------------------------------
def _vmem_limit_bytes():
    # Generation-aware: v7x has only 64 MiB physical VMEM; leave headroom for
    # compiler scratch.  v5e/v6e (128 MiB) get ~102 MiB.
    try:
        cap = int(pltpu.get_tpu_info().vmem_capacity_bytes)
    except Exception:
        return 48 * 1024 * 1024
    return int(cap * 0.8)


def _compiler_params(vmem_limit):
    return pltpu.CompilerParams(
        dimension_semantics=("parallel",),
        vmem_limit_bytes=vmem_limit,
    )


def _pick_n_blk(N, H, W, Cp, vmem_limit):
    """Largest batch block that fits the VMEM budget while keeping >= 2 grid
    steps (so both v7x TensorCores get work)."""
    budget = vmem_limit // 2
    w_bytes = 2 * 9 * Cp * Cp * 2                     # double-buffered bf16 w
    best = 1
    for nb in range(1, N + 1):
        if N % nb:
            continue
        if N >= 2 and N // nb < 2:
            continue
        act = nb * H * W * Cp
        per = (4 * act * 2                            # in/out double buffers
               + nb * (H + 2) * (W + 2) * Cp * 2      # bf16 halo scratch
               + 3 * act * 4                          # f32 acc + temporaries
               + w_bytes)
        if per <= budget:
            best = nb
    return best


def _conv_stats_call(x_nhwc, w3d, n_blk, vmem_limit):
    N, H, W, Cp = x_nhwc.shape
    HW = H * W
    T = N // n_blk
    kernel = functools.partial(_conv_stats_kernel, H=H, W=W, Cp=Cp)
    return pl.pallas_call(
        kernel,
        out_shape=(
            jax.ShapeDtypeStruct((N, HW, Cp), jnp.bfloat16),   # raw conv
            jax.ShapeDtypeStruct((T, 1, Cp), jnp.float32),     # per-tile sum
            jax.ShapeDtypeStruct((T, 1, Cp), jnp.float32),     # per-tile sumsq
        ),
        grid_spec=pltpu.PrefetchScalarGridSpec(
            num_scalar_prefetch=0,
            grid=(T,),
            in_specs=[
                pl.BlockSpec((n_blk, H, W, Cp), lambda i: (i, 0, 0, 0)),
                pl.BlockSpec((9, Cp, Cp), lambda i: (0, 0, 0)),
            ],
            out_specs=[
                pl.BlockSpec((n_blk, HW, Cp), lambda i: (i, 0, 0)),
                pl.BlockSpec((1, 1, Cp), lambda i: (i, 0, 0)),
                pl.BlockSpec((1, 1, Cp), lambda i: (i, 0, 0)),
            ],
            scratch_shapes=[pltpu.VMEM((n_blk, H + 2, W + 2, Cp),
                                       jnp.bfloat16)],
        ),
        compiler_params=_compiler_params(vmem_limit),
    )(x_nhwc, w3d)


def _bn_relu_conv_stats_call(yraw, scale, shift, w3d, n_blk, H, W, vmem_limit):
    N, HW, Cp = yraw.shape
    T = N // n_blk
    kernel = functools.partial(_bn_relu_conv_stats_kernel, H=H, W=W, Cp=Cp)
    return pl.pallas_call(
        kernel,
        out_shape=(
            jax.ShapeDtypeStruct((N, HW, Cp), jnp.bfloat16),
            jax.ShapeDtypeStruct((T, 1, Cp), jnp.float32),
            jax.ShapeDtypeStruct((T, 1, Cp), jnp.float32),
        ),
        grid_spec=pltpu.PrefetchScalarGridSpec(
            num_scalar_prefetch=0,
            grid=(T,),
            in_specs=[
                pl.BlockSpec((n_blk, HW, Cp), lambda i: (i, 0, 0)),
                pl.BlockSpec((1, Cp), lambda i: (0, 0)),
                pl.BlockSpec((1, Cp), lambda i: (0, 0)),
                pl.BlockSpec((9, Cp, Cp), lambda i: (0, 0, 0)),
            ],
            out_specs=[
                pl.BlockSpec((n_blk, HW, Cp), lambda i: (i, 0, 0)),
                pl.BlockSpec((1, 1, Cp), lambda i: (i, 0, 0)),
                pl.BlockSpec((1, 1, Cp), lambda i: (i, 0, 0)),
            ],
            scratch_shapes=[pltpu.VMEM((n_blk, H + 2, W + 2, Cp),
                                       jnp.bfloat16)],
        ),
        compiler_params=_compiler_params(vmem_limit),
    )(yraw, scale, shift, w3d)


def _bn_relu_call(yraw, scale, shift, n_blk, vmem_limit):
    N, HW, Cp = yraw.shape
    T = N // n_blk
    return pl.pallas_call(
        _bn_relu_kernel,
        out_shape=jax.ShapeDtypeStruct((N, HW, Cp), jnp.bfloat16),
        grid_spec=pltpu.PrefetchScalarGridSpec(
            num_scalar_prefetch=0,
            grid=(T,),
            in_specs=[
                pl.BlockSpec((n_blk, HW, Cp), lambda i: (i, 0, 0)),
                pl.BlockSpec((1, Cp), lambda i: (0, 0)),
                pl.BlockSpec((1, Cp), lambda i: (0, 0)),
            ],
            out_specs=pl.BlockSpec((n_blk, HW, Cp), lambda i: (i, 0, 0)),
        ),
        input_output_aliases={0: 0},      # write BN+ReLU in place
        compiler_params=_compiler_params(vmem_limit),
    )(yraw, scale, shift)


def _fold_bn(sum_t, sq_t, gamma_p, beta_p, count):
    """Reduce per-tile partials; fold BN into one (scale, shift) FMA (f32)."""
    s = jnp.sum(sum_t, axis=(0, 1))                     # (Cp,)
    q = jnp.sum(sq_t, axis=(0, 1))                      # (Cp,)
    mean = s / count
    var = jnp.maximum(q / count - mean * mean, 0.0)     # biased variance
    inv = jax.lax.rsqrt(var + _EPS)
    scale = gamma_p * inv
    shift = beta_p - mean * scale
    return scale.reshape(1, -1), shift.reshape(1, -1)


def decoder_bottleneck_layer(x_nchw, params, *, n_blk=None):
    """Matches DecoderBottleneckLayer.forward (training-mode BN). NCHW in/out."""
    N, C, H, W = x_nchw.shape
    Cp = _round_up(C, _LANE)          # lane-dense channels, full MXU columns
    count = N * H * W

    x = jnp.transpose(x_nchw, (0, 2, 3, 1)).astype(jnp.bfloat16)   # NHWC bf16
    if Cp != C:
        x = jnp.pad(x, ((0, 0), (0, 0), (0, 0), (0, Cp - C)))

    def prep_w(w):                    # (3,3,cin,cout) HWIO -> (9, Cp, Cp) bf16
        w = jnp.pad(w.astype(jnp.float32),
                    ((0, 0), (0, 0), (0, Cp - C), (0, Cp - C)))
        return w.reshape(9, Cp, Cp).astype(jnp.bfloat16)

    def prep_vec(v):                  # pad gamma/beta with zeros (pads stay 0)
        return jnp.pad(v.astype(jnp.float32), (0, Cp - C))

    w1, w2 = prep_w(params["w1"]), prep_w(params["w2"])
    g1, beta1 = prep_vec(params["g1"]), prep_vec(params["beta1"])
    g2, beta2 = prep_vec(params["g2"]), prep_vec(params["beta2"])
    # conv biases b1/b2 are deliberately NOT passed: training-mode BN's mean
    # subtraction cancels them exactly.

    vmem_limit = _vmem_limit_bytes()
    if n_blk is None:
        n_blk = _pick_n_blk(N, H, W, Cp, vmem_limit)
    assert N % n_blk == 0

    # stage 1: conv + BN partial stats
    y1, s1, q1 = _conv_stats_call(x, w1, n_blk, vmem_limit)
    scale1, shift1 = _fold_bn(s1, q1, g1, beta1, count)
    # stage-1 BN+ReLU fused into stage-2 conv + BN partial stats
    y2, s2, q2 = _bn_relu_conv_stats_call(y1, scale1, shift1, w2, n_blk,
                                          H, W, vmem_limit)
    scale2, shift2 = _fold_bn(s2, q2, g2, beta2, count)
    # stage-2 BN + ReLU (in place on y2)
    out = _bn_relu_call(y2, scale2, shift2, n_blk, vmem_limit)

    out = out.reshape(N, H, W, Cp)[:, :, :, :C].astype(jnp.float32)
    return jnp.transpose(out, (0, 3, 1, 2))                       # -> NCHW


# --------------------------------------------------------------------------
# pure-JAX f32 reference (PyTorch semantics, bias included) + demo
# --------------------------------------------------------------------------
def _ref_stage(x, w, b, g, beta):
    y = jax.lax.conv_general_dilated(
        x, w, window_strides=(1, 1), padding="SAME",
        dimension_numbers=("NHWC", "HWIO", "NHWC"))
    y = y + b.reshape(1, 1, 1, -1)
    mean = jnp.mean(y, axis=(0, 1, 2), keepdims=True)
    var = jnp.mean((y - mean) ** 2, axis=(0, 1, 2), keepdims=True)
    y = ((y - mean) * jax.lax.rsqrt(var + _EPS)
         * g.reshape(1, 1, 1, -1) + beta.reshape(1, 1, 1, -1))
    return jnp.maximum(y, 0.0)


def _ref_forward(x_nchw, params):
    x = jnp.transpose(x_nchw, (0, 2, 3, 1))
    y = _ref_stage(x, params["w1"], params["b1"], params["g1"], params["beta1"])
    y = _ref_stage(y, params["w2"], params["b2"], params["g2"], params["beta2"])
    return jnp.transpose(y, (0, 3, 1, 2))


def init_params(key, C):
    """Deterministic synthetic params (shapes match nn.Conv2d / nn.BatchNorm2d)."""
    ks = jax.random.split(key, 8)
    bound = 1.0 / ((C * 9) ** 0.5)  # PyTorch Conv2d default init bound

    def u(k, shape):
        return jax.random.uniform(k, shape, jnp.float32, -bound, bound)

    return {
        "w1": u(ks[0], (3, 3, C, C)),   # (kh, kw, cin, cout)
        "b1": u(ks[1], (C,)),
        "g1": 1.0 + 0.1 * jax.random.normal(ks[2], (C,), jnp.float32),
        "beta1": 0.1 * jax.random.normal(ks[3], (C,), jnp.float32),
        "w2": u(ks[4], (3, 3, C, C)),
        "b2": u(ks[5], (C,)),
        "g2": 1.0 + 0.1 * jax.random.normal(ks[6], (C,), jnp.float32),
        "beta2": 0.1 * jax.random.normal(ks[7], (C,), jnp.float32),
    }


if __name__ == "__main__":
    key = jax.random.PRNGKey(0)
    kx, kp = jax.random.split(key)
    N, C, H, W = 2, 4, 16, 16
    x = jax.random.normal(kx, (N, C, H, W), jnp.float32)
    params = init_params(kp, C)

    out = jax.jit(decoder_bottleneck_layer)(x, params)
    out = jax.block_until_ready(out)
    assert out.shape == (N, C, H, W)

    ref = jax.block_until_ready(jax.jit(_ref_forward)(x, params))
    # bf16 MXU inputs / bf16 intermediates -> relaxed tolerance vs f32 ref.
    assert jnp.allclose(out, ref, atol=5e-2, rtol=5e-2), "mismatch vs reference"

    print("KERNEL_OK")
</pallas_src>

<mosaic_0001>
module attributes {stable_mosaic.version = 11 : i64} {
  func.func @_conv_stats_kernel(%arg0: i32, %arg1: memref<1x16x16x128xbf16, #tpu.memory_space<vmem>>, %arg2: memref<9x128x128xbf16, #tpu.memory_space<vmem>>, %arg3: memref<1x256x128xbf16, #tpu.memory_space<vmem>>, %arg4: memref<1x1x128xf32, #tpu.memory_space<vmem>>, %arg5: memref<1x1x128xf32, #tpu.memory_space<vmem>>, %arg6: memref<1x18x18x128xbf16, #tpu.memory_space<vmem>>) attributes {dimension_semantics = [#tpu.dimension_semantics<parallel>], iteration_bounds = array<i64: 2>, scalar_prefetch = 0 : i64, scratch_operands = 1 : i64, tpu.core_type = #tpu.core_type<tc>, window_params = [{transform_indices = @transform_0, window_bounds = array<i64: 1, 16, 16, 128>}, {pipeline_mode = #tpu.pipeline_mode<synchronous>, transform_indices = @transform_1, window_bounds = array<i64: 9, 128, 128>}, {transform_indices = @transform_2, window_bounds = array<i64: 1, 256, 128>}, {transform_indices = @transform_3, window_bounds = array<i64: 1, 1, 128>}, {transform_indices = @transform_4, window_bounds = array<i64: 1, 1, 128>}]} {
    %cst = arith.constant 0.000000e+00 : bf16
    %0 = vector.broadcast %cst : bf16 to vector<1x1x18x128xbf16>
    %c0 = arith.constant 0 : index
    %c0_0 = arith.constant 0 : index
    %c0_1 = arith.constant 0 : index
    %c0_2 = arith.constant 0 : index
    %1 = vector.load %arg6[%c0, %c0_0, %c0_1, %c0_2] : memref<1x18x18x128xbf16, #tpu.memory_space<vmem>>, vector<1x1x18x128xbf16>
    tpu.vector_store %arg6[%c0, %c0_0, %c0_1, %c0_2], %0 {strides = array<i32>} : memref<1x18x18x128xbf16, #tpu.memory_space<vmem>>, vector<1x1x18x128xbf16>,
    %c0_3 = arith.constant 0 : index
    %c17 = arith.constant 17 : index
    %c0_4 = arith.constant 0 : index
    %c0_5 = arith.constant 0 : index
    %2 = vector.load %arg6[%c0_3, %c17, %c0_4, %c0_5] : memref<1x18x18x128xbf16, #tpu.memory_space<vmem>>, vector<1x1x18x128xbf16>
    tpu.vector_store %arg6[%c0_3, %c17, %c0_4, %c0_5], %0 {strides = array<i32>} : memref<1x18x18x128xbf16, #tpu.memory_space<vmem>>, vector<1x1x18x128xbf16>,
    %cst_6 = arith.constant 0.000000e+00 : bf16
    %3 = vector.broadcast %cst_6 : bf16 to vector<1x16x1x128xbf16>
    %c0_7 = arith.constant 0 : index
    %c1 = arith.constant 1 : index
    %c0_8 = arith.constant 0 : index
    %c0_9 = arith.constant 0 : index
    %4 = vector.load %arg6[%c0_7, %c1, %c0_8, %c0_9] : memref<1x18x18x128xbf16, #tpu.memory_space<vmem>>, vector<1x16x1x128xbf16>
    tpu.vector_store %arg6[%c0_7, %c1, %c0_8, %c0_9], %3 {strides = array<i32>} : memref<1x18x18x128xbf16, #tpu.memory_space<vmem>>, vector<1x16x1x128xbf16>,
    %c0_10 = arith.constant 0 : index
    %c1_11 = arith.constant 1 : index
    %c17_12 = arith.constant 17 : index
    %c0_13 = arith.constant 0 : index
    %5 = vector.load %arg6[%c0_10, %c1_11, %c17_12, %c0_13] : memref<1x18x18x128xbf16, #tpu.memory_space<vmem>>, vector<1x16x1x128xbf16>
    tpu.vector_store %arg6[%c0_10, %c1_11, %c17_12, %c0_13], %3 {strides = array<i32>} : memref<1x18x18x128xbf16, #tpu.memory_space<vmem>>, vector<1x16x1x128xbf16>,
    %c0_14 = arith.constant 0 : index
    %c0_15 = arith.constant 0 : index
    %c0_16 = arith.constant 0 : index
    %c0_17 = arith.constant 0 : index
    %6 = vector.load %arg1[%c0_14, %c0_15, %c0_16, %c0_17] : memref<1x16x16x128xbf16, #tpu.memory_space<vmem>>, vector<1x16x16x128xbf16>
    %c0_18 = arith.constant 0 : index
    %c1_19 = arith.constant 1 : index
    %c1_20 = arith.constant 1 : index
    %c0_21 = arith.constant 0 : index
    %7 = vector.load %arg6[%c0_18, %c1_19, %c1_20, %c0_21] : memref<1x18x18x128xbf16, #tpu.memory_space<vmem>>, vector<1x16x16x128xbf16>
    tpu.vector_store %arg6[%c0_18, %c1_19, %c1_20, %c0_21], %6 {strides = array<i32>} : memref<1x18x18x128xbf16, #tpu.memory_space<vmem>>, vector<1x16x16x128xbf16>,
    %c0_22 = arith.constant 0 : index
    %c0_23 = arith.constant 0 : index
    %c0_24 = arith.constant 0 : index
    %c0_25 = arith.constant 0 : index
    %8 = vector.load %arg6[%c0_22, %c0_23, %c0_24, %c0_25] : memref<1x18x18x128xbf16, #tpu.memory_space<vmem>>, vector<1x16x16x128xbf16>
    %9 = vector.shape_cast %8 : vector<1x16x16x128xbf16> to vector<256x128xbf16>
    %c0_26 = arith.constant 0 : index
    %c0_27 = arith.constant 0 : index
    %c0_28 = arith.constant 0 : index
    %10 = vector.load %arg2[%c0_26, %c0_27, %c0_28] : memref<9x128x128xbf16, #tpu.memory_space<vmem>>, vector<1x128x128xbf16>
    %11 = vector.shape_cast %10 : vector<1x128x128xbf16> to vector<128x128xbf16>
    %cst_29 = arith.constant dense<0.000000e+00> : vector<256x128xf32>
    %12 = tpu.matmul %9, %11, %cst_29 {dimension_numbers = #tpu.dot_dimension_numbers<[1], [0], [0], [1], [0, 0, 1, 1], [], []>} : vector<256x128xbf16>, vector<128x128xbf16>, vector<256x128xf32> -> vector<256x128xf32>
    %c0_30 = arith.constant 0 : index
    %c0_31 = arith.constant 0 : index
    %c1_32 = arith.constant 1 : index
    %c0_33 = arith.constant 0 : index
    %13 = vector.load %arg6[%c0_30, %c0_31, %c1_32, %c0_33] : memref<1x18x18x128xbf16, #tpu.memory_space<vmem>>, vector<1x16x16x128xbf16>
    %14 = vector.shape_cast %13 : vector<1x16x16x128xbf16> to vector<256x128xbf16>
    %c1_34 = arith.constant 1 : index
    %c0_35 = arith.constant 0 : index
    %c0_36 = arith.constant 0 : index
    %15 = vector.load %arg2[%c1_34, %c0_35, %c0_36] : memref<9x128x128xbf16, #tpu.memory_space<vmem>>, vector<1x128x128xbf16>
    %16 = vector.shape_cast %15 : vector<1x128x128xbf16> to vector<128x128xbf16>
    %cst_37 = arith.constant dense<0.000000e+00> : vector<256x128xf32>
    %17 = tpu.matmul %14, %16, %cst_37 {dimension_numbers = #tpu.dot_dimension_numbers<[1], [0], [0], [1], [0, 0, 1, 1], [], []>} : vector<256x128xbf16>, vector<128x128xbf16>, vector<256x128xf32> -> vector<256x128xf32>
    %18 = arith.addf %12, %17 : vector<256x128xf32>
    %c0_38 = arith.constant 0 : index
    %c0_39 = arith.constant 0 : index
    %c2 = arith.constant 2 : index
    %c0_40 = arith.constant 0 : index
    %19 = vector.load %arg6[%c0_38, %c0_39, %c2, %c0_40] : memref<1x18x18x128xbf16, #tpu.memory_space<vmem>>, vector<1x16x16x128xbf16>
    %20 = vector.shape_cast %19 : vector<1x16x16x128xbf16> to vector<256x128xbf16>
    %c2_41 = arith.constant 2 : index
    %c0_42 = arith.constant 0 : index
    %c0_43 = arith.constant 0 : index
    %21 = vector.load %arg2[%c2_41, %c0_42, %c0_43] : memref<9x128x128xbf16, #tpu.memory_space<vmem>>, vector<1x128x128xbf16>
    %22 = vector.shape_cast %21 : vector<1x128x128xbf16> to vector<128x128xbf16>
    %cst_44 = arith.constant dense<0.000000e+00> : vector<256x128xf32>
    %23 = tpu.matmul %20, %22, %cst_44 {dimension_numbers = #tpu.dot_dimension_numbers<[1], [0], [0], [1], [0, 0, 1, 1], [], []>} : vector<256x128xbf16>, vector<128x128xbf16>, vector<256x128xf32> -> vector<256x128xf32>
    %24 = arith.addf %18, %23 : vector<256x128xf32>
    %c0_45 = arith.constant 0 : index
    %c1_46 = arith.constant 1 : index
    %c0_47 = arith.constant 0 : index
    %c0_48 = arith.constant 0 : index
    %25 = vector.load %arg6[%c0_45, %c1_46, %c0_47, %c0_48] : memref<1x18x18x128xbf16, #tpu.memory_space<vmem>>, vector<1x16x16x128xbf16>
    %26 = vector.shape_cast %25 : vector<1x16x16x128xbf16> to vector<256x128xbf16>
    %c3 = arith.constant 3 : index
    %c0_49 = arith.constant 0 : index
    %c0_50 = arith.constant 0 : index
    %27 = vector.load %arg2[%c3, %c0_49, %c0_50] : memref<9x128x128xbf16, #tpu.memory_space<vmem>>, vector<1x128x128xbf16>
    %28 = vector.shape_cast %27 : vector<1x128x128xbf16> to vector<128x128xbf16>
    %cst_51 = arith.constant dense<0.000000e+00> : vector<256x128xf32>
    %29 = tpu.matmul %26, %28, %cst_51 {dimension_numbers = #tpu.dot_dimension_numbers<[1], [0], [0], [1], [0, 0, 1, 1], [], []>} : vector<256x128xbf16>, vector<128x128xbf16>, vector<256x128xf32> -> vector<256x128xf32>
    %30 = arith.addf %24, %29 : vector<256x128xf32>
    %c0_52 = arith.constant 0 : index
    %c1_53 = arith.constant 1 : index
    %c1_54 = arith.constant 1 : index
    %c0_55 = arith.constant 0 : index
    %31 = vector.load %arg6[%c0_52, %c1_53, %c1_54, %c0_55] : memref<1x18x18x128xbf16, #tpu.memory_space<vmem>>, vector<1x16x16x128xbf16>
    %32 = vector.shape_cast %31 : vector<1x16x16x128xbf16> to vector<256x128xbf16>
    %c4 = arith.constant 4 : index
    %c0_56 = arith.constant 0 : index
    %c0_57 = arith.constant 0 : index
    %33 = vector.load %arg2[%c4, %c0_56, %c0_57] : memref<9x128x128xbf16, #tpu.memory_space<vmem>>, vector<1x128x128xbf16>
    %34 = vector.shape_cast %33 : vector<1x128x128xbf16> to vector<128x128xbf16>
    %cst_58 = arith.constant dense<0.000000e+00> : vector<256x128xf32>
    %35 = tpu.matmul %32, %34, %cst_58 {dimension_numbers = #tpu.dot_dimension_numbers<[1], [0], [0], [1], [0, 0, 1, 1], [], []>} : vector<256x128xbf16>, vector<128x128xbf16>, vector<256x128xf32> -> vector<256x128xf32>
    %36 = arith.addf %30, %35 : vector<256x128xf32>
    %c0_59 = arith.constant 0 : index
    %c1_60 = arith.constant 1 : index
    %c2_61 = arith.constant 2 : index
    %c0_62 = arith.constant 0 : index
    %37 = vector.load %arg6[%c0_59, %c1_60, %c2_61, %c0_62] : memref<1x18x18x128xbf16, #tpu.memory_space<vmem>>, vector<1x16x16x128xbf16>
    %38 = vector.shape_cast %37 : vector<1x16x16x128xbf16> to vector<256x128xbf16>
    %c5 = arith.constant 5 : index
    %c0_63 = arith.constant 0 : index
    %c0_64 = arith.constant 0 : index
    %39 = vector.load %arg2[%c5, %c0_63, %c0_64] : memref<9x128x128xbf16, #tpu.memory_space<vmem>>, vector<1x128x128xbf16>
    %40 = vector.shape_cast %39 : vector<1x128x128xbf16> to vector<128x128xbf16>
    %cst_65 = arith.constant dense<0.000000e+00> : vector<256x128xf32>
    %41 = tpu.matmul %38, %40, %cst_65 {dimension_numbers = #tpu.dot_dimension_numbers<[1], [0], [0], [1], [0, 0, 1, 1], [], []>} : vector<256x128xbf16>, vector<128x128xbf16>, vector<256x128xf32> -> vector<256x128xf32>
    %42 = arith.addf %36, %41 : vector<256x128xf32>
    %c0_66 = arith.constant 0 : index
    %c2_67 = arith.constant 2 : index
    %c0_68 = arith.constant 0 : index
    %c0_69 = arith.constant 0 : index
    %43 = vector.load %arg6[%c0_66, %c2_67, %c0_68, %c0_69] : memref<1x18x18x128xbf16, #tpu.memory_space<vmem>>, vector<1x16x16x128xbf16>
    %44 = vector.shape_cast %43 : vector<1x16x16x128xbf16> to vector<256x128xbf16>
    %c6 = arith.constant 6 : index
    %c0_70 = arith.constant 0 : index
    %c0_71 = arith.constant 0 : index
    %45 = vector.load %arg2[%c6, %c0_70, %c0_71] : memref<9x128x128xbf16, #tpu.memory_space<vmem>>, vector<1x128x128xbf16>
    %46 = vector.shape_cast %45 : vector<1x128x128xbf16> to vector<128x128xbf16>
    %cst_72 = arith.constant dense<0.000000e+00> : vector<256x128xf32>
    %47 = tpu.matmul %44, %46, %cst_72 {dimension_numbers = #tpu.dot_dimension_numbers<[1], [0], [0], [1], [0, 0, 1, 1], [], []>} : vector<256x128xbf16>, vector<128x128xbf16>, vector<256x128xf32> -> vector<256x128xf32>
    %48 = arith.addf %42, %47 : vector<256x128xf32>
    %c0_73 = arith.constant 0 : index
    %c2_74 = arith.constant 2 : index
    %c1_75 = arith.constant 1 : index
    %c0_76 = arith.constant 0 : index
    %49 = vector.load %arg6[%c0_73, %c2_74, %c1_75, %c0_76] : memref<1x18x18x128xbf16, #tpu.memory_space<vmem>>, vector<1x16x16x128xbf16>
    %50 = vector.shape_cast %49 : vector<1x16x16x128xbf16> to vector<256x128xbf16>
    %c7 = arith.constant 7 : index
    %c0_77 = arith.constant 0 : index
    %c0_78 = arith.constant 0 : index
    %51 = vector.load %arg2[%c7, %c0_77, %c0_78] : memref<9x128x128xbf16, #tpu.memory_space<vmem>>, vector<1x128x128xbf16>
    %52 = vector.shape_cast %51 : vector<1x128x128xbf16> to vector<128x128xbf16>
    %cst_79 = arith.constant dense<0.000000e+00> : vector<256x128xf32>
    %53 = tpu.matmul %50, %52, %cst_79 {dimension_numbers = #tpu.dot_dimension_numbers<[1], [0], [0], [1], [0, 0, 1, 1], [], []>} : vector<256x128xbf16>, vector<128x128xbf16>, vector<256x128xf32> -> vector<256x128xf32>
    %54 = arith.addf %48, %53 : vector<256x128xf32>
    %c0_80 = arith.constant 0 : index
    %c2_81 = arith.constant 2 : index
    %c2_82 = arith.constant 2 : index
    %c0_83 = arith.constant 0 : index
    %55 = vector.load %arg6[%c0_80, %c2_81, %c2_82, %c0_83] : memref<1x18x18x128xbf16, #tpu.memory_space<vmem>>, vector<1x16x16x128xbf16>
    %56 = vector.shape_cast %55 : vector<1x16x16x128xbf16> to vector<256x128xbf16>
    %c8 = arith.constant 8 : index
    %c0_84 = arith.constant 0 : index
    %c0_85 = arith.constant 0 : index
    %57 = vector.load %arg2[%c8, %c0_84, %c0_85] : memref<9x128x128xbf16, #tpu.memory_space<vmem>>, vector<1x128x128xbf16>
    %58 = vector.shape_cast %57 : vector<1x128x128xbf16> to vector<128x128xbf16>
    %cst_86 = arith.constant dense<0.000000e+00> : vector<256x128xf32>
    %59 = tpu.matmul %56, %58, %cst_86 {dimension_numbers = #tpu.dot_dimension_numbers<[1], [0], [0], [1], [0, 0, 1, 1], [], []>} : vector<256x128xbf16>, vector<128x128xbf16>, vector<256x128xf32> -> vector<256x128xf32>
    %60 = arith.addf %54, %59 : vector<256x128xf32>
    %61 = vector.shape_cast %60 : vector<256x128xf32> to vector<1x256x128xf32>
    %62 = arith.truncf %61 : vector<1x256x128xf32> to vector<1x256x128xbf16>
    %c0_87 = arith.constant 0 : index
    %c0_88 = arith.constant 0 : index
    %c0_89 = arith.constant 0 : index
    %63 = vector.load %arg3[%c0_87, %c0_88, %c0_89] : memref<1x256x128xbf16, #tpu.memory_space<vmem>>, vector<1x256x128xbf16>
    tpu.vector_store %arg3[%c0_87, %c0_88, %c0_89], %62 {strides = array<i32>} : memref<1x256x128xbf16, #tpu.memory_space<vmem>>, vector<1x256x128xbf16>,
    %cst_90 = arith.constant dense<0.000000e+00> : vector<128xf32>
    %64 = vector.multi_reduction <add>, %60, %cst_90 [0] : vector<256x128xf32> to vector<128xf32>
    %65 = vector.shape_cast %64 : vector<128xf32> to vector<1x1x128xf32>
    %c0_91 = arith.constant 0 : index
    %c0_92 = arith.constant 0 : index
    %c0_93 = arith.constant 0 : index
    %66 = vector.load %arg4[%c0_91, %c0_92, %c0_93] : memref<1x1x128xf32, #tpu.memory_space<vmem>>, vector<1x1x128xf32>
    tpu.vector_store %arg4[%c0_91, %c0_92, %c0_93], %65 {strides = array<i32>} : memref<1x1x128xf32, #tpu.memory_space<vmem>>, vector<1x1x128xf32>,
    %67 = arith.mulf %60, %60 : vector<256x128xf32>
    %cst_94 = arith.constant dense<0.000000e+00> : vector<128xf32>
    %68 = vector.multi_reduction <add>, %67, %cst_94 [0] : vector<256x128xf32> to vector<128xf32>
    %69 = vector.shape_cast %68 : vector<128xf32> to vector<1x1x128xf32>
    %c0_95 = arith.constant 0 : index
    %c0_96 = arith.constant 0 : index
    %c0_97 = arith.constant 0 : index
    %70 = vector.load %arg5[%c0_95, %c0_96, %c0_97] : memref<1x1x128xf32, #tpu.memory_space<vmem>>, vector<1x1x128xf32>
    tpu.vector_store %arg5[%c0_95, %c0_96, %c0_97], %69 {strides = array<i32>} : memref<1x1x128xf32, #tpu.memory_space<vmem>>, vector<1x1x128xf32>,
    return
  }
  func.func @transform_0(%arg0: i32) -> (i32, i32, i32, i32) {
    %c0_i32 = arith.constant 0 : i32
    %c0_i32_0 = arith.constant 0 : i32
    %c0_i32_1 = arith.constant 0 : i32
    %c0_i32_2 = arith.constant 0 : i32
    return %arg0, %c0_i32, %c0_i32_0, %c0_i32_1 : i32, i32, i32, i32
  }
  func.func @transform_1(%arg0: i32) -> (i32, i32, i32) {
    %c0_i32 = arith.constant 0 : i32
    %c0_i32_0 = arith.constant 0 : i32
    %c0_i32_1 = arith.constant 0 : i32
    %c0_i32_2 = arith.constant 0 : i32
    return %c0_i32, %c0_i32_0, %c0_i32_1 : i32, i32, i32
  }
  func.func @transform_2(%arg0: i32) -> (i32, i32, i32) {
    %c0_i32 = arith.constant 0 : i32
    %c0_i32_0 = arith.constant 0 : i32
    %c0_i32_1 = arith.constant 0 : i32
    return %arg0, %c0_i32, %c0_i32_0 : i32, i32, i32
  }
  func.func @transform_3(%arg0: i32) -> (i32, i32, i32) {
    %c0_i32 = arith.constant 0 : i32
    %c0_i32_0 = arith.constant 0 : i32
    %c0_i32_1 = arith.constant 0 : i32
    return %arg0, %c0_i32, %c0_i32_0 : i32, i32, i32
  }
  func.func @transform_4(%arg0: i32) -> (i32, i32, i32) {
    %c0_i32 = arith.constant 0 : i32
    %c0_i32_0 = arith.constant 0 : i32
    %c0_i32_1 = arith.constant 0 : i32
    return %arg0, %c0_i32, %c0_i32_0 : i32, i32, i32
  }
}

module attributes {stable_mosaic.version = 11 : i64} {
  func.func @_bn_relu_kernel(%arg0: i32, %arg1: memref<1x256x128xbf16, #tpu.memory_space<vmem>>, %arg2: memref<1x128xf32, #tpu.memory_space<vmem>>, %arg3: memref<1x128xf32, #tpu.memory_space<vmem>>, %arg4: memref<1x256x128xbf16, #tpu.memory_space<vmem>>) attributes {dimension_semantics = [#tpu.dimension_semantics<parallel>], iteration_bounds = array<i64: 2>, scalar_prefetch = 0 : i64, scratch_operands = 0 : i64, tpu.core_type = #tpu.core_type<tc>, window_params = [{transform_indices = @transform_0, window_bounds = array<i64: 1, 256, 128>}, {pipeline_mode = #tpu.pipeline_mode<synchronous>, transform_indices = @transform_1, window_bounds = array<i64: 1, 128>}, {pipeline_mode = #tpu.pipeline_mode<synchronous>, transform_indices = @transform_2, window_bounds = array<i64: 1, 128>}, {transform_indices = @transform_3, window_bounds = array<i64: 1, 256, 128>}]} {
    %c0 = arith.constant 0 : index
    %c0_0 = arith.constant 0 : index
    %c0_1 = arith.constant 0 : index
    %0 = vector.load %arg1[%c0, %c0_0, %c0_1] : memref<1x256x128xbf16, #tpu.memory_space<vmem>>, vector<1x256x128xbf16>
    %1 = arith.extf %0 : vector<1x256x128xbf16> to vector<1x256x128xf32>
    %c0_2 = arith.constant 0 : index
    %c0_3 = arith.constant 0 : index
    %2 = vector.load %arg2[%c0_2, %c0_3] : memref<1x128xf32, #tpu.memory_space<vmem>>, vector<1x128xf32>
    %3 = vector.shape_cast %2 : vector<1x128xf32> to vector<1x1x128xf32>
    %4 = vector.broadcast %3 : vector<1x1x128xf32> to vector<1x256x128xf32>
    %5 = arith.mulf %1, %4 : vector<1x256x128xf32>
    %c0_4 = arith.constant 0 : index
    %c0_5 = arith.constant 0 : index
    %6 = vector.load %arg3[%c0_4, %c0_5] : memref<1x128xf32, #tpu.memory_space<vmem>>, vector<1x128xf32>
    %7 = vector.shape_cast %6 : vector<1x128xf32> to vector<1x1x128xf32>
    %8 = vector.broadcast %7 : vector<1x1x128xf32> to vector<1x256x128xf32>
    %9 = arith.addf %5, %8 : vector<1x256x128xf32>
    %cst = arith.constant 0.000000e+00 : f32
    %10 = vector.broadcast %cst : f32 to vector<1x256x128xf32>
    %11 = arith.maximumf %9, %10 : vector<1x256x128xf32>
    %12 = arith.truncf %11 : vector<1x256x128xf32> to vector<1x256x128xbf16>
    %c0_6 = arith.constant 0 : index
    %c0_7 = arith.constant 0 : index
    %c0_8 = arith.constant 0 : index
    %13 = vector.load %arg4[%c0_6, %c0_7, %c0_8] : memref<1x256x128xbf16, #tpu.memory_space<vmem>>, vector<1x256x128xbf16>
    tpu.vector_store %arg4[%c0_6, %c0_7, %c0_8], %12 {strides = array<i32>} : memref<1x256x128xbf16, #tpu.memory_space<vmem>>, vector<1x256x128xbf16>,
    return
  }
  func.func @transform_0(%arg0: i32) -> (i32, i32, i32) {
    %c0_i32 = arith.constant 0 : i32
    %c0_i32_0 = arith.constant 0 : i32
    %c0_i32_1 = arith.constant 0 : i32
    return %arg0, %c0_i32, %c0_i32_0 : i32, i32, i32
  }
  func.func @transform_1(%arg0: i32) -> (i32, i32) {
    %c0_i32 = arith.constant 0 : i32
    %c0_i32_0 = arith.constant 0 : i32
    %c0_i32_1 = arith.constant 0 : i32
    return %c0_i32, %c0_i32_0 : i32, i32
  }
  func.func @transform_2(%arg0: i32) -> (i32, i32) {
    %c0_i32 = arith.constant 0 : i32
    %c0_i32_0 = arith.constant 0 : i32
    %c0_i32_1 = arith.constant 0 : i32
    return %c0_i32, %c0_i32_0 : i32, i32
  }
  func.func @transform_3(%arg0: i32) -> (i32, i32, i32) {
    %c0_i32 = arith.constant 0 : i32
    %c0_i32_0 = arith.constant 0 : i32
    %c0_i32_1 = arith.constant 0 : i32
    return %arg0, %c0_i32, %c0_i32_0 : i32, i32, i32
  }
}

module attributes {stable_mosaic.version = 11 : i64} {
  func.func @_bn_relu_conv_stats_kernel(%arg0: i32, %arg1: memref<1x256x128xbf16, #tpu.memory_space<vmem>>, %arg2: memref<1x128xf32, #tpu.memory_space<vmem>>, %arg3: memref<1x128xf32, #tpu.memory_space<vmem>>, %arg4: memref<9x128x128xbf16, #tpu.memory_space<vmem>>, %arg5: memref<1x256x128xbf16, #tpu.memory_space<vmem>>, %arg6: memref<1x1x128xf32, #tpu.memory_space<vmem>>, %arg7: memref<1x1x128xf32, #tpu.memory_space<vmem>>, %arg8: memref<1x18x18x128xbf16, #tpu.memory_space<vmem>>) attributes {dimension_semantics = [#tpu.dimension_semantics<parallel>], iteration_bounds = array<i64: 2>, scalar_prefetch = 0 : i64, scratch_operands = 1 : i64, tpu.core_type = #tpu.core_type<tc>, window_params = [{transform_indices = @transform_0, window_bounds = array<i64: 1, 256, 128>}, {pipeline_mode = #tpu.pipeline_mode<synchronous>, transform_indices = @transform_1, window_bounds = array<i64: 1, 128>}, {pipeline_mode = #tpu.pipeline_mode<synchronous>, transform_indices = @transform_2, window_bounds = array<i64: 1, 128>}, {pipeline_mode = #tpu.pipeline_mode<synchronous>, transform_indices = @transform_3, window_bounds = array<i64: 9, 128, 128>}, {transform_indices = @transform_4, window_bounds = array<i64: 1, 256, 128>}, {transform_indices = @transform_5, window_bounds = array<i64: 1, 1, 128>}, {transform_indices = @transform_6, window_bounds = array<i64: 1, 1, 128>}]} {
    %c0 = arith.constant 0 : index
    %c0_0 = arith.constant 0 : index
    %c0_1 = arith.constant 0 : index
    %0 = vector.load %arg1[%c0, %c0_0, %c0_1] : memref<1x256x128xbf16, #tpu.memory_space<vmem>>, vector<1x256x128xbf16>
    %1 = arith.extf %0 : vector<1x256x128xbf16> to vector<1x256x128xf32>
    %c0_2 = arith.constant 0 : index
    %c0_3 = arith.constant 0 : index
    %2 = vector.load %arg2[%c0_2, %c0_3] : memref<1x128xf32, #tpu.memory_space<vmem>>, vector<1x128xf32>
    %3 = vector.shape_cast %2 : vector<1x128xf32> to vector<1x1x128xf32>
    %4 = vector.broadcast %3 : vector<1x1x128xf32> to vector<1x256x128xf32>
    %5 = arith.mulf %1, %4 : vector<1x256x128xf32>
    %c0_4 = arith.constant 0 : index
    %c0_5 = arith.constant 0 : index
    %6 = vector.load %arg3[%c0_4, %c0_5] : memref<1x128xf32, #tpu.memory_space<vmem>>, vector<1x128xf32>
    %7 = vector.shape_cast %6 : vector<1x128xf32> to vector<1x1x128xf32>
    %8 = vector.broadcast %7 : vector<1x1x128xf32> to vector<1x256x128xf32>
    %9 = arith.addf %5, %8 : vector<1x256x128xf32>
    %cst = arith.constant 0.000000e+00 : f32
    %10 = vector.broadcast %cst : f32 to vector<1x256x128xf32>
    %11 = arith.maximumf %9, %10 : vector<1x256x128xf32>
    %12 = arith.truncf %11 : vector<1x256x128xf32> to vector<1x256x128xbf16>
    %cst_6 = arith.constant 0.000000e+00 : bf16
    %13 = vector.broadcast %cst_6 : bf16 to vector<1x1x18x128xbf16>
    %c0_7 = arith.constant 0 : index
    %c0_8 = arith.constant 0 : index
    %c0_9 = arith.constant 0 : index
    %c0_10 = arith.constant 0 : index
    %14 = vector.load %arg8[%c0_7, %c0_8, %c0_9, %c0_10] : memref<1x18x18x128xbf16, #tpu.memory_space<vmem>>, vector<1x1x18x128xbf16>
    tpu.vector_store %arg8[%c0_7, %c0_8, %c0_9, %c0_10], %13 {strides = array<i32>} : memref<1x18x18x128xbf16, #tpu.memory_space<vmem>>, vector<1x1x18x128xbf16>,
    %c0_11 = arith.constant 0 : index
    %c17 = arith.constant 17 : index
    %c0_12 = arith.constant 0 : index
    %c0_13 = arith.constant 0 : index
    %15 = vector.load %arg8[%c0_11, %c17, %c0_12, %c0_13] : memref<1x18x18x128xbf16, #tpu.memory_space<vmem>>, vector<1x1x18x128xbf16>
    tpu.vector_store %arg8[%c0_11, %c17, %c0_12, %c0_13], %13 {strides = array<i32>} : memref<1x18x18x128xbf16, #tpu.memory_space<vmem>>, vector<1x1x18x128xbf16>,
    %cst_14 = arith.constant 0.000000e+00 : bf16
    %16 = vector.broadcast %cst_14 : bf16 to vector<1x16x1x128xbf16>
    %c0_15 = arith.constant 0 : index
    %c1 = arith.constant 1 : index
    %c0_16 = arith.constant 0 : index
    %c0_17 = arith.constant 0 : index
    %17 = vector.load %arg8[%c0_15, %c1, %c0_16, %c0_17] : memref<1x18x18x128xbf16, #tpu.memory_space<vmem>>, vector<1x16x1x128xbf16>
    tpu.vector_store %arg8[%c0_15, %c1, %c0_16, %c0_17], %16 {strides = array<i32>} : memref<1x18x18x128xbf16, #tpu.memory_space<vmem>>, vector<1x16x1x128xbf16>,
    %c0_18 = arith.constant 0 : index
    %c1_19 = arith.constant 1 : index
    %c17_20 = arith.constant 17 : index
    %c0_21 = arith.constant 0 : index
    %18 = vector.load %arg8[%c0_18, %c1_19, %c17_20, %c0_21] : memref<1x18x18x128xbf16, #tpu.memory_space<vmem>>, vector<1x16x1x128xbf16>
    tpu.vector_store %arg8[%c0_18, %c1_19, %c17_20, %c0_21], %16 {strides = array<i32>} : memref<1x18x18x128xbf16, #tpu.memory_space<vmem>>, vector<1x16x1x128xbf16>,
    %19 = vector.shape_cast %12 : vector<1x256x128xbf16> to vector<1x16x16x128xbf16>
    %c0_22 = arith.constant 0 : index
    %c1_23 = arith.constant 1 : index
    %c1_24 = arith.constant 1 : index
    %c0_25 = arith.constant 0 : index
    %20 = vector.load %arg8[%c0_22, %c1_23, %c1_24, %c0_25] : memref<1x18x18x128xbf16, #tpu.memory_space<vmem>>, vector<1x16x16x128xbf16>
    tpu.vector_store %arg8[%c0_22, %c1_23, %c1_24, %c0_25], %19 {strides = array<i32>} : memref<1x18x18x128xbf16, #tpu.memory_space<vmem>>, vector<1x16x16x128xbf16>,
    %c0_26 = arith.constant 0 : index
    %c0_27 = arith.constant 0 : index
    %c0_28 = arith.constant 0 : index
    %c0_29 = arith.constant 0 : index
    %21 = vector.load %arg8[%c0_26, %c0_27, %c0_28, %c0_29] : memref<1x18x18x128xbf16, #tpu.memory_space<vmem>>, vector<1x16x16x128xbf16>
    %22 = vector.shape_cast %21 : vector<1x16x16x128xbf16> to vector<256x128xbf16>
    %c0_30 = arith.constant 0 : index
    %c0_31 = arith.constant 0 : index
    %c0_32 = arith.constant 0 : index
    %23 = vector.load %arg4[%c0_30, %c0_31, %c0_32] : memref<9x128x128xbf16, #tpu.memory_space<vmem>>, vector<1x128x128xbf16>
    %24 = vector.shape_cast %23 : vector<1x128x128xbf16> to vector<128x128xbf16>
    %cst_33 = arith.constant dense<0.000000e+00> : vector<256x128xf32>
    %25 = tpu.matmul %22, %24, %cst_33 {dimension_numbers = #tpu.dot_dimension_numbers<[1], [0], [0], [1], [0, 0, 1, 1], [], []>} : vector<256x128xbf16>, vector<128x128xbf16>, vector<256x128xf32> -> vector<256x128xf32>
    %c0_34 = arith.constant 0 : index
    %c0_35 = arith.constant 0 : index
    %c1_36 = arith.constant 1 : index
    %c0_37 = arith.constant 0 : index
    %26 = vector.load %arg8[%c0_34, %c0_35, %c1_36, %c0_37] : memref<1x18x18x128xbf16, #tpu.memory_space<vmem>>, vector<1x16x16x128xbf16>
    %27 = vector.shape_cast %26 : vector<1x16x16x128xbf16> to vector<256x128xbf16>
    %c1_38 = arith.constant 1 : index
    %c0_39 = arith.constant 0 : index
    %c0_40 = arith.constant 0 : index
    %28 = vector.load %arg4[%c1_38, %c0_39, %c0_40] : memref<9x128x128xbf16, #tpu.memory_space<vmem>>, vector<1x128x128xbf16>
    %29 = vector.shape_cast %28 : vector<1x128x128xbf16> to vector<128x128xbf16>
    %cst_41 = arith.constant dense<0.000000e+00> : vector<256x128xf32>
    %30 = tpu.matmul %27, %29, %cst_41 {dimension_numbers = #tpu.dot_dimension_numbers<[1], [0], [0], [1], [0, 0, 1, 1], [], []>} : vector<256x128xbf16>, vector<128x128xbf16>, vector<256x128xf32> -> vector<256x128xf32>
    %31 = arith.addf %25, %30 : vector<256x128xf32>
    %c0_42 = arith.constant 0 : index
    %c0_43 = arith.constant 0 : index
    %c2 = arith.constant 2 : index
    %c0_44 = arith.constant 0 : index
    %32 = vector.load %arg8[%c0_42, %c0_43, %c2, %c0_44] : memref<1x18x18x128xbf16, #tpu.memory_space<vmem>>, vector<1x16x16x128xbf16>
    %33 = vector.shape_cast %32 : vector<1x16x16x128xbf16> to vector<256x128xbf16>
    %c2_45 = arith.constant 2 : index
    %c0_46 = arith.constant 0 : index
    %c0_47 = arith.constant 0 : index
    %34 = vector.load %arg4[%c2_45, %c0_46, %c0_47] : memref<9x128x128xbf16, #tpu.memory_space<vmem>>, vector<1x128x128xbf16>
    %35 = vector.shape_cast %34 : vector<1x128x128xbf16> to vector<128x128xbf16>
    %cst_48 = arith.constant dense<0.000000e+00> : vector<256x128xf32>
    %36 = tpu.matmul %33, %35, %cst_48 {dimension_numbers = #tpu.dot_dimension_numbers<[1], [0], [0], [1], [0, 0, 1, 1], [], []>} : vector<256x128xbf16>, vector<128x128xbf16>, vector<256x128xf32> -> vector<256x128xf32>
    %37 = arith.addf %31, %36 : vector<256x128xf32>
    %c0_49 = arith.constant 0 : index
    %c1_50 = arith.constant 1 : index
    %c0_51 = arith.constant 0 : index
    %c0_52 = arith.constant 0 : index
    %38 = vector.load %arg8[%c0_49, %c1_50, %c0_51, %c0_52] : memref<1x18x18x128xbf16, #tpu.memory_space<vmem>>, vector<1x16x16x128xbf16>
    %39 = vector.shape_cast %38 : vector<1x16x16x128xbf16> to vector<256x128xbf16>
    %c3 = arith.constant 3 : index
    %c0_53 = arith.constant 0 : index
    %c0_54 = arith.constant 0 : index
    %40 = vector.load %arg4[%c3, %c0_53, %c0_54] : memref<9x128x128xbf16, #tpu.memory_space<vmem>>, vector<1x128x128xbf16>
    %41 = vector.shape_cast %40 : vector<1x128x128xbf16> to vector<128x128xbf16>
    %cst_55 = arith.constant dense<0.000000e+00> : vector<256x128xf32>
    %42 = tpu.matmul %39, %41, %cst_55 {dimension_numbers = #tpu.dot_dimension_numbers<[1], [0], [0], [1], [0, 0, 1, 1], [], []>} : vector<256x128xbf16>, vector<128x128xbf16>, vector<256x128xf32> -> vector<256x128xf32>
    %43 = arith.addf %37, %42 : vector<256x128xf32>
    %c0_56 = arith.constant 0 : index
    %c1_57 = arith.constant 1 : index
    %c1_58 = arith.constant 1 : index
    %c0_59 = arith.constant 0 : index
    %44 = vector.load %arg8[%c0_56, %c1_57, %c1_58, %c0_59] : memref<1x18x18x128xbf16, #tpu.memory_space<vmem>>, vector<1x16x16x128xbf16>
    %45 = vector.shape_cast %44 : vector<1x16x16x128xbf16> to vector<256x128xbf16>
    %c4 = arith.constant 4 : index
    %c0_60 = arith.constant 0 : index
    %c0_61 = arith.constant 0 : index
    %46 = vector.load %arg4[%c4, %c0_60, %c0_61] : memref<9x128x128xbf16, #tpu.memory_space<vmem>>, vector<1x128x128xbf16>
    %47 = vector.shape_cast %46 : vector<1x128x128xbf16> to vector<128x128xbf16>
    %cst_62 = arith.constant dense<0.000000e+00> : vector<256x128xf32>
    %48 = tpu.matmul %45, %47, %cst_62 {dimension_numbers = #tpu.dot_dimension_numbers<[1], [0], [0], [1], [0, 0, 1, 1], [], []>} : vector<256x128xbf16>, vector<128x128xbf16>, vector<256x128xf32> -> vector<256x128xf32>
    %49 = arith.addf %43, %48 : vector<256x128xf32>
    %c0_63 = arith.constant 0 : index
    %c1_64 = arith.constant 1 : index
    %c2_65 = arith.constant 2 : index
    %c0_66 = arith.constant 0 : index
    %50 = vector.load %arg8[%c0_63, %c1_64, %c2_65, %c0_66] : memref<1x18x18x128xbf16, #tpu.memory_space<vmem>>, vector<1x16x16x128xbf16>
    %51 = vector.shape_cast %50 : vector<1x16x16x128xbf16> to vector<256x128xbf16>
    %c5 = arith.constant 5 : index
    %c0_67 = arith.constant 0 : index
    %c0_68 = arith.constant 0 : index
    %52 = vector.load %arg4[%c5, %c0_67, %c0_68] : memref<9x128x128xbf16, #tpu.memory_space<vmem>>, vector<1x128x128xbf16>
    %53 = vector.shape_cast %52 : vector<1x128x128xbf16> to vector<128x128xbf16>
    %cst_69 = arith.constant dense<0.000000e+00> : vector<256x128xf32>
    %54 = tpu.matmul %51, %53, %cst_69 {dimension_numbers = #tpu.dot_dimension_numbers<[1], [0], [0], [1], [0, 0, 1, 1], [], []>} : vector<256x128xbf16>, vector<128x128xbf16>, vector<256x128xf32> -> vector<256x128xf32>
    %55 = arith.addf %49, %54 : vector<256x128xf32>
    %c0_70 = arith.constant 0 : index
    %c2_71 = arith.constant 2 : index
    %c0_72 = arith.constant 0 : index
    %c0_73 = arith.constant 0 : index
    %56 = vector.load %arg8[%c0_70, %c2_71, %c0_72, %c0_73] : memref<1x18x18x128xbf16, #tpu.memory_space<vmem>>, vector<1x16x16x128xbf16>
    %57 = vector.shape_cast %56 : vector<1x16x16x128xbf16> to vector<256x128xbf16>
    %c6 = arith.constant 6 : index
    %c0_74 = arith.constant 0 : index
    %c0_75 = arith.constant 0 : index
    %58 = vector.load %arg4[%c6, %c0_74, %c0_75] : memref<9x128x128xbf16, #tpu.memory_space<vmem>>, vector<1x128x128xbf16>
    %59 = vector.shape_cast %58 : vector<1x128x128xbf16> to vector<128x128xbf16>
    %cst_76 = arith.constant dense<0.000000e+00> : vector<256x128xf32>
    %60 = tpu.matmul %57, %59, %cst_76 {dimension_numbers = #tpu.dot_dimension_numbers<[1], [0], [0], [1], [0, 0, 1, 1], [], []>} : vector<256x128xbf16>, vector<128x128xbf16>, vector<256x128xf32> -> vector<256x128xf32>
    %61 = arith.addf %55, %60 : vector<256x128xf32>
    %c0_77 = arith.constant 0 : index
    %c2_78 = arith.constant 2 : index
    %c1_79 = arith.constant 1 : index
    %c0_80 = arith.constant 0 : index
    %62 = vector.load %arg8[%c0_77, %c2_78, %c1_79, %c0_80] : memref<1x18x18x128xbf16, #tpu.memory_space<vmem>>, vector<1x16x16x128xbf16>
    %63 = vector.shape_cast %62 : vector<1x16x16x128xbf16> to vector<256x128xbf16>
    %c7 = arith.constant 7 : index
    %c0_81 = arith.constant 0 : index
    %c0_82 = arith.constant 0 : index
    %64 = vector.load %arg4[%c7, %c0_81, %c0_82] : memref<9x128x128xbf16, #tpu.memory_space<vmem>>, vector<1x128x128xbf16>
    %65 = vector.shape_cast %64 : vector<1x128x128xbf16> to vector<128x128xbf16>
    %cst_83 = arith.constant dense<0.000000e+00> : vector<256x128xf32>
    %66 = tpu.matmul %63, %65, %cst_83 {dimension_numbers = #tpu.dot_dimension_numbers<[1], [0], [0], [1], [0, 0, 1, 1], [], []>} : vector<256x128xbf16>, vector<128x128xbf16>, vector<256x128xf32> -> vector<256x128xf32>
    %67 = arith.addf %61, %66 : vector<256x128xf32>
    %c0_84 = arith.constant 0 : index
    %c2_85 = arith.constant 2 : index
    %c2_86 = arith.constant 2 : index
    %c0_87 = arith.constant 0 : index
    %68 = vector.load %arg8[%c0_84, %c2_85, %c2_86, %c0_87] : memref<1x18x18x128xbf16, #tpu.memory_space<vmem>>, vector<1x16x16x128xbf16>
    %69 = vector.shape_cast %68 : vector<1x16x16x128xbf16> to vector<256x128xbf16>
    %c8 = arith.constant 8 : index
    %c0_88 = arith.constant 0 : index
    %c0_89 = arith.constant 0 : index
    %70 = vector.load %arg4[%c8, %c0_88, %c0_89] : memref<9x128x128xbf16, #tpu.memory_space<vmem>>, vector<1x128x128xbf16>
    %71 = vector.shape_cast %70 : vector<1x128x128xbf16> to vector<128x128xbf16>
    %cst_90 = arith.constant dense<0.000000e+00> : vector<256x128xf32>
    %72 = tpu.matmul %69, %71, %cst_90 {dimension_numbers = #tpu.dot_dimension_numbers<[1], [0], [0], [1], [0, 0, 1, 1], [], []>} : vector<256x128xbf16>, vector<128x128xbf16>, vector<256x128xf32> -> vector<256x128xf32>
    %73 = arith.addf %67, %72 : vector<256x128xf32>
    %74 = vector.shape_cast %73 : vector<256x128xf32> to vector<1x256x128xf32>
    %75 = arith.truncf %74 : vector<1x256x128xf32> to vector<1x256x128xbf16>
    %c0_91 = arith.constant 0 : index
    %c0_92 = arith.constant 0 : index
    %c0_93 = arith.constant 0 : index
    %76 = vector.load %arg5[%c0_91, %c0_92, %c0_93] : memref<1x256x128xbf16, #tpu.memory_space<vmem>>, vector<1x256x128xbf16>
    tpu.vector_store %arg5[%c0_91, %c0_92, %c0_93], %75 {strides = array<i32>} : memref<1x256x128xbf16, #tpu.memory_space<vmem>>, vector<1x256x128xbf16>,
    %cst_94 = arith.constant dense<0.000000e+00> : vector<128xf32>
    %77 = vector.multi_reduction <add>, %73, %cst_94 [0] : vector<256x128xf32> to vector<128xf32>
    %78 = vector.shape_cast %77 : vector<128xf32> to vector<1x1x128xf32>
    %c0_95 = arith.constant 0 : index
    %c0_96 = arith.constant 0 : index
    %c0_97 = arith.constant 0 : index
    %79 = vector.load %arg6[%c0_95, %c0_96, %c0_97] : memref<1x1x128xf32, #tpu.memory_space<vmem>>, vector<1x1x128xf32>
    tpu.vector_store %arg6[%c0_95, %c0_96, %c0_97], %78 {strides = array<i32>} : memref<1x1x128xf32, #tpu.memory_space<vmem>>, vector<1x1x128xf32>,
    %80 = arith.mulf %73, %73 : vector<256x128xf32>
    %cst_98 = arith.constant dense<0.000000e+00> : vector<128xf32>
    %81 = vector.multi_reduction <add>, %80, %cst_98 [0] : vector<256x128xf32> to vector<128xf32>
    %82 = vector.shape_cast %81 : vector<128xf32> to vector<1x1x128xf32>
    %c0_99 = arith.constant 0 : index
    %c0_100 = arith.constant 0 : index
    %c0_101 = arith.constant 0 : index
    %83 = vector.load %arg7[%c0_99, %c0_100, %c0_101] : memref<1x1x128xf32, #tpu.memory_space<vmem>>, vector<1x1x128xf32>
    tpu.vector_store %arg7[%c0_99, %c0_100, %c0_101], %82 {strides = array<i32>} : memref<1x1x128xf32, #tpu.memory_space<vmem>>, vector<1x1x128xf32>,
    return
  }
  func.func @transform_0(%arg0: i32) -> (i32, i32, i32) {
    %c0_i32 = arith.constant 0 : i32
    %c0_i32_0 = arith.constant 0 : i32
    %c0_i32_1 = arith.constant 0 : i32
    return %arg0, %c0_i32, %c0_i32_0 : i32, i32, i32
  }
  func.func @transform_1(%arg0: i32) -> (i32, i32) {
    %c0_i32 = arith.constant 0 : i32
    %c0_i32_0 = arith.constant 0 : i32
    %c0_i32_1 = arith.constant 0 : i32
    return %c0_i32, %c0_i32_0 : i32, i32
  }
  func.func @transform_2(%arg0: i32) -> (i32, i32) {
    %c0_i32 = arith.constant 0 : i32
    %c0_i32_0 = arith.constant 0 : i32
    %c0_i32_1 = arith.constant 0 : i32
    return %c0_i32, %c0_i32_0 : i32, i32
  }
  func.func @transform_3(%arg0: i32) -> (i32, i32, i32) {
    %c0_i32 = arith.constant 0 : i32
    %c0_i32_0 = arith.constant 0 : i32
    %c0_i32_1 = arith.constant 0 : i32
    %c0_i32_2 = arith.constant 0 : i32
    return %c0_i32, %c0_i32_0, %c0_i32_1 : i32, i32, i32
  }
  func.func @transform_4(%arg0: i32) -> (i32, i32, i32) {
    %c0_i32 = arith.constant 0 : i32
    %c0_i32_0 = arith.constant 0 : i32
    %c0_i32_1 = arith.constant 0 : i32
    return %arg0, %c0_i32, %c0_i32_0 : i32, i32, i32
  }
  func.func @transform_5(%arg0: i32) -> (i32, i32, i32) {
    %c0_i32 = arith.constant 0 : i32
    %c0_i32_0 = arith.constant 0 : i32
    %c0_i32_1 = arith.constant 0 : i32
    return %arg0, %c0_i32, %c0_i32_0 : i32, i32, i32
  }
  func.func @transform_6(%arg0: i32) -> (i32, i32, i32) {
    %c0_i32 = arith.constant 0 : i32
    %c0_i32_0 = arith.constant 0 : i32
    %c0_i32_1 = arith.constant 0 : i32
    return %arg0, %c0_i32, %c0_i32_0 : i32, i32, i32
  }
}

</mosaic_0001>

<llo_original>
// kernel: decoder_bottleneck_layer.5
$region0: #{decoder_bottleneck_layer.5}
  #allocation0 [shape = 'u32[]', space=smem, size = 0x4, offset = 0x4, fixed_abs, tag = 'smem constant byte address 0x4 - core index']
  #allocation1 [shape = 'u32[72,128]{1,0:T(1,128)}', space=vmem, size = 0x9000, scoped, tag = 'internal scratch']
  %s0 = inlined_call_operand.vmem [shape: bf16[2,256,128], index: 0, kind: input, shape index: {}, may-alias: {0,3}]
  %s1 = inlined_call_operand.vmem [shape: f32[1,128], index: 1, kind: input, shape index: {}]
  %s2 = inlined_call_operand.vmem [shape: f32[1,128], index: 2, kind: input, shape index: {}]
  %s3 = inlined_call_operand.vmem [shape: bf16[2,256,128], index: 3, kind: output, shape index: {}, may-alias: {0,3}]
  %s4 = sld [smem:[#allocation0]]
  $region45: #{decoder_bottleneck_layer.5} parent=0
    _
  %s6 = ssub.s32 1, %s4
  %s7 = scalar_select 0, %s6, %s4
  loop: start=0, step=1, limit=4
  $region2: #{decoder_bottleneck_layer.5} parent=0 // loop_pre_header
    _
  $region3: #{decoder_bottleneck_layer.5} parent=0 // loop_header
    %s9 = sphi 0, %s13
    %p10 = scmp.ge.s32.totalorder %s9, 4
    %s19 = sphi 0, %s21
    %s22 = sphi 0, %s19
    %s23 = sphi 0, %s22
    %s39 = sphi 0, %s23
    %s43 = sphi 0, %s43
    %s45 = sphi 0, %s43
    %s46 = sphi 0, %s45
    %s60 = sphi 0, %s46
    %s64 = sphi 0, %s64
    %s66 = sphi 0, %s64
    %s67 = sphi 0, %s66
    %s81 = sphi 0, %s67
    %s87 = sphi 0, %s89
    %s90 = sphi 0, %s87
    %s91 = sphi 0, %s90
    %s107 = sphi 0, %s91
  $region4: #{decoder_bottleneck_layer.5} parent=0 // loop_header_branch
    %12 = sbr.rel (%p10) target = $region8
  $region5: #{decoder_bottleneck_layer.5} parent=0 // loop_body
    %s14 = ssub.s32 %s9, 1
    %s15 = ssub.s32 %s9, 2
    %s16 = sadd.s32 %s9, 1
    %s17 = ssub.s32 %s9, %s16
    %p18 = scmp.eq.s32.totalorder %s17, 0
    %s20 = sadd.s32 %s19, 1
    %s21 = scalar_select %p18, %s19, %s20
    %p24 = pneg %p18
    %p25 = scmp.eq.s32.totalorder %s9, 1
    %p26 = por %p24, %p25
    %p27 = scmp.ne.s32.totalorder %s19, %s22
    %p28 = scmp.eq.s32.totalorder %s9, 0
    %p29 = por %p27, %p28
    %p30 = scmp.ne.s32.totalorder %s19, %s22
    %p31 = scmp.eq.s32.totalorder %s14, 1
    %p32 = por %p30, %p31
    %p33 = scmp.ne.s32.totalorder %s22, %s23
    %p34 = scmp.eq.s32.totalorder %s14, 0
    %p35 = por %p33, %p34
    %p36 = scmp.ne.s32.totalorder %s22, %s23
    %p37 = scmp.eq.s32.totalorder %s15, 1
    %p38 = por %p36, %p37
    %p40 = scmp.ne.s32.totalorder %s23, %s39
    %p41 = scmp.eq.s32.totalorder %s15, 0
    %p42 = por %p40, %p41
    %s44 = sadd.s32 %s43, 1
    %p47 = scmp.eq.s32.totalorder %s9, 1
    %p48 = scmp.ne.s32.totalorder %s43, %s45
    %p49 = scmp.eq.s32.totalorder %s9, 0
    %p50 = por %p48, %p49
    %p51 = scmp.ne.s32.totalorder %s43, %s45
    %p52 = scmp.eq.s32.totalorder %s14, 1
    %p53 = por %p51, %p52
    %p54 = scmp.ne.s32.totalorder %s45, %s46
    %p55 = scmp.eq.s32.totalorder %s14, 0
    %p56 = por %p54, %p55
    %p57 = scmp.ne.s32.totalorder %s45, %s46
    %p58 = scmp.eq.s32.totalorder %s15, 1
    %p59 = por %p57, %p58
    %p61 = scmp.ne.s32.totalorder %s46, %s60
    %p62 = scmp.eq.s32.totalorder %s15, 0
    %p63 = por %p61, %p62
    %s65 = sadd.s32 %s64, 1
    %p68 = scmp.eq.s32.totalorder %s9, 1
    %p69 = scmp.ne.s32.totalorder %s64, %s66
    %p70 = scmp.eq.s32.totalorder %s9, 0
    %p71 = por %p69, %p70
    %p72 = scmp.ne.s32.totalorder %s64, %s66
    %p73 = scmp.eq.s32.totalorder %s14, 1
    %p74 = por %p72, %p73
    %p75 = scmp.ne.s32.totalorder %s66, %s67
    %p76 = scmp.eq.s32.totalorder %s14, 0
    %p77 = por %p75, %p76
    %p78 = scmp.ne.s32.totalorder %s66, %s67
    %p79 = scmp.eq.s32.totalorder %s15, 1
    %p80 = por %p78, %p79
    %p82 = scmp.ne.s32.totalorder %s67, %s81
    %p83 = scmp.eq.s32.totalorder %s15, 0
    %p84 = por %p82, %p83
    %s85 = ssub.s32 %s9, %s16
    %p86 = scmp.eq.s32.totalorder %s85, 0
    %s88 = sadd.s32 %s87, 1
    %s89 = scalar_select %p86, %s87, %s88
    %p92 = pneg %p86
    %p93 = scmp.eq.s32.totalorder %s9, 1
    %p94 = por %p92, %p93
    %p95 = scmp.ne.s32.totalorder %s87, %s90
    %p96 = scmp.eq.s32.totalorder %s9, 0
    %p97 = por %p95, %p96
    %p98 = scmp.ne.s32.totalorder %s87, %s90
    %p99 = scmp.eq.s32.totalorder %s14, 1
    %p100 = por %p98, %p99
    %p101 = scmp.ne.s32.totalorder %s90, %s91
    %p102 = scmp.eq.s32.totalorder %s14, 0
    %p103 = por %p101, %p102
    %p104 = scmp.ne.s32.totalorder %s90, %s91
    %p105 = scmp.eq.s32.totalorder %s15, 1
    %p106 = por %p104, %p105
    %p108 = scmp.ne.s32.totalorder %s91, %s107
    %p109 = scmp.eq.s32.totalorder %s15, 0
    %p110 = por %p108, %p109
    %p111 = scmp.le.s32.totalorder 1, %s9
    %p112 = scmp.lt.s32.totalorder %s9, 3
    %p113 = pnand %p111, %p112
    %p114 = pneg %p113
    // Predicated region
    $region9: #{decoder_bottleneck_layer.5} parent=5 // pred_check
      _
    $region10: #{decoder_bottleneck_layer.5} parent=5 // pred_check_branch
      %116 = sbr.rel (%p113) target = $region12
    $region11: #{decoder_bottleneck_layer.5} parent=5 // pred_region
      %s117 = ssub.s32 %s9, 1
      // Predicated region
      $region13: #{decoder_bottleneck_layer.5} parent=11 // pred_check
        %p118 = pneg %p56
      $region14: #{decoder_bottleneck_layer.5} parent=11 // pred_check_branch
        %120 = sbr.rel (%p118) target = $region16
      $region15: #{decoder_bottleneck_layer.5} parent=11 // pred_region
        _
      $region16: #{decoder_bottleneck_layer.5} parent=11 // pred_fallthru
        _
      // Predicated region
      $region17: #{decoder_bottleneck_layer.5} parent=11 // pred_check
        %p121 = pneg %p77
      $region18: #{decoder_bottleneck_layer.5} parent=11 // pred_check_branch
        %123 = sbr.rel (%p121) target = $region20
      $region19: #{decoder_bottleneck_layer.5} parent=11 // pred_region
        _
      $region20: #{decoder_bottleneck_layer.5} parent=11 // pred_fallthru
        _
    $region12: #{decoder_bottleneck_layer.5} parent=5 // pred_fallthru
      _
    %p124 = scmp.lt.s32.totalorder %s9, 2
    // Predicated region
    $region21: #{decoder_bottleneck_layer.5} parent=5 // pred_check
      %p125 = pneg %p124
    $region22: #{decoder_bottleneck_layer.5} parent=5 // pred_check_branch
      %127 = sbr.rel (%p125) target = $region24
    $region23: #{decoder_bottleneck_layer.5} parent=5 // pred_region
      // Predicated region
      $region25: #{decoder_bottleneck_layer.5} parent=23 // pred_check
        %p128 = pneg %p29
      $region26: #{decoder_bottleneck_layer.5} parent=23 // pred_check_branch
        %130 = sbr.rel (%p128) target = $region28
      $region27: #{decoder_bottleneck_layer.5} parent=23 // pred_region
        %p131 = scmp.lt.s32.totalorder %s9, 1
        %s132 = scalar_select %p131, %s9, 1
        %s133 = smul.addr %s132, 32
        %s134 = smul.addr %s133, 4
        %s135 = scalar_lea.vmem %s0, %s134
      $region28: #{decoder_bottleneck_layer.5} parent=23 // pred_fallthru
        _
    $region24: #{decoder_bottleneck_layer.5} parent=5 // pred_fallthru
      _
    %p136 = scmp.le.s32.totalorder 1, %s9
    %p137 = scmp.lt.s32.totalorder %s9, 3
    %p138 = pnand %p136, %p137
    %p139 = pneg %p138
    // Predicated region
    $region29: #{decoder_bottleneck_layer.5} parent=5 // pred_check
      _
    $region30: #{decoder_bottleneck_layer.5} parent=5 // pred_check_branch
      %141 = sbr.rel (%p138) target = $region32
    $region31: #{decoder_bottleneck_layer.5} parent=5 // pred_region
      %s142 = ssub.s32 %s9, 1
      %p143 = scmp.lt.s32.totalorder %s14, 1
      %s144 = scalar_select %p143, %s14, 1
      %s145 = smul.addr %s144, 32
      %s146 = smul.addr %s145, 4
      %s147 = scalar_lea.vmem %s0, %s146
      %p148 = pneg %p35
      %p149 = pneg %p32
      %p150 = pneg %p56
      %p151 = pneg %p53
      %p152 = pneg %p77
      %p153 = pneg %p74
      %p154 = pneg %p103
      %p155 = pneg %p100
      %p156 = scmp.lt.s32.totalorder %s14, 1
      %s157 = scalar_select %p156, %s14, 1
      %s158 = smul.addr %s157, 32
      %s159 = smul.addr %s158, 4
      %s160 = scalar_lea.vmem %s3, %s159
      %p161 = scmp.lt.s32.totalorder %s14, 1
      %s162 = scalar_select %p161, %s14, 1
      %s163 = smul.addr %s162, 32
      %s164 = smul.addr %s163, 4
      %s165 = scalar_lea.vmem %s0, %s164
      %p166 = scmp.lt.s32.totalorder %s14, 1
      %s167 = scalar_select %p166, %s14, 1
      %s168 = smul.addr %s167, 32
      %s169 = smul.addr %s168, 4
      %s170 = scalar_lea.vmem %s3, %s169
      %v171 = vld [vmem:[%s165] sm:$0xf]
      %v172 = vld [vmem:[%s165 + $0x4] sm:$0xf]
      %v173 = vld [vmem:[%s165 + $0x8] sm:$0xf]
      %v174 = vld [vmem:[%s165 + $0xc] sm:$0xf]
      %v175 = vld [vmem:[%s165 + $0x10] sm:$0xf]
      %v176 = vld [vmem:[%s165 + $0x14] sm:$0xf]
      %v177 = vld [vmem:[%s165 + $0x18] sm:$0xf]
      %v178 = vld [vmem:[%s165 + $0x1c] sm:$0xf]
      %v179 = vld [vmem:[%s165 + $0x20] sm:$0xf]
      %v180 = vld [vmem:[%s165 + $0x24] sm:$0xf]
      %v181 = vld [vmem:[%s165 + $0x28] sm:$0xf]
      %v182 = vld [vmem:[%s165 + $0x2c] sm:$0xf]
      %v183 = vld [vmem:[%s165 + $0x30] sm:$0xf]
      %v184 = vld [vmem:[%s165 + $0x34] sm:$0xf]
      %v185 = vld [vmem:[%s165 + $0x38] sm:$0xf]
      %v186 = vld [vmem:[%s165 + $0x3c] sm:$0xf]
      %v187 = vld [vmem:[%s165 + $0x40] sm:$0xf]
      %v188 = vld [vmem:[%s165 + $0x44] sm:$0xf]
      %v189 = vld [vmem:[%s165 + $0x48] sm:$0xf]
      %v190 = vld [vmem:[%s165 + $0x4c] sm:$0xf]
      %v191 = vld [vmem:[%s165 + $0x50] sm:$0xf]
      %v192 = vld [vmem:[%s165 + $0x54] sm:$0xf]
      %v193 = vld [vmem:[%s165 + $0x58] sm:$0xf]
      %v194 = vld [vmem:[%s165 + $0x5c] sm:$0xf]
      %v195 = vld [vmem:[%s165 + $0x60] sm:$0xf]
      %v196 = vld [vmem:[%s165 + $0x64] sm:$0xf]
      %v197 = vld [vmem:[%s165 + $0x68] sm:$0xf]
      %v198 = vld [vmem:[%s165 + $0x6c] sm:$0xf]
      %v199 = vld [vmem:[%s165 + $0x70] sm:$0xf]
      %v200 = vld [vmem:[%s165 + $0x74] sm:$0xf]
      %v201 = vld [vmem:[%s165 + $0x78] sm:$0xf]
      %v202 = vld [vmem:[%s165 + $0x7c] sm:$0xf]
      %v203 = vunpack.c.l.bf16 %v171
      %v204 = vunpack.c.l.bf16 %v172
      %v205 = vunpack.c.l.bf16 %v173
      %v206 = vunpack.c.l.bf16 %v174
      %v207 = vunpack.c.l.bf16 %v175
      %v208 = vunpack.c.l.bf16 %v176
      %v209 = vunpack.c.l.bf16 %v177
      %v210 = vunpack.c.l.bf16 %v178
      %v211 = vunpack.c.l.bf16 %v179
      %v212 = vunpack.c.l.bf16 %v180
      %v213 = vunpack.c.l.bf16 %v181
      %v214 = vunpack.c.l.bf16 %v182
      %v215 = vunpack.c.l.bf16 %v183
      %v216 = vunpack.c.l.bf16 %v184
      %v217 = vunpack.c.l.bf16 %v185
      %v218 = vunpack.c.l.bf16 %v186
      %v219 = vunpack.c.l.bf16 %v187
      %v220 = vunpack.c.l.bf16 %v188
      %v221 = vunpack.c.l.bf16 %v189
      %v222 = vunpack.c.l.bf16 %v190
      %v223 = vunpack.c.l.bf16 %v191
      %v224 = vunpack.c.l.bf16 %v192
      %v225 = vunpack.c.l.bf16 %v193
      %v226 = vunpack.c.l.bf16 %v194
      %v227 = vunpack.c.l.bf16 %v195
      %v228 = vunpack.c.l.bf16 %v196
      %v229 = vunpack.c.l.bf16 %v197
      %v230 = vunpack.c.l.bf16 %v198
      %v231 = vunpack.c.l.bf16 %v199
      %v232 = vunpack.c.l.bf16 %v200
      %v233 = vunpack.c.l.bf16 %v201
      %v234 = vunpack.c.l.bf16 %v202
      %v235 = vld [vmem:[%s1] sm:$0x1]
      %v237 = vperm.slane %v235, 0
      %v239 = vmul.f32 %v203, %v237
      %v240 = vmul.f32 %v204, %v237
      %v241 = vmul.f32 %v205, %v237
      %v242 = vmul.f32 %v206, %v237
      %v243 = vmul.f32 %v207, %v237
      %v244 = vmul.f32 %v208, %v237
      %v245 = vmul.f32 %v209, %v237
      %v246 = vmul.f32 %v210, %v237
      %v247 = vmul.f32 %v211, %v237
      %v248 = vmul.f32 %v212, %v237
      %v249 = vmul.f32 %v213, %v237
      %v250 = vmul.f32 %v214, %v237
      %v251 = vmul.f32 %v215, %v237
      %v252 = vmul.f32 %v216, %v237
      %v253 = vmul.f32 %v217, %v237
      %v254 = vmul.f32 %v218, %v237
      %v255 = vmul.f32 %v219, %v237
      %v256 = vmul.f32 %v220, %v237
      %v257 = vmul.f32 %v221, %v237
      %v258 = vmul.f32 %v222, %v237
      %v259 = vmul.f32 %v223, %v237
      %v260 = vmul.f32 %v224, %v237
      %v261 = vmul.f32 %v225, %v237
      %v262 = vmul.f32 %v226, %v237
      %v263 = vmul.f32 %v227, %v237
      %v264 = vmul.f32 %v228, %v237
      %v265 = vmul.f32 %v229, %v237
      %v266 = vmul.f32 %v230, %v237
      %v267 = vmul.f32 %v231, %v237
      %v268 = vmul.f32 %v232, %v237
      %v269 = vmul.f32 %v233, %v237
      %v270 = vmul.f32 %v234, %v237
      %v271 = vld [vmem:[%s2] sm:$0x1]
      %v273 = vperm.slane %v271, 0
      %v275 = vadd.f32 %v239, %v273
      %v276 = vadd.f32 %v240, %v273
      %v277 = vadd.f32 %v241, %v273
      %v278 = vadd.f32 %v242, %v273
      %v279 = vadd.f32 %v243, %v273
      %v280 = vadd.f32 %v244, %v273
      %v281 = vadd.f32 %v245, %v273
      %v282 = vadd.f32 %v246, %v273
      %v283 = vadd.f32 %v247, %v273
      %v284 = vadd.f32 %v248, %v273
      %v285 = vadd.f32 %v249, %v273
      %v286 = vadd.f32 %v250, %v273
      %v287 = vadd.f32 %v251, %v273
      %v288 = vadd.f32 %v252, %v273
      %v289 = vadd.f32 %v253, %v273
      %v290 = vadd.f32 %v254, %v273
      %v291 = vadd.f32 %v255, %v273
      %v292 = vadd.f32 %v256, %v273
      %v293 = vadd.f32 %v257, %v273
      %v294 = vadd.f32 %v258, %v273
      %v295 = vadd.f32 %v259, %v273
      %v296 = vadd.f32 %v260, %v273
      %v297 = vadd.f32 %v261, %v273
      %v298 = vadd.f32 %v262, %v273
      %v299 = vadd.f32 %v263, %v273
      %v300 = vadd.f32 %v264, %v273
      %v301 = vadd.f32 %v265, %v273
      %v302 = vadd.f32 %v266, %v273
      %v303 = vadd.f32 %v267, %v273
      %v304 = vadd.f32 %v268, %v273
      %v305 = vadd.f32 %v269, %v273
      %v306 = vadd.f32 %v270, %v273
      %v307 = vmax.f32 %v275, 0.0
      %v308 = vmax.f32 %v276, 0.0
      %v309 = vmax.f32 %v277, 0.0
      %v310 = vmax.f32 %v278, 0.0
      %v311 = vmax.f32 %v279, 0.0
      %v312 = vmax.f32 %v280, 0.0
      %v313 = vmax.f32 %v281, 0.0
      %v314 = vmax.f32 %v282, 0.0
      %v315 = vmax.f32 %v283, 0.0
      %v316 = vmax.f32 %v284, 0.0
      %v317 = vmax.f32 %v285, 0.0
      %v318 = vmax.f32 %v286, 0.0
      %v319 = vmax.f32 %v287, 0.0
      %v320 = vmax.f32 %v288, 0.0
      %v321 = vmax.f32 %v289, 0.0
      %v322 = vmax.f32 %v290, 0.0
      %v323 = vmax.f32 %v291, 0.0
      %v324 = vmax.f32 %v292, 0.0
      %v325 = vmax.f32 %v293, 0.0
      %v326 = vmax.f32 %v294, 0.0
      %v327 = vmax.f32 %v295, 0.0
      %v328 = vmax.f32 %v296, 0.0
      %v329 = vmax.f32 %v297, 0.0
      %v330 = vmax.f32 %v298, 0.0
      %v331 = vmax.f32 %v299, 0.0
      %v332 = vmax.f32 %v300, 0.0
      %v333 = vmax.f32 %v301, 0.0
      %v334 = vmax.f32 %v302, 0.0
      %v335 = vmax.f32 %v303, 0.0
      %v336 = vmax.f32 %v304, 0.0
      %v337 = vmax.f32 %v305, 0.0
      %v338 = vmax.f32 %v306, 0.0
      %v339 = vpack.c.bf16 %v307, %v307
      %v340 = vpack.c.bf16 %v308, %v308
      %v341 = vpack.c.bf16 %v309, %v309
      %v342 = vpack.c.bf16 %v310, %v310
      %v343 = vpack.c.bf16 %v311, %v311
      %v344 = vpack.c.bf16 %v312, %v312
      %v345 = vpack.c.bf16 %v313, %v313
      %v346 = vpack.c.bf16 %v314, %v314
      %v347 = vpack.c.bf16 %v315, %v315
      %v348 = vpack.c.bf16 %v316, %v316
      %v349 = vpack.c.bf16 %v317, %v317
      %v350 = vpack.c.bf16 %v318, %v318
      %v351 = vpack.c.bf16 %v319, %v319
      %v352 = vpack.c.bf16 %v320, %v320
      %v353 = vpack.c.bf16 %v321, %v321
      %v354 = vpack.c.bf16 %v322, %v322
      %v355 = vpack.c.bf16 %v323, %v323
      %v356 = vpack.c.bf16 %v324, %v324
      %v357 = vpack.c.bf16 %v325, %v325
      %v358 = vpack.c.bf16 %v326, %v326
      %v359 = vpack.c.bf16 %v327, %v327
      %v360 = vpack.c.bf16 %v328, %v328
      %v361 = vpack.c.bf16 %v329, %v329
      %v362 = vpack.c.bf16 %v330, %v330
      %v363 = vpack.c.bf16 %v331, %v331
      %v364 = vpack.c.bf16 %v332, %v332
      %v365 = vpack.c.bf16 %v333, %v333
      %v366 = vpack.c.bf16 %v334, %v334
      %v367 = vpack.c.bf16 %v335, %v335
      %v368 = vpack.c.bf16 %v336, %v336
      %v369 = vpack.c.bf16 %v337, %v337
      %v370 = vpack.c.bf16 %v338, %v338
      %371 = vst [vmem:[%s170] sm:$0xf] %v339
      %372 = vst [vmem:[%s170 + $0x4] sm:$0xf] %v340
      %373 = vst [vmem:[%s170 + $0x8] sm:$0xf] %v341
      %374 = vst [vmem:[%s170 + $0xc] sm:$0xf] %v342
      %375 = vst [vmem:[%s170 + $0x10] sm:$0xf] %v343
      %376 = vst [vmem:[%s170 + $0x14] sm:$0xf] %v344
      %377 = vst [vmem:[%s170 + $0x18] sm:$0xf] %v345
      %378 = vst [vmem:[%s170 + $0x1c] sm:$0xf] %v346
      %379 = vst [vmem:[%s170 + $0x20] sm:$0xf] %v347
      %380 = vst [vmem:[%s170 + $0x24] sm:$0xf] %v348
      %381 = vst [vmem:[%s170 + $0x28] sm:$0xf] %v349
      %382 = vst [vmem:[%s170 + $0x2c] sm:$0xf] %v350
      %383 = vst [vmem:[%s170 + $0x30] sm:$0xf] %v351
      %384 = vst [vmem:[%s170 + $0x34] sm:$0xf] %v352
      %385 = vst [vmem:[%s170 + $0x38] sm:$0xf] %v353
      %386 = vst [vmem:[%s170 + $0x3c] sm:$0xf] %v354
      %387 = vst [vmem:[%s170 + $0x40] sm:$0xf] %v355
      %388 = vst [vmem:[%s170 + $0x44] sm:$0xf] %v356
      %389 = vst [vmem:[%s170 + $0x48] sm:$0xf] %v357
      %390 = vst [vmem:[%s170 + $0x4c] sm:$0xf] %v358
      %391 = vst [vmem:[%s170 + $0x50] sm:$0xf] %v359
      %392 = vst [vmem:[%s170 + $0x54] sm:$0xf] %v360
      %393 = vst [vmem:[%s170 + $0x58] sm:$0xf] %v361
      %394 = vst [vmem:[%s170 + $0x5c] sm:$0xf] %v362
      %395 = vst [vmem:[%s170 + $0x60] sm:$0xf] %v363
      %396 = vst [vmem:[%s170 + $0x64] sm:$0xf] %v364
      %397 = vst [vmem:[%s170 + $0x68] sm:$0xf] %v365
      %398 = vst [vmem:[%s170 + $0x6c] sm:$0xf] %v366
      %399 = vst [vmem:[%s170 + $0x70] sm:$0xf] %v367
      %400 = vst [vmem:[%s170 + $0x74] sm:$0xf] %v368
      %401 = vst [vmem:[%s170 + $0x78] sm:$0xf] %v369
      %402 = vst [vmem:[%s170 + $0x7c] sm:$0xf] %v370
      %p403 = scmp.lt.s32.totalorder %s14, 1
      %s404 = scalar_select %p403, %s14, 1
      %s405 = smul.addr %s404, 32
      %s406 = smul.addr %s405, 4
      %s407 = scalar_lea.vmem %s3, %s406
      // Predicated region
      $region33: #{decoder_bottleneck_layer.5} parent=31 // pred_check
        %p408 = pneg %p100
      $region34: #{decoder_bottleneck_layer.5} parent=31 // pred_check_branch
        %410 = sbr.rel (%p408) target = $region36
      $region35: #{decoder_bottleneck_layer.5} parent=31 // pred_region
        _
      $region36: #{decoder_bottleneck_layer.5} parent=31 // pred_fallthru
        _
    $region32: #{decoder_bottleneck_layer.5} parent=5 // pred_fallthru
      _
    %p411 = scmp.le.s32.totalorder 2, %s9
    // Predicated region
    $region37: #{decoder_bottleneck_layer.5} parent=5 // pred_check
      %p412 = pneg %p411
    $region38: #{decoder_bottleneck_layer.5} parent=5 // pred_check_branch
      %414 = sbr.rel (%p412) target = $region40
    $region39: #{decoder_bottleneck_layer.5} parent=5 // pred_region
      %s415 = ssub.s32 %s9, 2
      // Predicated region
      $region41: #{decoder_bottleneck_layer.5} parent=39 // pred_check
        %p416 = pneg %p106
      $region42: #{decoder_bottleneck_layer.5} parent=39 // pred_check_branch
        %418 = sbr.rel (%p416) target = $region44
      $region43: #{decoder_bottleneck_layer.5} parent=39 // pred_region
        %p419 = scmp.lt.s32.totalorder %s15, 1
        %s420 = scalar_select %p419, %s15, 1
        %s421 = smul.addr %s420, 32
        %s422 = smul.addr %s421, 4
        %s423 = scalar_lea.vmem %s3, %s422
      $region44: #{decoder_bottleneck_layer.5} parent=39 // pred_fallthru
        _
    $region40: #{decoder_bottleneck_layer.5} parent=5 // pred_fallthru
      _
  $region6: #{decoder_bottleneck_layer.5} parent=0 // loop_footer
    %s13 = sadd.s32 1, %s9
  $region7: #{decoder_bottleneck_layer.5} parent=0 // loop_footer_branch
    %8 = sbr.rel target = $region3
  $region8: #{decoder_bottleneck_layer.5} parent=0 // loop_exit
    _

// kernel: decoder_bottleneck_layer.4
$region0: #{decoder_bottleneck_layer.4}
  #allocation0 [shape = 'u32[]', space=smem, size = 0x4, offset = 0x4, fixed_abs, tag = 'smem constant byte address 0x4 - core index']
  #allocation1 [shape = 'u32[72,128]{1,0:T(1,128)}', space=vmem, size = 0x9000, scoped, tag = 'internal scratch']
  #allocation2 [shape = 'bf16[1,18,18,128]{3,2,1,0:T(8,128)(2,1)}', space=vmem, size = 0x1b000, scoped, tag = 'scratch operand']
  %s0 = inlined_call_operand.vmem [shape: bf16[2,256,128], index: 0, kind: input, shape index: {}]
  %s1 = inlined_call_operand.vmem [shape: f32[1,128], index: 1, kind: input, shape index: {}]
  %s2 = inlined_call_operand.vmem [shape: f32[1,128], index: 2, kind: input, shape index: {}]
  %s3 = inlined_call_operand.vmem [shape: bf16[9,128,128], index: 3, kind: input, shape index: {}]
  %s4 = inlined_call_operand.vmem [shape: bf16[2,256,128], index: 4, kind: output, shape index: {0}]
  %s5 = inlined_call_operand.vmem [shape: f32[2,1,128], index: 5, kind: output, shape index: {1}]
  %s6 = inlined_call_operand.vmem [shape: f32[2,1,128], index: 6, kind: output, shape index: {2}]
  %7 = xla_tuple %s4, %s5, %s6
  %s8 = sld [smem:[#allocation0]]
  $region65: #{decoder_bottleneck_layer.4} parent=0
    _
  %s10 = ssub.s32 1, %s8
  %s11 = scalar_select 0, %s10, %s8
  loop: start=0, step=1, limit=4
  $region2: #{decoder_bottleneck_layer.4} parent=0 // loop_pre_header
    _
  $region3: #{decoder_bottleneck_layer.4} parent=0 // loop_header
    %s13 = sphi 0, %s17
    %p14 = scmp.ge.s32.totalorder %s13, 4
    %s23 = sphi 0, %s25
    %s26 = sphi 0, %s23
    %s27 = sphi 0, %s26
    %s43 = sphi 0, %s27
    %s47 = sphi 0, %s47
    %s49 = sphi 0, %s47
    %s50 = sphi 0, %s49
    %s64 = sphi 0, %s50
    %s68 = sphi 0, %s68
    %s70 = sphi 0, %s68
    %s71 = sphi 0, %s70
    %s85 = sphi 0, %s71
    %s89 = sphi 0, %s89
    %s91 = sphi 0, %s89
    %s92 = sphi 0, %s91
    %s106 = sphi 0, %s92
    %s112 = sphi 0, %s114
    %s115 = sphi 0, %s112
    %s116 = sphi 0, %s115
    %s132 = sphi 0, %s116
    %s138 = sphi 0, %s140
    %s141 = sphi 0, %s138
    %s142 = sphi 0, %s141
    %s158 = sphi 0, %s142
    %s164 = sphi 0, %s166
    %s167 = sphi 0, %s164
    %s168 = sphi 0, %s167
    %s184 = sphi 0, %s168
  $region4: #{decoder_bottleneck_layer.4} parent=0 // loop_header_branch
    %16 = sbr.rel (%p14) target = $region8
  $region5: #{decoder_bottleneck_layer.4} parent=0 // loop_body
    %s18 = ssub.s32 %s13, 1
    %s19 = ssub.s32 %s13, 2
    %s20 = sadd.s32 %s13, 1
    %s21 = ssub.s32 %s13, %s20
    %p22 = scmp.eq.s32.totalorder %s21, 0
    %s24 = sadd.s32 %s23, 1
    %s25 = scalar_select %p22, %s23, %s24
    %p28 = pneg %p22
    %p29 = scmp.eq.s32.totalorder %s13, 1
    %p30 = por %p28, %p29
    %p31 = scmp.ne.s32.totalorder %s23, %s26
    %p32 = scmp.eq.s32.totalorder %s13, 0
    %p33 = por %p31, %p32
    %p34 = scmp.ne.s32.totalorder %s23, %s26
    %p35 = scmp.eq.s32.totalorder %s18, 1
    %p36 = por %p34, %p35
    %p37 = scmp.ne.s32.totalorder %s26, %s27
    %p38 = scmp.eq.s32.totalorder %s18, 0
    %p39 = por %p37, %p38
    %p40 = scmp.ne.s32.totalorder %s26, %s27
    %p41 = scmp.eq.s32.totalorder %s19, 1
    %p42 = por %p40, %p41
    %p44 = scmp.ne.s32.totalorder %s27, %s43
    %p45 = scmp.eq.s32.totalorder %s19, 0
    %p46 = por %p44, %p45
    %s48 = sadd.s32 %s47, 1
    %p51 = scmp.eq.s32.totalorder %s13, 1
    %p52 = scmp.ne.s32.totalorder %s47, %s49
    %p53 = scmp.eq.s32.totalorder %s13, 0
    %p54 = por %p52, %p53
    %p55 = scmp.ne.s32.totalorder %s47, %s49
    %p56 = scmp.eq.s32.totalorder %s18, 1
    %p57 = por %p55, %p56
    %p58 = scmp.ne.s32.totalorder %s49, %s50
    %p59 = scmp.eq.s32.totalorder %s18, 0
    %p60 = por %p58, %p59
    %p61 = scmp.ne.s32.totalorder %s49, %s50
    %p62 = scmp.eq.s32.totalorder %s19, 1
    %p63 = por %p61, %p62
    %p65 = scmp.ne.s32.totalorder %s50, %s64
    %p66 = scmp.eq.s32.totalorder %s19, 0
    %p67 = por %p65, %p66
    %s69 = sadd.s32 %s68, 1
    %p72 = scmp.eq.s32.totalorder %s13, 1
    %p73 = scmp.ne.s32.totalorder %s68, %s70
    %p74 = scmp.eq.s32.totalorder %s13, 0
    %p75 = por %p73, %p74
    %p76 = scmp.ne.s32.totalorder %s68, %s70
    %p77 = scmp.eq.s32.totalorder %s18, 1
    %p78 = por %p76, %p77
    %p79 = scmp.ne.s32.totalorder %s70, %s71
    %p80 = scmp.eq.s32.totalorder %s18, 0
    %p81 = por %p79, %p80
    %p82 = scmp.ne.s32.totalorder %s70, %s71
    %p83 = scmp.eq.s32.totalorder %s19, 1
    %p84 = por %p82, %p83
    %p86 = scmp.ne.s32.totalorder %s71, %s85
    %p87 = scmp.eq.s32.totalorder %s19, 0
    %p88 = por %p86, %p87
    %s90 = sadd.s32 %s89, 1
    %p93 = scmp.eq.s32.totalorder %s13, 1
    %p94 = scmp.ne.s32.totalorder %s89, %s91
    %p95 = scmp.eq.s32.totalorder %s13, 0
    %p96 = por %p94, %p95
    %p97 = scmp.ne.s32.totalorder %s89, %s91
    %p98 = scmp.eq.s32.totalorder %s18, 1
    %p99 = por %p97, %p98
    %p100 = scmp.ne.s32.totalorder %s91, %s92
    %p101 = scmp.eq.s32.totalorder %s18, 0
    %p102 = por %p100, %p101
    %p103 = scmp.ne.s32.totalorder %s91, %s92
    %p104 = scmp.eq.s32.totalorder %s19, 1
    %p105 = por %p103, %p104
    %p107 = scmp.ne.s32.totalorder %s92, %s106
    %p108 = scmp.eq.s32.totalorder %s19, 0
    %p109 = por %p107, %p108
    %s110 = ssub.s32 %s13, %s20
    %p111 = scmp.eq.s32.totalorder %s110, 0
    %s113 = sadd.s32 %s112, 1
    %s114 = scalar_select %p111, %s112, %s113
    %p117 = pneg %p111
    %p118 = scmp.eq.s32.totalorder %s13, 1
    %p119 = por %p117, %p118
    %p120 = scmp.ne.s32.totalorder %s112, %s115
    %p121 = scmp.eq.s32.totalorder %s13, 0
    %p122 = por %p120, %p121
    %p123 = scmp.ne.s32.totalorder %s112, %s115
    %p124 = scmp.eq.s32.totalorder %s18, 1
    %p125 = por %p123, %p124
    %p126 = scmp.ne.s32.totalorder %s115, %s116
    %p127 = scmp.eq.s32.totalorder %s18, 0
    %p128 = por %p126, %p127
    %p129 = scmp.ne.s32.totalorder %s115, %s116
    %p130 = scmp.eq.s32.totalorder %s19, 1
    %p131 = por %p129, %p130
    %p133 = scmp.ne.s32.totalorder %s116, %s132
    %p134 = scmp.eq.s32.totalorder %s19, 0
    %p135 = por %p133, %p134
    %s136 = ssub.s32 %s13, %s20
    %p137 = scmp.eq.s32.totalorder %s136, 0
    %s139 = sadd.s32 %s138, 1
    %s140 = scalar_select %p137, %s138, %s139
    %p143 = pneg %p137
    %p144 = scmp.eq.s32.totalorder %s13, 1
    %p145 = por %p143, %p144
    %p146 = scmp.ne.s32.totalorder %s138, %s141
    %p147 = scmp.eq.s32.totalorder %s13, 0
    %p148 = por %p146, %p147
    %p149 = scmp.ne.s32.totalorder %s138, %s141
    %p150 = scmp.eq.s32.totalorder %s18, 1
    %p151 = por %p149, %p150
    %p152 = scmp.ne.s32.totalorder %s141, %s142
    %p153 = scmp.eq.s32.totalorder %s18, 0
    %p154 = por %p152, %p153
    %p155 = scmp.ne.s32.totalorder %s141, %s142
    %p156 = scmp.eq.s32.totalorder %s19, 1
    %p157 = por %p155, %p156
    %p159 = scmp.ne.s32.totalorder %s142, %s158
    %p160 = scmp.eq.s32.totalorder %s19, 0
    %p161 = por %p159, %p160
    %s162 = ssub.s32 %s13, %s20
    %p163 = scmp.eq.s32.totalorder %s162, 0
    %s165 = sadd.s32 %s164, 1
    %s166 = scalar_select %p163, %s164, %s165
    %p169 = pneg %p163
    %p170 = scmp.eq.s32.totalorder %s13, 1
    %p171 = por %p169, %p170
    %p172 = scmp.ne.s32.totalorder %s164, %s167
    %p173 = scmp.eq.s32.totalorder %s13, 0
    %p174 = por %p172, %p173
    %p175 = scmp.ne.s32.totalorder %s164, %s167
    %p176 = scmp.eq.s32.totalorder %s18, 1
    %p177 = por %p175, %p176
    %p178 = scmp.ne.s32.totalorder %s167, %s168
    %p179 = scmp.eq.s32.totalorder %s18, 0
    %p180 = por %p178, %p179
    %p181 = scmp.ne.s32.totalorder %s167, %s168
    %p182 = scmp.eq.s32.totalorder %s19, 1
    %p183 = por %p181, %p182
    %p185 = scmp.ne.s32.totalorder %s168, %s184
    %p186 = scmp.eq.s32.totalorder %s19, 0
    %p187 = por %p185, %p186
    %p188 = scmp.le.s32.totalorder 1, %s13
    %p189 = scmp.lt.s32.totalorder %s13, 3
    %p190 = pnand %p188, %p189
    %p191 = pneg %p190
    // Predicated region
    $region9: #{decoder_bottleneck_layer.4} parent=5 // pred_check
      _
    $region10: #{decoder_bottleneck_layer.4} parent=5 // pred_check_branch
      %193 = sbr.rel (%p190) target = $region12
    $region11: #{decoder_bottleneck_layer.4} parent=5 // pred_region
      %s194 = ssub.s32 %s13, 1
      // Predicated region
      $region13: #{decoder_bottleneck_layer.4} parent=11 // pred_check
        %p195 = pneg %p60
      $region14: #{decoder_bottleneck_layer.4} parent=11 // pred_check_branch
        %197 = sbr.rel (%p195) target = $region16
      $region15: #{decoder_bottleneck_layer.4} parent=11 // pred_region
        _
      $region16: #{decoder_bottleneck_layer.4} parent=11 // pred_fallthru
        _
      // Predicated region
      $region17: #{decoder_bottleneck_layer.4} parent=11 // pred_check
        %p198 = pneg %p81
      $region18: #{decoder_bottleneck_layer.4} parent=11 // pred_check_branch
        %200 = sbr.rel (%p198) target = $region20
      $region19: #{decoder_bottleneck_layer.4} parent=11 // pred_region
        _
      $region20: #{decoder_bottleneck_layer.4} parent=11 // pred_fallthru
        _
      // Predicated region
      $region21: #{decoder_bottleneck_layer.4} parent=11 // pred_check
        %p201 = pneg %p102
      $region22: #{decoder_bottleneck_layer.4} parent=11 // pred_check_branch
        %203 = sbr.rel (%p201) target = $region24
      $region23: #{decoder_bottleneck_layer.4} parent=11 // pred_region
        _
      $region24: #{decoder_bottleneck_layer.4} parent=11 // pred_fallthru
        _
    $region12: #{decoder_bottleneck_layer.4} parent=5 // pred_fallthru
      _
    %p204 = scmp.lt.s32.totalorder %s13, 2
    // Predicated region
    $region25: #{decoder_bottleneck_layer.4} parent=5 // pred_check
      %p205 = pneg %p204
    $region26: #{decoder_bottleneck_layer.4} parent=5 // pred_check_branch
      %207 = sbr.rel (%p205) target = $region28
    $region27: #{decoder_bottleneck_layer.4} parent=5 // pred_region
      // Predicated region
      $region29: #{decoder_bottleneck_layer.4} parent=27 // pred_check
        %p208 = pneg %p33
      $region30: #{decoder_bottleneck_layer.4} parent=27 // pred_check_branch
        %210 = sbr.rel (%p208) target = $region32
      $region31: #{decoder_bottleneck_layer.4} parent=27 // pred_region
        %p211 = scmp.lt.s32.totalorder %s13, 1
        %s212 = scalar_select %p211, %s13, 1
        %s213 = smul.addr %s212, 32
        %s214 = smul.addr %s213, 4
        %s215 = scalar_lea.vmem %s0, %s214
      $region32: #{decoder_bottleneck_layer.4} parent=27 // pred_fallthru
        _
    $region28: #{decoder_bottleneck_layer.4} parent=5 // pred_fallthru
      _
    %p216 = scmp.le.s32.totalorder 1, %s13
    %p217 = scmp.lt.s32.totalorder %s13, 3
    %p218 = pnand %p216, %p217
    %p219 = pneg %p218
    // Predicated region
    $region33: #{decoder_bottleneck_layer.4} parent=5 // pred_check
      _
    $region34: #{decoder_bottleneck_layer.4} parent=5 // pred_check_branch
      %221 = sbr.rel (%p218) target = $region36
    $region35: #{decoder_bottleneck_layer.4} parent=5 // pred_region
      %s222 = ssub.s32 %s13, 1
      %p223 = scmp.lt.s32.totalorder %s18, 1
      %s224 = scalar_select %p223, %s18, 1
      %s225 = smul.addr %s224, 32
      %s226 = smul.addr %s225, 4
      %s227 = scalar_lea.vmem %s0, %s226
      %p228 = pneg %p39
      %p229 = pneg %p36
      %p230 = pneg %p60
      %p231 = pneg %p57
      %p232 = pneg %p81
      %p233 = pneg %p78
      %p234 = pneg %p102
      %p235 = pneg %p99
      %p236 = pneg %p128
      %p237 = pneg %p125
      %p238 = scmp.lt.s32.totalorder %s18, 1
      %s239 = scalar_select %p238, %s18, 1
      %s240 = smul.addr %s239, 32
      %s241 = smul.addr %s240, 4
      %s242 = scalar_lea.vmem %s4, %s241
      %p243 = pneg %p154
      %p244 = pneg %p151
      %p245 = scmp.lt.s32.totalorder %s18, 1
      %s246 = scalar_select %p245, %s18, 1
      %s247 = scalar_lea.vmem %s5, %s246
      %p248 = pneg %p180
      %p249 = pneg %p177
      %p250 = scmp.lt.s32.totalorder %s18, 1
      %s251 = scalar_select %p250, %s18, 1
      %s252 = scalar_lea.vmem %s6, %s251
      %p253 = scmp.lt.s32.totalorder %s18, 1
      %s254 = scalar_select %p253, %s18, 1
      %s255 = smul.addr %s254, 32
      %s256 = smul.addr %s255, 4
      %s257 = scalar_lea.vmem %s0, %s256
      %p258 = scmp.lt.s32.totalorder %s18, 1
      %s259 = scalar_select %p258, %s18, 1
      %s260 = smul.addr %s259, 32
      %s261 = smul.addr %s260, 4
      %s262 = scalar_lea.vmem %s4, %s261
      %p263 = scmp.lt.s32.totalorder %s18, 1
      %s264 = scalar_select %p263, %s18, 1
      %s265 = scalar_lea.vmem %s5, %s264
      %p266 = scmp.lt.s32.totalorder %s18, 1
      %s267 = scalar_select %p266, %s18, 1
      %s268 = scalar_lea.vmem %s6, %s267
      %v270 = vld [vmem:[%s257] sm:$0xf]
      %v271 = vld [vmem:[%s257 + $0x4] sm:$0xf]
      %v272 = vld [vmem:[%s257 + $0x8] sm:$0xf]
      %v273 = vld [vmem:[%s257 + $0xc] sm:$0xf]
      %v274 = vld [vmem:[%s257 + $0x10] sm:$0xf]
      %v275 = vld [vmem:[%s257 + $0x14] sm:$0xf]
      %v276 = vld [vmem:[%s257 + $0x18] sm:$0xf]
      %v277 = vld [vmem:[%s257 + $0x1c] sm:$0xf]
      %v278 = vld [vmem:[%s257 + $0x20] sm:$0xf]
      %v279 = vld [vmem:[%s257 + $0x24] sm:$0xf]
      %v280 = vld [vmem:[%s257 + $0x28] sm:$0xf]
      %v281 = vld [vmem:[%s257 + $0x2c] sm:$0xf]
      %v282 = vld [vmem:[%s257 + $0x30] sm:$0xf]
      %v283 = vld [vmem:[%s257 + $0x34] sm:$0xf]
      %v284 = vld [vmem:[%s257 + $0x38] sm:$0xf]
      %v285 = vld [vmem:[%s257 + $0x3c] sm:$0xf]
      %v286 = vld [vmem:[%s257 + $0x40] sm:$0xf]
      %v287 = vld [vmem:[%s257 + $0x44] sm:$0xf]
      %v288 = vld [vmem:[%s257 + $0x48] sm:$0xf]
      %v289 = vld [vmem:[%s257 + $0x4c] sm:$0xf]
      %v290 = vld [vmem:[%s257 + $0x50] sm:$0xf]
      %v291 = vld [vmem:[%s257 + $0x54] sm:$0xf]
      %v292 = vld [vmem:[%s257 + $0x58] sm:$0xf]
      %v293 = vld [vmem:[%s257 + $0x5c] sm:$0xf]
      %v294 = vld [vmem:[%s257 + $0x60] sm:$0xf]
      %v295 = vld [vmem:[%s257 + $0x64] sm:$0xf]
      %v296 = vld [vmem:[%s257 + $0x68] sm:$0xf]
      %v297 = vld [vmem:[%s257 + $0x6c] sm:$0xf]
      %v298 = vld [vmem:[%s257 + $0x70] sm:$0xf]
      %v299 = vld [vmem:[%s257 + $0x74] sm:$0xf]
      %v300 = vld [vmem:[%s257 + $0x78] sm:$0xf]
      %v301 = vld [vmem:[%s257 + $0x7c] sm:$0xf]
      %v302 = vunpack.c.l.bf16 %v270
      %v303 = vunpack.c.l.bf16 %v271
      %v304 = vunpack.c.l.bf16 %v272
      %v305 = vunpack.c.l.bf16 %v273
      %v306 = vunpack.c.l.bf16 %v274
      %v307 = vunpack.c.l.bf16 %v275
      %v308 = vunpack.c.l.bf16 %v276
      %v309 = vunpack.c.l.bf16 %v277
      %v310 = vunpack.c.l.bf16 %v278
      %v311 = vunpack.c.l.bf16 %v279
      %v312 = vunpack.c.l.bf16 %v280
      %v313 = vunpack.c.l.bf16 %v281
      %v314 = vunpack.c.l.bf16 %v282
      %v315 = vunpack.c.l.bf16 %v283
      %v316 = vunpack.c.l.bf16 %v284
      %v317 = vunpack.c.l.bf16 %v285
      %v318 = vunpack.c.l.bf16 %v286
      %v319 = vunpack.c.l.bf16 %v287
      %v320 = vunpack.c.l.bf16 %v288
      %v321 = vunpack.c.l.bf16 %v289
      %v322 = vunpack.c.l.bf16 %v290
      %v323 = vunpack.c.l.bf16 %v291
      %v324 = vunpack.c.l.bf16 %v292
      %v325 = vunpack.c.l.bf16 %v293
      %v326 = vunpack.c.l.bf16 %v294
      %v327 = vunpack.c.l.bf16 %v295
      %v328 = vunpack.c.l.bf16 %v296
      %v329 = vunpack.c.l.bf16 %v297
      %v330 = vunpack.c.l.bf16 %v298
      %v331 = vunpack.c.l.bf16 %v299
      %v332 = vunpack.c.l.bf16 %v300
      %v333 = vunpack.c.l.bf16 %v301
      %v334 = vld [vmem:[%s1] sm:$0x1]
      %v336 = vperm.slane %v334, 0
      %v338 = vmul.f32 %v302, %v336
      %v339 = vmul.f32 %v303, %v336
      %v340 = vmul.f32 %v304, %v336
      %v341 = vmul.f32 %v305, %v336
      %v342 = vmul.f32 %v306, %v336
      %v343 = vmul.f32 %v307, %v336
      %v344 = vmul.f32 %v308, %v336
      %v345 = vmul.f32 %v309, %v336
      %v346 = vmul.f32 %v310, %v336
      %v347 = vmul.f32 %v311, %v336
      %v348 = vmul.f32 %v312, %v336
      %v349 = vmul.f32 %v313, %v336
      %v350 = vmul.f32 %v314, %v336
      %v351 = vmul.f32 %v315, %v336
      %v352 = vmul.f32 %v316, %v336
      %v353 = vmul.f32 %v317, %v336
      %v354 = vmul.f32 %v318, %v336
      %v355 = vmul.f32 %v319, %v336
      %v356 = vmul.f32 %v320, %v336
      %v357 = vmul.f32 %v321, %v336
      %v358 = vmul.f32 %v322, %v336
      %v359 = vmul.f32 %v323, %v336
      %v360 = vmul.f32 %v324, %v336
      %v361 = vmul.f32 %v325, %v336
      %v362 = vmul.f32 %v326, %v336
      %v363 = vmul.f32 %v327, %v336
      %v364 = vmul.f32 %v328, %v336
      %v365 = vmul.f32 %v329, %v336
      %v366 = vmul.f32 %v330, %v336
      %v367 = vmul.f32 %v331, %v336
      %v368 = vmul.f32 %v332, %v336
      %v369 = vmul.f32 %v333, %v336
      %v370 = vld [vmem:[%s2] sm:$0x1]
      %v372 = vperm.slane %v370, 0
      %v374 = vadd.f32 %v338, %v372
      %v375 = vadd.f32 %v339, %v372
      %v376 = vadd.f32 %v340, %v372
      %v377 = vadd.f32 %v341, %v372
      %v378 = vadd.f32 %v342, %v372
      %v379 = vadd.f32 %v343, %v372
      %v380 = vadd.f32 %v344, %v372
      %v381 = vadd.f32 %v345, %v372
      %v382 = vadd.f32 %v346, %v372
      %v383 = vadd.f32 %v347, %v372
      %v384 = vadd.f32 %v348, %v372
      %v385 = vadd.f32 %v349, %v372
      %v386 = vadd.f32 %v350, %v372
      %v387 = vadd.f32 %v351, %v372
      %v388 = vadd.f32 %v352, %v372
      %v389 = vadd.f32 %v353, %v372
      %v390 = vadd.f32 %v354, %v372
      %v391 = vadd.f32 %v355, %v372
      %v392 = vadd.f32 %v356, %v372
      %v393 = vadd.f32 %v357, %v372
      %v394 = vadd.f32 %v358, %v372
      %v395 = vadd.f32 %v359, %v372
      %v396 = vadd.f32 %v360, %v372
      %v397 = vadd.f32 %v361, %v372
      %v398 = vadd.f32 %v362, %v372
      %v399 = vadd.f32 %v363, %v372
      %v400 = vadd.f32 %v364, %v372
      %v401 = vadd.f32 %v365, %v372
      %v402 = vadd.f32 %v366, %v372
      %v403 = vadd.f32 %v367, %v372
      %v404 = vadd.f32 %v368, %v372
      %v405 = vadd.f32 %v369, %v372
      %v406 = vmax.f32 %v374, 0.0
      %v407 = vmax.f32 %v375, 0.0
      %v408 = vmax.f32 %v376, 0.0
      %v409 = vmax.f32 %v377, 0.0
      %v410 = vmax.f32 %v378, 0.0
      %v411 = vmax.f32 %v379, 0.0
      %v412 = vmax.f32 %v380, 0.0
      %v413 = vmax.f32 %v381, 0.0
      %v414 = vmax.f32 %v382, 0.0
      %v415 = vmax.f32 %v383, 0.0
      %v416 = vmax.f32 %v384, 0.0
      %v417 = vmax.f32 %v385, 0.0
      %v418 = vmax.f32 %v386, 0.0
      %v419 = vmax.f32 %v387, 0.0
      %v420 = vmax.f32 %v388, 0.0
      %v421 = vmax.f32 %v389, 0.0
      %v422 = vmax.f32 %v390, 0.0
      %v423 = vmax.f32 %v391, 0.0
      %v424 = vmax.f32 %v392, 0.0
      %v425 = vmax.f32 %v393, 0.0
      %v426 = vmax.f32 %v394, 0.0
      %v427 = vmax.f32 %v395, 0.0
      %v428 = vmax.f32 %v396, 0.0
      %v429 = vmax.f32 %v397, 0.0
      %v430 = vmax.f32 %v398, 0.0
      %v431 = vmax.f32 %v399, 0.0
      %v432 = vmax.f32 %v400, 0.0
      %v433 = vmax.f32 %v401, 0.0
      %v434 = vmax.f32 %v402, 0.0
      %v435 = vmax.f32 %v403, 0.0
      %v436 = vmax.f32 %v404, 0.0
      %v437 = vmax.f32 %v405, 0.0
      %v438 = vpack.c.bf16 %v406, %v406
      %v439 = vpack.c.bf16 %v407, %v407
      %v440 = vpack.c.bf16 %v408, %v408
      %v441 = vpack.c.bf16 %v409, %v409
      %v442 = vpack.c.bf16 %v410, %v410
      %v443 = vpack.c.bf16 %v411, %v411
      %v444 = vpack.c.bf16 %v412, %v412
      %v445 = vpack.c.bf16 %v413, %v413
      %v446 = vpack.c.bf16 %v414, %v414
      %v447 = vpack.c.bf16 %v415, %v415
      %v448 = vpack.c.bf16 %v416, %v416
      %v449 = vpack.c.bf16 %v417, %v417
      %v450 = vpack.c.bf16 %v418, %v418
      %v451 = vpack.c.bf16 %v419, %v419
      %v452 = vpack.c.bf16 %v420, %v420
      %v453 = vpack.c.bf16 %v421, %v421
      %v454 = vpack.c.bf16 %v422, %v422
      %v455 = vpack.c.bf16 %v423, %v423
      %v456 = vpack.c.bf16 %v424, %v424
      %v457 = vpack.c.bf16 %v425, %v425
      %v458 = vpack.c.bf16 %v426, %v426
      %v459 = vpack.c.bf16 %v427, %v427
      %v460 = vpack.c.bf16 %v428, %v428
      %v461 = vpack.c.bf16 %v429, %v429
      %v462 = vpack.c.bf16 %v430, %v430
      %v463 = vpack.c.bf16 %v431, %v431
      %v464 = vpack.c.bf16 %v432, %v432
      %v465 = vpack.c.bf16 %v433, %v433
      %v466 = vpack.c.bf16 %v434, %v434
      %v467 = vpack.c.bf16 %v435, %v435
      %v468 = vpack.c.bf16 %v436, %v436
      %v469 = vpack.c.bf16 %v437, %v437
      %470 = vst [vmem:[#allocation2] sm:$0xf] 0
      %471 = vst [vmem:[#allocation2 + $0x4] sm:$0xf] 0
      %472 = vst [vmem:[#allocation2 + $0x8] sm:$0x1] 0
      %s473 = scalar_lea.vmem [#allocation2], 204
      %474 = vst [vmem:[%s473] sm:$0xf] 0
      %475 = vst [vmem:[%s473 + $0x4] sm:$0xf] 0
      %476 = vst [vmem:[%s473 + $0x8] sm:$0x1] 0
      %s477 = scalar_lea.vmem [#allocation2], 12
      %vm478 = vcmask 1040384
      %vm479 = vsmask.f32 256
      %vm480 = vmand %vm478, %vm479
      %v481 = vld [vmem:[%s477] sm:$0x1]
      %v482 = vsel %vm480, 0, %v481
      %483 = vst [vmem:[%s477] sm:$0x1] %v482
      %v484 = vld [vmem:[%s477 + $0xc] sm:$0x1]
      %v485 = vsel %vm480, 0, %v484
      %486 = vst [vmem:[%s477 + $0xc] sm:$0x1] %v485
      %v487 = vld [vmem:[%s477 + $0x18] sm:$0x1]
      %v488 = vsel %vm480, 0, %v487
      %489 = vst [vmem:[%s477 + $0x18] sm:$0x1] %v488
      %v490 = vld [vmem:[%s477 + $0x24] sm:$0x1]
      %v491 = vsel %vm480, 0, %v490
      %492 = vst [vmem:[%s477 + $0x24] sm:$0x1] %v491
      %v493 = vld [vmem:[%s477 + $0x30] sm:$0x1]
      %v494 = vsel %vm480, 0, %v493
      %495 = vst [vmem:[%s477 + $0x30] sm:$0x1] %v494
      %v496 = vld [vmem:[%s477 + $0x3c] sm:$0x1]
      %v497 = vsel %vm480, 0, %v496
      %498 = vst [vmem:[%s477 + $0x3c] sm:$0x1] %v497
      %v499 = vld [vmem:[%s477 + $0x48] sm:$0x1]
      %v500 = vsel %vm480, 0, %v499
      %501 = vst [vmem:[%s477 + $0x48] sm:$0x1] %v500
      %v502 = vld [vmem:[%s477 + $0x54] sm:$0x1]
      %v503 = vsel %vm480, 0, %v502
      %504 = vst [vmem:[%s477 + $0x54] sm:$0x1] %v503
      %v505 = vld [vmem:[%s477 + $0x60] sm:$0x1]
      %v506 = vsel %vm480, 0, %v505
      %507 = vst [vmem:[%s477 + $0x60] sm:$0x1] %v506
      %v508 = vld [vmem:[%s477 + $0x6c] sm:$0x1]
      %v509 = vsel %vm480, 0, %v508
      %510 = vst [vmem:[%s477 + $0x6c] sm:$0x1] %v509
      %v511 = vld [vmem:[%s477 + $0x78] sm:$0x1]
      %v512 = vsel %vm480, 0, %v511
      %513 = vst [vmem:[%s477 + $0x78] sm:$0x1] %v512
      %v514 = vld [vmem:[%s477 + $0x84] sm:$0x1]
      %v515 = vsel %vm480, 0, %v514
      %516 = vst [vmem:[%s477 + $0x84] sm:$0x1] %v515
      %v517 = vld [vmem:[%s477 + $0x90] sm:$0x1]
      %v518 = vsel %vm480, 0, %v517
      %519 = vst [vmem:[%s477 + $0x90] sm:$0x1] %v518
      %v520 = vld [vmem:[%s477 + $0x9c] sm:$0x1]
      %v521 = vsel %vm480, 0, %v520
      %522 = vst [vmem:[%s477 + $0x9c] sm:$0x1] %v521
      %v523 = vld [vmem:[%s477 + $0xa8] sm:$0x1]
      %v524 = vsel %vm480, 0, %v523
      %525 = vst [vmem:[%s477 + $0xa8] sm:$0x1] %v524
      %v526 = vld [vmem:[%s477 + $0xb4] sm:$0x1]
      %v527 = vsel %vm480, 0, %v526
      %528 = vst [vmem:[%s477 + $0xb4] sm:$0x1] %v527
      %vm529 = vsmask.f32 7938
      %vm530 = vmand %vm478, %vm529
      %v531 = vld [vmem:[%s477 + $0x8] sm:$0x1]
      %v532 = vsel %vm530, 0, %v531
      %533 = vst [vmem:[%s477 + $0x8] sm:$0x1] %v532
      %v534 = vld [vmem:[%s477 + $0x14] sm:$0x1]
      %v535 = vsel %vm530, 0, %v534
      %536 = vst [vmem:[%s477 + $0x14] sm:$0x1] %v535
      %v537 = vld [vmem:[%s477 + $0x20] sm:$0x1]
      %v538 = vsel %vm530, 0, %v537
      %539 = vst [vmem:[%s477 + $0x20] sm:$0x1] %v538
      %v540 = vld [vmem:[%s477 + $0x2c] sm:$0x1]
      %v541 = vsel %vm530, 0, %v540
      %542 = vst [vmem:[%s477 + $0x2c] sm:$0x1] %v541
      %v543 = vld [vmem:[%s477 + $0x38] sm:$0x1]
      %v544 = vsel %vm530, 0, %v543
      %545 = vst [vmem:[%s477 + $0x38] sm:$0x1] %v544
      %v546 = vld [vmem:[%s477 + $0x44] sm:$0x1]
      %v547 = vsel %vm530, 0, %v546
      %548 = vst [vmem:[%s477 + $0x44] sm:$0x1] %v547
      %v549 = vld [vmem:[%s477 + $0x50] sm:$0x1]
      %v550 = vsel %vm530, 0, %v549
      %551 = vst [vmem:[%s477 + $0x50] sm:$0x1] %v550
      %v552 = vld [vmem:[%s477 + $0x5c] sm:$0x1]
      %v553 = vsel %vm530, 0, %v552
      %554 = vst [vmem:[%s477 + $0x5c] sm:$0x1] %v553
      %v555 = vld [vmem:[%s477 + $0x68] sm:$0x1]
      %v556 = vsel %vm530, 0, %v555
      %557 = vst [vmem:[%s477 + $0x68] sm:$0x1] %v556
      %v558 = vld [vmem:[%s477 + $0x74] sm:$0x1]
      %v559 = vsel %vm530, 0, %v558
      %560 = vst [vmem:[%s477 + $0x74] sm:$0x1] %v559
      %v561 = vld [vmem:[%s477 + $0x80] sm:$0x1]
      %v562 = vsel %vm530, 0, %v561
      %563 = vst [vmem:[%s477 + $0x80] sm:$0x1] %v562
      %v564 = vld [vmem:[%s477 + $0x8c] sm:$0x1]
      %v565 = vsel %vm530, 0, %v564
      %566 = vst [vmem:[%s477 + $0x8c] sm:$0x1] %v565
      %v567 = vld [vmem:[%s477 + $0x98] sm:$0x1]
      %v568 = vsel %vm530, 0, %v567
      %569 = vst [vmem:[%s477 + $0x98] sm:$0x1] %v568
      %v570 = vld [vmem:[%s477 + $0xa4] sm:$0x1]
      %v571 = vsel %vm530, 0, %v570
      %572 = vst [vmem:[%s477 + $0xa4] sm:$0x1] %v571
      %v573 = vld [vmem:[%s477 + $0xb0] sm:$0x1]
      %v574 = vsel %vm530, 0, %v573
      %575 = vst [vmem:[%s477 + $0xb0] sm:$0x1] %v574
      %v576 = vld [vmem:[%s477 + $0xbc] sm:$0x1]
      %v577 = vsel %vm530, 0, %v576
      %578 = vst [vmem:[%s477 + $0xbc] sm:$0x1] %v577
      %vm579 = vsmask.f32 4368
      %vm580 = vmor %vm479, %vm579
      %v582 = vshrl.u32 %v438, 16
      %v584 = vrot.slane %v582, 7
      %v585 = vshll.u32 %v438, 16
      %v587 = vor.u32 %v584, %v585
      %v588 = vrot.slane %v584, 4
      %v590 = vshrl.u32 %v439, 16
      %v592 = vrot.slane %v590, 7
      %v593 = vshll.u32 %v439, 16
      %v595 = vor.u32 %v592, %v593
      %v596 = vsel %vm580, %v588, %v595
      %v597 = vrot.slane %v592, 4
      %v599 = vshrl.u32 %v440, 16
      %v601 = vrot.slane %v599, 7
      %v602 = vshll.u32 %v440, 16
      %v604 = vor.u32 %v601, %v602
      %v605 = vrot.slane %v601, 4
      %v607 = vshrl.u32 %v441, 16
      %v609 = vrot.slane %v607, 7
      %v610 = vshll.u32 %v441, 16
      %v612 = vor.u32 %v609, %v610
      %v613 = vsel %vm580, %v605, %v612
      %v614 = vrot.slane %v609, 4
      %v616 = vshrl.u32 %v442, 16
      %v618 = vrot.slane %v616, 7
      %v619 = vshll.u32 %v442, 16
      %v621 = vor.u32 %v618, %v619
      %v622 = vrot.slane %v618, 4
      %v624 = vshrl.u32 %v443, 16
      %v626 = vrot.slane %v624, 7
      %v627 = vshll.u32 %v443, 16
      %v629 = vor.u32 %v626, %v627
      %v630 = vsel %vm580, %v622, %v629
      %v631 = vrot.slane %v626, 4
      %v633 = vshrl.u32 %v444, 16
      %v635 = vrot.slane %v633, 7
      %v636 = vshll.u32 %v444, 16
      %v638 = vor.u32 %v635, %v636
      %v639 = vrot.slane %v635, 4
      %v641 = vshrl.u32 %v445, 16
      %v643 = vrot.slane %v641, 7
      %v644 = vshll.u32 %v445, 16
      %v646 = vor.u32 %v643, %v644
      %v647 = vsel %vm580, %v639, %v646
      %v648 = vrot.slane %v643, 4
      %v650 = vshrl.u32 %v446, 16
      %v652 = vrot.slane %v650, 7
      %v653 = vshll.u32 %v446, 16
      %v655 = vor.u32 %v652, %v653
      %v656 = vrot.slane %v652, 4
      %v658 = vshrl.u32 %v447, 16
      %v660 = vrot.slane %v658, 7
      %v661 = vshll.u32 %v447, 16
      %v663 = vor.u32 %v660, %v661
      %v664 = vsel %vm580, %v656, %v663
      %v665 = vrot.slane %v660, 4
      %v667 = vshrl.u32 %v448, 16
      %v669 = vrot.slane %v667, 7
      %v670 = vshll.u32 %v448, 16
      %v672 = vor.u32 %v669, %v670
      %v673 = vrot.slane %v669, 4
      %v675 = vshrl.u32 %v449, 16
      %v677 = vrot.slane %v675, 7
      %v678 = vshll.u32 %v449, 16
      %v680 = vor.u32 %v677, %v678
      %v681 = vsel %vm580, %v673, %v680
      %v682 = vrot.slane %v677, 4
      %v684 = vshrl.u32 %v450, 16
      %v686 = vrot.slane %v684, 7
      %v687 = vshll.u32 %v450, 16
      %v689 = vor.u32 %v686, %v687
      %v690 = vrot.slane %v686, 4
      %v692 = vshrl.u32 %v451, 16
      %v694 = vrot.slane %v692, 7
      %v695 = vshll.u32 %v451, 16
      %v697 = vor.u32 %v694, %v695
      %v698 = vsel %vm580, %v690, %v697
      %v699 = vrot.slane %v694, 4
      %v701 = vshrl.u32 %v452, 16
      %v703 = vrot.slane %v701, 7
      %v704 = vshll.u32 %v452, 16
      %v706 = vor.u32 %v703, %v704
      %v707 = vrot.slane %v703, 4
      %v709 = vshrl.u32 %v453, 16
      %v711 = vrot.slane %v709, 7
      %v712 = vshll.u32 %v453, 16
      %v714 = vor.u32 %v711, %v712
      %v715 = vsel %vm580, %v707, %v714
      %v716 = vrot.slane %v711, 4
      %v718 = vshrl.u32 %v454, 16
      %v720 = vrot.slane %v718, 7
      %v721 = vshll.u32 %v454, 16
      %v723 = vor.u32 %v720, %v721
      %v724 = vrot.slane %v720, 4
      %v726 = vshrl.u32 %v455, 16
      %v728 = vrot.slane %v726, 7
      %v729 = vshll.u32 %v455, 16
      %v731 = vor.u32 %v728, %v729
      %v732 = vsel %vm580, %v724, %v731
      %v733 = vrot.slane %v728, 4
      %v735 = vshrl.u32 %v456, 16
      %v737 = vrot.slane %v735, 7
      %v738 = vshll.u32 %v456, 16
      %v740 = vor.u32 %v737, %v738
      %v741 = vrot.slane %v737, 4
      %v743 = vshrl.u32 %v457, 16
      %v745 = vrot.slane %v743, 7
      %v746 = vshll.u32 %v457, 16
      %v748 = vor.u32 %v745, %v746
      %v749 = vsel %vm580, %v741, %v748
      %v750 = vrot.slane %v745, 4
      %v752 = vshrl.u32 %v458, 16
      %v754 = vrot.slane %v752, 7
      %v755 = vshll.u32 %v458, 16
      %v757 = vor.u32 %v754, %v755
      %v758 = vrot.slane %v754, 4
      %v760 = vshrl.u32 %v459, 16
      %v762 = vrot.slane %v760, 7
      %v763 = vshll.u32 %v459, 16
      %v765 = vor.u32 %v762, %v763
      %v766 = vsel %vm580, %v758, %v765
      %v767 = vrot.slane %v762, 4
      %v769 = vshrl.u32 %v460, 16
      %v771 = vrot.slane %v769, 7
      %v772 = vshll.u32 %v460, 16
      %v774 = vor.u32 %v771, %v772
      %v775 = vrot.slane %v771, 4
      %v777 = vshrl.u32 %v461, 16
      %v779 = vrot.slane %v777, 7
      %v780 = vshll.u32 %v461, 16
      %v782 = vor.u32 %v779, %v780
      %v783 = vsel %vm580, %v775, %v782
      %v784 = vrot.slane %v779, 4
      %v786 = vshrl.u32 %v462, 16
      %v788 = vrot.slane %v786, 7
      %v789 = vshll.u32 %v462, 16
      %v791 = vor.u32 %v788, %v789
      %v792 = vrot.slane %v788, 4
      %v794 = vshrl.u32 %v463, 16
      %v796 = vrot.slane %v794, 7
      %v797 = vshll.u32 %v463, 16
      %v799 = vor.u32 %v796, %v797
      %v800 = vsel %vm580, %v792, %v799
      %v801 = vrot.slane %v796, 4
      %v803 = vshrl.u32 %v464, 16
      %v805 = vrot.slane %v803, 7
      %v806 = vshll.u32 %v464, 16
      %v808 = vor.u32 %v805, %v806
      %v809 = vrot.slane %v805, 4
      %v811 = vshrl.u32 %v465, 16
      %v813 = vrot.slane %v811, 7
      %v814 = vshll.u32 %v465, 16
      %v816 = vor.u32 %v813, %v814
      %v817 = vsel %vm580, %v809, %v816
      %v818 = vrot.slane %v813, 4
      %v820 = vshrl.u32 %v466, 16
      %v822 = vrot.slane %v820, 7
      %v823 = vshll.u32 %v466, 16
      %v825 = vor.u32 %v822, %v823
      %v826 = vrot.slane %v822, 4
      %v828 = vshrl.u32 %v467, 16
      %v830 = vrot.slane %v828, 7
      %v831 = vshll.u32 %v467, 16
      %v833 = vor.u32 %v830, %v831
      %v834 = vsel %vm580, %v826, %v833
      %v835 = vrot.slane %v830, 4
      %v837 = vshrl.u32 %v468, 16
      %v839 = vrot.slane %v837, 7
      %v840 = vshll.u32 %v468, 16
      %v842 = vor.u32 %v839, %v840
      %v843 = vrot.slane %v839, 4
      %v845 = vshrl.u32 %v469, 16
      %v847 = vrot.slane %v845, 7
      %v848 = vshll.u32 %v469, 16
      %v850 = vor.u32 %v847, %v848
      %v851 = vsel %vm580, %v843, %v850
      %v852 = vrot.slane %v847, 4
      %vm901 = vcmask 1043456
      %vm902 = vmand %vm901, %vm529
      %v903 = vld [vmem:[%s477] sm:$0xf]
      %v904 = vsel %vm902, %v587, %v903
      %905 = vst [vmem:[%s477] sm:$0xf] %v904
      %906 = vst [vmem:[%s477 + $0x4] sm:$0xf] %v596
      %v907 = vld [vmem:[%s477 + $0x8] sm:$0x1]
      %v908 = vsel %vm480, %v597, %v907
      %909 = vst [vmem:[%s477 + $0x8] sm:$0x1] %v908
      %v910 = vld [vmem:[%s477 + $0xc] sm:$0xf]
      %v911 = vsel %vm902, %v604, %v910
      %912 = vst [vmem:[%s477 + $0xc] sm:$0xf] %v911
      %913 = vst [vmem:[%s477 + $0x10] sm:$0xf] %v613
      %v914 = vld [vmem:[%s477 + $0x14] sm:$0x1]
      %v915 = vsel %vm480, %v614, %v914
      %916 = vst [vmem:[%s477 + $0x14] sm:$0x1] %v915
      %v917 = vld [vmem:[%s477 + $0x18] sm:$0xf]
      %v918 = vsel %vm902, %v621, %v917
      %919 = vst [vmem:[%s477 + $0x18] sm:$0xf] %v918
      %920 = vst [vmem:[%s477 + $0x1c] sm:$0xf] %v630
      %v921 = vld [vmem:[%s477 + $0x20] sm:$0x1]
      %v922 = vsel %vm480, %v631, %v921
      %923 = vst [vmem:[%s477 + $0x20] sm:$0x1] %v922
      %v924 = vld [vmem:[%s477 + $0x24] sm:$0xf]
      %v925 = vsel %vm902, %v638, %v924
      %926 = vst [vmem:[%s477 + $0x24] sm:$0xf] %v925
      %927 = vst [vmem:[%s477 + $0x28] sm:$0xf] %v647
      %v928 = vld [vmem:[%s477 + $0x2c] sm:$0x1]
      %v929 = vsel %vm480, %v648, %v928
      %930 = vst [vmem:[%s477 + $0x2c] sm:$0x1] %v929
      %v931 = vld [vmem:[%s477 + $0x30] sm:$0xf]
      %v932 = vsel %vm902, %v655, %v931
      %933 = vst [vmem:[%s477 + $0x30] sm:$0xf] %v932
      %934 = vst [vmem:[%s477 + $0x34] sm:$0xf] %v664
      %v935 = vld [vmem:[%s477 + $0x38] sm:$0x1]
      %v936 = vsel %vm480, %v665, %v935
      %937 = vst [vmem:[%s477 + $0x38] sm:$0x1] %v936
      %v938 = vld [vmem:[%s477 + $0x3c] sm:$0xf]
      %v939 = vsel %vm902, %v672, %v938
      %940 = vst [vmem:[%s477 + $0x3c] sm:$0xf] %v939
      %941 = vst [vmem:[%s477 + $0x40] sm:$0xf] %v681
      %v942 = vld [vmem:[%s477 + $0x44] sm:$0x1]
      %v943 = vsel %vm480, %v682, %v942
      %944 = vst [vmem:[%s477 + $0x44] sm:$0x1] %v943
      %v945 = vld [vmem:[%s477 + $0x48] sm:$0xf]
      %v946 = vsel %vm902, %v689, %v945
      %947 = vst [vmem:[%s477 + $0x48] sm:$0xf] %v946
      %948 = vst [vmem:[%s477 + $0x4c] sm:$0xf] %v698
      %v949 = vld [vmem:[%s477 + $0x50] sm:$0x1]
      %v950 = vsel %vm480, %v699, %v949
      %951 = vst [vmem:[%s477 + $0x50] sm:$0x1] %v950
      %v952 = vld [vmem:[%s477 + $0x54] sm:$0xf]
      %v953 = vsel %vm902, %v706, %v952
      %954 = vst [vmem:[%s477 + $0x54] sm:$0xf] %v953
      %955 = vst [vmem:[%s477 + $0x58] sm:$0xf] %v715
      %v956 = vld [vmem:[%s477 + $0x5c] sm:$0x1]
      %v957 = vsel %vm480, %v716, %v956
      %958 = vst [vmem:[%s477 + $0x5c] sm:$0x1] %v957
      %v959 = vld [vmem:[%s477 + $0x60] sm:$0xf]
      %v960 = vsel %vm902, %v723, %v959
      %961 = vst [vmem:[%s477 + $0x60] sm:$0xf] %v960
      %962 = vst [vmem:[%s477 + $0x64] sm:$0xf] %v732
      %v963 = vld [vmem:[%s477 + $0x68] sm:$0x1]
      %v964 = vsel %vm480, %v733, %v963
      %965 = vst [vmem:[%s477 + $0x68] sm:$0x1] %v964
      %v966 = vld [vmem:[%s477 + $0x6c] sm:$0xf]
      %v967 = vsel %vm902, %v740, %v966
      %968 = vst [vmem:[%s477 + $0x6c] sm:$0xf] %v967
      %969 = vst [vmem:[%s477 + $0x70] sm:$0xf] %v749
      %v970 = vld [vmem:[%s477 + $0x74] sm:$0x1]
      %v971 = vsel %vm480, %v750, %v970
      %972 = vst [vmem:[%s477 + $0x74] sm:$0x1] %v971
      %v973 = vld [vmem:[%s477 + $0x78] sm:$0xf]
      %v974 = vsel %vm902, %v757, %v973
      %975 = vst [vmem:[%s477 + $0x78] sm:$0xf] %v974
      %976 = vst [vmem:[%s477 + $0x7c] sm:$0xf] %v766
      %v977 = vld [vmem:[%s477 + $0x80] sm:$0x1]
      %v978 = vsel %vm480, %v767, %v977
      %979 = vst [vmem:[%s477 + $0x80] sm:$0x1] %v978
      %v980 = vld [vmem:[%s477 + $0x84] sm:$0xf]
      %v981 = vsel %vm902, %v774, %v980
      %982 = vst [vmem:[%s477 + $0x84] sm:$0xf] %v981
      %983 = vst [vmem:[%s477 + $0x88] sm:$0xf] %v783
      %v984 = vld [vmem:[%s477 + $0x8c] sm:$0x1]
      %v985 = vsel %vm480, %v784, %v984
      %986 = vst [vmem:[%s477 + $0x8c] sm:$0x1] %v985
      %v987 = vld [vmem:[%s477 + $0x90] sm:$0xf]
      %v988 = vsel %vm902, %v791, %v987
      %989 = vst [vmem:[%s477 + $0x90] sm:$0xf] %v988
      %990 = vst [vmem:[%s477 + $0x94] sm:$0xf] %v800
      %v991 = vld [vmem:[%s477 + $0x98] sm:$0x1]
      %v992 = vsel %vm480, %v801, %v991
      %993 = vst [vmem:[%s477 + $0x98] sm:$0x1] %v992
      %v994 = vld [vmem:[%s477 + $0x9c] sm:$0xf]
      %v995 = vsel %vm902, %v808, %v994
      %996 = vst [vmem:[%s477 + $0x9c] sm:$0xf] %v995
      %997 = vst [vmem:[%s477 + $0xa0] sm:$0xf] %v817
      %v998 = vld [vmem:[%s477 + $0xa4] sm:$0x1]
      %v999 = vsel %vm480, %v818, %v998
      %1000 = vst [vmem:[%s477 + $0xa4] sm:$0x1] %v999
      %v1001 = vld [vmem:[%s477 + $0xa8] sm:$0xf]
      %v1002 = vsel %vm902, %v825, %v1001
      %1003 = vst [vmem:[%s477 + $0xa8] sm:$0xf] %v1002
      %1004 = vst [vmem:[%s477 + $0xac] sm:$0xf] %v834
      %v1005 = vld [vmem:[%s477 + $0xb0] sm:$0x1]
      %v1006 = vsel %vm480, %v835, %v1005
      %1007 = vst [vmem:[%s477 + $0xb0] sm:$0x1] %v1006
      %v1008 = vld [vmem:[%s477 + $0xb4] sm:$0xf]
      %v1009 = vsel %vm902, %v842, %v1008
      %1010 = vst [vmem:[%s477 + $0xb4] sm:$0xf] %v1009
      %1011 = vst [vmem:[%s477 + $0xb8] sm:$0xf] %v851
      %v1012 = vld [vmem:[%s477 + $0xbc] sm:$0x1]
      %v1013 = vsel %vm480, %v852, %v1012
      %1014 = vst [vmem:[%s477 + $0xbc] sm:$0x1] %v1013
      %v1015 = vld [vmem:[#allocation2] sm:$0xf]
      %v1016 = vld [vmem:[#allocation2 + $0x4] sm:$0xf]
      %v1017 = vld [vmem:[#allocation2 + $0xc] sm:$0xf]
      %v1018 = vld [vmem:[#allocation2 + $0x10] sm:$0xf]
      %v1019 = vld [vmem:[#allocation2 + $0x18] sm:$0xf]
      %v1020 = vld [vmem:[#allocation2 + $0x1c] sm:$0xf]
      %v1021 = vld [vmem:[#allocation2 + $0x24] sm:$0xf]
      %v1022 = vld [vmem:[#allocation2 + $0x28] sm:$0xf]
      %v1023 = vld [vmem:[#allocation2 + $0x30] sm:$0xf]
      %v1024 = vld [vmem:[#allocation2 + $0x34] sm:$0xf]
      %v1025 = vld [vmem:[#allocation2 + $0x3c] sm:$0xf]
      %v1026 = vld [vmem:[#allocation2 + $0x40] sm:$0xf]
      %v1027 = vld [vmem:[#allocation2 + $0x48] sm:$0xf]
      %v1028 = vld [vmem:[#allocation2 + $0x4c] sm:$0xf]
      %v1029 = vld [vmem:[#allocation2 + $0x54] sm:$0xf]
      %v1030 = vld [vmem:[#allocation2 + $0x58] sm:$0xf]
      %v1031 = vld [vmem:[#allocation2 + $0x60] sm:$0xf]
      %v1032 = vld [vmem:[#allocation2 + $0x64] sm:$0xf]
      %v1033 = vld [vmem:[#allocation2 + $0x6c] sm:$0xf]
      %v1034 = vld [vmem:[#allocation2 + $0x70] sm:$0xf]
      %v1035 = vld [vmem:[#allocation2 + $0x78] sm:$0xf]
      %v1036 = vld [vmem:[#allocation2 + $0x7c] sm:$0xf]
      %v1037 = vld [vmem:[#allocation2 + $0x84] sm:$0xf]
      %v1038 = vld [vmem:[#allocation2 + $0x88] sm:$0xf]
      %v1039 = vld [vmem:[#allocation2 + $0x90] sm:$0xf]
      %v1040 = vld [vmem:[#allocation2 + $0x94] sm:$0xf]
      %v1041 = vld [vmem:[#allocation2 + $0x9c] sm:$0xf]
      %v1042 = vld [vmem:[#allocation2 + $0xa0] sm:$0xf]
      %v1043 = vld [vmem:[#allocation2 + $0xa8] sm:$0xf]
      %v1044 = vld [vmem:[#allocation2 + $0xac] sm:$0xf]
      %v1045 = vld [vmem:[#allocation2 + $0xb4] sm:$0xf]
      %v1046 = vld [vmem:[#allocation2 + $0xb8] sm:$0xf]
      %v1047 = vld [vmem:[%s3] sm:$0xf]
      %v1048 = vld [vmem:[%s3 + $0x4] sm:$0xf]
      %v1049 = vld [vmem:[%s3 + $0x8] sm:$0xf]
      %v1050 = vld [vmem:[%s3 + $0xc] sm:$0xf]
      %v1051 = vld [vmem:[%s3 + $0x10] sm:$0xf]
      %v1052 = vld [vmem:[%s3 + $0x14] sm:$0xf]
      %v1053 = vld [vmem:[%s3 + $0x18] sm:$0xf]
      %v1054 = vld [vmem:[%s3 + $0x1c] sm:$0xf]
      %v1055 = vld [vmem:[%s3 + $0x20] sm:$0xf]
      %v1056 = vld [vmem:[%s3 + $0x24] sm:$0xf]
      %v1057 = vld [vmem:[%s3 + $0x28] sm:$0xf]
      %v1058 = vld [vmem:[%s3 + $0x2c] sm:$0xf]
      %v1059 = vld [vmem:[%s3 + $0x30] sm:$0xf]
      %v1060 = vld [vmem:[%s3 + $0x34] sm:$0xf]
      %v1061 = vld [vmem:[%s3 + $0x38] sm:$0xf]
      %v1062 = vld [vmem:[%s3 + $0x3c] sm:$0xf]
      %v1063 = vld [vmem:[#allocation2 + $0x8] sm:$0x1]
      %v1064 = vld [vmem:[#allocation2 + $0x14] sm:$0x1]
      %v1065 = vld [vmem:[#allocation2 + $0x20] sm:$0x1]
      %v1066 = vld [vmem:[#allocation2 + $0x2c] sm:$0x1]
      %v1067 = vld [vmem:[#allocation2 + $0x38] sm:$0x1]
      %v1068 = vld [vmem:[#allocation2 + $0x44] sm:$0x1]
      %v1069 = vld [vmem:[#allocation2 + $0x50] sm:$0x1]
      %v1070 = vld [vmem:[#allocation2 + $0x5c] sm:$0x1]
      %v1071 = vld [vmem:[#allocation2 + $0x68] sm:$0x1]
      %v1072 = vld [vmem:[#allocation2 + $0x74] sm:$0x1]
      %v1073 = vld [vmem:[#allocation2 + $0x80] sm:$0x1]
      %v1074 = vld [vmem:[#allocation2 + $0x8c] sm:$0x1]
      %v1075 = vld [vmem:[#allocation2 + $0x98] sm:$0x1]
      %v1076 = vld [vmem:[#allocation2 + $0xa4] sm:$0x1]
      %v1077 = vld [vmem:[#allocation2 + $0xb0] sm:$0x1]
      %v1078 = vld [vmem:[#allocation2 + $0xbc] sm:$0x1]
      %vm1079 = vsmask.f32 3328
      %vm1080 = vsmask.f32 7440
      %vm1081 = vmor %vm1079, %vm1080
      %v1083 = vshrl.u32 %v1015, 16
      %v1085 = vrot.slane %v1083, 4
      %v1086 = vshll.u32 %v1015, 16
      %v1088 = vrot.slane %v1086, 5
      %v1089 = vor.u32 %v1085, %v1088
      %v1090 = vrot.slane %v1089, 4
      %v1092 = vshll.u32 %v1016, 16
      %v1094 = vrot.slane %v1092, 5
      %v1095 = vsel %vm1081, %v1090, %v1094
      %v1096 = vshrl.u32 %v1016, 16
      %v1098 = vrot.slane %v1096, 4
      %v1099 = vor.u32 %v1098, %v1094
      %v1100 = vrot.slane %v1099, 4
      %v1102 = vshll.u32 %v1063, 16
      %v1104 = vrot.slane %v1102, 5
      %v1105 = vsel %vm1081, %v1100, %v1104
      %v1107 = vshrl.u32 %v1017, 16
      %v1109 = vrot.slane %v1107, 4
      %v1110 = vshll.u32 %v1017, 16
      %v1112 = vrot.slane %v1110, 5
      %v1113 = vor.u32 %v1109, %v1112
      %v1114 = vrot.slane %v1113, 4
      %v1116 = vshll.u32 %v1018, 16
      %v1118 = vrot.slane %v1116, 5
      %v1119 = vsel %vm1081, %v1114, %v1118
      %v1120 = vshrl.u32 %v1018, 16
      %v1122 = vrot.slane %v1120, 4
      %v1123 = vor.u32 %v1122, %v1118
      %v1124 = vrot.slane %v1123, 4
      %v1126 = vshll.u32 %v1064, 16
      %v1128 = vrot.slane %v1126, 5
      %v1129 = vsel %vm1081, %v1124, %v1128
      %v1131 = vshrl.u32 %v1019, 16
      %v1133 = vrot.slane %v1131, 4
      %v1134 = vshll.u32 %v1019, 16
      %v1136 = vrot.slane %v1134, 5
      %v1137 = vor.u32 %v1133, %v1136
      %v1138 = vrot.slane %v1137, 4
      %v1140 = vshll.u32 %v1020, 16
      %v1142 = vrot.slane %v1140, 5
      %v1143 = vsel %vm1081, %v1138, %v1142
      %v1144 = vshrl.u32 %v1020, 16
      %v1146 = vrot.slane %v1144, 4
      %v1147 = vor.u32 %v1146, %v1142
      %v1148 = vrot.slane %v1147, 4
      %v1150 = vshll.u32 %v1065, 16
      %v1152 = vrot.slane %v1150, 5
      %v1153 = vsel %vm1081, %v1148, %v1152
      %v1155 = vshrl.u32 %v1021, 16
      %v1157 = vrot.slane %v1155, 4
      %v1158 = vshll.u32 %v1021, 16
      %v1160 = vrot.slane %v1158, 5
      %v1161 = vor.u32 %v1157, %v1160
      %v1162 = vrot.slane %v1161, 4
      %v1164 = vshll.u32 %v1022, 16
      %v1166 = vrot.slane %v1164, 5
      %v1167 = vsel %vm1081, %v1162, %v1166
      %v1168 = vshrl.u32 %v1022, 16
      %v1170 = vrot.slane %v1168, 4
      %v1171 = vor.u32 %v1170, %v1166
      %v1172 = vrot.slane %v1171, 4
      %v1174 = vshll.u32 %v1066, 16
      %v1176 = vrot.slane %v1174, 5
      %v1177 = vsel %vm1081, %v1172, %v1176
      %v1179 = vshrl.u32 %v1023, 16
      %v1181 = vrot.slane %v1179, 4
      %v1182 = vshll.u32 %v1023, 16
      %v1184 = vrot.slane %v1182, 5
      %v1185 = vor.u32 %v1181, %v1184
      %v1186 = vrot.slane %v1185, 4
      %v1188 = vshll.u32 %v1024, 16
      %v1190 = vrot.slane %v1188, 5
      %v1191 = vsel %vm1081, %v1186, %v1190
      %v1192 = vshrl.u32 %v1024, 16
      %v1194 = vrot.slane %v1192, 4
      %v1195 = vor.u32 %v1194, %v1190
      %v1196 = vrot.slane %v1195, 4
      %v1198 = vshll.u32 %v1067, 16
      %v1200 = vrot.slane %v1198, 5
      %v1201 = vsel %vm1081, %v1196, %v1200
      %v1203 = vshrl.u32 %v1025, 16
      %v1205 = vrot.slane %v1203, 4
      %v1206 = vshll.u32 %v1025, 16
      %v1208 = vrot.slane %v1206, 5
      %v1209 = vor.u32 %v1205, %v1208
      %v1210 = vrot.slane %v1209, 4
      %v1212 = vshll.u32 %v1026, 16
      %v1214 = vrot.slane %v1212, 5
      %v1215 = vsel %vm1081, %v1210, %v1214
      %v1216 = vshrl.u32 %v1026, 16
      %v1218 = vrot.slane %v1216, 4
      %v1219 = vor.u32 %v1218, %v1214
      %v1220 = vrot.slane %v1219, 4
      %v1222 = vshll.u32 %v1068, 16
      %v1224 = vrot.slane %v1222, 5
      %v1225 = vsel %vm1081, %v1220, %v1224
      %v1227 = vshrl.u32 %v1027, 16
      %v1229 = vrot.slane %v1227, 4
      %v1230 = vshll.u32 %v1027, 16
      %v1232 = vrot.slane %v1230, 5
      %v1233 = vor.u32 %v1229, %v1232
      %v1234 = vrot.slane %v1233, 4
      %v1236 = vshll.u32 %v1028, 16
      %v1238 = vrot.slane %v1236, 5
      %v1239 = vsel %vm1081, %v1234, %v1238
      %v1240 = vshrl.u32 %v1028, 16
      %v1242 = vrot.slane %v1240, 4
      %v1243 = vor.u32 %v1242, %v1238
      %v1244 = vrot.slane %v1243, 4
      %v1246 = vshll.u32 %v1069, 16
      %v1248 = vrot.slane %v1246, 5
      %v1249 = vsel %vm1081, %v1244, %v1248
      %v1251 = vshrl.u32 %v1029, 16
      %v1253 = vrot.slane %v1251, 4
      %v1254 = vshll.u32 %v1029, 16
      %v1256 = vrot.slane %v1254, 5
      %v1257 = vor.u32 %v1253, %v1256
      %v1258 = vrot.slane %v1257, 4
      %v1260 = vshll.u32 %v1030, 16
      %v1262 = vrot.slane %v1260, 5
      %v1263 = vsel %vm1081, %v1258, %v1262
      %v1264 = vshrl.u32 %v1030, 16
      %v1266 = vrot.slane %v1264, 4
      %v1267 = vor.u32 %v1266, %v1262
      %v1268 = vrot.slane %v1267, 4
      %v1270 = vshll.u32 %v1070, 16
      %v1272 = vrot.slane %v1270, 5
      %v1273 = vsel %vm1081, %v1268, %v1272
      %v1275 = vshrl.u32 %v1031, 16
      %v1277 = vrot.slane %v1275, 4
      %v1278 = vshll.u32 %v1031, 16
      %v1280 = vrot.slane %v1278, 5
      %v1281 = vor.u32 %v1277, %v1280
      %v1282 = vrot.slane %v1281, 4
      %v1284 = vshll.u32 %v1032, 16
      %v1286 = vrot.slane %v1284, 5
      %v1287 = vsel %vm1081, %v1282, %v1286
      %v1288 = vshrl.u32 %v1032, 16
      %v1290 = vrot.slane %v1288, 4
      %v1291 = vor.u32 %v1290, %v1286
      %v1292 = vrot.slane %v1291, 4
      %v1294 = vshll.u32 %v1071, 16
      %v1296 = vrot.slane %v1294, 5
      %v1297 = vsel %vm1081, %v1292, %v1296
      %v1299 = vshrl.u32 %v1033, 16
      %v1301 = vrot.slane %v1299, 4
      %v1302 = vshll.u32 %v1033, 16
      %v1304 = vrot.slane %v1302, 5
      %v1305 = vor.u32 %v1301, %v1304
      %v1306 = vrot.slane %v1305, 4
      %v1308 = vshll.u32 %v1034, 16
      %v1310 = vrot.slane %v1308, 5
      %v1311 = vsel %vm1081, %v1306, %v1310
      %v1312 = vshrl.u32 %v1034, 16
      %v1314 = vrot.slane %v1312, 4
      %v1315 = vor.u32 %v1314, %v1310
      %v1316 = vrot.slane %v1315, 4
      %v1318 = vshll.u32 %v1072, 16
      %v1320 = vrot.slane %v1318, 5
      %v1321 = vsel %vm1081, %v1316, %v1320
      %v1323 = vshrl.u32 %v1035, 16
      %v1325 = vrot.slane %v1323, 4
      %v1326 = vshll.u32 %v1035, 16
      %v1328 = vrot.slane %v1326, 5
      %v1329 = vor.u32 %v1325, %v1328
      %v1330 = vrot.slane %v1329, 4
      %v1332 = vshll.u32 %v1036, 16
      %v1334 = vrot.slane %v1332, 5
      %v1335 = vsel %vm1081, %v1330, %v1334
      %v1336 = vshrl.u32 %v1036, 16
      %v1338 = vrot.slane %v1336, 4
      %v1339 = vor.u32 %v1338, %v1334
      %v1340 = vrot.slane %v1339, 4
      %v1342 = vshll.u32 %v1073, 16
      %v1344 = vrot.slane %v1342, 5
      %v1345 = vsel %vm1081, %v1340, %v1344
      %v1347 = vshrl.u32 %v1037, 16
      %v1349 = vrot.slane %v1347, 4
      %v1350 = vshll.u32 %v1037, 16
      %v1352 = vrot.slane %v1350, 5
      %v1353 = vor.u32 %v1349, %v1352
      %v1354 = vrot.slane %v1353, 4
      %v1356 = vshll.u32 %v1038, 16
      %v1358 = vrot.slane %v1356, 5
      %v1359 = vsel %vm1081, %v1354, %v1358
      %v1360 = vshrl.u32 %v1038, 16
      %v1362 = vrot.slane %v1360, 4
      %v1363 = vor.u32 %v1362, %v1358
      %v1364 = vrot.slane %v1363, 4
      %v1366 = vshll.u32 %v1074, 16
      %v1368 = vrot.slane %v1366, 5
      %v1369 = vsel %vm1081, %v1364, %v1368
      %v1371 = vshrl.u32 %v1039, 16
      %v1373 = vrot.slane %v1371, 4
      %v1374 = vshll.u32 %v1039, 16
      %v1376 = vrot.slane %v1374, 5
      %v1377 = vor.u32 %v1373, %v1376
      %v1378 = vrot.slane %v1377, 4
      %v1380 = vshll.u32 %v1040, 16
      %v1382 = vrot.slane %v1380, 5
      %v1383 = vsel %vm1081, %v1378, %v1382
      %v1384 = vshrl.u32 %v1040, 16
      %v1386 = vrot.slane %v1384, 4
      %v1387 = vor.u32 %v1386, %v1382
      %v1388 = vrot.slane %v1387, 4
      %v1390 = vshll.u32 %v1075, 16
      %v1392 = vrot.slane %v1390, 5
      %v1393 = vsel %vm1081, %v1388, %v1392
      %v1395 = vshrl.u32 %v1041, 16
      %v1397 = vrot.slane %v1395, 4
      %v1398 = vshll.u32 %v1041, 16
      %v1400 = vrot.slane %v1398, 5
      %v1401 = vor.u32 %v1397, %v1400
      %v1402 = vrot.slane %v1401, 4
      %v1404 = vshll.u32 %v1042, 16
      %v1406 = vrot.slane %v1404, 5
      %v1407 = vsel %vm1081, %v1402, %v1406
      %v1408 = vshrl.u32 %v1042, 16
      %v1410 = vrot.slane %v1408, 4
      %v1411 = vor.u32 %v1410, %v1406
      %v1412 = vrot.slane %v1411, 4
      %v1414 = vshll.u32 %v1076, 16
      %v1416 = vrot.slane %v1414, 5
      %v1417 = vsel %vm1081, %v1412, %v1416
      %v1419 = vshrl.u32 %v1043, 16
      %v1421 = vrot.slane %v1419, 4
      %v1422 = vshll.u32 %v1043, 16
      %v1424 = vrot.slane %v1422, 5
      %v1425 = vor.u32 %v1421, %v1424
      %v1426 = vrot.slane %v1425, 4
      %v1428 = vshll.u32 %v1044, 16
      %v1430 = vrot.slane %v1428, 5
      %v1431 = vsel %vm1081, %v1426, %v1430
      %v1432 = vshrl.u32 %v1044, 16
      %v1434 = vrot.slane %v1432, 4
      %v1435 = vor.u32 %v1434, %v1430
      %v1436 = vrot.slane %v1435, 4
      %v1438 = vshll.u32 %v1077, 16
      %v1440 = vrot.slane %v1438, 5
      %v1441 = vsel %vm1081, %v1436, %v1440
      %v1443 = vshrl.u32 %v1045, 16
      %v1445 = vrot.slane %v1443, 4
      %v1446 = vshll.u32 %v1045, 16
      %v1448 = vrot.slane %v1446, 5
      %v1449 = vor.u32 %v1445, %v1448
      %v1450 = vrot.slane %v1449, 4
      %v1452 = vshll.u32 %v1046, 16
      %v1454 = vrot.slane %v1452, 5
      %v1455 = vsel %vm1081, %v1450, %v1454
      %v1456 = vshrl.u32 %v1046, 16
      %v1458 = vrot.slane %v1456, 4
      %v1459 = vor.u32 %v1458, %v1454
      %v1460 = vrot.slane %v1459, 4
      %v1462 = vshll.u32 %v1078, 16
      %v1464 = vrot.slane %v1462, 5
      %v1465 = vsel %vm1081, %v1460, %v1464
      %s1466 = scalar_lea.vmem %s3, 64
      %v1467 = vld [vmem:[%s1466] sm:$0xf]
      %v1468 = vld [vmem:[%s1466 + $0x4] sm:$0xf]
      %v1469 = vld [vmem:[%s1466 + $0x8] sm:$0xf]
      %v1470 = vld [vmem:[%s1466 + $0xc] sm:$0xf]
      %v1471 = vld [vmem:[%s1466 + $0x10] sm:$0xf]
      %v1472 = vld [vmem:[%s1466 + $0x14] sm:$0xf]
      %v1473 = vld [vmem:[%s1466 + $0x18] sm:$0xf]
      %v1474 = vld [vmem:[%s1466 + $0x1c] sm:$0xf]
      %v1475 = vld [vmem:[%s1466 + $0x20] sm:$0xf]
      %v1476 = vld [vmem:[%s1466 + $0x24] sm:$0xf]
      %v1477 = vld [vmem:[%s1466 + $0x28] sm:$0xf]
      %v1478 = vld [vmem:[%s1466 + $0x2c] sm:$0xf]
      %v1479 = vld [vmem:[%s1466 + $0x30] sm:$0xf]
      %v1480 = vld [vmem:[%s1466 + $0x34] sm:$0xf]
      %v1481 = vld [vmem:[%s1466 + $0x38] sm:$0xf]
      %v1482 = vld [vmem:[%s1466 + $0x3c] sm:$0xf]
      %v1483 = vunpack.c.l.b16 %v1095
      %v1484 = vunpack.c.l.b16 %v1105
      %v1485 = vunpack.c.l.b16 %v1119
      %v1486 = vunpack.c.l.b16 %v1129
      %v1487 = vunpack.c.l.b16 %v1143
      %v1488 = vunpack.c.l.b16 %v1153
      %v1489 = vunpack.c.l.b16 %v1167
      %v1490 = vunpack.c.l.b16 %v1177
      %v1491 = vunpack.c.l.b16 %v1191
      %v1492 = vunpack.c.l.b16 %v1201
      %v1493 = vunpack.c.l.b16 %v1215
      %v1494 = vunpack.c.l.b16 %v1225
      %v1495 = vunpack.c.l.b16 %v1239
      %v1496 = vunpack.c.l.b16 %v1249
      %v1497 = vunpack.c.l.b16 %v1263
      %v1498 = vunpack.c.l.b16 %v1273
      %v1499 = vunpack.c.l.b16 %v1287
      %v1500 = vunpack.c.l.b16 %v1297
      %v1501 = vunpack.c.l.b16 %v1311
      %v1502 = vunpack.c.l.b16 %v1321
      %v1503 = vunpack.c.l.b16 %v1335
      %v1504 = vunpack.c.l.b16 %v1345
      %v1505 = vunpack.c.l.b16 %v1359
      %v1506 = vunpack.c.l.b16 %v1369
      %v1507 = vunpack.c.l.b16 %v1383
      %v1508 = vunpack.c.l.b16 %v1393
      %v1509 = vunpack.c.l.b16 %v1407
      %v1510 = vunpack.c.l.b16 %v1417
      %v1511 = vunpack.c.l.b16 %v1431
      %v1512 = vunpack.c.l.b16 %v1441
      %v1513 = vunpack.c.l.b16 %v1455
      %v1514 = vunpack.c.l.b16 %v1465
      %v1515 = vpack.c.b16 %v1484, %v1483
      %v1516 = vpack.c.b16 %v1486, %v1485
      %v1517 = vpack.c.b16 %v1488, %v1487
      %v1518 = vpack.c.b16 %v1490, %v1489
      %v1519 = vpack.c.b16 %v1492, %v1491
      %v1520 = vpack.c.b16 %v1494, %v1493
      %v1521 = vpack.c.b16 %v1496, %v1495
      %v1522 = vpack.c.b16 %v1498, %v1497
      %v1523 = vpack.c.b16 %v1500, %v1499
      %v1524 = vpack.c.b16 %v1502, %v1501
      %v1525 = vpack.c.b16 %v1504, %v1503
      %v1526 = vpack.c.b16 %v1506, %v1505
      %v1527 = vpack.c.b16 %v1508, %v1507
      %v1528 = vpack.c.b16 %v1510, %v1509
      %v1529 = vpack.c.b16 %v1512, %v1511
      %v1530 = vpack.c.b16 %v1514, %v1513
      %v1563 = vunpack.c.l.b16 %v1467
      %v1564 = vunpack.c.l.b16 %v1468
      %v1565 = vunpack.c.l.b16 %v1469
      %v1566 = vunpack.c.l.b16 %v1470
      %v1567 = vunpack.c.l.b16 %v1471
      %v1568 = vunpack.c.l.b16 %v1472
      %v1569 = vunpack.c.l.b16 %v1473
      %v1570 = vunpack.c.l.b16 %v1474
      %v1571 = vunpack.c.l.b16 %v1475
      %v1572 = vunpack.c.l.b16 %v1476
      %v1573 = vunpack.c.l.b16 %v1477
      %v1574 = vunpack.c.l.b16 %v1478
      %v1575 = vunpack.c.l.b16 %v1479
      %v1576 = vunpack.c.l.b16 %v1480
      %v1577 = vunpack.c.l.b16 %v1481
      %v1578 = vunpack.c.l.b16 %v1482
      %v1579 = vpack.c.b16 %v1564, %v1563
      %v1580 = vpack.c.b16 %v1566, %v1565
      %v1581 = vpack.c.b16 %v1568, %v1567
      %v1582 = vpack.c.b16 %v1570, %v1569
      %v1583 = vpack.c.b16 %v1572, %v1571
      %v1584 = vpack.c.b16 %v1574, %v1573
      %v1585 = vpack.c.b16 %v1576, %v1575
      %v1586 = vpack.c.b16 %v1578, %v1577
      %1595 = vmatpush.bf16.msra.mxu0 %v1586
      %1596 = vmatpush.bf16.msra.mxu0 %v1585
      %1597 = vmatpush.bf16.msra.mxu0 %v1584
      %1598 = vmatpush.bf16.msra.mxu0 %v1583
      %1599 = vmatpush.bf16.msra.mxu0 %v1582
      %1600 = vmatpush.bf16.msra.mxu0 %v1581
      %1601 = vmatpush.bf16.msra.mxu0 %v1580
      %1602 = vmatpush.bf16.msra.mxu0 %v1579
      %1603 = vmatmul.bf16.gmra.mxu0 %v1515
      %v1604 = vpop.f32.mrf.mxu0
      %v1605 = vadd.f32 0.0, %v1604
      %v1606 = vpop.f32.mrf.mxu0
      %v1607 = vadd.f32 0.0, %v1606
      %1608 = vmatmul.bf16.gmra.mxu0 %v1516
      %v1609 = vpop.f32.mrf.mxu0
      %v1610 = vadd.f32 0.0, %v1609
      %v1611 = vpop.f32.mrf.mxu0
      %v1612 = vadd.f32 0.0, %v1611
      %1613 = vmatmul.bf16.gmra.mxu0 %v1517
      %v1614 = vpop.f32.mrf.mxu0
      %v1615 = vadd.f32 0.0, %v1614
      %v1616 = vpop.f32.mrf.mxu0
      %v1617 = vadd.f32 0.0, %v1616
      %1618 = vmatmul.bf16.gmra.mxu0 %v1518
      %v1619 = vpop.f32.mrf.mxu0
      %v1620 = vadd.f32 0.0, %v1619
      %v1621 = vpop.f32.mrf.mxu0
      %v1622 = vadd.f32 0.0, %v1621
      %1623 = vmatmul.bf16.gmra.mxu0 %v1519
      %v1624 = vpop.f32.mrf.mxu0
      %v1625 = vadd.f32 0.0, %v1624
      %v1626 = vpop.f32.mrf.mxu0
      %v1627 = vadd.f32 0.0, %v1626
      %1628 = vmatmul.bf16.gmra.mxu0 %v1520
      %v1629 = vpop.f32.mrf.mxu0
      %v1630 = vadd.f32 0.0, %v1629
      %v1631 = vpop.f32.mrf.mxu0
      %v1632 = vadd.f32 0.0, %v1631
      %1633 = vmatmul.bf16.gmra.mxu0 %v1521
      %v1634 = vpop.f32.mrf.mxu0
      %v1635 = vadd.f32 0.0, %v1634
      %v1636 = vpop.f32.mrf.mxu0
      %v1637 = vadd.f32 0.0, %v1636
      %1638 = vmatmul.bf16.gmra.mxu0 %v1522
      %v1639 = vpop.f32.mrf.mxu0
      %v1640 = vadd.f32 0.0, %v1639
      %v1641 = vpop.f32.mrf.mxu0
      %v1642 = vadd.f32 0.0, %v1641
      %1643 = vmatmul.bf16.gmra.mxu0 %v1523
      %v1644 = vpop.f32.mrf.mxu0
      %v1645 = vadd.f32 0.0, %v1644
      %v1646 = vpop.f32.mrf.mxu0
      %v1647 = vadd.f32 0.0, %v1646
      %1648 = vmatmul.bf16.gmra.mxu0 %v1524
      %v1649 = vpop.f32.mrf.mxu0
      %v1650 = vadd.f32 0.0, %v1649
      %v1651 = vpop.f32.mrf.mxu0
      %v1652 = vadd.f32 0.0, %v1651
      %1653 = vmatmul.bf16.gmra.mxu0 %v1525
      %v1654 = vpop.f32.mrf.mxu0
      %v1655 = vadd.f32 0.0, %v1654
      %v1656 = vpop.f32.mrf.mxu0
      %v1657 = vadd.f32 0.0, %v1656
      %1658 = vmatmul.bf16.gmra.mxu0 %v1526
      %v1659 = vpop.f32.mrf.mxu0
      %v1660 = vadd.f32 0.0, %v1659
      %v1661 = vpop.f32.mrf.mxu0
      %v1662 = vadd.f32 0.0, %v1661
      %1663 = vmatmul.bf16.gmra.mxu0 %v1527
      %v1664 = vpop.f32.mrf.mxu0
      %v1665 = vadd.f32 0.0, %v1664
      %v1666 = vpop.f32.mrf.mxu0
      %v1667 = vadd.f32 0.0, %v1666
      %1668 = vmatmul.bf16.gmra.mxu0 %v1528
      %v1669 = vpop.f32.mrf.mxu0
      %v1670 = vadd.f32 0.0, %v1669
      %v1671 = vpop.f32.mrf.mxu0
      %v1672 = vadd.f32 0.0, %v1671
      %1673 = vmatmul.bf16.gmra.mxu0 %v1529
      %v1674 = vpop.f32.mrf.mxu0
      %v1675 = vadd.f32 0.0, %v1674
      %v1676 = vpop.f32.mrf.mxu0
      %v1677 = vadd.f32 0.0, %v1676
      %1678 = vmatmul.bf16.gmra.mxu0 %v1530
      %v1679 = vpop.f32.mrf.mxu0
      %v1680 = vadd.f32 0.0, %v1679
      %v1681 = vpop.f32.mrf.mxu0
      %v1682 = vadd.f32 0.0, %v1681
      %1683 = vdwg.mxu0
      %v1716 = vunpack.c.l.b16 %v1015
      %v1717 = vunpack.c.l.b16 %v1016
      %v1718 = vunpack.c.l.b16 %v1017
      %v1719 = vunpack.c.l.b16 %v1018
      %v1720 = vunpack.c.l.b16 %v1019
      %v1721 = vunpack.c.l.b16 %v1020
      %v1722 = vunpack.c.l.b16 %v1021
      %v1723 = vunpack.c.l.b16 %v1022
      %v1724 = vunpack.c.l.b16 %v1023
      %v1725 = vunpack.c.l.b16 %v1024
      %v1726 = vunpack.c.l.b16 %v1025
      %v1727 = vunpack.c.l.b16 %v1026
      %v1728 = vunpack.c.l.b16 %v1027
      %v1729 = vunpack.c.l.b16 %v1028
      %v1730 = vunpack.c.l.b16 %v1029
      %v1731 = vunpack.c.l.b16 %v1030
      %v1732 = vunpack.c.l.b16 %v1031
      %v1733 = vunpack.c.l.b16 %v1032
      %v1734 = vunpack.c.l.b16 %v1033
      %v1735 = vunpack.c.l.b16 %v1034
      %v1736 = vunpack.c.l.b16 %v1035
      %v1737 = vunpack.c.l.b16 %v1036
      %v1738 = vunpack.c.l.b16 %v1037
      %v1739 = vunpack.c.l.b16 %v1038
      %v1740 = vunpack.c.l.b16 %v1039
      %v1741 = vunpack.c.l.b16 %v1040
      %v1742 = vunpack.c.l.b16 %v1041
      %v1743 = vunpack.c.l.b16 %v1042
      %v1744 = vunpack.c.l.b16 %v1043
      %v1745 = vunpack.c.l.b16 %v1044
      %v1746 = vunpack.c.l.b16 %v1045
      %v1747 = vunpack.c.l.b16 %v1046
      %v1748 = vpack.c.b16 %v1717, %v1716
      %v1749 = vpack.c.b16 %v1719, %v1718
      %v1750 = vpack.c.b16 %v1721, %v1720
      %v1751 = vpack.c.b16 %v1723, %v1722
      %v1752 = vpack.c.b16 %v1725, %v1724
      %v1753 = vpack.c.b16 %v1727, %v1726
      %v1754 = vpack.c.b16 %v1729, %v1728
      %v1755 = vpack.c.b16 %v1731, %v1730
      %v1756 = vpack.c.b16 %v1733, %v1732
      %v1757 = vpack.c.b16 %v1735, %v1734
      %v1758 = vpack.c.b16 %v1737, %v1736
      %v1759 = vpack.c.b16 %v1739, %v1738
      %v1760 = vpack.c.b16 %v1741, %v1740
      %v1761 = vpack.c.b16 %v1743, %v1742
      %v1762 = vpack.c.b16 %v1745, %v1744
      %v1763 = vpack.c.b16 %v1747, %v1746
      %v1796 = vunpack.c.l.b16 %v1047
      %v1797 = vunpack.c.l.b16 %v1048
      %v1798 = vunpack.c.l.b16 %v1049
      %v1799 = vunpack.c.l.b16 %v1050
      %v1800 = vunpack.c.l.b16 %v1051
      %v1801 = vunpack.c.l.b16 %v1052
      %v1802 = vunpack.c.l.b16 %v1053
      %v1803 = vunpack.c.l.b16 %v1054
      %v1804 = vunpack.c.l.b16 %v1055
      %v1805 = vunpack.c.l.b16 %v1056
      %v1806 = vunpack.c.l.b16 %v1057
      %v1807 = vunpack.c.l.b16 %v1058
      %v1808 = vunpack.c.l.b16 %v1059
      %v1809 = vunpack.c.l.b16 %v1060
      %v1810 = vunpack.c.l.b16 %v1061
      %v1811 = vunpack.c.l.b16 %v1062
      %v1812 = vpack.c.b16 %v1797, %v1796
      %v1813 = vpack.c.b16 %v1799, %v1798
      %v1814 = vpack.c.b16 %v1801, %v1800
      %v1815 = vpack.c.b16 %v1803, %v1802
      %v1816 = vpack.c.b16 %v1805, %v1804
      %v1817 = vpack.c.b16 %v1807, %v1806
      %v1818 = vpack.c.b16 %v1809, %v1808
      %v1819 = vpack.c.b16 %v1811, %v1810
      %1828 = vmatpush.bf16.msra.mxu0 %v1819
      %1829 = vmatpush.bf16.msra.mxu0 %v1818
      %1830 = vmatpush.bf16.msra.mxu0 %v1817
      %1831 = vmatpush.bf16.msra.mxu0 %v1816
      %1832 = vmatpush.bf16.msra.mxu0 %v1815
      %1833 = vmatpush.bf16.msra.mxu0 %v1814
      %1834 = vmatpush.bf16.msra.mxu0 %v1813
      %1835 = vmatpush.bf16.msra.mxu0 %v1812
      %1836 = vmatmul.bf16.gmra.mxu0 %v1748
      %v1837 = vpop.f32.mrf.mxu0
      %v1838 = vadd.f32 %v1605, %v1837
      %v1839 = vpop.f32.mrf.mxu0
      %v1840 = vadd.f32 %v1607, %v1839
      %1841 = vmatmul.bf16.gmra.mxu0 %v1749
      %v1842 = vpop.f32.mrf.mxu0
      %v1843 = vadd.f32 %v1610, %v1842
      %v1844 = vpop.f32.mrf.mxu0
      %v1845 = vadd.f32 %v1612, %v1844
      %1846 = vmatmul.bf16.gmra.mxu0 %v1750
      %v1847 = vpop.f32.mrf.mxu0
      %v1848 = vadd.f32 %v1615, %v1847
      %v1849 = vpop.f32.mrf.mxu0
      %v1850 = vadd.f32 %v1617, %v1849
      %1851 = vmatmul.bf16.gmra.mxu0 %v1751
      %v1852 = vpop.f32.mrf.mxu0
      %v1853 = vadd.f32 %v1620, %v1852
      %v1854 = vpop.f32.mrf.mxu0
      %v1855 = vadd.f32 %v1622, %v1854
      %1856 = vmatmul.bf16.gmra.mxu0 %v1752
      %v1857 = vpop.f32.mrf.mxu0
      %v1858 = vadd.f32 %v1625, %v1857
      %v1859 = vpop.f32.mrf.mxu0
      %v1860 = vadd.f32 %v1627, %v1859
      %1861 = vmatmul.bf16.gmra.mxu0 %v1753
      %v1862 = vpop.f32.mrf.mxu0
      %v1863 = vadd.f32 %v1630, %v1862
      %v1864 = vpop.f32.mrf.mxu0
      %v1865 = vadd.f32 %v1632, %v1864
      %1866 = vmatmul.bf16.gmra.mxu0 %v1754
      %v1867 = vpop.f32.mrf.mxu0
      %v1868 = vadd.f32 %v1635, %v1867
      %v1869 = vpop.f32.mrf.mxu0
      %v1870 = vadd.f32 %v1637, %v1869
      %1871 = vmatmul.bf16.gmra.mxu0 %v1755
      %v1872 = vpop.f32.mrf.mxu0
      %v1873 = vadd.f32 %v1640, %v1872
      %v1874 = vpop.f32.mrf.mxu0
      %v1875 = vadd.f32 %v1642, %v1874
      %1876 = vmatmul.bf16.gmra.mxu0 %v1756
      %v1877 = vpop.f32.mrf.mxu0
      %v1878 = vadd.f32 %v1645, %v1877
      %v1879 = vpop.f32.mrf.mxu0
      %v1880 = vadd.f32 %v1647, %v1879
      %1881 = vmatmul.bf16.gmra.mxu0 %v1757
      %v1882 = vpop.f32.mrf.mxu0
      %v1883 = vadd.f32 %v1650, %v1882
      %v1884 = vpop.f32.mrf.mxu0
      %v1885 = vadd.f32 %v1652, %v1884
      %1886 = vmatmul.bf16.gmra.mxu0 %v1758
      %v1887 = vpop.f32.mrf.mxu0
      %v1888 = vadd.f32 %v1655, %v1887
      %v1889 = vpop.f32.mrf.mxu0
      %v1890 = vadd.f32 %v1657, %v1889
      %1891 = vmatmul.bf16.gmra.mxu0 %v1759
      %v1892 = vpop.f32.mrf.mxu0
      %v1893 = vadd.f32 %v1660, %v1892
      %v1894 = vpop.f32.mrf.mxu0
      %v1895 = vadd.f32 %v1662, %v1894
      %1896 = vmatmul.bf16.gmra.mxu0 %v1760
      %v1897 = vpop.f32.mrf.mxu0
      %v1898 = vadd.f32 %v1665, %v1897
      %v1899 = vpop.f32.mrf.mxu0
      %v1900 = vadd.f32 %v1667, %v1899
      %1901 = vmatmul.bf16.gmra.mxu0 %v1761
      %v1902 = vpop.f32.mrf.mxu0
      %v1903 = vadd.f32 %v1670, %v1902
      %v1904 = vpop.f32.mrf.mxu0
      %v1905 = vadd.f32 %v1672, %v1904
      %1906 = vmatmul.bf16.gmra.mxu0 %v1762
      %v1907 = vpop.f32.mrf.mxu0
      %v1908 = vadd.f32 %v1675, %v1907
      %v1909 = vpop.f32.mrf.mxu0
      %v1910 = vadd.f32 %v1677, %v1909
      %1911 = vmatmul.bf16.gmra.mxu0 %v1763
      %v1912 = vpop.f32.mrf.mxu0
      %v1913 = vadd.f32 %v1680, %v1912
      %v1914 = vpop.f32.mrf.mxu0
      %v1915 = vadd.f32 %v1682, %v1914
      %1916 = vdwg.mxu0
      %v1917 = vld [vmem:[#allocation2] sm:$0xe]
      %v1918 = vld [vmem:[#allocation2 + $0xc] sm:$0xe]
      %v1919 = vld [vmem:[#allocation2 + $0x18] sm:$0xe]
      %v1920 = vld [vmem:[#allocation2 + $0x24] sm:$0xe]
      %v1921 = vld [vmem:[#allocation2 + $0x30] sm:$0xe]
      %v1922 = vld [vmem:[#allocation2 + $0x3c] sm:$0xe]
      %v1923 = vld [vmem:[#allocation2 + $0x48] sm:$0xe]
      %v1924 = vld [vmem:[#allocation2 + $0x54] sm:$0xe]
      %v1925 = vld [vmem:[#allocation2 + $0x60] sm:$0xe]
      %v1926 = vld [vmem:[#allocation2 + $0x6c] sm:$0xe]
      %v1927 = vld [vmem:[#allocation2 + $0x78] sm:$0xe]
      %v1928 = vld [vmem:[#allocation2 + $0x84] sm:$0xe]
      %v1929 = vld [vmem:[#allocation2 + $0x90] sm:$0xe]
      %v1930 = vld [vmem:[#allocation2 + $0x9c] sm:$0xe]
      %v1931 = vld [vmem:[#allocation2 + $0xa8] sm:$0xe]
      %v1932 = vld [vmem:[#allocation2 + $0xb4] sm:$0xe]
      %vm1965 = vcmask 1042432
      %vm1966 = vcmask 1046532
      %vm1967 = vmor %vm1965, %vm1966
      %v1968 = vrot.slane %v1917, 5
      %v1969 = vrot.slane %v1968, 4
      %v1970 = vrot.slane %v1016, 5
      %v1971 = vsel %vm1967, %v1969, %v1970
      %v1972 = vrot.slane %v1970, 4
      %v1973 = vrot.slane %v1063, 5
      %v1974 = vsel %vm1967, %v1972, %v1973
      %v1975 = vrot.slane %v1918, 5
      %v1976 = vrot.slane %v1975, 4
      %v1977 = vrot.slane %v1018, 5
      %v1978 = vsel %vm1967, %v1976, %v1977
      %v1979 = vrot.slane %v1977, 4
      %v1980 = vrot.slane %v1064, 5
      %v1981 = vsel %vm1967, %v1979, %v1980
      %v1982 = vrot.slane %v1919, 5
      %v1983 = vrot.slane %v1982, 4
      %v1984 = vrot.slane %v1020, 5
      %v1985 = vsel %vm1967, %v1983, %v1984
      %v1986 = vrot.slane %v1984, 4
      %v1987 = vrot.slane %v1065, 5
      %v1988 = vsel %vm1967, %v1986, %v1987
      %v1989 = vrot.slane %v1920, 5
      %v1990 = vrot.slane %v1989, 4
      %v1991 = vrot.slane %v1022, 5
      %v1992 = vsel %vm1967, %v1990, %v1991
      %v1993 = vrot.slane %v1991, 4
      %v1994 = vrot.slane %v1066, 5
      %v1995 = vsel %vm1967, %v1993, %v1994
      %v1996 = vrot.slane %v1921, 5
      %v1997 = vrot.slane %v1996, 4
      %v1998 = vrot.slane %v1024, 5
      %v1999 = vsel %vm1967, %v1997, %v1998
      %v2000 = vrot.slane %v1998, 4
      %v2001 = vrot.slane %v1067, 5
      %v2002 = vsel %vm1967, %v2000, %v2001
      %v2003 = vrot.slane %v1922, 5
      %v2004 = vrot.slane %v2003, 4
      %v2005 = vrot.slane %v1026, 5
      %v2006 = vsel %vm1967, %v2004, %v2005
      %v2007 = vrot.slane %v2005, 4
      %v2008 = vrot.slane %v1068, 5
      %v2009 = vsel %vm1967, %v2007, %v2008
      %v2010 = vrot.slane %v1923, 5
      %v2011 = vrot.slane %v2010, 4
      %v2012 = vrot.slane %v1028, 5
      %v2013 = vsel %vm1967, %v2011, %v2012
      %v2014 = vrot.slane %v2012, 4
      %v2015 = vrot.slane %v1069, 5
      %v2016 = vsel %vm1967, %v2014, %v2015
      %v2017 = vrot.slane %v1924, 5
      %v2018 = vrot.slane %v2017, 4
      %v2019 = vrot.slane %v1030, 5
      %v2020 = vsel %vm1967, %v2018, %v2019
      %v2021 = vrot.slane %v2019, 4
      %v2022 = vrot.slane %v1070, 5
      %v2023 = vsel %vm1967, %v2021, %v2022
      %v2024 = vrot.slane %v1925, 5
      %v2025 = vrot.slane %v2024, 4
      %v2026 = vrot.slane %v1032, 5
      %v2027 = vsel %vm1967, %v2025, %v2026
      %v2028 = vrot.slane %v2026, 4
      %v2029 = vrot.slane %v1071, 5
      %v2030 = vsel %vm1967, %v2028, %v2029
      %v2031 = vrot.slane %v1926, 5
      %v2032 = vrot.slane %v2031, 4
      %v2033 = vrot.slane %v1034, 5
      %v2034 = vsel %vm1967, %v2032, %v2033
      %v2035 = vrot.slane %v2033, 4
      %v2036 = vrot.slane %v1072, 5
      %v2037 = vsel %vm1967, %v2035, %v2036
      %v2038 = vrot.slane %v1927, 5
      %v2039 = vrot.slane %v2038, 4
      %v2040 = vrot.slane %v1036, 5
      %v2041 = vsel %vm1967, %v2039, %v2040
      %v2042 = vrot.slane %v2040, 4
      %v2043 = vrot.slane %v1073, 5
      %v2044 = vsel %vm1967, %v2042, %v2043
      %v2045 = vrot.slane %v1928, 5
      %v2046 = vrot.slane %v2045, 4
      %v2047 = vrot.slane %v1038, 5
      %v2048 = vsel %vm1967, %v2046, %v2047
      %v2049 = vrot.slane %v2047, 4
      %v2050 = vrot.slane %v1074, 5
      %v2051 = vsel %vm1967, %v2049, %v2050
      %v2052 = vrot.slane %v1929, 5
      %v2053 = vrot.slane %v2052, 4
      %v2054 = vrot.slane %v1040, 5
      %v2055 = vsel %vm1967, %v2053, %v2054
      %v2056 = vrot.slane %v2054, 4
      %v2057 = vrot.slane %v1075, 5
      %v2058 = vsel %vm1967, %v2056, %v2057
      %v2059 = vrot.slane %v1930, 5
      %v2060 = vrot.slane %v2059, 4
      %v2061 = vrot.slane %v1042, 5
      %v2062 = vsel %vm1967, %v2060, %v2061
      %v2063 = vrot.slane %v2061, 4
      %v2064 = vrot.slane %v1076, 5
      %v2065 = vsel %vm1967, %v2063, %v2064
      %v2066 = vrot.slane %v1931, 5
      %v2067 = vrot.slane %v2066, 4
      %v2068 = vrot.slane %v1044, 5
      %v2069 = vsel %vm1967, %v2067, %v2068
      %v2070 = vrot.slane %v2068, 4
      %v2071 = vrot.slane %v1077, 5
      %v2072 = vsel %vm1967, %v2070, %v2071
      %v2073 = vrot.slane %v1932, 5
      %v2074 = vrot.slane %v2073, 4
      %v2075 = vrot.slane %v1046, 5
      %v2076 = vsel %vm1967, %v2074, %v2075
      %v2077 = vrot.slane %v2075, 4
      %v2078 = vrot.slane %v1078, 5
      %v2079 = vsel %vm1967, %v2077, %v2078
      %s2080 = scalar_lea.vmem %s3, 128
      %v2081 = vld [vmem:[%s2080] sm:$0xf]
      %v2082 = vld [vmem:[%s2080 + $0x4] sm:$0xf]
      %v2083 = vld [vmem:[%s2080 + $0x8] sm:$0xf]
      %v2084 = vld [vmem:[%s2080 + $0xc] sm:$0xf]
      %v2085 = vld [vmem:[%s2080 + $0x10] sm:$0xf]
      %v2086 = vld [vmem:[%s2080 + $0x14] sm:$0xf]
      %v2087 = vld [vmem:[%s2080 + $0x18] sm:$0xf]
      %v2088 = vld [vmem:[%s2080 + $0x1c] sm:$0xf]
      %v2089 = vld [vmem:[%s2080 + $0x20] sm:$0xf]
      %v2090 = vld [vmem:[%s2080 + $0x24] sm:$0xf]
      %v2091 = vld [vmem:[%s2080 + $0x28] sm:$0xf]
      %v2092 = vld [vmem:[%s2080 + $0x2c] sm:$0xf]
      %v2093 = vld [vmem:[%s2080 + $0x30] sm:$0xf]
      %v2094 = vld [vmem:[%s2080 + $0x34] sm:$0xf]
      %v2095 = vld [vmem:[%s2080 + $0x38] sm:$0xf]
      %v2096 = vld [vmem:[%s2080 + $0x3c] sm:$0xf]
      %v2097 = vunpack.c.l.b16 %v1971
      %v2098 = vunpack.c.l.b16 %v1974
      %v2099 = vunpack.c.l.b16 %v1978
      %v2100 = vunpack.c.l.b16 %v1981
      %v2101 = vunpack.c.l.b16 %v1985
      %v2102 = vunpack.c.l.b16 %v1988
      %v2103 = vunpack.c.l.b16 %v1992
      %v2104 = vunpack.c.l.b16 %v1995
      %v2105 = vunpack.c.l.b16 %v1999
      %v2106 = vunpack.c.l.b16 %v2002
      %v2107 = vunpack.c.l.b16 %v2006
      %v2108 = vunpack.c.l.b16 %v2009
      %v2109 = vunpack.c.l.b16 %v2013
      %v2110 = vunpack.c.l.b16 %v2016
      %v2111 = vunpack.c.l.b16 %v2020
      %v2112 = vunpack.c.l.b16 %v2023
      %v2113 = vunpack.c.l.b16 %v2027
      %v2114 = vunpack.c.l.b16 %v2030
      %v2115 = vunpack.c.l.b16 %v2034
      %v2116 = vunpack.c.l.b16 %v2037
      %v2117 = vunpack.c.l.b16 %v2041
      %v2118 = vunpack.c.l.b16 %v2044
      %v2119 = vunpack.c.l.b16 %v2048
      %v2120 = vunpack.c.l.b16 %v2051
      %v2121 = vunpack.c.l.b16 %v2055
      %v2122 = vunpack.c.l.b16 %v2058
      %v2123 = vunpack.c.l.b16 %v2062
      %v2124 = vunpack.c.l.b16 %v2065
      %v2125 = vunpack.c.l.b16 %v2069
      %v2126 = vunpack.c.l.b16 %v2072
      %v2127 = vunpack.c.l.b16 %v2076
      %v2128 = vunpack.c.l.b16 %v2079
      %v2129 = vpack.c.b16 %v2098, %v2097
      %v2130 = vpack.c.b16 %v2100, %v2099
      %v2131 = vpack.c.b16 %v2102, %v2101
      %v2132 = vpack.c.b16 %v2104, %v2103
      %v2133 = vpack.c.b16 %v2106, %v2105
      %v2134 = vpack.c.b16 %v2108, %v2107
      %v2135 = vpack.c.b16 %v2110, %v2109
      %v2136 = vpack.c.b16 %v2112, %v2111
      %v2137 = vpack.c.b16 %v2114, %v2113
      %v2138 = vpack.c.b16 %v2116, %v2115
      %v2139 = vpack.c.b16 %v2118, %v2117
      %v2140 = vpack.c.b16 %v2120, %v2119
      %v2141 = vpack.c.b16 %v2122, %v2121
      %v2142 = vpack.c.b16 %v2124, %v2123
      %v2143 = vpack.c.b16 %v2126, %v2125
      %v2144 = vpack.c.b16 %v2128, %v2127
      %v2177 = vunpack.c.l.b16 %v2081
      %v2178 = vunpack.c.l.b16 %v2082
      %v2179 = vunpack.c.l.b16 %v2083
      %v2180 = vunpack.c.l.b16 %v2084
      %v2181 = vunpack.c.l.b16 %v2085
      %v2182 = vunpack.c.l.b16 %v2086
      %v2183 = vunpack.c.l.b16 %v2087
      %v2184 = vunpack.c.l.b16 %v2088
      %v2185 = vunpack.c.l.b16 %v2089
      %v2186 = vunpack.c.l.b16 %v2090
      %v2187 = vunpack.c.l.b16 %v2091
      %v2188 = vunpack.c.l.b16 %v2092
      %v2189 = vunpack.c.l.b16 %v2093
      %v2190 = vunpack.c.l.b16 %v2094
      %v2191 = vunpack.c.l.b16 %v2095
      %v2192 = vunpack.c.l.b16 %v2096
      %v2193 = vpack.c.b16 %v2178, %v2177
      %v2194 = vpack.c.b16 %v2180, %v2179
      %v2195 = vpack.c.b16 %v2182, %v2181
      %v2196 = vpack.c.b16 %v2184, %v2183
      %v2197 = vpack.c.b16 %v2186, %v2185
      %v2198 = vpack.c.b16 %v2188, %v2187
      %v2199 = vpack.c.b16 %v2190, %v2189
      %v2200 = vpack.c.b16 %v2192, %v2191
      %2209 = vmatpush.bf16.msra.mxu0 %v2200
      %2210 = vmatpush.bf16.msra.mxu0 %v2199
      %2211 = vmatpush.bf16.msra.mxu0 %v2198
      %2212 = vmatpush.bf16.msra.mxu0 %v2197
      %2213 = vmatpush.bf16.msra.mxu0 %v2196
      %2214 = vmatpush.bf16.msra.mxu0 %v2195
      %2215 = vmatpush.bf16.msra.mxu0 %v2194
      %2216 = vmatpush.bf16.msra.mxu0 %v2193
      %2217 = vmatmul.bf16.gmra.mxu0 %v2129
      %v2218 = vpop.f32.mrf.mxu0
      %v2219 = vadd.f32 0.0, %v2218
      %v2220 = vpop.f32.mrf.mxu0
      %v2221 = vadd.f32 0.0, %v2220
      %2222 = vmatmul.bf16.gmra.mxu0 %v2130
      %v2223 = vpop.f32.mrf.mxu0
      %v2224 = vadd.f32 0.0, %v2223
      %v2225 = vpop.f32.mrf.mxu0
      %v2226 = vadd.f32 0.0, %v2225
      %2227 = vmatmul.bf16.gmra.mxu0 %v2131
      %v2228 = vpop.f32.mrf.mxu0
      %v2229 = vadd.f32 0.0, %v2228
      %v2230 = vpop.f32.mrf.mxu0
      %v2231 = vadd.f32 0.0, %v2230
      %2232 = vmatmul.bf16.gmra.mxu0 %v2132
      %v2233 = vpop.f32.mrf.mxu0
      %v2234 = vadd.f32 0.0, %v2233
      %v2235 = vpop.f32.mrf.mxu0
      %v2236 = vadd.f32 0.0, %v2235
      %2237 = vmatmul.bf16.gmra.mxu0 %v2133
      %v2238 = vpop.f32.mrf.mxu0
      %v2239 = vadd.f32 0.0, %v2238
      %v2240 = vpop.f32.mrf.mxu0
      %v2241 = vadd.f32 0.0, %v2240
      %2242 = vmatmul.bf16.gmra.mxu0 %v2134
      %v2243 = vpop.f32.mrf.mxu0
      %v2244 = vadd.f32 0.0, %v2243
      %v2245 = vpop.f32.mrf.mxu0
      %v2246 = vadd.f32 0.0, %v2245
      %2247 = vmatmul.bf16.gmra.mxu0 %v2135
      %v2248 = vpop.f32.mrf.mxu0
      %v2249 = vadd.f32 0.0, %v2248
      %v2250 = vpop.f32.mrf.mxu0
      %v2251 = vadd.f32 0.0, %v2250
      %2252 = vmatmul.bf16.gmra.mxu0 %v2136
      %v2253 = vpop.f32.mrf.mxu0
      %v2254 = vadd.f32 0.0, %v2253
      %v2255 = vpop.f32.mrf.mxu0
      %v2256 = vadd.f32 0.0, %v2255
      %2257 = vmatmul.bf16.gmra.mxu0 %v2137
      %v2258 = vpop.f32.mrf.mxu0
      %v2259 = vadd.f32 0.0, %v2258
      %v2260 = vpop.f32.mrf.mxu0
      %v2261 = vadd.f32 0.0, %v2260
      %2262 = vmatmul.bf16.gmra.mxu0 %v2138
      %v2263 = vpop.f32.mrf.mxu0
      %v2264 = vadd.f32 0.0, %v2263
      %v2265 = vpop.f32.mrf.mxu0
      %v2266 = vadd.f32 0.0, %v2265
      %2267 = vmatmul.bf16.gmra.mxu0 %v2139
      %v2268 = vpop.f32.mrf.mxu0
      %v2269 = vadd.f32 0.0, %v2268
      %v2270 = vpop.f32.mrf.mxu0
      %v2271 = vadd.f32 0.0, %v2270
      %2272 = vmatmul.bf16.gmra.mxu0 %v2140
      %v2273 = vpop.f32.mrf.mxu0
      %v2274 = vadd.f32 0.0, %v2273
      %v2275 = vpop.f32.mrf.mxu0
      %v2276 = vadd.f32 0.0, %v2275
      %2277 = vmatmul.bf16.gmra.mxu0 %v2141
      %v2278 = vpop.f32.mrf.mxu0
      %v2279 = vadd.f32 0.0, %v2278
      %v2280 = vpop.f32.mrf.mxu0
      %v2281 = vadd.f32 0.0, %v2280
      %2282 = vmatmul.bf16.gmra.mxu0 %v2142
      %v2283 = vpop.f32.mrf.mxu0
      %v2284 = vadd.f32 0.0, %v2283
      %v2285 = vpop.f32.mrf.mxu0
      %v2286 = vadd.f32 0.0, %v2285
      %2287 = vmatmul.bf16.gmra.mxu0 %v2143
      %v2288 = vpop.f32.mrf.mxu0
      %v2289 = vadd.f32 0.0, %v2288
      %v2290 = vpop.f32.mrf.mxu0
      %v2291 = vadd.f32 0.0, %v2290
      %2292 = vmatmul.bf16.gmra.mxu0 %v2144
      %v2293 = vpop.f32.mrf.mxu0
      %v2294 = vadd.f32 0.0, %v2293
      %v2295 = vpop.f32.mrf.mxu0
      %v2296 = vadd.f32 0.0, %v2295
      %2297 = vdwg.mxu0
      %v2298 = vadd.f32 %v1838, %v2219
      %v2299 = vadd.f32 %v1840, %v2221
      %v2300 = vadd.f32 %v1843, %v2224
      %v2301 = vadd.f32 %v1845, %v2226
      %v2302 = vadd.f32 %v1848, %v2229
      %v2303 = vadd.f32 %v1850, %v2231
      %v2304 = vadd.f32 %v1853, %v2234
      %v2305 = vadd.f32 %v1855, %v2236
      %v2306 = vadd.f32 %v1858, %v2239
      %v2307 = vadd.f32 %v1860, %v2241
      %v2308 = vadd.f32 %v1863, %v2244
      %v2309 = vadd.f32 %v1865, %v2246
      %v2310 = vadd.f32 %v1868, %v2249
      %v2311 = vadd.f32 %v1870, %v2251
      %v2312 = vadd.f32 %v1873, %v2254
      %v2313 = vadd.f32 %v1875, %v2256
      %v2314 = vadd.f32 %v1878, %v2259
      %v2315 = vadd.f32 %v1880, %v2261
      %v2316 = vadd.f32 %v1883, %v2264
      %v2317 = vadd.f32 %v1885, %v2266
      %v2318 = vadd.f32 %v1888, %v2269
      %v2319 = vadd.f32 %v1890, %v2271
      %v2320 = vadd.f32 %v1893, %v2274
      %v2321 = vadd.f32 %v1895, %v2276
      %v2322 = vadd.f32 %v1898, %v2279
      %v2323 = vadd.f32 %v1900, %v2281
      %v2324 = vadd.f32 %v1903, %v2284
      %v2325 = vadd.f32 %v1905, %v2286
      %v2326 = vadd.f32 %v1908, %v2289
      %v2327 = vadd.f32 %v1910, %v2291
      %v2328 = vadd.f32 %v1913, %v2294
      %v2329 = vadd.f32 %v1915, %v2296
      %v2330 = vld [vmem:[%s477] sm:$0xf]
      %v2331 = vld [vmem:[%s477 + $0x4] sm:$0xf]
      %v2332 = vld [vmem:[%s477 + $0xc] sm:$0xf]
      %v2333 = vld [vmem:[%s477 + $0x10] sm:$0xf]
      %v2334 = vld [vmem:[%s477 + $0x18] sm:$0xf]
      %v2335 = vld [vmem:[%s477 + $0x1c] sm:$0xf]
      %v2336 = vld [vmem:[%s477 + $0x24] sm:$0xf]
      %v2337 = vld [vmem:[%s477 + $0x28] sm:$0xf]
      %v2338 = vld [vmem:[%s477 + $0x30] sm:$0xf]
      %v2339 = vld [vmem:[%s477 + $0x34] sm:$0xf]
      %v2340 = vld [vmem:[%s477 + $0x3c] sm:$0xf]
      %v2341 = vld [vmem:[%s477 + $0x40] sm:$0xf]
      %v2342 = vld [vmem:[%s477 + $0x48] sm:$0xf]
      %v2343 = vld [vmem:[%s477 + $0x4c] sm:$0xf]
      %v2344 = vld [vmem:[%s477 + $0x54] sm:$0xf]
      %v2345 = vld [vmem:[%s477 + $0x58] sm:$0xf]
      %v2346 = vld [vmem:[%s477 + $0x60] sm:$0xf]
      %v2347 = vld [vmem:[%s477 + $0x64] sm:$0xf]
      %v2348 = vld [vmem:[%s477 + $0x6c] sm:$0xf]
      %v2349 = vld [vmem:[%s477 + $0x70] sm:$0xf]
      %v2350 = vld [vmem:[%s477 + $0x78] sm:$0xf]
      %v2351 = vld [vmem:[%s477 + $0x7c] sm:$0xf]
      %v2352 = vld [vmem:[%s477 + $0x84] sm:$0xf]
      %v2353 = vld [vmem:[%s477 + $0x88] sm:$0xf]
      %v2354 = vld [vmem:[%s477 + $0x90] sm:$0xf]
      %v2355 = vld [vmem:[%s477 + $0x94] sm:$0xf]
      %v2356 = vld [vmem:[%s477 + $0x9c] sm:$0xf]
      %v2357 = vld [vmem:[%s477 + $0xa0] sm:$0xf]
      %v2358 = vld [vmem:[%s477 + $0xa8] sm:$0xf]
      %v2359 = vld [vmem:[%s477 + $0xac] sm:$0xf]
      %v2360 = vld [vmem:[%s477 + $0xb4] sm:$0xf]
      %v2361 = vld [vmem:[%s477 + $0xb8] sm:$0xf]
      %s2362 = scalar_lea.vmem %s3, 192
      %v2363 = vld [vmem:[%s2362] sm:$0xf]
      %v2364 = vld [vmem:[%s2362 + $0x4] sm:$0xf]
      %v2365 = vld [vmem:[%s2362 + $0x8] sm:$0xf]
      %v2366 = vld [vmem:[%s2362 + $0xc] sm:$0xf]
      %v2367 = vld [vmem:[%s2362 + $0x10] sm:$0xf]
      %v2368 = vld [vmem:[%s2362 + $0x14] sm:$0xf]
      %v2369 = vld [vmem:[%s2362 + $0x18] sm:$0xf]
      %v2370 = vld [vmem:[%s2362 + $0x1c] sm:$0xf]
      %v2371 = vld [vmem:[%s2362 + $0x20] sm:$0xf]
      %v2372 = vld [vmem:[%s2362 + $0x24] sm:$0xf]
      %v2373 = vld [vmem:[%s2362 + $0x28] sm:$0xf]
      %v2374 = vld [vmem:[%s2362 + $0x2c] sm:$0xf]
      %v2375 = vld [vmem:[%s2362 + $0x30] sm:$0xf]
      %v2376 = vld [vmem:[%s2362 + $0x34] sm:$0xf]
      %v2377 = vld [vmem:[%s2362 + $0x38] sm:$0xf]
      %v2378 = vld [vmem:[%s2362 + $0x3c] sm:$0xf]
      %v2411 = vunpack.c.l.b16 %v2330
      %v2412 = vunpack.c.l.b16 %v2331
      %v2413 = vunpack.c.l.b16 %v2332
      %v2414 = vunpack.c.l.b16 %v2333
      %v2415 = vunpack.c.l.b16 %v2334
      %v2416 = vunpack.c.l.b16 %v2335
      %v2417 = vunpack.c.l.b16 %v2336
      %v2418 = vunpack.c.l.b16 %v2337
      %v2419 = vunpack.c.l.b16 %v2338
      %v2420 = vunpack.c.l.b16 %v2339
      %v2421 = vunpack.c.l.b16 %v2340
      %v2422 = vunpack.c.l.b16 %v2341
      %v2423 = vunpack.c.l.b16 %v2342
      %v2424 = vunpack.c.l.b16 %v2343
      %v2425 = vunpack.c.l.b16 %v2344
      %v2426 = vunpack.c.l.b16 %v2345
      %v2427 = vunpack.c.l.b16 %v2346
      %v2428 = vunpack.c.l.b16 %v2347
      %v2429 = vunpack.c.l.b16 %v2348
      %v2430 = vunpack.c.l.b16 %v2349
      %v2431 = vunpack.c.l.b16 %v2350
      %v2432 = vunpack.c.l.b16 %v2351
      %v2433 = vunpack.c.l.b16 %v2352
      %v2434 = vunpack.c.l.b16 %v2353
      %v2435 = vunpack.c.l.b16 %v2354
      %v2436 = vunpack.c.l.b16 %v2355
      %v2437 = vunpack.c.l.b16 %v2356
      %v2438 = vunpack.c.l.b16 %v2357
      %v2439 = vunpack.c.l.b16 %v2358
      %v2440 = vunpack.c.l.b16 %v2359
      %v2441 = vunpack.c.l.b16 %v2360
      %v2442 = vunpack.c.l.b16 %v2361
      %v2443 = vpack.c.b16 %v2412, %v2411
      %v2444 = vpack.c.b16 %v2414, %v2413
      %v2445 = vpack.c.b16 %v2416, %v2415
      %v2446 = vpack.c.b16 %v2418, %v2417
      %v2447 = vpack.c.b16 %v2420, %v2419
      %v2448 = vpack.c.b16 %v2422, %v2421
      %v2449 = vpack.c.b16 %v2424, %v2423
      %v2450 = vpack.c.b16 %v2426, %v2425
      %v2451 = vpack.c.b16 %v2428, %v2427
      %v2452 = vpack.c.b16 %v2430, %v2429
      %v2453 = vpack.c.b16 %v2432, %v2431
      %v2454 = vpack.c.b16 %v2434, %v2433
      %v2455 = vpack.c.b16 %v2436, %v2435
      %v2456 = vpack.c.b16 %v2438, %v2437
      %v2457 = vpack.c.b16 %v2440, %v2439
      %v2458 = vpack.c.b16 %v2442, %v2441
      %v2491 = vunpack.c.l.b16 %v2363
      %v2492 = vunpack.c.l.b16 %v2364
      %v2493 = vunpack.c.l.b16 %v2365
      %v2494 = vunpack.c.l.b16 %v2366
      %v2495 = vunpack.c.l.b16 %v2367
      %v2496 = vunpack.c.l.b16 %v2368
      %v2497 = vunpack.c.l.b16 %v2369
      %v2498 = vunpack.c.l.b16 %v2370
      %v2499 = vunpack.c.l.b16 %v2371
      %v2500 = vunpack.c.l.b16 %v2372
      %v2501 = vunpack.c.l.b16 %v2373
      %v2502 = vunpack.c.l.b16 %v2374
      %v2503 = vunpack.c.l.b16 %v2375
      %v2504 = vunpack.c.l.b16 %v2376
      %v2505 = vunpack.c.l.b16 %v2377
      %v2506 = vunpack.c.l.b16 %v2378
      %v2507 = vpack.c.b16 %v2492, %v2491
      %v2508 = vpack.c.b16 %v2494, %v2493
      %v2509 = vpack.c.b16 %v2496, %v2495
      %v2510 = vpack.c.b16 %v2498, %v2497
      %v2511 = vpack.c.b16 %v2500, %v2499
      %v2512 = vpack.c.b16 %v2502, %v2501
      %v2513 = vpack.c.b16 %v2504, %v2503
      %v2514 = vpack.c.b16 %v2506, %v2505
      %2523 = vmatpush.bf16.msra.mxu0 %v2514
      %2524 = vmatpush.bf16.msra.mxu0 %v2513
      %2525 = vmatpush.bf16.msra.mxu0 %v2512
      %2526 = vmatpush.bf16.msra.mxu0 %v2511
      %2527 = vmatpush.bf16.msra.mxu0 %v2510
      %2528 = vmatpush.bf16.msra.mxu0 %v2509
      %2529 = vmatpush.bf16.msra.mxu0 %v2508
      %2530 = vmatpush.bf16.msra.mxu0 %v2507
      %2531 = vmatmul.bf16.gmra.mxu0 %v2443
      %v2532 = vpop.f32.mrf.mxu0
      %v2533 = vadd.f32 0.0, %v2532
      %v2534 = vpop.f32.mrf.mxu0
      %v2535 = vadd.f32 0.0, %v2534
      %2536 = vmatmul.bf16.gmra.mxu0 %v2444
      %v2537 = vpop.f32.mrf.mxu0
      %v2538 = vadd.f32 0.0, %v2537
      %v2539 = vpop.f32.mrf.mxu0
      %v2540 = vadd.f32 0.0, %v2539
      %2541 = vmatmul.bf16.gmra.mxu0 %v2445
      %v2542 = vpop.f32.mrf.mxu0
      %v2543 = vadd.f32 0.0, %v2542
      %v2544 = vpop.f32.mrf.mxu0
      %v2545 = vadd.f32 0.0, %v2544
      %2546 = vmatmul.bf16.gmra.mxu0 %v2446
      %v2547 = vpop.f32.mrf.mxu0
      %v2548 = vadd.f32 0.0, %v2547
      %v2549 = vpop.f32.mrf.mxu0
      %v2550 = vadd.f32 0.0, %v2549
      %2551 = vmatmul.bf16.gmra.mxu0 %v2447
      %v2552 = vpop.f32.mrf.mxu0
      %v2553 = vadd.f32 0.0, %v2552
      %v2554 = vpop.f32.mrf.mxu0
      %v2555 = vadd.f32 0.0, %v2554
      %2556 = vmatmul.bf16.gmra.mxu0 %v2448
      %v2557 = vpop.f32.mrf.mxu0
      %v2558 = vadd.f32 0.0, %v2557
      %v2559 = vpop.f32.mrf.mxu0
      %v2560 = vadd.f32 0.0, %v2559
      %2561 = vmatmul.bf16.gmra.mxu0 %v2449
      %v2562 = vpop.f32.mrf.mxu0
      %v2563 = vadd.f32 0.0, %v2562
      %v2564 = vpop.f32.mrf.mxu0
      %v2565 = vadd.f32 0.0, %v2564
      %2566 = vmatmul.bf16.gmra.mxu0 %v2450
      %v2567 = vpop.f32.mrf.mxu0
      %v2568 = vadd.f32 0.0, %v2567
      %v2569 = vpop.f32.mrf.mxu0
      %v2570 = vadd.f32 0.0, %v2569
      %2571 = vmatmul.bf16.gmra.mxu0 %v2451
      %v2572 = vpop.f32.mrf.mxu0
      %v2573 = vadd.f32 0.0, %v2572
      %v2574 = vpop.f32.mrf.mxu0
      %v2575 = vadd.f32 0.0, %v2574
      %2576 = vmatmul.bf16.gmra.mxu0 %v2452
      %v2577 = vpop.f32.mrf.mxu0
      %v2578 = vadd.f32 0.0, %v2577
      %v2579 = vpop.f32.mrf.mxu0
      %v2580 = vadd.f32 0.0, %v2579
      %2581 = vmatmul.bf16.gmra.mxu0 %v2453
      %v2582 = vpop.f32.mrf.mxu0
      %v2583 = vadd.f32 0.0, %v2582
      %v2584 = vpop.f32.mrf.mxu0
      %v2585 = vadd.f32 0.0, %v2584
      %2586 = vmatmul.bf16.gmra.mxu0 %v2454
      %v2587 = vpop.f32.mrf.mxu0
      %v2588 = vadd.f32 0.0, %v2587
      %v2589 = vpop.f32.mrf.mxu0
      %v2590 = vadd.f32 0.0, %v2589
      %2591 = vmatmul.bf16.gmra.mxu0 %v2455
      %v2592 = vpop.f32.mrf.mxu0
      %v2593 = vadd.f32 0.0, %v2592
      %v2594 = vpop.f32.mrf.mxu0
      %v2595 = vadd.f32 0.0, %v2594
      %2596 = vmatmul.bf16.gmra.mxu0 %v2456
      %v2597 = vpop.f32.mrf.mxu0
      %v2598 = vadd.f32 0.0, %v2597
      %v2599 = vpop.f32.mrf.mxu0
      %v2600 = vadd.f32 0.0, %v2599
      %2601 = vmatmul.bf16.gmra.mxu0 %v2457
      %v2602 = vpop.f32.mrf.mxu0
      %v2603 = vadd.f32 0.0, %v2602
      %v2604 = vpop.f32.mrf.mxu0
      %v2605 = vadd.f32 0.0, %v2604
      %2606 = vmatmul.bf16.gmra.mxu0 %v2458
      %v2607 = vpop.f32.mrf.mxu0
      %v2608 = vadd.f32 0.0, %v2607
      %v2609 = vpop.f32.mrf.mxu0
      %v2610 = vadd.f32 0.0, %v2609
      %2611 = vdwg.mxu0
      %v2612 = vadd.f32 %v2298, %v2533
      %v2613 = vadd.f32 %v2299, %v2535
      %v2614 = vadd.f32 %v2300, %v2538
      %v2615 = vadd.f32 %v2301, %v2540
      %v2616 = vadd.f32 %v2302, %v2543
      %v2617 = vadd.f32 %v2303, %v2545
      %v2618 = vadd.f32 %v2304, %v2548
      %v2619 = vadd.f32 %v2305, %v2550
      %v2620 = vadd.f32 %v2306, %v2553
      %v2621 = vadd.f32 %v2307, %v2555
      %v2622 = vadd.f32 %v2308, %v2558
      %v2623 = vadd.f32 %v2309, %v2560
      %v2624 = vadd.f32 %v2310, %v2563
      %v2625 = vadd.f32 %v2311, %v2565
      %v2626 = vadd.f32 %v2312, %v2568
      %v2627 = vadd.f32 %v2313, %v2570
      %v2628 = vadd.f32 %v2314, %v2573
      %v2629 = vadd.f32 %v2315, %v2575
      %v2630 = vadd.f32 %v2316, %v2578
      %v2631 = vadd.f32 %v2317, %v2580
      %v2632 = vadd.f32 %v2318, %v2583
      %v2633 = vadd.f32 %v2319, %v2585
      %v2634 = vadd.f32 %v2320, %v2588
      %v2635 = vadd.f32 %v2321, %v2590
      %v2636 = vadd.f32 %v2322, %v2593
      %v2637 = vadd.f32 %v2323, %v2595
      %v2638 = vadd.f32 %v2324, %v2598
      %v2639 = vadd.f32 %v2325, %v2600
      %v2640 = vadd.f32 %v2326, %v2603
      %v2641 = vadd.f32 %v2327, %v2605
      %v2642 = vadd.f32 %v2328, %v2608
      %v2643 = vadd.f32 %v2329, %v2610
      %v2644 = vld [vmem:[%s477] sm:$0xf]
      %v2645 = vld [vmem:[%s477 + $0x4] sm:$0xf]
      %v2646 = vld [vmem:[%s477 + $0x8] sm:$0x1]
      %v2647 = vld [vmem:[%s477 + $0xc] sm:$0xf]
      %v2648 = vld [vmem:[%s477 + $0x10] sm:$0xf]
      %v2649 = vld [vmem:[%s477 + $0x14] sm:$0x1]
      %v2650 = vld [vmem:[%s477 + $0x18] sm:$0xf]
      %v2651 = vld [vmem:[%s477 + $0x1c] sm:$0xf]
      %v2652 = vld [vmem:[%s477 + $0x20] sm:$0x1]
      %v2653 = vld [vmem:[%s477 + $0x24] sm:$0xf]
      %v2654 = vld [vmem:[%s477 + $0x28] sm:$0xf]
      %v2655 = vld [vmem:[%s477 + $0x2c] sm:$0x1]
      %v2656 = vld [vmem:[%s477 + $0x30] sm:$0xf]
      %v2657 = vld [vmem:[%s477 + $0x34] sm:$0xf]
      %v2658 = vld [vmem:[%s477 + $0x38] sm:$0x1]
      %v2659 = vld [vmem:[%s477 + $0x3c] sm:$0xf]
      %v2660 = vld [vmem:[%s477 + $0x40] sm:$0xf]
      %v2661 = vld [vmem:[%s477 + $0x44] sm:$0x1]
      %v2662 = vld [vmem:[%s477 + $0x48] sm:$0xf]
      %v2663 = vld [vmem:[%s477 + $0x4c] sm:$0xf]
      %v2664 = vld [vmem:[%s477 + $0x50] sm:$0x1]
      %v2665 = vld [vmem:[%s477 + $0x54] sm:$0xf]
      %v2666 = vld [vmem:[%s477 + $0x58] sm:$0xf]
      %v2667 = vld [vmem:[%s477 + $0x5c] sm:$0x1]
      %v2668 = vld [vmem:[%s477 + $0x60] sm:$0xf]
      %v2669 = vld [vmem:[%s477 + $0x64] sm:$0xf]
      %v2670 = vld [vmem:[%s477 + $0x68] sm:$0x1]
      %v2671 = vld [vmem:[%s477 + $0x6c] sm:$0xf]
      %v2672 = vld [vmem:[%s477 + $0x70] sm:$0xf]
      %v2673 = vld [vmem:[%s477 + $0x74] sm:$0x1]
      %v2674 = vld [vmem:[%s477 + $0x78] sm:$0xf]
      %v2675 = vld [vmem:[%s477 + $0x7c] sm:$0xf]
      %v2676 = vld [vmem:[%s477 + $0x80] sm:$0x1]
      %v2677 = vld [vmem:[%s477 + $0x84] sm:$0xf]
      %v2678 = vld [vmem:[%s477 + $0x88] sm:$0xf]
      %v2679 = vld [vmem:[%s477 + $0x8c] sm:$0x1]
      %v2680 = vld [vmem:[%s477 + $0x90] sm:$0xf]
      %v2681 = vld [vmem:[%s477 + $0x94] sm:$0xf]
      %v2682 = vld [vmem:[%s477 + $0x98] sm:$0x1]
      %v2683 = vld [vmem:[%s477 + $0x9c] sm:$0xf]
      %v2684 = vld [vmem:[%s477 + $0xa0] sm:$0xf]
      %v2685 = vld [vmem:[%s477 + $0xa4] sm:$0x1]
      %v2686 = vld [vmem:[%s477 + $0xa8] sm:$0xf]
      %v2687 = vld [vmem:[%s477 + $0xac] sm:$0xf]
      %v2688 = vld [vmem:[%s477 + $0xb0] sm:$0x1]
      %v2689 = vld [vmem:[%s477 + $0xb4] sm:$0xf]
      %v2690 = vld [vmem:[%s477 + $0xb8] sm:$0xf]
      %v2691 = vld [vmem:[%s477 + $0xbc] sm:$0x1]
      %v2693 = vshrl.u32 %v2644, 16
      %v2695 = vrot.slane %v2693, 4
      %v2696 = vshll.u32 %v2644, 16
      %v2698 = vrot.slane %v2696, 5
      %v2699 = vor.u32 %v2695, %v2698
      %v2700 = vrot.slane %v2699, 4
      %v2702 = vshll.u32 %v2645, 16
      %v2704 = vrot.slane %v2702, 5
      %v2705 = vsel %vm1081, %v2700, %v2704
      %v2706 = vshrl.u32 %v2645, 16
      %v2708 = vrot.slane %v2706, 4
      %v2709 = vor.u32 %v2708, %v2704
      %v2710 = vrot.slane %v2709, 4
      %v2712 = vshll.u32 %v2646, 16
      %v2714 = vrot.slane %v2712, 5
      %v2715 = vsel %vm1081, %v2710, %v2714
      %v2717 = vshrl.u32 %v2647, 16
      %v2719 = vrot.slane %v2717, 4
      %v2720 = vshll.u32 %v2647, 16
      %v2722 = vrot.slane %v2720, 5
      %v2723 = vor.u32 %v2719, %v2722
      %v2724 = vrot.slane %v2723, 4
      %v2726 = vshll.u32 %v2648, 16
      %v2728 = vrot.slane %v2726, 5
      %v2729 = vsel %vm1081, %v2724, %v2728
      %v2730 = vshrl.u32 %v2648, 16
      %v2732 = vrot.slane %v2730, 4
      %v2733 = vor.u32 %v2732, %v2728
      %v2734 = vrot.slane %v2733, 4
      %v2736 = vshll.u32 %v2649, 16
      %v2738 = vrot.slane %v2736, 5
      %v2739 = vsel %vm1081, %v2734, %v2738
      %v2741 = vshrl.u32 %v2650, 16
      %v2743 = vrot.slane %v2741, 4
      %v2744 = vshll.u32 %v2650, 16
      %v2746 = vrot.slane %v2744, 5
      %v2747 = vor.u32 %v2743, %v2746
      %v2748 = vrot.slane %v2747, 4
      %v2750 = vshll.u32 %v2651, 16
      %v2752 = vrot.slane %v2750, 5
      %v2753 = vsel %vm1081, %v2748, %v2752
      %v2754 = vshrl.u32 %v2651, 16
      %v2756 = vrot.slane %v2754, 4
      %v2757 = vor.u32 %v2756, %v2752
      %v2758 = vrot.slane %v2757, 4
      %v2760 = vshll.u32 %v2652, 16
      %v2762 = vrot.slane %v2760, 5
      %v2763 = vsel %vm1081, %v2758, %v2762
      %v2765 = vshrl.u32 %v2653, 16
      %v2767 = vrot.slane %v2765, 4
      %v2768 = vshll.u32 %v2653, 16
      %v2770 = vrot.slane %v2768, 5
      %v2771 = vor.u32 %v2767, %v2770
      %v2772 = vrot.slane %v2771, 4
      %v2774 = vshll.u32 %v2654, 16
      %v2776 = vrot.slane %v2774, 5
      %v2777 = vsel %vm1081, %v2772, %v2776
      %v2778 = vshrl.u32 %v2654, 16
      %v2780 = vrot.slane %v2778, 4
      %v2781 = vor.u32 %v2780, %v2776
      %v2782 = vrot.slane %v2781, 4
      %v2784 = vshll.u32 %v2655, 16
      %v2786 = vrot.slane %v2784, 5
      %v2787 = vsel %vm1081, %v2782, %v2786
      %v2789 = vshrl.u32 %v2656, 16
      %v2791 = vrot.slane %v2789, 4
      %v2792 = vshll.u32 %v2656, 16
      %v2794 = vrot.slane %v2792, 5
      %v2795 = vor.u32 %v2791, %v2794
      %v2796 = vrot.slane %v2795, 4
      %v2798 = vshll.u32 %v2657, 16
      %v2800 = vrot.slane %v2798, 5
      %v2801 = vsel %vm1081, %v2796, %v2800
      %v2802 = vshrl.u32 %v2657, 16
      %v2804 = vrot.slane %v2802, 4
      %v2805 = vor.u32 %v2804, %v2800
      %v2806 = vrot.slane %v2805, 4
      %v2808 = vshll.u32 %v2658, 16
      %v2810 = vrot.slane %v2808, 5
      %v2811 = vsel %vm1081, %v2806, %v2810
      %v2813 = vshrl.u32 %v2659, 16
      %v2815 = vrot.slane %v2813, 4
      %v2816 = vshll.u32 %v2659, 16
      %v2818 = vrot.slane %v2816, 5
      %v2819 = vor.u32 %v2815, %v2818
      %v2820 = vrot.slane %v2819, 4
      %v2822 = vshll.u32 %v2660, 16
      %v2824 = vrot.slane %v2822, 5
      %v2825 = vsel %vm1081, %v2820, %v2824
      %v2826 = vshrl.u32 %v2660, 16
      %v2828 = vrot.slane %v2826, 4
      %v2829 = vor.u32 %v2828, %v2824
      %v2830 = vrot.slane %v2829, 4
      %v2832 = vshll.u32 %v2661, 16
      %v2834 = vrot.slane %v2832, 5
      %v2835 = vsel %vm1081, %v2830, %v2834
      %v2837 = vshrl.u32 %v2662, 16
      %v2839 = vrot.slane %v2837, 4
      %v2840 = vshll.u32 %v2662, 16
      %v2842 = vrot.slane %v2840, 5
      %v2843 = vor.u32 %v2839, %v2842
      %v2844 = vrot.slane %v2843, 4
      %v2846 = vshll.u32 %v2663, 16
      %v2848 = vrot.slane %v2846, 5
      %v2849 = vsel %vm1081, %v2844, %v2848
      %v2850 = vshrl.u32 %v2663, 16
      %v2852 = vrot.slane %v2850, 4
      %v2853 = vor.u32 %v2852, %v2848
      %v2854 = vrot.slane %v2853, 4
      %v2856 = vshll.u32 %v2664, 16
      %v2858 = vrot.slane %v2856, 5
      %v2859 = vsel %vm1081, %v2854, %v2858
      %v2861 = vshrl.u32 %v2665, 16
      %v2863 = vrot.slane %v2861, 4
      %v2864 = vshll.u32 %v2665, 16
      %v2866 = vrot.slane %v2864, 5
      %v2867 = vor.u32 %v2863, %v2866
      %v2868 = vrot.slane %v2867, 4
      %v2870 = vshll.u32 %v2666, 16
      %v2872 = vrot.slane %v2870, 5
      %v2873 = vsel %vm1081, %v2868, %v2872
      %v2874 = vshrl.u32 %v2666, 16
      %v2876 = vrot.slane %v2874, 4
      %v2877 = vor.u32 %v2876, %v2872
      %v2878 = vrot.slane %v2877, 4
      %v2880 = vshll.u32 %v2667, 16
      %v2882 = vrot.slane %v2880, 5
      %v2883 = vsel %vm1081, %v2878, %v2882
      %v2885 = vshrl.u32 %v2668, 16
      %v2887 = vrot.slane %v2885, 4
      %v2888 = vshll.u32 %v2668, 16
      %v2890 = vrot.slane %v2888, 5
      %v2891 = vor.u32 %v2887, %v2890
      %v2892 = vrot.slane %v2891, 4
      %v2894 = vshll.u32 %v2669, 16
      %v2896 = vrot.slane %v2894, 5
      %v2897 = vsel %vm1081, %v2892, %v2896
      %v2898 = vshrl.u32 %v2669, 16
      %v2900 = vrot.slane %v2898, 4
      %v2901 = vor.u32 %v2900, %v2896
      %v2902 = vrot.slane %v2901, 4
      %v2904 = vshll.u32 %v2670, 16
      %v2906 = vrot.slane %v2904, 5
      %v2907 = vsel %vm1081, %v2902, %v2906
      %v2909 = vshrl.u32 %v2671, 16
      %v2911 = vrot.slane %v2909, 4
      %v2912 = vshll.u32 %v2671, 16
      %v2914 = vrot.slane %v2912, 5
      %v2915 = vor.u32 %v2911, %v2914
      %v2916 = vrot.slane %v2915, 4
      %v2918 = vshll.u32 %v2672, 16
      %v2920 = vrot.slane %v2918, 5
      %v2921 = vsel %vm1081, %v2916, %v2920
      %v2922 = vshrl.u32 %v2672, 16
      %v2924 = vrot.slane %v2922, 4
      %v2925 = vor.u32 %v2924, %v2920
      %v2926 = vrot.slane %v2925, 4
      %v2928 = vshll.u32 %v2673, 16
      %v2930 = vrot.slane %v2928, 5
      %v2931 = vsel %vm1081, %v2926, %v2930
      %v2933 = vshrl.u32 %v2674, 16
      %v2935 = vrot.slane %v2933, 4
      %v2936 = vshll.u32 %v2674, 16
      %v2938 = vrot.slane %v2936, 5
      %v2939 = vor.u32 %v2935, %v2938
      %v2940 = vrot.slane %v2939, 4
      %v2942 = vshll.u32 %v2675, 16
      %v2944 = vrot.slane %v2942, 5
      %v2945 = vsel %vm1081, %v2940, %v2944
      %v2946 = vshrl.u32 %v2675, 16
      %v2948 = vrot.slane %v2946, 4
      %v2949 = vor.u32 %v2948, %v2944
      %v2950 = vrot.slane %v2949, 4
      %v2952 = vshll.u32 %v2676, 16
      %v2954 = vrot.slane %v2952, 5
      %v2955 = vsel %vm1081, %v2950, %v2954
      %v2957 = vshrl.u32 %v2677, 16
      %v2959 = vrot.slane %v2957, 4
      %v2960 = vshll.u32 %v2677, 16
      %v2962 = vrot.slane %v2960, 5
      %v2963 = vor.u32 %v2959, %v2962
      %v2964 = vrot.slane %v2963, 4
      %v2966 = vshll.u32 %v2678, 16
      %v2968 = vrot.slane %v2966, 5
      %v2969 = vsel %vm1081, %v2964, %v2968
      %v2970 = vshrl.u32 %v2678, 16
      %v2972 = vrot.slane %v2970, 4
      %v2973 = vor.u32 %v2972, %v2968
      %v2974 = vrot.slane %v2973, 4
      %v2976 = vshll.u32 %v2679, 16
      %v2978 = vrot.slane %v2976, 5
      %v2979 = vsel %vm1081, %v2974, %v2978
      %v2981 = vshrl.u32 %v2680, 16
      %v2983 = vrot.slane %v2981, 4
      %v2984 = vshll.u32 %v2680, 16
      %v2986 = vrot.slane %v2984, 5
      %v2987 = vor.u32 %v2983, %v2986
      %v2988 = vrot.slane %v2987, 4
      %v2990 = vshll.u32 %v2681, 16
      %v2992 = vrot.slane %v2990, 5
      %v2993 = vsel %vm1081, %v2988, %v2992
      %v2994 = vshrl.u32 %v2681, 16
      %v2996 = vrot.slane %v2994, 4
      %v2997 = vor.u32 %v2996, %v2992
      %v2998 = vrot.slane %v2997, 4
      %v3000 = vshll.u32 %v2682, 16
      %v3002 = vrot.slane %v3000, 5
      %v3003 = vsel %vm1081, %v2998, %v3002
      %v3005 = vshrl.u32 %v2683, 16
      %v3007 = vrot.slane %v3005, 4
      %v3008 = vshll.u32 %v2683, 16
      %v3010 = vrot.slane %v3008, 5
      %v3011 = vor.u32 %v3007, %v3010
      %v3012 = vrot.slane %v3011, 4
      %v3014 = vshll.u32 %v2684, 16
      %v3016 = vrot.slane %v3014, 5
      %v3017 = vsel %vm1081, %v3012, %v3016
      %v3018 = vshrl.u32 %v2684, 16
      %v3020 = vrot.slane %v3018, 4
      %v3021 = vor.u32 %v3020, %v3016
      %v3022 = vrot.slane %v3021, 4
      %v3024 = vshll.u32 %v2685, 16
      %v3026 = vrot.slane %v3024, 5
      %v3027 = vsel %vm1081, %v3022, %v3026
      %v3029 = vshrl.u32 %v2686, 16
      %v3031 = vrot.slane %v3029, 4
      %v3032 = vshll.u32 %v2686, 16
      %v3034 = vrot.slane %v3032, 5
      %v3035 = vor.u32 %v3031, %v3034
      %v3036 = vrot.slane %v3035, 4
      %v3038 = vshll.u32 %v2687, 16
      %v3040 = vrot.slane %v3038, 5
      %v3041 = vsel %vm1081, %v3036, %v3040
      %v3042 = vshrl.u32 %v2687, 16
      %v3044 = vrot.slane %v3042, 4
      %v3045 = vor.u32 %v3044, %v3040
      %v3046 = vrot.slane %v3045, 4
      %v3048 = vshll.u32 %v2688, 16
      %v3050 = vrot.slane %v3048, 5
      %v3051 = vsel %vm1081, %v3046, %v3050
      %v3053 = vshrl.u32 %v2689, 16
      %v3055 = vrot.slane %v3053, 4
      %v3056 = vshll.u32 %v2689, 16
      %v3058 = vrot.slane %v3056, 5
      %v3059 = vor.u32 %v3055, %v3058
      %v3060 = vrot.slane %v3059, 4
      %v3062 = vshll.u32 %v2690, 16
      %v3064 = vrot.slane %v3062, 5
      %v3065 = vsel %vm1081, %v3060, %v3064
      %v3066 = vshrl.u32 %v2690, 16
      %v3068 = vrot.slane %v3066, 4
      %v3069 = vor.u32 %v3068, %v3064
      %v3070 = vrot.slane %v3069, 4
      %v3072 = vshll.u32 %v2691, 16
      %v3074 = vrot.slane %v3072, 5
      %v3075 = vsel %vm1081, %v3070, %v3074
      %s3076 = scalar_lea.vmem %s3, 256
      %v3077 = vld [vmem:[%s3076] sm:$0xf]
      %v3078 = vld [vmem:[%s3076 + $0x4] sm:$0xf]
      %v3079 = vld [vmem:[%s3076 + $0x8] sm:$0xf]
      %v3080 = vld [vmem:[%s3076 + $0xc] sm:$0xf]
      %v3081 = vld [vmem:[%s3076 + $0x10] sm:$0xf]
      %v3082 = vld [vmem:[%s3076 + $0x14] sm:$0xf]
      %v3083 = vld [vmem:[%s3076 + $0x18] sm:$0xf]
      %v3084 = vld [vmem:[%s3076 + $0x1c] sm:$0xf]
      %v3085 = vld [vmem:[%s3076 + $0x20] sm:$0xf]
      %v3086 = vld [vmem:[%s3076 + $0x24] sm:$0xf]
      %v3087 = vld [vmem:[%s3076 + $0x28] sm:$0xf]
      %v3088 = vld [vmem:[%s3076 + $0x2c] sm:$0xf]
      %v3089 = vld [vmem:[%s3076 + $0x30] sm:$0xf]
      %v3090 = vld [vmem:[%s3076 + $0x34] sm:$0xf]
      %v3091 = vld [vmem:[%s3076 + $0x38] sm:$0xf]
      %v3092 = vld [vmem:[%s3076 + $0x3c] sm:$0xf]
      %v3093 = vunpack.c.l.b16 %v2705
      %v3094 = vunpack.c.l.b16 %v2715
      %v3095 = vunpack.c.l.b16 %v2729
      %v3096 = vunpack.c.l.b16 %v2739
      %v3097 = vunpack.c.l.b16 %v2753
      %v3098 = vunpack.c.l.b16 %v2763
      %v3099 = vunpack.c.l.b16 %v2777
      %v3100 = vunpack.c.l.b16 %v2787
      %v3101 = vunpack.c.l.b16 %v2801
      %v3102 = vunpack.c.l.b16 %v2811
      %v3103 = vunpack.c.l.b16 %v2825
      %v3104 = vunpack.c.l.b16 %v2835
      %v3105 = vunpack.c.l.b16 %v2849
      %v3106 = vunpack.c.l.b16 %v2859
      %v3107 = vunpack.c.l.b16 %v2873
      %v3108 = vunpack.c.l.b16 %v2883
      %v3109 = vunpack.c.l.b16 %v2897
      %v3110 = vunpack.c.l.b16 %v2907
      %v3111 = vunpack.c.l.b16 %v2921
      %v3112 = vunpack.c.l.b16 %v2931
      %v3113 = vunpack.c.l.b16 %v2945
      %v3114 = vunpack.c.l.b16 %v2955
      %v3115 = vunpack.c.l.b16 %v2969
      %v3116 = vunpack.c.l.b16 %v2979
      %v3117 = vunpack.c.l.b16 %v2993
      %v3118 = vunpack.c.l.b16 %v3003
      %v3119 = vunpack.c.l.b16 %v3017
      %v3120 = vunpack.c.l.b16 %v3027
      %v3121 = vunpack.c.l.b16 %v3041
      %v3122 = vunpack.c.l.b16 %v3051
      %v3123 = vunpack.c.l.b16 %v3065
      %v3124 = vunpack.c.l.b16 %v3075
      %v3125 = vpack.c.b16 %v3094, %v3093
      %v3126 = vpack.c.b16 %v3096, %v3095
      %v3127 = vpack.c.b16 %v3098, %v3097
      %v3128 = vpack.c.b16 %v3100, %v3099
      %v3129 = vpack.c.b16 %v3102, %v3101
      %v3130 = vpack.c.b16 %v3104, %v3103
      %v3131 = vpack.c.b16 %v3106, %v3105
      %v3132 = vpack.c.b16 %v3108, %v3107
      %v3133 = vpack.c.b16 %v3110, %v3109
      %v3134 = vpack.c.b16 %v3112, %v3111
      %v3135 = vpack.c.b16 %v3114, %v3113
      %v3136 = vpack.c.b16 %v3116, %v3115
      %v3137 = vpack.c.b16 %v3118, %v3117
      %v3138 = vpack.c.b16 %v3120, %v3119
      %v3139 = vpack.c.b16 %v3122, %v3121
      %v3140 = vpack.c.b16 %v3124, %v3123
      %v3173 = vunpack.c.l.b16 %v3077
      %v3174 = vunpack.c.l.b16 %v3078
      %v3175 = vunpack.c.l.b16 %v3079
      %v3176 = vunpack.c.l.b16 %v3080
      %v3177 = vunpack.c.l.b16 %v3081
      %v3178 = vunpack.c.l.b16 %v3082
      %v3179 = vunpack.c.l.b16 %v3083
      %v3180 = vunpack.c.l.b16 %v3084
      %v3181 = vunpack.c.l.b16 %v3085
      %v3182 = vunpack.c.l.b16 %v3086
      %v3183 = vunpack.c.l.b16 %v3087
      %v3184 = vunpack.c.l.b16 %v3088
      %v3185 = vunpack.c.l.b16 %v3089
      %v3186 = vunpack.c.l.b16 %v3090
      %v3187 = vunpack.c.l.b16 %v3091
      %v3188 = vunpack.c.l.b16 %v3092
      %v3189 = vpack.c.b16 %v3174, %v3173
      %v3190 = vpack.c.b16 %v3176, %v3175
      %v3191 = vpack.c.b16 %v3178, %v3177
      %v3192 = vpack.c.b16 %v3180, %v3179
      %v3193 = vpack.c.b16 %v3182, %v3181
      %v3194 = vpack.c.b16 %v3184, %v3183
      %v3195 = vpack.c.b16 %v3186, %v3185
      %v3196 = vpack.c.b16 %v3188, %v3187
      %3205 = vmatpush.bf16.msra.mxu0 %v3196
      %3206 = vmatpush.bf16.msra.mxu0 %v3195
      %3207 = vmatpush.bf16.msra.mxu0 %v3194
      %3208 = vmatpush.bf16.msra.mxu0 %v3193
      %3209 = vmatpush.bf16.msra.mxu0 %v3192
      %3210 = vmatpush.bf16.msra.mxu0 %v3191
      %3211 = vmatpush.bf16.msra.mxu0 %v3190
      %3212 = vmatpush.bf16.msra.mxu0 %v3189
      %3213 = vmatmul.bf16.gmra.mxu0 %v3125
      %v3214 = vpop.f32.mrf.mxu0
      %v3215 = vadd.f32 0.0, %v3214
      %v3216 = vpop.f32.mrf.mxu0
      %v3217 = vadd.f32 0.0, %v3216
      %3218 = vmatmul.bf16.gmra.mxu0 %v3126
      %v3219 = vpop.f32.mrf.mxu0
      %v3220 = vadd.f32 0.0, %v3219
      %v3221 = vpop.f32.mrf.mxu0
      %v3222 = vadd.f32 0.0, %v3221
      %3223 = vmatmul.bf16.gmra.mxu0 %v3127
      %v3224 = vpop.f32.mrf.mxu0
      %v3225 = vadd.f32 0.0, %v3224
      %v3226 = vpop.f32.mrf.mxu0
      %v3227 = vadd.f32 0.0, %v3226
      %3228 = vmatmul.bf16.gmra.mxu0 %v3128
      %v3229 = vpop.f32.mrf.mxu0
      %v3230 = vadd.f32 0.0, %v3229
      %v3231 = vpop.f32.mrf.mxu0
      %v3232 = vadd.f32 0.0, %v3231
      %3233 = vmatmul.bf16.gmra.mxu0 %v3129
      %v3234 = vpop.f32.mrf.mxu0
      %v3235 = vadd.f32 0.0, %v3234
      %v3236 = vpop.f32.mrf.mxu0
      %v3237 = vadd.f32 0.0, %v3236
      %3238 = vmatmul.bf16.gmra.mxu0 %v3130
      %v3239 = vpop.f32.mrf.mxu0
      %v3240 = vadd.f32 0.0, %v3239
      %v3241 = vpop.f32.mrf.mxu0
      %v3242 = vadd.f32 0.0, %v3241
      %3243 = vmatmul.bf16.gmra.mxu0 %v3131
      %v3244 = vpop.f32.mrf.mxu0
      %v3245 = vadd.f32 0.0, %v3244
      %v3246 = vpop.f32.mrf.mxu0
      %v3247 = vadd.f32 0.0, %v3246
      %3248 = vmatmul.bf16.gmra.mxu0 %v3132
      %v3249 = vpop.f32.mrf.mxu0
      %v3250 = vadd.f32 0.0, %v3249
      %v3251 = vpop.f32.mrf.mxu0
      %v3252 = vadd.f32 0.0, %v3251
      %3253 = vmatmul.bf16.gmra.mxu0 %v3133
      %v3254 = vpop.f32.mrf.mxu0
      %v3255 = vadd.f32 0.0, %v3254
      %v3256 = vpop.f32.mrf.mxu0
      %v3257 = vadd.f32 0.0, %v3256
      %3258 = vmatmul.bf16.gmra.mxu0 %v3134
      %v3259 = vpop.f32.mrf.mxu0
      %v3260 = vadd.f32 0.0, %v3259
      %v3261 = vpop.f32.mrf.mxu0
      %v3262 = vadd.f32 0.0, %v3261
      %3263 = vmatmul.bf16.gmra.mxu0 %v3135
      %v3264 = vpop.f32.mrf.mxu0
      %v3265 = vadd.f32 0.0, %v3264
      %v3266 = vpop.f32.mrf.mxu0
      %v3267 = vadd.f32 0.0, %v3266
      %3268 = vmatmul.bf16.gmra.mxu0 %v3136
      %v3269 = vpop.f32.mrf.mxu0
      %v3270 = vadd.f32 0.0, %v3269
      %v3271 = vpop.f32.mrf.mxu0
      %v3272 = vadd.f32 0.0, %v3271
      %3273 = vmatmul.bf16.gmra.mxu0 %v3137
      %v3274 = vpop.f32.mrf.mxu0
      %v3275 = vadd.f32 0.0, %v3274
      %v3276 = vpop.f32.mrf.mxu0
      %v3277 = vadd.f32 0.0, %v3276
      %3278 = vmatmul.bf16.gmra.mxu0 %v3138
      %v3279 = vpop.f32.mrf.mxu0
      %v3280 = vadd.f32 0.0, %v3279
      %v3281 = vpop.f32.mrf.mxu0
      %v3282 = vadd.f32 0.0, %v3281
      %3283 = vmatmul.bf16.gmra.mxu0 %v3139
      %v3284 = vpop.f32.mrf.mxu0
      %v3285 = vadd.f32 0.0, %v3284
      %v3286 = vpop.f32.mrf.mxu0
      %v3287 = vadd.f32 0.0, %v3286
      %3288 = vmatmul.bf16.gmra.mxu0 %v3140
      %v3289 = vpop.f32.mrf.mxu0
      %v3290 = vadd.f32 0.0, %v3289
      %v3291 = vpop.f32.mrf.mxu0
      %v3292 = vadd.f32 0.0, %v3291
      %3293 = vdwg.mxu0
      %v3294 = vadd.f32 %v2612, %v3215
      %v3295 = vadd.f32 %v2613, %v3217
      %v3296 = vadd.f32 %v2614, %v3220
      %v3297 = vadd.f32 %v2615, %v3222
      %v3298 = vadd.f32 %v2616, %v3225
      %v3299 = vadd.f32 %v2617, %v3227
      %v3300 = vadd.f32 %v2618, %v3230
      %v3301 = vadd.f32 %v2619, %v3232
      %v3302 = vadd.f32 %v2620, %v3235
      %v3303 = vadd.f32 %v2621, %v3237
      %v3304 = vadd.f32 %v2622, %v3240
      %v3305 = vadd.f32 %v2623, %v3242
      %v3306 = vadd.f32 %v2624, %v3245
      %v3307 = vadd.f32 %v2625, %v3247
      %v3308 = vadd.f32 %v2626, %v3250
      %v3309 = vadd.f32 %v2627, %v3252
      %v3310 = vadd.f32 %v2628, %v3255
      %v3311 = vadd.f32 %v2629, %v3257
      %v3312 = vadd.f32 %v2630, %v3260
      %v3313 = vadd.f32 %v2631, %v3262
      %v3314 = vadd.f32 %v2632, %v3265
      %v3315 = vadd.f32 %v2633, %v3267
      %v3316 = vadd.f32 %v2634, %v3270
      %v3317 = vadd.f32 %v2635, %v3272
      %v3318 = vadd.f32 %v2636, %v3275
      %v3319 = vadd.f32 %v2637, %v3277
      %v3320 = vadd.f32 %v2638, %v3280
      %v3321 = vadd.f32 %v2639, %v3282
      %v3322 = vadd.f32 %v2640, %v3285
      %v3323 = vadd.f32 %v2641, %v3287
      %v3324 = vadd.f32 %v2642, %v3290
      %v3325 = vadd.f32 %v2643, %v3292
      %v3326 = vld [vmem:[%s477] sm:$0xe]
      %v3327 = vld [vmem:[%s477 + $0xc] sm:$0xe]
      %v3328 = vld [vmem:[%s477 + $0x18] sm:$0xe]
      %v3329 = vld [vmem:[%s477 + $0x24] sm:$0xe]
      %v3330 = vld [vmem:[%s477 + $0x30] sm:$0xe]
      %v3331 = vld [vmem:[%s477 + $0x3c] sm:$0xe]
      %v3332 = vld [vmem:[%s477 + $0x48] sm:$0xe]
      %v3333 = vld [vmem:[%s477 + $0x54] sm:$0xe]
      %v3334 = vld [vmem:[%s477 + $0x60] sm:$0xe]
      %v3335 = vld [vmem:[%s477 + $0x6c] sm:$0xe]
      %v3336 = vld [vmem:[%s477 + $0x78] sm:$0xe]
      %v3337 = vld [vmem:[%s477 + $0x84] sm:$0xe]
      %v3338 = vld [vmem:[%s477 + $0x90] sm:$0xe]
      %v3339 = vld [vmem:[%s477 + $0x9c] sm:$0xe]
      %v3340 = vld [vmem:[%s477 + $0xa8] sm:$0xe]
      %v3341 = vld [vmem:[%s477 + $0xb4] sm:$0xe]
      %v3390 = vrot.slane %v3326, 5
      %v3391 = vrot.slane %v3390, 4
      %v3392 = vrot.slane %v2645, 5
      %v3393 = vsel %vm1967, %v3391, %v3392
      %v3394 = vrot.slane %v3392, 4
      %v3395 = vrot.slane %v2646, 5
      %v3396 = vsel %vm1967, %v3394, %v3395
      %v3397 = vrot.slane %v3327, 5
      %v3398 = vrot.slane %v3397, 4
      %v3399 = vrot.slane %v2648, 5
      %v3400 = vsel %vm1967, %v3398, %v3399
      %v3401 = vrot.slane %v3399, 4
      %v3402 = vrot.slane %v2649, 5
      %v3403 = vsel %vm1967, %v3401, %v3402
      %v3404 = vrot.slane %v3328, 5
      %v3405 = vrot.slane %v3404, 4
      %v3406 = vrot.slane %v2651, 5
      %v3407 = vsel %vm1967, %v3405, %v3406
      %v3408 = vrot.slane %v3406, 4
      %v3409 = vrot.slane %v2652, 5
      %v3410 = vsel %vm1967, %v3408, %v3409
      %v3411 = vrot.slane %v3329, 5
      %v3412 = vrot.slane %v3411, 4
      %v3413 = vrot.slane %v2654, 5
      %v3414 = vsel %vm1967, %v3412, %v3413
      %v3415 = vrot.slane %v3413, 4
      %v3416 = vrot.slane %v2655, 5
      %v3417 = vsel %vm1967, %v3415, %v3416
      %v3418 = vrot.slane %v3330, 5
      %v3419 = vrot.slane %v3418, 4
      %v3420 = vrot.slane %v2657, 5
      %v3421 = vsel %vm1967, %v3419, %v3420
      %v3422 = vrot.slane %v3420, 4
      %v3423 = vrot.slane %v2658, 5
      %v3424 = vsel %vm1967, %v3422, %v3423
      %v3425 = vrot.slane %v3331, 5
      %v3426 = vrot.slane %v3425, 4
      %v3427 = vrot.slane %v2660, 5
      %v3428 = vsel %vm1967, %v3426, %v3427
      %v3429 = vrot.slane %v3427, 4
      %v3430 = vrot.slane %v2661, 5
      %v3431 = vsel %vm1967, %v3429, %v3430
      %v3432 = vrot.slane %v3332, 5
      %v3433 = vrot.slane %v3432, 4
      %v3434 = vrot.slane %v2663, 5
      %v3435 = vsel %vm1967, %v3433, %v3434
      %v3436 = vrot.slane %v3434, 4
      %v3437 = vrot.slane %v2664, 5
      %v3438 = vsel %vm1967, %v3436, %v3437
      %v3439 = vrot.slane %v3333, 5
      %v3440 = vrot.slane %v3439, 4
      %v3441 = vrot.slane %v2666, 5
      %v3442 = vsel %vm1967, %v3440, %v3441
      %v3443 = vrot.slane %v3441, 4
      %v3444 = vrot.slane %v2667, 5
      %v3445 = vsel %vm1967, %v3443, %v3444
      %v3446 = vrot.slane %v3334, 5
      %v3447 = vrot.slane %v3446, 4
      %v3448 = vrot.slane %v2669, 5
      %v3449 = vsel %vm1967, %v3447, %v3448
      %v3450 = vrot.slane %v3448, 4
      %v3451 = vrot.slane %v2670, 5
      %v3452 = vsel %vm1967, %v3450, %v3451
      %v3453 = vrot.slane %v3335, 5
      %v3454 = vrot.slane %v3453, 4
      %v3455 = vrot.slane %v2672, 5
      %v3456 = vsel %vm1967, %v3454, %v3455
      %v3457 = vrot.slane %v3455, 4
      %v3458 = vrot.slane %v2673, 5
      %v3459 = vsel %vm1967, %v3457, %v3458
      %v3460 = vrot.slane %v3336, 5
      %v3461 = vrot.slane %v3460, 4
      %v3462 = vrot.slane %v2675, 5
      %v3463 = vsel %vm1967, %v3461, %v3462
      %v3464 = vrot.slane %v3462, 4
      %v3465 = vrot.slane %v2676, 5
      %v3466 = vsel %vm1967, %v3464, %v3465
      %v3467 = vrot.slane %v3337, 5
      %v3468 = vrot.slane %v3467, 4
      %v3469 = vrot.slane %v2678, 5
      %v3470 = vsel %vm1967, %v3468, %v3469
      %v3471 = vrot.slane %v3469, 4
      %v3472 = vrot.slane %v2679, 5
      %v3473 = vsel %vm1967, %v3471, %v3472
      %v3474 = vrot.slane %v3338, 5
      %v3475 = vrot.slane %v3474, 4
      %v3476 = vrot.slane %v2681, 5
      %v3477 = vsel %vm1967, %v3475, %v3476
      %v3478 = vrot.slane %v3476, 4
      %v3479 = vrot.slane %v2682, 5
      %v3480 = vsel %vm1967, %v3478, %v3479
      %v3481 = vrot.slane %v3339, 5
      %v3482 = vrot.slane %v3481, 4
      %v3483 = vrot.slane %v2684, 5
      %v3484 = vsel %vm1967, %v3482, %v3483
      %v3485 = vrot.slane %v3483, 4
      %v3486 = vrot.slane %v2685, 5
      %v3487 = vsel %vm1967, %v3485, %v3486
      %v3488 = vrot.slane %v3340, 5
      %v3489 = vrot.slane %v3488, 4
      %v3490 = vrot.slane %v2687, 5
      %v3491 = vsel %vm1967, %v3489, %v3490
      %v3492 = vrot.slane %v3490, 4
      %v3493 = vrot.slane %v2688, 5
      %v3494 = vsel %vm1967, %v3492, %v3493
      %v3495 = vrot.slane %v3341, 5
      %v3496 = vrot.slane %v3495, 4
      %v3497 = vrot.slane %v2690, 5
      %v3498 = vsel %vm1967, %v3496, %v3497
      %v3499 = vrot.slane %v3497, 4
      %v3500 = vrot.slane %v2691, 5
      %v3501 = vsel %vm1967, %v3499, %v3500
      %s3502 = scalar_lea.vmem %s3, 320
      %v3503 = vld [vmem:[%s3502] sm:$0xf]
      %v3504 = vld [vmem:[%s3502 + $0x4] sm:$0xf]
      %v3505 = vld [vmem:[%s3502 + $0x8] sm:$0xf]
      %v3506 = vld [vmem:[%s3502 + $0xc] sm:$0xf]
      %v3507 = vld [vmem:[%s3502 + $0x10] sm:$0xf]
      %v3508 = vld [vmem:[%s3502 + $0x14] sm:$0xf]
      %v3509 = vld [vmem:[%s3502 + $0x18] sm:$0xf]
      %v3510 = vld [vmem:[%s3502 + $0x1c] sm:$0xf]
      %v3511 = vld [vmem:[%s3502 + $0x20] sm:$0xf]
      %v3512 = vld [vmem:[%s3502 + $0x24] sm:$0xf]
      %v3513 = vld [vmem:[%s3502 + $0x28] sm:$0xf]
      %v3514 = vld [vmem:[%s3502 + $0x2c] sm:$0xf]
      %v3515 = vld [vmem:[%s3502 + $0x30] sm:$0xf]
      %v3516 = vld [vmem:[%s3502 + $0x34] sm:$0xf]
      %v3517 = vld [vmem:[%s3502 + $0x38] sm:$0xf]
      %v3518 = vld [vmem:[%s3502 + $0x3c] sm:$0xf]
      %v3519 = vunpack.c.l.b16 %v3393
      %v3520 = vunpack.c.l.b16 %v3396
      %v3521 = vunpack.c.l.b16 %v3400
      %v3522 = vunpack.c.l.b16 %v3403
      %v3523 = vunpack.c.l.b16 %v3407
      %v3524 = vunpack.c.l.b16 %v3410
      %v3525 = vunpack.c.l.b16 %v3414
      %v3526 = vunpack.c.l.b16 %v3417
      %v3527 = vunpack.c.l.b16 %v3421
      %v3528 = vunpack.c.l.b16 %v3424
      %v3529 = vunpack.c.l.b16 %v3428
      %v3530 = vunpack.c.l.b16 %v3431
      %v3531 = vunpack.c.l.b16 %v3435
      %v3532 = vunpack.c.l.b16 %v3438
      %v3533 = vunpack.c.l.b16 %v3442
      %v3534 = vunpack.c.l.b16 %v3445
      %v3535 = vunpack.c.l.b16 %v3449
      %v3536 = vunpack.c.l.b16 %v3452
      %v3537 = vunpack.c.l.b16 %v3456
      %v3538 = vunpack.c.l.b16 %v3459
      %v3539 = vunpack.c.l.b16 %v3463
      %v3540 = vunpack.c.l.b16 %v3466
      %v3541 = vunpack.c.l.b16 %v3470
      %v3542 = vunpack.c.l.b16 %v3473
      %v3543 = vunpack.c.l.b16 %v3477
      %v3544 = vunpack.c.l.b16 %v3480
      %v3545 = vunpack.c.l.b16 %v3484
      %v3546 = vunpack.c.l.b16 %v3487
      %v3547 = vunpack.c.l.b16 %v3491
      %v3548 = vunpack.c.l.b16 %v3494
      %v3549 = vunpack.c.l.b16 %v3498
      %v3550 = vunpack.c.l.b16 %v3501
      %v3551 = vpack.c.b16 %v3520, %v3519
      %v3552 = vpack.c.b16 %v3522, %v3521
      %v3553 = vpack.c.b16 %v3524, %v3523
      %v3554 = vpack.c.b16 %v3526, %v3525
      %v3555 = vpack.c.b16 %v3528, %v3527
      %v3556 = vpack.c.b16 %v3530, %v3529
      %v3557 = vpack.c.b16 %v3532, %v3531
      %v3558 = vpack.c.b16 %v3534, %v3533
      %v3559 = vpack.c.b16 %v3536, %v3535
      %v3560 = vpack.c.b16 %v3538, %v3537
      %v3561 = vpack.c.b16 %v3540, %v3539
      %v3562 = vpack.c.b16 %v3542, %v3541
      %v3563 = vpack.c.b16 %v3544, %v3543
      %v3564 = vpack.c.b16 %v3546, %v3545
      %v3565 = vpack.c.b16 %v3548, %v3547
      %v3566 = vpack.c.b16 %v3550, %v3549
      %v3599 = vunpack.c.l.b16 %v3503
      %v3600 = vunpack.c.l.b16 %v3504
      %v3601 = vunpack.c.l.b16 %v3505
      %v3602 = vunpack.c.l.b16 %v3506
      %v3603 = vunpack.c.l.b16 %v3507
      %v3604 = vunpack.c.l.b16 %v3508
      %v3605 = vunpack.c.l.b16 %v3509
      %v3606 = vunpack.c.l.b16 %v3510
      %v3607 = vunpack.c.l.b16 %v3511
      %v3608 = vunpack.c.l.b16 %v3512
      %v3609 = vunpack.c.l.b16 %v3513
      %v3610 = vunpack.c.l.b16 %v3514
      %v3611 = vunpack.c.l.b16 %v3515
      %v3612 = vunpack.c.l.b16 %v3516
      %v3613 = vunpack.c.l.b16 %v3517
      %v3614 = vunpack.c.l.b16 %v3518
      %v3615 = vpack.c.b16 %v3600, %v3599
      %v3616 = vpack.c.b16 %v3602, %v3601
      %v3617 = vpack.c.b16 %v3604, %v3603
      %v3618 = vpack.c.b16 %v3606, %v3605
      %v3619 = vpack.c.b16 %v3608, %v3607
      %v3620 = vpack.c.b16 %v3610, %v3609
      %v3621 = vpack.c.b16 %v3612, %v3611
      %v3622 = vpack.c.b16 %v3614, %v3613
      %3631 = vmatpush.bf16.msra.mxu0 %v3622
      %3632 = vmatpush.bf16.msra.mxu0 %v3621
      %3633 = vmatpush.bf16.msra.mxu0 %v3620
      %3634 = vmatpush.bf16.msra.mxu0 %v3619
      %3635 = vmatpush.bf16.msra.mxu0 %v3618
      %3636 = vmatpush.bf16.msra.mxu0 %v3617
      %3637 = vmatpush.bf16.msra.mxu0 %v3616
      %3638 = vmatpush.bf16.msra.mxu0 %v3615
      %3639 = vmatmul.bf16.gmra.mxu0 %v3551
      %v3640 = vpop.f32.mrf.mxu0
      %v3641 = vadd.f32 0.0, %v3640
      %v3642 = vpop.f32.mrf.mxu0
      %v3643 = vadd.f32 0.0, %v3642
      %3644 = vmatmul.bf16.gmra.mxu0 %v3552
      %v3645 = vpop.f32.mrf.mxu0
      %v3646 = vadd.f32 0.0, %v3645
      %v3647 = vpop.f32.mrf.mxu0
      %v3648 = vadd.f32 0.0, %v3647
      %3649 = vmatmul.bf16.gmra.mxu0 %v3553
      %v3650 = vpop.f32.mrf.mxu0
      %v3651 = vadd.f32 0.0, %v3650
      %v3652 = vpop.f32.mrf.mxu0
      %v3653 = vadd.f32 0.0, %v3652
      %3654 = vmatmul.bf16.gmra.mxu0 %v3554
      %v3655 = vpop.f32.mrf.mxu0
      %v3656 = vadd.f32 0.0, %v3655
      %v3657 = vpop.f32.mrf.mxu0
      %v3658 = vadd.f32 0.0, %v3657
      %3659 = vmatmul.bf16.gmra.mxu0 %v3555
      %v3660 = vpop.f32.mrf.mxu0
      %v3661 = vadd.f32 0.0, %v3660
      %v3662 = vpop.f32.mrf.mxu0
      %v3663 = vadd.f32 0.0, %v3662
      %3664 = vmatmul.bf16.gmra.mxu0 %v3556
      %v3665 = vpop.f32.mrf.mxu0
      %v3666 = vadd.f32 0.0, %v3665
      %v3667 = vpop.f32.mrf.mxu0
      %v3668 = vadd.f32 0.0, %v3667
      %3669 = vmatmul.bf16.gmra.mxu0 %v3557
      %v3670 = vpop.f32.mrf.mxu0
      %v3671 = vadd.f32 0.0, %v3670
      %v3672 = vpop.f32.mrf.mxu0
      %v3673 = vadd.f32 0.0, %v3672
      %3674 = vmatmul.bf16.gmra.mxu0 %v3558
      %v3675 = vpop.f32.mrf.mxu0
      %v3676 = vadd.f32 0.0, %v3675
      %v3677 = vpop.f32.mrf.mxu0
      %v3678 = vadd.f32 0.0, %v3677
      %3679 = vmatmul.bf16.gmra.mxu0 %v3559
      %v3680 = vpop.f32.mrf.mxu0
      %v3681 = vadd.f32 0.0, %v3680
      %v3682 = vpop.f32.mrf.mxu0
      %v3683 = vadd.f32 0.0, %v3682
      %3684 = vmatmul.bf16.gmra.mxu0 %v3560
      %v3685 = vpop.f32.mrf.mxu0
      %v3686 = vadd.f32 0.0, %v3685
      %v3687 = vpop.f32.mrf.mxu0
      %v3688 = vadd.f32 0.0, %v3687
      %3689 = vmatmul.bf16.gmra.mxu0 %v3561
      %v3690 = vpop.f32.mrf.mxu0
      %v3691 = vadd.f32 0.0, %v3690
      %v3692 = vpop.f32.mrf.mxu0
      %v3693 = vadd.f32 0.0, %v3692
      %3694 = vmatmul.bf16.gmra.mxu0 %v3562
      %v3695 = vpop.f32.mrf.mxu0
      %v3696 = vadd.f32 0.0, %v3695
      %v3697 = vpop.f32.mrf.mxu0
      %v3698 = vadd.f32 0.0, %v3697
      %3699 = vmatmul.bf16.gmra.mxu0 %v3563
      %v3700 = vpop.f32.mrf.mxu0
      %v3701 = vadd.f32 0.0, %v3700
      %v3702 = vpop.f32.mrf.mxu0
      %v3703 = vadd.f32 0.0, %v3702
      %3704 = vmatmul.bf16.gmra.mxu0 %v3564
      %v3705 = vpop.f32.mrf.mxu0
      %v3706 = vadd.f32 0.0, %v3705
      %v3707 = vpop.f32.mrf.mxu0
      %v3708 = vadd.f32 0.0, %v3707
      %3709 = vmatmul.bf16.gmra.mxu0 %v3565
      %v3710 = vpop.f32.mrf.mxu0
      %v3711 = vadd.f32 0.0, %v3710
      %v3712 = vpop.f32.mrf.mxu0
      %v3713 = vadd.f32 0.0, %v3712
      %3714 = vmatmul.bf16.gmra.mxu0 %v3566
      %v3715 = vpop.f32.mrf.mxu0
      %v3716 = vadd.f32 0.0, %v3715
      %v3717 = vpop.f32.mrf.mxu0
      %v3718 = vadd.f32 0.0, %v3717
      %3719 = vdwg.mxu0
      %v3720 = vadd.f32 %v3294, %v3641
      %v3721 = vadd.f32 %v3295, %v3643
      %v3722 = vadd.f32 %v3296, %v3646
      %v3723 = vadd.f32 %v3297, %v3648
      %v3724 = vadd.f32 %v3298, %v3651
      %v3725 = vadd.f32 %v3299, %v3653
      %v3726 = vadd.f32 %v3300, %v3656
      %v3727 = vadd.f32 %v3301, %v3658
      %v3728 = vadd.f32 %v3302, %v3661
      %v3729 = vadd.f32 %v3303, %v3663
      %v3730 = vadd.f32 %v3304, %v3666
      %v3731 = vadd.f32 %v3305, %v3668
      %v3732 = vadd.f32 %v3306, %v3671
      %v3733 = vadd.f32 %v3307, %v3673
      %v3734 = vadd.f32 %v3308, %v3676
      %v3735 = vadd.f32 %v3309, %v3678
      %v3736 = vadd.f32 %v3310, %v3681
      %v3737 = vadd.f32 %v3311, %v3683
      %v3738 = vadd.f32 %v3312, %v3686
      %v3739 = vadd.f32 %v3313, %v3688
      %v3740 = vadd.f32 %v3314, %v3691
      %v3741 = vadd.f32 %v3315, %v3693
      %v3742 = vadd.f32 %v3316, %v3696
      %v3743 = vadd.f32 %v3317, %v3698
      %v3744 = vadd.f32 %v3318, %v3701
      %v3745 = vadd.f32 %v3319, %v3703
      %v3746 = vadd.f32 %v3320, %v3706
      %v3747 = vadd.f32 %v3321, %v3708
      %v3748 = vadd.f32 %v3322, %v3711
      %v3749 = vadd.f32 %v3323, %v3713
      %v3750 = vadd.f32 %v3324, %v3716
      %v3751 = vadd.f32 %v3325, %v3718
      %s3752 = scalar_lea.vmem [#allocation2], 24
      %v3753 = vld [vmem:[%s3752] sm:$0xf]
      %v3754 = vld [vmem:[%s3752 + $0x4] sm:$0xf]
      %v3755 = vld [vmem:[%s3752 + $0xc] sm:$0xf]
      %v3756 = vld [vmem:[%s3752 + $0x10] sm:$0xf]
      %v3757 = vld [vmem:[%s3752 + $0x18] sm:$0xf]
      %v3758 = vld [vmem:[%s3752 + $0x1c] sm:$0xf]
      %v3759 = vld [vmem:[%s3752 + $0x24] sm:$0xf]
      %v3760 = vld [vmem:[%s3752 + $0x28] sm:$0xf]
      %v3761 = vld [vmem:[%s3752 + $0x30] sm:$0xf]
      %v3762 = vld [vmem:[%s3752 + $0x34] sm:$0xf]
      %v3763 = vld [vmem:[%s3752 + $0x3c] sm:$0xf]
      %v3764 = vld [vmem:[%s3752 + $0x40] sm:$0xf]
      %v3765 = vld [vmem:[%s3752 + $0x48] sm:$0xf]
      %v3766 = vld [vmem:[%s3752 + $0x4c] sm:$0xf]
      %v3767 = vld [vmem:[%s3752 + $0x54] sm:$0xf]
      %v3768 = vld [vmem:[%s3752 + $0x58] sm:$0xf]
      %v3769 = vld [vmem:[%s3752 + $0x60] sm:$0xf]
      %v3770 = vld [vmem:[%s3752 + $0x64] sm:$0xf]
      %v3771 = vld [vmem:[%s3752 + $0x6c] sm:$0xf]
      %v3772 = vld [vmem:[%s3752 + $0x70] sm:$0xf]
      %v3773 = vld [vmem:[%s3752 + $0x78] sm:$0xf]
      %v3774 = vld [vmem:[%s3752 + $0x7c] sm:$0xf]
      %v3775 = vld [vmem:[%s3752 + $0x84] sm:$0xf]
      %v3776 = vld [vmem:[%s3752 + $0x88] sm:$0xf]
      %v3777 = vld [vmem:[%s3752 + $0x90] sm:$0xf]
      %v3778 = vld [vmem:[%s3752 + $0x94] sm:$0xf]
      %v3779 = vld [vmem:[%s3752 + $0x9c] sm:$0xf]
      %v3780 = vld [vmem:[%s3752 + $0xa0] sm:$0xf]
      %v3781 = vld [vmem:[%s3752 + $0xa8] sm:$0xf]
      %v3782 = vld [vmem:[%s3752 + $0xac] sm:$0xf]
      %v3783 = vld [vmem:[%s3752 + $0xb4] sm:$0xf]
      %v3784 = vld [vmem:[%s3752 + $0xb8] sm:$0xf]
      %s3785 = scalar_lea.vmem %s3, 384
      %v3786 = vld [vmem:[%s3785] sm:$0xf]
      %v3787 = vld [vmem:[%s3785 + $0x4] sm:$0xf]
      %v3788 = vld [vmem:[%s3785 + $0x8] sm:$0xf]
      %v3789 = vld [vmem:[%s3785 + $0xc] sm:$0xf]
      %v3790 = vld [vmem:[%s3785 + $0x10] sm:$0xf]
      %v3791 = vld [vmem:[%s3785 + $0x14] sm:$0xf]
      %v3792 = vld [vmem:[%s3785 + $0x18] sm:$0xf]
      %v3793 = vld [vmem:[%s3785 + $0x1c] sm:$0xf]
      %v3794 = vld [vmem:[%s3785 + $0x20] sm:$0xf]
      %v3795 = vld [vmem:[%s3785 + $0x24] sm:$0xf]
      %v3796 = vld [vmem:[%s3785 + $0x28] sm:$0xf]
      %v3797 = vld [vmem:[%s3785 + $0x2c] sm:$0xf]
      %v3798 = vld [vmem:[%s3785 + $0x30] sm:$0xf]
      %v3799 = vld [vmem:[%s3785 + $0x34] sm:$0xf]
      %v3800 = vld [vmem:[%s3785 + $0x38] sm:$0xf]
      %v3801 = vld [vmem:[%s3785 + $0x3c] sm:$0xf]
      %v3834 = vunpack.c.l.b16 %v3753
      %v3835 = vunpack.c.l.b16 %v3754
      %v3836 = vunpack.c.l.b16 %v3755
      %v3837 = vunpack.c.l.b16 %v3756
      %v3838 = vunpack.c.l.b16 %v3757
      %v3839 = vunpack.c.l.b16 %v3758
      %v3840 = vunpack.c.l.b16 %v3759
      %v3841 = vunpack.c.l.b16 %v3760
      %v3842 = vunpack.c.l.b16 %v3761
      %v3843 = vunpack.c.l.b16 %v3762
      %v3844 = vunpack.c.l.b16 %v3763
      %v3845 = vunpack.c.l.b16 %v3764
      %v3846 = vunpack.c.l.b16 %v3765
      %v3847 = vunpack.c.l.b16 %v3766
      %v3848 = vunpack.c.l.b16 %v3767
      %v3849 = vunpack.c.l.b16 %v3768
      %v3850 = vunpack.c.l.b16 %v3769
      %v3851 = vunpack.c.l.b16 %v3770
      %v3852 = vunpack.c.l.b16 %v3771
      %v3853 = vunpack.c.l.b16 %v3772
      %v3854 = vunpack.c.l.b16 %v3773
      %v3855 = vunpack.c.l.b16 %v3774
      %v3856 = vunpack.c.l.b16 %v3775
      %v3857 = vunpack.c.l.b16 %v3776
      %v3858 = vunpack.c.l.b16 %v3777
      %v3859 = vunpack.c.l.b16 %v3778
      %v3860 = vunpack.c.l.b16 %v3779
      %v3861 = vunpack.c.l.b16 %v3780
      %v3862 = vunpack.c.l.b16 %v3781
      %v3863 = vunpack.c.l.b16 %v3782
      %v3864 = vunpack.c.l.b16 %v3783
      %v3865 = vunpack.c.l.b16 %v3784
      %v3866 = vpack.c.b16 %v3835, %v3834
      %v3867 = vpack.c.b16 %v3837, %v3836
      %v3868 = vpack.c.b16 %v3839, %v3838
      %v3869 = vpack.c.b16 %v3841, %v3840
      %v3870 = vpack.c.b16 %v3843, %v3842
      %v3871 = vpack.c.b16 %v3845, %v3844
      %v3872 = vpack.c.b16 %v3847, %v3846
      %v3873 = vpack.c.b16 %v3849, %v3848
      %v3874 = vpack.c.b16 %v3851, %v3850
      %v3875 = vpack.c.b16 %v3853, %v3852
      %v3876 = vpack.c.b16 %v3855, %v3854
      %v3877 = vpack.c.b16 %v3857, %v3856
      %v3878 = vpack.c.b16 %v3859, %v3858
      %v3879 = vpack.c.b16 %v3861, %v3860
      %v3880 = vpack.c.b16 %v3863, %v3862
      %v3881 = vpack.c.b16 %v3865, %v3864
      %v3914 = vunpack.c.l.b16 %v3786
      %v3915 = vunpack.c.l.b16 %v3787
      %v3916 = vunpack.c.l.b16 %v3788
      %v3917 = vunpack.c.l.b16 %v3789
      %v3918 = vunpack.c.l.b16 %v3790
      %v3919 = vunpack.c.l.b16 %v3791
      %v3920 = vunpack.c.l.b16 %v3792
      %v3921 = vunpack.c.l.b16 %v3793
      %v3922 = vunpack.c.l.b16 %v3794
      %v3923 = vunpack.c.l.b16 %v3795
      %v3924 = vunpack.c.l.b16 %v3796
      %v3925 = vunpack.c.l.b16 %v3797
      %v3926 = vunpack.c.l.b16 %v3798
      %v3927 = vunpack.c.l.b16 %v3799
      %v3928 = vunpack.c.l.b16 %v3800
      %v3929 = vunpack.c.l.b16 %v3801
      %v3930 = vpack.c.b16 %v3915, %v3914
      %v3931 = vpack.c.b16 %v3917, %v3916
      %v3932 = vpack.c.b16 %v3919, %v3918
      %v3933 = vpack.c.b16 %v3921, %v3920
      %v3934 = vpack.c.b16 %v3923, %v3922
      %v3935 = vpack.c.b16 %v3925, %v3924
      %v3936 = vpack.c.b16 %v3927, %v3926
      %v3937 = vpack.c.b16 %v3929, %v3928
      %3946 = vmatpush.bf16.msra.mxu0 %v3937
      %3947 = vmatpush.bf16.msra.mxu0 %v3936
      %3948 = vmatpush.bf16.msra.mxu0 %v3935
      %3949 = vmatpush.bf16.msra.mxu0 %v3934
      %3950 = vmatpush.bf16.msra.mxu0 %v3933
      %3951 = vmatpush.bf16.msra.mxu0 %v3932
      %3952 = vmatpush.bf16.msra.mxu0 %v3931
      %3953 = vmatpush.bf16.msra.mxu0 %v3930
      %3954 = vmatmul.bf16.gmra.mxu0 %v3866
      %v3955 = vpop.f32.mrf.mxu0
      %v3956 = vadd.f32 0.0, %v3955
      %v3957 = vpop.f32.mrf.mxu0
      %v3958 = vadd.f32 0.0, %v3957
      %3959 = vmatmul.bf16.gmra.mxu0 %v3867
      %v3960 = vpop.f32.mrf.mxu0
      %v3961 = vadd.f32 0.0, %v3960
      %v3962 = vpop.f32.mrf.mxu0
      %v3963 = vadd.f32 0.0, %v3962
      %3964 = vmatmul.bf16.gmra.mxu0 %v3868
      %v3965 = vpop.f32.mrf.mxu0
      %v3966 = vadd.f32 0.0, %v3965
      %v3967 = vpop.f32.mrf.mxu0
      %v3968 = vadd.f32 0.0, %v3967
      %3969 = vmatmul.bf16.gmra.mxu0 %v3869
      %v3970 = vpop.f32.mrf.mxu0
      %v3971 = vadd.f32 0.0, %v3970
      %v3972 = vpop.f32.mrf.mxu0
      %v3973 = vadd.f32 0.0, %v3972
      %3974 = vmatmul.bf16.gmra.mxu0 %v3870
      %v3975 = vpop.f32.mrf.mxu0
      %v3976 = vadd.f32 0.0, %v3975
      %v3977 = vpop.f32.mrf.mxu0
      %v3978 = vadd.f32 0.0, %v3977
      %3979 = vmatmul.bf16.gmra.mxu0 %v3871
      %v3980 = vpop.f32.mrf.mxu0
      %v3981 = vadd.f32 0.0, %v3980
      %v3982 = vpop.f32.mrf.mxu0
      %v3983 = vadd.f32 0.0, %v3982
      %3984 = vmatmul.bf16.gmra.mxu0 %v3872
      %v3985 = vpop.f32.mrf.mxu0
      %v3986 = vadd.f32 0.0, %v3985
      %v3987 = vpop.f32.mrf.mxu0
      %v3988 = vadd.f32 0.0, %v3987
      %3989 = vmatmul.bf16.gmra.mxu0 %v3873
      %v3990 = vpop.f32.mrf.mxu0
      %v3991 = vadd.f32 0.0, %v3990
      %v3992 = vpop.f32.mrf.mxu0
      %v3993 = vadd.f32 0.0, %v3992
      %3994 = vmatmul.bf16.gmra.mxu0 %v3874
      %v3995 = vpop.f32.mrf.mxu0
      %v3996 = vadd.f32 0.0, %v3995
      %v3997 = vpop.f32.mrf.mxu0
      %v3998 = vadd.f32 0.0, %v3997
      %3999 = vmatmul.bf16.gmra.mxu0 %v3875
      %v4000 = vpop.f32.mrf.mxu0
      %v4001 = vadd.f32 0.0, %v4000
      %v4002 = vpop.f32.mrf.mxu0
      %v4003 = vadd.f32 0.0, %v4002
      %4004 = vmatmul.bf16.gmra.mxu0 %v3876
      %v4005 = vpop.f32.mrf.mxu0
      %v4006 = vadd.f32 0.0, %v4005
      %v4007 = vpop.f32.mrf.mxu0
      %v4008 = vadd.f32 0.0, %v4007
      %4009 = vmatmul.bf16.gmra.mxu0 %v3877
      %v4010 = vpop.f32.mrf.mxu0
      %v4011 = vadd.f32 0.0, %v4010
      %v4012 = vpop.f32.mrf.mxu0
      %v4013 = vadd.f32 0.0, %v4012
      %4014 = vmatmul.bf16.gmra.mxu0 %v3878
      %v4015 = vpop.f32.mrf.mxu0
      %v4016 = vadd.f32 0.0, %v4015
      %v4017 = vpop.f32.mrf.mxu0
      %v4018 = vadd.f32 0.0, %v4017
      %4019 = vmatmul.bf16.gmra.mxu0 %v3879
      %v4020 = vpop.f32.mrf.mxu0
      %v4021 = vadd.f32 0.0, %v4020
      %v4022 = vpop.f32.mrf.mxu0
      %v4023 = vadd.f32 0.0, %v4022
      %4024 = vmatmul.bf16.gmra.mxu0 %v3880
      %v4025 = vpop.f32.mrf.mxu0
      %v4026 = vadd.f32 0.0, %v4025
      %v4027 = vpop.f32.mrf.mxu0
      %v4028 = vadd.f32 0.0, %v4027
      %4029 = vmatmul.bf16.gmra.mxu0 %v3881
      %v4030 = vpop.f32.mrf.mxu0
      %v4031 = vadd.f32 0.0, %v4030
      %v4032 = vpop.f32.mrf.mxu0
      %v4033 = vadd.f32 0.0, %v4032
      %4034 = vdwg.mxu0
      %v4035 = vadd.f32 %v3720, %v3956
      %v4036 = vadd.f32 %v3721, %v3958
      %v4037 = vadd.f32 %v3722, %v3961
      %v4038 = vadd.f32 %v3723, %v3963
      %v4039 = vadd.f32 %v3724, %v3966
      %v4040 = vadd.f32 %v3725, %v3968
      %v4041 = vadd.f32 %v3726, %v3971
      %v4042 = vadd.f32 %v3727, %v3973
      %v4043 = vadd.f32 %v3728, %v3976
      %v4044 = vadd.f32 %v3729, %v3978
      %v4045 = vadd.f32 %v3730, %v3981
      %v4046 = vadd.f32 %v3731, %v3983
      %v4047 = vadd.f32 %v3732, %v3986
      %v4048 = vadd.f32 %v3733, %v3988
      %v4049 = vadd.f32 %v3734, %v3991
      %v4050 = vadd.f32 %v3735, %v3993
      %v4051 = vadd.f32 %v3736, %v3996
      %v4052 = vadd.f32 %v3737, %v3998
      %v4053 = vadd.f32 %v3738, %v4001
      %v4054 = vadd.f32 %v3739, %v4003
      %v4055 = vadd.f32 %v3740, %v4006
      %v4056 = vadd.f32 %v3741, %v4008
      %v4057 = vadd.f32 %v3742, %v4011
      %v4058 = vadd.f32 %v3743, %v4013
      %v4059 = vadd.f32 %v3744, %v4016
      %v4060 = vadd.f32 %v3745, %v4018
      %v4061 = vadd.f32 %v3746, %v4021
      %v4062 = vadd.f32 %v3747, %v4023
      %v4063 = vadd.f32 %v3748, %v4026
      %v4064 = vadd.f32 %v3749, %v4028
      %v4065 = vadd.f32 %v3750, %v4031
      %v4066 = vadd.f32 %v3751, %v4033
      %v4067 = vld [vmem:[%s3752] sm:$0xf]
      %v4068 = vld [vmem:[%s3752 + $0x4] sm:$0xf]
      %v4069 = vld [vmem:[%s3752 + $0x8] sm:$0x1]
      %v4070 = vld [vmem:[%s3752 + $0xc] sm:$0xf]
      %v4071 = vld [vmem:[%s3752 + $0x10] sm:$0xf]
      %v4072 = vld [vmem:[%s3752 + $0x14] sm:$0x1]
      %v4073 = vld [vmem:[%s3752 + $0x18] sm:$0xf]
      %v4074 = vld [vmem:[%s3752 + $0x1c] sm:$0xf]
      %v4075 = vld [vmem:[%s3752 + $0x20] sm:$0x1]
      %v4076 = vld [vmem:[%s3752 + $0x24] sm:$0xf]
      %v4077 = vld [vmem:[%s3752 + $0x28] sm:$0xf]
      %v4078 = vld [vmem:[%s3752 + $0x2c] sm:$0x1]
      %v4079 = vld [vmem:[%s3752 + $0x30] sm:$0xf]
      %v4080 = vld [vmem:[%s3752 + $0x34] sm:$0xf]
      %v4081 = vld [vmem:[%s3752 + $0x38] sm:$0x1]
      %v4082 = vld [vmem:[%s3752 + $0x3c] sm:$0xf]
      %v4083 = vld [vmem:[%s3752 + $0x40] sm:$0xf]
      %v4084 = vld [vmem:[%s3752 + $0x44] sm:$0x1]
      %v4085 = vld [vmem:[%s3752 + $0x48] sm:$0xf]
      %v4086 = vld [vmem:[%s3752 + $0x4c] sm:$0xf]
      %v4087 = vld [vmem:[%s3752 + $0x50] sm:$0x1]
      %v4088 = vld [vmem:[%s3752 + $0x54] sm:$0xf]
      %v4089 = vld [vmem:[%s3752 + $0x58] sm:$0xf]
      %v4090 = vld [vmem:[%s3752 + $0x5c] sm:$0x1]
      %v4091 = vld [vmem:[%s3752 + $0x60] sm:$0xf]
      %v4092 = vld [vmem:[%s3752 + $0x64] sm:$0xf]
      %v4093 = vld [vmem:[%s3752 + $0x68] sm:$0x1]
      %v4094 = vld [vmem:[%s3752 + $0x6c] sm:$0xf]
      %v4095 = vld [vmem:[%s3752 + $0x70] sm:$0xf]
      %v4096 = vld [vmem:[%s3752 + $0x74] sm:$0x1]
      %v4097 = vld [vmem:[%s3752 + $0x78] sm:$0xf]
      %v4098 = vld [vmem:[%s3752 + $0x7c] sm:$0xf]
      %v4099 = vld [vmem:[%s3752 + $0x80] sm:$0x1]
      %v4100 = vld [vmem:[%s3752 + $0x84] sm:$0xf]
      %v4101 = vld [vmem:[%s3752 + $0x88] sm:$0xf]
      %v4102 = vld [vmem:[%s3752 + $0x8c] sm:$0x1]
      %v4103 = vld [vmem:[%s3752 + $0x90] sm:$0xf]
      %v4104 = vld [vmem:[%s3752 + $0x94] sm:$0xf]
      %v4105 = vld [vmem:[%s3752 + $0x98] sm:$0x1]
      %v4106 = vld [vmem:[%s3752 + $0x9c] sm:$0xf]
      %v4107 = vld [vmem:[%s3752 + $0xa0] sm:$0xf]
      %v4108 = vld [vmem:[%s3752 + $0xa4] sm:$0x1]
      %v4109 = vld [vmem:[%s3752 + $0xa8] sm:$0xf]
      %v4110 = vld [vmem:[%s3752 + $0xac] sm:$0xf]
      %v4111 = vld [vmem:[%s3752 + $0xb0] sm:$0x1]
      %v4112 = vld [vmem:[%s3752 + $0xb4] sm:$0xf]
      %v4113 = vld [vmem:[%s3752 + $0xb8] sm:$0xf]
      %v4114 = vld [vmem:[%s3752 + $0xbc] sm:$0x1]
      %v4116 = vshrl.u32 %v4067, 16
      %v4118 = vrot.slane %v4116, 4
      %v4119 = vshll.u32 %v4067, 16
      %v4121 = vrot.slane %v4119, 5
      %v4122 = vor.u32 %v4118, %v4121
      %v4123 = vrot.slane %v4122, 4
      %v4125 = vshll.u32 %v4068, 16
      %v4127 = vrot.slane %v4125, 5
      %v4128 = vsel %vm1081, %v4123, %v4127
      %v4129 = vshrl.u32 %v4068, 16
      %v4131 = vrot.slane %v4129, 4
      %v4132 = vor.u32 %v4131, %v4127
      %v4133 = vrot.slane %v4132, 4
      %v4135 = vshll.u32 %v4069, 16
      %v4137 = vrot.slane %v4135, 5
      %v4138 = vsel %vm1081, %v4133, %v4137
      %v4140 = vshrl.u32 %v4070, 16
      %v4142 = vrot.slane %v4140, 4
      %v4143 = vshll.u32 %v4070, 16
      %v4145 = vrot.slane %v4143, 5
      %v4146 = vor.u32 %v4142, %v4145
      %v4147 = vrot.slane %v4146, 4
      %v4149 = vshll.u32 %v4071, 16
      %v4151 = vrot.slane %v4149, 5
      %v4152 = vsel %vm1081, %v4147, %v4151
      %v4153 = vshrl.u32 %v4071, 16
      %v4155 = vrot.slane %v4153, 4
      %v4156 = vor.u32 %v4155, %v4151
      %v4157 = vrot.slane %v4156, 4
      %v4159 = vshll.u32 %v4072, 16
      %v4161 = vrot.slane %v4159, 5
      %v4162 = vsel %vm1081, %v4157, %v4161
      %v4164 = vshrl.u32 %v4073, 16
      %v4166 = vrot.slane %v4164, 4
      %v4167 = vshll.u32 %v4073, 16
      %v4169 = vrot.slane %v4167, 5
      %v4170 = vor.u32 %v4166, %v4169
      %v4171 = vrot.slane %v4170, 4
      %v4173 = vshll.u32 %v4074, 16
      %v4175 = vrot.slane %v4173, 5
      %v4176 = vsel %vm1081, %v4171, %v4175
      %v4177 = vshrl.u32 %v4074, 16
      %v4179 = vrot.slane %v4177, 4
      %v4180 = vor.u32 %v4179, %v4175
      %v4181 = vrot.slane %v4180, 4
      %v4183 = vshll.u32 %v4075, 16
      %v4185 = vrot.slane %v4183, 5
      %v4186 = vsel %vm1081, %v4181, %v4185
      %v4188 = vshrl.u32 %v4076, 16
      %v4190 = vrot.slane %v4188, 4
      %v4191 = vshll.u32 %v4076, 16
      %v4193 = vrot.slane %v4191, 5
      %v4194 = vor.u32 %v4190, %v4193
      %v4195 = vrot.slane %v4194, 4
      %v4197 = vshll.u32 %v4077, 16
      %v4199 = vrot.slane %v4197, 5
      %v4200 = vsel %vm1081, %v4195, %v4199
      %v4201 = vshrl.u32 %v4077, 16
      %v4203 = vrot.slane %v4201, 4
      %v4204 = vor.u32 %v4203, %v4199
      %v4205 = vrot.slane %v4204, 4
      %v4207 = vshll.u32 %v4078, 16
      %v4209 = vrot.slane %v4207, 5
      %v4210 = vsel %vm1081, %v4205, %v4209
      %v4212 = vshrl.u32 %v4079, 16
      %v4214 = vrot.slane %v4212, 4
      %v4215 = vshll.u32 %v4079, 16
      %v4217 = vrot.slane %v4215, 5
      %v4218 = vor.u32 %v4214, %v4217
      %v4219 = vrot.slane %v4218, 4
      %v4221 = vshll.u32 %v4080, 16
      %v4223 = vrot.slane %v4221, 5
      %v4224 = vsel %vm1081, %v4219, %v4223
      %v4225 = vshrl.u32 %v4080, 16
      %v4227 = vrot.slane %v4225, 4
      %v4228 = vor.u32 %v4227, %v4223
      %v4229 = vrot.slane %v4228, 4
      %v4231 = vshll.u32 %v4081, 16
      %v4233 = vrot.slane %v4231, 5
      %v4234 = vsel %vm1081, %v4229, %v4233
      %v4236 = vshrl.u32 %v4082, 16
      %v4238 = vrot.slane %v4236, 4
      %v4239 = vshll.u32 %v4082, 16
      %v4241 = vrot.slane %v4239, 5
      %v4242 = vor.u32 %v4238, %v4241
      %v4243 = vrot.slane %v4242, 4
      %v4245 = vshll.u32 %v4083, 16
      %v4247 = vrot.slane %v4245, 5
      %v4248 = vsel %vm1081, %v4243, %v4247
      %v4249 = vshrl.u32 %v4083, 16
      %v4251 = vrot.slane %v4249, 4
      %v4252 = vor.u32 %v4251, %v4247
      %v4253 = vrot.slane %v4252, 4
      %v4255 = vshll.u32 %v4084, 16
      %v4257 = vrot.slane %v4255, 5
      %v4258 = vsel %vm1081, %v4253, %v4257
      %v4260 = vshrl.u32 %v4085, 16
      %v4262 = vrot.slane %v4260, 4
      %v4263 = vshll.u32 %v4085, 16
      %v4265 = vrot.slane %v4263, 5
      %v4266 = vor.u32 %v4262, %v4265
      %v4267 = vrot.slane %v4266, 4
      %v4269 = vshll.u32 %v4086, 16
      %v4271 = vrot.slane %v4269, 5
      %v4272 = vsel %vm1081, %v4267, %v4271
      %v4273 = vshrl.u32 %v4086, 16
      %v4275 = vrot.slane %v4273, 4
      %v4276 = vor.u32 %v4275, %v4271
      %v4277 = vrot.slane %v4276, 4
      %v4279 = vshll.u32 %v4087, 16
      %v4281 = vrot.slane %v4279, 5
      %v4282 = vsel %vm1081, %v4277, %v4281
      %v4284 = vshrl.u32 %v4088, 16
      %v4286 = vrot.slane %v4284, 4
      %v4287 = vshll.u32 %v4088, 16
      %v4289 = vrot.slane %v4287, 5
      %v4290 = vor.u32 %v4286, %v4289
      %v4291 = vrot.slane %v4290, 4
      %v4293 = vshll.u32 %v4089, 16
      %v4295 = vrot.slane %v4293, 5
      %v4296 = vsel %vm1081, %v4291, %v4295
      %v4297 = vshrl.u32 %v4089, 16
      %v4299 = vrot.slane %v4297, 4
      %v4300 = vor.u32 %v4299, %v4295
      %v4301 = vrot.slane %v4300, 4
      %v4303 = vshll.u32 %v4090, 16
      %v4305 = vrot.slane %v4303, 5
      %v4306 = vsel %vm1081, %v4301, %v4305
      %v4308 = vshrl.u32 %v4091, 16
      %v4310 = vrot.slane %v4308, 4
      %v4311 = vshll.u32 %v4091, 16
      %v4313 = vrot.slane %v4311, 5
      %v4314 = vor.u32 %v4310, %v4313
      %v4315 = vrot.slane %v4314, 4
      %v4317 = vshll.u32 %v4092, 16
      %v4319 = vrot.slane %v4317, 5
      %v4320 = vsel %vm1081, %v4315, %v4319
      %v4321 = vshrl.u32 %v4092, 16
      %v4323 = vrot.slane %v4321, 4
      %v4324 = vor.u32 %v4323, %v4319
      %v4325 = vrot.slane %v4324, 4
      %v4327 = vshll.u32 %v4093, 16
      %v4329 = vrot.slane %v4327, 5
      %v4330 = vsel %vm1081, %v4325, %v4329
      %v4332 = vshrl.u32 %v4094, 16
      %v4334 = vrot.slane %v4332, 4
      %v4335 = vshll.u32 %v4094, 16
      %v4337 = vrot.slane %v4335, 5
      %v4338 = vor.u32 %v4334, %v4337
      %v4339 = vrot.slane %v4338, 4
      %v4341 = vshll.u32 %v4095, 16
      %v4343 = vrot.slane %v4341, 5
      %v4344 = vsel %vm1081, %v4339, %v4343
      %v4345 = vshrl.u32 %v4095, 16
      %v4347 = vrot.slane %v4345, 4
      %v4348 = vor.u32 %v4347, %v4343
      %v4349 = vrot.slane %v4348, 4
      %v4351 = vshll.u32 %v4096, 16
      %v4353 = vrot.slane %v4351, 5
      %v4354 = vsel %vm1081, %v4349, %v4353
      %v4356 = vshrl.u32 %v4097, 16
      %v4358 = vrot.slane %v4356, 4
      %v4359 = vshll.u32 %v4097, 16
      %v4361 = vrot.slane %v4359, 5
      %v4362 = vor.u32 %v4358, %v4361
      %v4363 = vrot.slane %v4362, 4
      %v4365 = vshll.u32 %v4098, 16
      %v4367 = vrot.slane %v4365, 5
      %v4368 = vsel %vm1081, %v4363, %v4367
      %v4369 = vshrl.u32 %v4098, 16
      %v4371 = vrot.slane %v4369, 4
      %v4372 = vor.u32 %v4371, %v4367
      %v4373 = vrot.slane %v4372, 4
      %v4375 = vshll.u32 %v4099, 16
      %v4377 = vrot.slane %v4375, 5
      %v4378 = vsel %vm1081, %v4373, %v4377
      %v4380 = vshrl.u32 %v4100, 16
      %v4382 = vrot.slane %v4380, 4
      %v4383 = vshll.u32 %v4100, 16
      %v4385 = vrot.slane %v4383, 5
      %v4386 = vor.u32 %v4382, %v4385
      %v4387 = vrot.slane %v4386, 4
      %v4389 = vshll.u32 %v4101, 16
      %v4391 = vrot.slane %v4389, 5
      %v4392 = vsel %vm1081, %v4387, %v4391
      %v4393 = vshrl.u32 %v4101, 16
      %v4395 = vrot.slane %v4393, 4
      %v4396 = vor.u32 %v4395, %v4391
      %v4397 = vrot.slane %v4396, 4
      %v4399 = vshll.u32 %v4102, 16
      %v4401 = vrot.slane %v4399, 5
      %v4402 = vsel %vm1081, %v4397, %v4401
      %v4404 = vshrl.u32 %v4103, 16
      %v4406 = vrot.slane %v4404, 4
      %v4407 = vshll.u32 %v4103, 16
      %v4409 = vrot.slane %v4407, 5
      %v4410 = vor.u32 %v4406, %v4409
      %v4411 = vrot.slane %v4410, 4
      %v4413 = vshll.u32 %v4104, 16
      %v4415 = vrot.slane %v4413, 5
      %v4416 = vsel %vm1081, %v4411, %v4415
      %v4417 = vshrl.u32 %v4104, 16
      %v4419 = vrot.slane %v4417, 4
      %v4420 = vor.u32 %v4419, %v4415
      %v4421 = vrot.slane %v4420, 4
      %v4423 = vshll.u32 %v4105, 16
      %v4425 = vrot.slane %v4423, 5
      %v4426 = vsel %vm1081, %v4421, %v4425
      %v4428 = vshrl.u32 %v4106, 16
      %v4430 = vrot.slane %v4428, 4
      %v4431 = vshll.u32 %v4106, 16
      %v4433 = vrot.slane %v4431, 5
      %v4434 = vor.u32 %v4430, %v4433
      %v4435 = vrot.slane %v4434, 4
      %v4437 = vshll.u32 %v4107, 16
      %v4439 = vrot.slane %v4437, 5
      %v4440 = vsel %vm1081, %v4435, %v4439
      %v4441 = vshrl.u32 %v4107, 16
      %v4443 = vrot.slane %v4441, 4
      %v4444 = vor.u32 %v4443, %v4439
      %v4445 = vrot.slane %v4444, 4
      %v4447 = vshll.u32 %v4108, 16
      %v4449 = vrot.slane %v4447, 5
      %v4450 = vsel %vm1081, %v4445, %v4449
      %v4452 = vshrl.u32 %v4109, 16
      %v4454 = vrot.slane %v4452, 4
      %v4455 = vshll.u32 %v4109, 16
      %v4457 = vrot.slane %v4455, 5
      %v4458 = vor.u32 %v4454, %v4457
      %v4459 = vrot.slane %v4458, 4
      %v4461 = vshll.u32 %v4110, 16
      %v4463 = vrot.slane %v4461, 5
      %v4464 = vsel %vm1081, %v4459, %v4463
      %v4465 = vshrl.u32 %v4110, 16
      %v4467 = vrot.slane %v4465, 4
      %v4468 = vor.u32 %v4467, %v4463
      %v4469 = vrot.slane %v4468, 4
      %v4471 = vshll.u32 %v4111, 16
      %v4473 = vrot.slane %v4471, 5
      %v4474 = vsel %vm1081, %v4469, %v4473
      %v4476 = vshrl.u32 %v4112, 16
      %v4478 = vrot.slane %v4476, 4
      %v4479 = vshll.u32 %v4112, 16
      %v4481 = vrot.slane %v4479, 5
      %v4482 = vor.u32 %v4478, %v4481
      %v4483 = vrot.slane %v4482, 4
      %v4485 = vshll.u32 %v4113, 16
      %v4487 = vrot.slane %v4485, 5
      %v4488 = vsel %vm1081, %v4483, %v4487
      %v4489 = vshrl.u32 %v4113, 16
      %v4491 = vrot.slane %v4489, 4
      %v4492 = vor.u32 %v4491, %v4487
      %v4493 = vrot.slane %v4492, 4
      %v4495 = vshll.u32 %v4114, 16
      %v4497 = vrot.slane %v4495, 5
      %v4498 = vsel %vm1081, %v4493, %v4497
      %s4499 = scalar_lea.vmem %s3, 448
      %v4500 = vld [vmem:[%s4499] sm:$0xf]
      %v4501 = vld [vmem:[%s4499 + $0x4] sm:$0xf]
      %v4502 = vld [vmem:[%s4499 + $0x8] sm:$0xf]
      %v4503 = vld [vmem:[%s4499 + $0xc] sm:$0xf]
      %v4504 = vld [vmem:[%s4499 + $0x10] sm:$0xf]
      %v4505 = vld [vmem:[%s4499 + $0x14] sm:$0xf]
      %v4506 = vld [vmem:[%s4499 + $0x18] sm:$0xf]
      %v4507 = vld [vmem:[%s4499 + $0x1c] sm:$0xf]
      %v4508 = vld [vmem:[%s4499 + $0x20] sm:$0xf]
      %v4509 = vld [vmem:[%s4499 + $0x24] sm:$0xf]
      %v4510 = vld [vmem:[%s4499 + $0x28] sm:$0xf]
      %v4511 = vld [vmem:[%s4499 + $0x2c] sm:$0xf]
      %v4512 = vld [vmem:[%s4499 + $0x30] sm:$0xf]
      %v4513 = vld [vmem:[%s4499 + $0x34] sm:$0xf]
      %v4514 = vld [vmem:[%s4499 + $0x38] sm:$0xf]
      %v4515 = vld [vmem:[%s4499 + $0x3c] sm:$0xf]
      %v4516 = vunpack.c.l.b16 %v4128
      %v4517 = vunpack.c.l.b16 %v4138
      %v4518 = vunpack.c.l.b16 %v4152
      %v4519 = vunpack.c.l.b16 %v4162
      %v4520 = vunpack.c.l.b16 %v4176
      %v4521 = vunpack.c.l.b16 %v4186
      %v4522 = vunpack.c.l.b16 %v4200
      %v4523 = vunpack.c.l.b16 %v4210
      %v4524 = vunpack.c.l.b16 %v4224
      %v4525 = vunpack.c.l.b16 %v4234
      %v4526 = vunpack.c.l.b16 %v4248
      %v4527 = vunpack.c.l.b16 %v4258
      %v4528 = vunpack.c.l.b16 %v4272
      %v4529 = vunpack.c.l.b16 %v4282
      %v4530 = vunpack.c.l.b16 %v4296
      %v4531 = vunpack.c.l.b16 %v4306
      %v4532 = vunpack.c.l.b16 %v4320
      %v4533 = vunpack.c.l.b16 %v4330
      %v4534 = vunpack.c.l.b16 %v4344
      %v4535 = vunpack.c.l.b16 %v4354
      %v4536 = vunpack.c.l.b16 %v4368
      %v4537 = vunpack.c.l.b16 %v4378
      %v4538 = vunpack.c.l.b16 %v4392
      %v4539 = vunpack.c.l.b16 %v4402
      %v4540 = vunpack.c.l.b16 %v4416
      %v4541 = vunpack.c.l.b16 %v4426
      %v4542 = vunpack.c.l.b16 %v4440
      %v4543 = vunpack.c.l.b16 %v4450
      %v4544 = vunpack.c.l.b16 %v4464
      %v4545 = vunpack.c.l.b16 %v4474
      %v4546 = vunpack.c.l.b16 %v4488
      %v4547 = vunpack.c.l.b16 %v4498
      %v4548 = vpack.c.b16 %v4517, %v4516
      %v4549 = vpack.c.b16 %v4519, %v4518
      %v4550 = vpack.c.b16 %v4521, %v4520
      %v4551 = vpack.c.b16 %v4523, %v4522
      %v4552 = vpack.c.b16 %v4525, %v4524
      %v4553 = vpack.c.b16 %v4527, %v4526
      %v4554 = vpack.c.b16 %v4529, %v4528
      %v4555 = vpack.c.b16 %v4531, %v4530
      %v4556 = vpack.c.b16 %v4533, %v4532
      %v4557 = vpack.c.b16 %v4535, %v4534
      %v4558 = vpack.c.b16 %v4537, %v4536
      %v4559 = vpack.c.b16 %v4539, %v4538
      %v4560 = vpack.c.b16 %v4541, %v4540
      %v4561 = vpack.c.b16 %v4543, %v4542
      %v4562 = vpack.c.b16 %v4545, %v4544
      %v4563 = vpack.c.b16 %v4547, %v4546
      %v4596 = vunpack.c.l.b16 %v4500
      %v4597 = vunpack.c.l.b16 %v4501
      %v4598 = vunpack.c.l.b16 %v4502
      %v4599 = vunpack.c.l.b16 %v4503
      %v4600 = vunpack.c.l.b16 %v4504
      %v4601 = vunpack.c.l.b16 %v4505
      %v4602 = vunpack.c.l.b16 %v4506
      %v4603 = vunpack.c.l.b16 %v4507
      %v4604 = vunpack.c.l.b16 %v4508
      %v4605 = vunpack.c.l.b16 %v4509
      %v4606 = vunpack.c.l.b16 %v4510
      %v4607 = vunpack.c.l.b16 %v4511
      %v4608 = vunpack.c.l.b16 %v4512
      %v4609 = vunpack.c.l.b16 %v4513
      %v4610 = vunpack.c.l.b16 %v4514
      %v4611 = vunpack.c.l.b16 %v4515
      %v4612 = vpack.c.b16 %v4597, %v4596
      %v4613 = vpack.c.b16 %v4599, %v4598
      %v4614 = vpack.c.b16 %v4601, %v4600
      %v4615 = vpack.c.b16 %v4603, %v4602
      %v4616 = vpack.c.b16 %v4605, %v4604
      %v4617 = vpack.c.b16 %v4607, %v4606
      %v4618 = vpack.c.b16 %v4609, %v4608
      %v4619 = vpack.c.b16 %v4611, %v4610
      %4628 = vmatpush.bf16.msra.mxu0 %v4619
      %4629 = vmatpush.bf16.msra.mxu0 %v4618
      %4630 = vmatpush.bf16.msra.mxu0 %v4617
      %4631 = vmatpush.bf16.msra.mxu0 %v4616
      %4632 = vmatpush.bf16.msra.mxu0 %v4615
      %4633 = vmatpush.bf16.msra.mxu0 %v4614
      %4634 = vmatpush.bf16.msra.mxu0 %v4613
      %4635 = vmatpush.bf16.msra.mxu0 %v4612
      %4636 = vmatmul.bf16.gmra.mxu0 %v4548
      %v4637 = vpop.f32.mrf.mxu0
      %v4638 = vadd.f32 0.0, %v4637
      %v4639 = vpop.f32.mrf.mxu0
      %v4640 = vadd.f32 0.0, %v4639
      %4641 = vmatmul.bf16.gmra.mxu0 %v4549
      %v4642 = vpop.f32.mrf.mxu0
      %v4643 = vadd.f32 0.0, %v4642
      %v4644 = vpop.f32.mrf.mxu0
      %v4645 = vadd.f32 0.0, %v4644
      %4646 = vmatmul.bf16.gmra.mxu0 %v4550
      %v4647 = vpop.f32.mrf.mxu0
      %v4648 = vadd.f32 0.0, %v4647
      %v4649 = vpop.f32.mrf.mxu0
      %v4650 = vadd.f32 0.0, %v4649
      %4651 = vmatmul.bf16.gmra.mxu0 %v4551
      %v4652 = vpop.f32.mrf.mxu0
      %v4653 = vadd.f32 0.0, %v4652
      %v4654 = vpop.f32.mrf.mxu0
      %v4655 = vadd.f32 0.0, %v4654
      %4656 = vmatmul.bf16.gmra.mxu0 %v4552
      %v4657 = vpop.f32.mrf.mxu0
      %v4658 = vadd.f32 0.0, %v4657
      %v4659 = vpop.f32.mrf.mxu0
      %v4660 = vadd.f32 0.0, %v4659
      %4661 = vmatmul.bf16.gmra.mxu0 %v4553
      %v4662 = vpop.f32.mrf.mxu0
      %v4663 = vadd.f32 0.0, %v4662
      %v4664 = vpop.f32.mrf.mxu0
      %v4665 = vadd.f32 0.0, %v4664
      %4666 = vmatmul.bf16.gmra.mxu0 %v4554
      %v4667 = vpop.f32.mrf.mxu0
      %v4668 = vadd.f32 0.0, %v4667
      %v4669 = vpop.f32.mrf.mxu0
      %v4670 = vadd.f32 0.0, %v4669
      %4671 = vmatmul.bf16.gmra.mxu0 %v4555
      %v4672 = vpop.f32.mrf.mxu0
      %v4673 = vadd.f32 0.0, %v4672
      %v4674 = vpop.f32.mrf.mxu0
      %v4675 = vadd.f32 0.0, %v4674
      %4676 = vmatmul.bf16.gmra.mxu0 %v4556
      %v4677 = vpop.f32.mrf.mxu0
      %v4678 = vadd.f32 0.0, %v4677
      %v4679 = vpop.f32.mrf.mxu0
      %v4680 = vadd.f32 0.0, %v4679
      %4681 = vmatmul.bf16.gmra.mxu0 %v4557
      %v4682 = vpop.f32.mrf.mxu0
      %v4683 = vadd.f32 0.0, %v4682
      %v4684 = vpop.f32.mrf.mxu0
      %v4685 = vadd.f32 0.0, %v4684
      %4686 = vmatmul.bf16.gmra.mxu0 %v4558
      %v4687 = vpop.f32.mrf.mxu0
      %v4688 = vadd.f32 0.0, %v4687
      %v4689 = vpop.f32.mrf.mxu0
      %v4690 = vadd.f32 0.0, %v4689
      %4691 = vmatmul.bf16.gmra.mxu0 %v4559
      %v4692 = vpop.f32.mrf.mxu0
      %v4693 = vadd.f32 0.0, %v4692
      %v4694 = vpop.f32.mrf.mxu0
      %v4695 = vadd.f32 0.0, %v4694
      %4696 = vmatmul.bf16.gmra.mxu0 %v4560
      %v4697 = vpop.f32.mrf.mxu0
      %v4698 = vadd.f32 0.0, %v4697
      %v4699 = vpop.f32.mrf.mxu0
      %v4700 = vadd.f32 0.0, %v4699
      %4701 = vmatmul.bf16.gmra.mxu0 %v4561
      %v4702 = vpop.f32.mrf.mxu0
      %v4703 = vadd.f32 0.0, %v4702
      %v4704 = vpop.f32.mrf.mxu0
      %v4705 = vadd.f32 0.0, %v4704
      %4706 = vmatmul.bf16.gmra.mxu0 %v4562
      %v4707 = vpop.f32.mrf.mxu0
      %v4708 = vadd.f32 0.0, %v4707
      %v4709 = vpop.f32.mrf.mxu0
      %v4710 = vadd.f32 0.0, %v4709
      %4711 = vmatmul.bf16.gmra.mxu0 %v4563
      %v4712 = vpop.f32.mrf.mxu0
      %v4713 = vadd.f32 0.0, %v4712
      %v4714 = vpop.f32.mrf.mxu0
      %v4715 = vadd.f32 0.0, %v4714
      %4716 = vdwg.mxu0
      %v4717 = vadd.f32 %v4035, %v4638
      %v4718 = vadd.f32 %v4036, %v4640
      %v4719 = vadd.f32 %v4037, %v4643
      %v4720 = vadd.f32 %v4038, %v4645
      %v4721 = vadd.f32 %v4039, %v4648
      %v4722 = vadd.f32 %v4040, %v4650
      %v4723 = vadd.f32 %v4041, %v4653
      %v4724 = vadd.f32 %v4042, %v4655
      %v4725 = vadd.f32 %v4043, %v4658
      %v4726 = vadd.f32 %v4044, %v4660
      %v4727 = vadd.f32 %v4045, %v4663
      %v4728 = vadd.f32 %v4046, %v4665
      %v4729 = vadd.f32 %v4047, %v4668
      %v4730 = vadd.f32 %v4048, %v4670
      %v4731 = vadd.f32 %v4049, %v4673
      %v4732 = vadd.f32 %v4050, %v4675
      %v4733 = vadd.f32 %v4051, %v4678
      %v4734 = vadd.f32 %v4052, %v4680
      %v4735 = vadd.f32 %v4053, %v4683
      %v4736 = vadd.f32 %v4054, %v4685
      %v4737 = vadd.f32 %v4055, %v4688
      %v4738 = vadd.f32 %v4056, %v4690
      %v4739 = vadd.f32 %v4057, %v4693
      %v4740 = vadd.f32 %v4058, %v4695
      %v4741 = vadd.f32 %v4059, %v4698
      %v4742 = vadd.f32 %v4060, %v4700
      %v4743 = vadd.f32 %v4061, %v4703
      %v4744 = vadd.f32 %v4062, %v4705
      %v4745 = vadd.f32 %v4063, %v4708
      %v4746 = vadd.f32 %v4064, %v4710
      %v4747 = vadd.f32 %v4065, %v4713
      %v4748 = vadd.f32 %v4066, %v4715
      %v4749 = vld [vmem:[%s3752] sm:$0xe]
      %v4750 = vld [vmem:[%s3752 + $0xc] sm:$0xe]
      %v4751 = vld [vmem:[%s3752 + $0x18] sm:$0xe]
      %v4752 = vld [vmem:[%s3752 + $0x24] sm:$0xe]
      %v4753 = vld [vmem:[%s3752 + $0x30] sm:$0xe]
      %v4754 = vld [vmem:[%s3752 + $0x3c] sm:$0xe]
      %v4755 = vld [vmem:[%s3752 + $0x48] sm:$0xe]
      %v4756 = vld [vmem:[%s3752 + $0x54] sm:$0xe]
      %v4757 = vld [vmem:[%s3752 + $0x60] sm:$0xe]
      %v4758 = vld [vmem:[%s3752 + $0x6c] sm:$0xe]
      %v4759 = vld [vmem:[%s3752 + $0x78] sm:$0xe]
      %v4760 = vld [vmem:[%s3752 + $0x84] sm:$0xe]
      %v4761 = vld [vmem:[%s3752 + $0x90] sm:$0xe]
      %v4762 = vld [vmem:[%s3752 + $0x9c] sm:$0xe]
      %v4763 = vld [vmem:[%s3752 + $0xa8] sm:$0xe]
      %v4764 = vld [vmem:[%s3752 + $0xb4] sm:$0xe]
      %v4813 = vrot.slane %v4749, 5
      %v4814 = vrot.slane %v4813, 4
      %v4815 = vrot.slane %v4068, 5
      %v4816 = vsel %vm1967, %v4814, %v4815
      %v4817 = vrot.slane %v4815, 4
      %v4818 = vrot.slane %v4069, 5
      %v4819 = vsel %vm1967, %v4817, %v4818
      %v4820 = vrot.slane %v4750, 5
      %v4821 = vrot.slane %v4820, 4
      %v4822 = vrot.slane %v4071, 5
      %v4823 = vsel %vm1967, %v4821, %v4822
      %v4824 = vrot.slane %v4822, 4
      %v4825 = vrot.slane %v4072, 5
      %v4826 = vsel %vm1967, %v4824, %v4825
      %v4827 = vrot.slane %v4751, 5
      %v4828 = vrot.slane %v4827, 4
      %v4829 = vrot.slane %v4074, 5
      %v4830 = vsel %vm1967, %v4828, %v4829
      %v4831 = vrot.slane %v4829, 4
      %v4832 = vrot.slane %v4075, 5
      %v4833 = vsel %vm1967, %v4831, %v4832
      %v4834 = vrot.slane %v4752, 5
      %v4835 = vrot.slane %v4834, 4
      %v4836 = vrot.slane %v4077, 5
      %v4837 = vsel %vm1967, %v4835, %v4836
      %v4838 = vrot.slane %v4836, 4
      %v4839 = vrot.slane %v4078, 5
      %v4840 = vsel %vm1967, %v4838, %v4839
      %v4841 = vrot.slane %v4753, 5
      %v4842 = vrot.slane %v4841, 4
      %v4843 = vrot.slane %v4080, 5
      %v4844 = vsel %vm1967, %v4842, %v4843
      %v4845 = vrot.slane %v4843, 4
      %v4846 = vrot.slane %v4081, 5
      %v4847 = vsel %vm1967, %v4845, %v4846
      %v4848 = vrot.slane %v4754, 5
      %v4849 = vrot.slane %v4848, 4
      %v4850 = vrot.slane %v4083, 5
      %v4851 = vsel %vm1967, %v4849, %v4850
      %v4852 = vrot.slane %v4850, 4
      %v4853 = vrot.slane %v4084, 5
      %v4854 = vsel %vm1967, %v4852, %v4853
      %v4855 = vrot.slane %v4755, 5
      %v4856 = vrot.slane %v4855, 4
      %v4857 = vrot.slane %v4086, 5
      %v4858 = vsel %vm1967, %v4856, %v4857
      %v4859 = vrot.slane %v4857, 4
      %v4860 = vrot.slane %v4087, 5
      %v4861 = vsel %vm1967, %v4859, %v4860
      %v4862 = vrot.slane %v4756, 5
      %v4863 = vrot.slane %v4862, 4
      %v4864 = vrot.slane %v4089, 5
      %v4865 = vsel %vm1967, %v4863, %v4864
      %v4866 = vrot.slane %v4864, 4
      %v4867 = vrot.slane %v4090, 5
      %v4868 = vsel %vm1967, %v4866, %v4867
      %v4869 = vrot.slane %v4757, 5
      %v4870 = vrot.slane %v4869, 4
      %v4871 = vrot.slane %v4092, 5
      %v4872 = vsel %vm1967, %v4870, %v4871
      %v4873 = vrot.slane %v4871, 4
      %v4874 = vrot.slane %v4093, 5
      %v4875 = vsel %vm1967, %v4873, %v4874
      %v4876 = vrot.slane %v4758, 5
      %v4877 = vrot.slane %v4876, 4
      %v4878 = vrot.slane %v4095, 5
      %v4879 = vsel %vm1967, %v4877, %v4878
      %v4880 = vrot.slane %v4878, 4
      %v4881 = vrot.slane %v4096, 5
      %v4882 = vsel %vm1967, %v4880, %v4881
      %v4883 = vrot.slane %v4759, 5
      %v4884 = vrot.slane %v4883, 4
      %v4885 = vrot.slane %v4098, 5
      %v4886 = vsel %vm1967, %v4884, %v4885
      %v4887 = vrot.slane %v4885, 4
      %v4888 = vrot.slane %v4099, 5
      %v4889 = vsel %vm1967, %v4887, %v4888
      %v4890 = vrot.slane %v4760, 5
      %v4891 = vrot.slane %v4890, 4
      %v4892 = vrot.slane %v4101, 5
      %v4893 = vsel %vm1967, %v4891, %v4892
      %v4894 = vrot.slane %v4892, 4
      %v4895 = vrot.slane %v4102, 5
      %v4896 = vsel %vm1967, %v4894, %v4895
      %v4897 = vrot.slane %v4761, 5
      %v4898 = vrot.slane %v4897, 4
      %v4899 = vrot.slane %v4104, 5
      %v4900 = vsel %vm1967, %v4898, %v4899
      %v4901 = vrot.slane %v4899, 4
      %v4902 = vrot.slane %v4105, 5
      %v4903 = vsel %vm1967, %v4901, %v4902
      %v4904 = vrot.slane %v4762, 5
      %v4905 = vrot.slane %v4904, 4
      %v4906 = vrot.slane %v4107, 5
      %v4907 = vsel %vm1967, %v4905, %v4906
      %v4908 = vrot.slane %v4906, 4
      %v4909 = vrot.slane %v4108, 5
      %v4910 = vsel %vm1967, %v4908, %v4909
      %v4911 = vrot.slane %v4763, 5
      %v4912 = vrot.slane %v4911, 4
      %v4913 = vrot.slane %v4110, 5
      %v4914 = vsel %vm1967, %v4912, %v4913
      %v4915 = vrot.slane %v4913, 4
      %v4916 = vrot.slane %v4111, 5
      %v4917 = vsel %vm1967, %v4915, %v4916
      %v4918 = vrot.slane %v4764, 5
      %v4919 = vrot.slane %v4918, 4
      %v4920 = vrot.slane %v4113, 5
      %v4921 = vsel %vm1967, %v4919, %v4920
      %v4922 = vrot.slane %v4920, 4
      %v4923 = vrot.slane %v4114, 5
      %v4924 = vsel %vm1967, %v4922, %v4923
      %s4925 = scalar_lea.vmem %s3, 512
      %v4926 = vld [vmem:[%s4925] sm:$0xf]
      %v4927 = vld [vmem:[%s4925 + $0x4] sm:$0xf]
      %v4928 = vld [vmem:[%s4925 + $0x8] sm:$0xf]
      %v4929 = vld [vmem:[%s4925 + $0xc] sm:$0xf]
      %v4930 = vld [vmem:[%s4925 + $0x10] sm:$0xf]
      %v4931 = vld [vmem:[%s4925 + $0x14] sm:$0xf]
      %v4932 = vld [vmem:[%s4925 + $0x18] sm:$0xf]
      %v4933 = vld [vmem:[%s4925 + $0x1c] sm:$0xf]
      %v4934 = vld [vmem:[%s4925 + $0x20] sm:$0xf]
      %v4935 = vld [vmem:[%s4925 + $0x24] sm:$0xf]
      %v4936 = vld [vmem:[%s4925 + $0x28] sm:$0xf]
      %v4937 = vld [vmem:[%s4925 + $0x2c] sm:$0xf]
      %v4938 = vld [vmem:[%s4925 + $0x30] sm:$0xf]
      %v4939 = vld [vmem:[%s4925 + $0x34] sm:$0xf]
      %v4940 = vld [vmem:[%s4925 + $0x38] sm:$0xf]
      %v4941 = vld [vmem:[%s4925 + $0x3c] sm:$0xf]
      %v4942 = vunpack.c.l.b16 %v4816
      %v4943 = vunpack.c.l.b16 %v4819
      %v4944 = vunpack.c.l.b16 %v4823
      %v4945 = vunpack.c.l.b16 %v4826
      %v4946 = vunpack.c.l.b16 %v4830
      %v4947 = vunpack.c.l.b16 %v4833
      %v4948 = vunpack.c.l.b16 %v4837
      %v4949 = vunpack.c.l.b16 %v4840
      %v4950 = vunpack.c.l.b16 %v4844
      %v4951 = vunpack.c.l.b16 %v4847
      %v4952 = vunpack.c.l.b16 %v4851
      %v4953 = vunpack.c.l.b16 %v4854
      %v4954 = vunpack.c.l.b16 %v4858
      %v4955 = vunpack.c.l.b16 %v4861
      %v4956 = vunpack.c.l.b16 %v4865
      %v4957 = vunpack.c.l.b16 %v4868
      %v4958 = vunpack.c.l.b16 %v4872
      %v4959 = vunpack.c.l.b16 %v4875
      %v4960 = vunpack.c.l.b16 %v4879
      %v4961 = vunpack.c.l.b16 %v4882
      %v4962 = vunpack.c.l.b16 %v4886
      %v4963 = vunpack.c.l.b16 %v4889
      %v4964 = vunpack.c.l.b16 %v4893
      %v4965 = vunpack.c.l.b16 %v4896
      %v4966 = vunpack.c.l.b16 %v4900
      %v4967 = vunpack.c.l.b16 %v4903
      %v4968 = vunpack.c.l.b16 %v4907
      %v4969 = vunpack.c.l.b16 %v4910
      %v4970 = vunpack.c.l.b16 %v4914
      %v4971 = vunpack.c.l.b16 %v4917
      %v4972 = vunpack.c.l.b16 %v4921
      %v4973 = vunpack.c.l.b16 %v4924
      %v4974 = vpack.c.b16 %v4943, %v4942
      %v4975 = vpack.c.b16 %v4945, %v4944
      %v4976 = vpack.c.b16 %v4947, %v4946
      %v4977 = vpack.c.b16 %v4949, %v4948
      %v4978 = vpack.c.b16 %v4951, %v4950
      %v4979 = vpack.c.b16 %v4953, %v4952
      %v4980 = vpack.c.b16 %v4955, %v4954
      %v4981 = vpack.c.b16 %v4957, %v4956
      %v4982 = vpack.c.b16 %v4959, %v4958
      %v4983 = vpack.c.b16 %v4961, %v4960
      %v4984 = vpack.c.b16 %v4963, %v4962
      %v4985 = vpack.c.b16 %v4965, %v4964
      %v4986 = vpack.c.b16 %v4967, %v4966
      %v4987 = vpack.c.b16 %v4969, %v4968
      %v4988 = vpack.c.b16 %v4971, %v4970
      %v4989 = vpack.c.b16 %v4973, %v4972
      %v5022 = vunpack.c.l.b16 %v4926
      %v5023 = vunpack.c.l.b16 %v4927
      %v5024 = vunpack.c.l.b16 %v4928
      %v5025 = vunpack.c.l.b16 %v4929
      %v5026 = vunpack.c.l.b16 %v4930
      %v5027 = vunpack.c.l.b16 %v4931
      %v5028 = vunpack.c.l.b16 %v4932
      %v5029 = vunpack.c.l.b16 %v4933
      %v5030 = vunpack.c.l.b16 %v4934
      %v5031 = vunpack.c.l.b16 %v4935
      %v5032 = vunpack.c.l.b16 %v4936
      %v5033 = vunpack.c.l.b16 %v4937
      %v5034 = vunpack.c.l.b16 %v4938
      %v5035 = vunpack.c.l.b16 %v4939
      %v5036 = vunpack.c.l.b16 %v4940
      %v5037 = vunpack.c.l.b16 %v4941
      %v5038 = vpack.c.b16 %v5023, %v5022
      %v5039 = vpack.c.b16 %v5025, %v5024
      %v5040 = vpack.c.b16 %v5027, %v5026
      %v5041 = vpack.c.b16 %v5029, %v5028
      %v5042 = vpack.c.b16 %v5031, %v5030
      %v5043 = vpack.c.b16 %v5033, %v5032
      %v5044 = vpack.c.b16 %v5035, %v5034
      %v5045 = vpack.c.b16 %v5037, %v5036
      %5054 = vmatpush.bf16.msra.mxu0 %v5045
      %5055 = vmatpush.bf16.msra.mxu0 %v5044
      %5056 = vmatpush.bf16.msra.mxu0 %v5043
      %5057 = vmatpush.bf16.msra.mxu0 %v5042
      %5058 = vmatpush.bf16.msra.mxu0 %v5041
      %5059 = vmatpush.bf16.msra.mxu0 %v5040
      %5060 = vmatpush.bf16.msra.mxu0 %v5039
      %5061 = vmatpush.bf16.msra.mxu0 %v5038
      %5062 = vmatmul.bf16.gmra.mxu0 %v4974
      %v5063 = vpop.f32.mrf.mxu0
      %v5064 = vadd.f32 0.0, %v5063
      %v5065 = vpop.f32.mrf.mxu0
      %v5066 = vadd.f32 0.0, %v5065
      %5067 = vmatmul.bf16.gmra.mxu0 %v4975
      %v5068 = vpop.f32.mrf.mxu0
      %v5069 = vadd.f32 0.0, %v5068
      %v5070 = vpop.f32.mrf.mxu0
      %v5071 = vadd.f32 0.0, %v5070
      %5072 = vmatmul.bf16.gmra.mxu0 %v4976
      %v5073 = vpop.f32.mrf.mxu0
      %v5074 = vadd.f32 0.0, %v5073
      %v5075 = vpop.f32.mrf.mxu0
      %v5076 = vadd.f32 0.0, %v5075
      %5077 = vmatmul.bf16.gmra.mxu0 %v4977
      %v5078 = vpop.f32.mrf.mxu0
      %v5079 = vadd.f32 0.0, %v5078
      %v5080 = vpop.f32.mrf.mxu0
      %v5081 = vadd.f32 0.0, %v5080
      %5082 = vmatmul.bf16.gmra.mxu0 %v4978
      %v5083 = vpop.f32.mrf.mxu0
      %v5084 = vadd.f32 0.0, %v5083
      %v5085 = vpop.f32.mrf.mxu0
      %v5086 = vadd.f32 0.0, %v5085
      %5087 = vmatmul.bf16.gmra.mxu0 %v4979
      %v5088 = vpop.f32.mrf.mxu0
      %v5089 = vadd.f32 0.0, %v5088
      %v5090 = vpop.f32.mrf.mxu0
      %v5091 = vadd.f32 0.0, %v5090
      %5092 = vmatmul.bf16.gmra.mxu0 %v4980
      %v5093 = vpop.f32.mrf.mxu0
      %v5094 = vadd.f32 0.0, %v5093
      %v5095 = vpop.f32.mrf.mxu0
      %v5096 = vadd.f32 0.0, %v5095
      %5097 = vmatmul.bf16.gmra.mxu0 %v4981
      %v5098 = vpop.f32.mrf.mxu0
      %v5099 = vadd.f32 0.0, %v5098
      %v5100 = vpop.f32.mrf.mxu0
      %v5101 = vadd.f32 0.0, %v5100
      %5102 = vmatmul.bf16.gmra.mxu0 %v4982
      %v5103 = vpop.f32.mrf.mxu0
      %v5104 = vadd.f32 0.0, %v5103
      %v5105 = vpop.f32.mrf.mxu0
      %v5106 = vadd.f32 0.0, %v5105
      %5107 = vmatmul.bf16.gmra.mxu0 %v4983
      %v5108 = vpop.f32.mrf.mxu0
      %v5109 = vadd.f32 0.0, %v5108
      %v5110 = vpop.f32.mrf.mxu0
      %v5111 = vadd.f32 0.0, %v5110
      %5112 = vmatmul.bf16.gmra.mxu0 %v4984
      %v5113 = vpop.f32.mrf.mxu0
      %v5114 = vadd.f32 0.0, %v5113
      %v5115 = vpop.f32.mrf.mxu0
      %v5116 = vadd.f32 0.0, %v5115
      %5117 = vmatmul.bf16.gmra.mxu0 %v4985
      %v5118 = vpop.f32.mrf.mxu0
      %v5119 = vadd.f32 0.0, %v5118
      %v5120 = vpop.f32.mrf.mxu0
      %v5121 = vadd.f32 0.0, %v5120
      %5122 = vmatmul.bf16.gmra.mxu0 %v4986
      %v5123 = vpop.f32.mrf.mxu0
      %v5124 = vadd.f32 0.0, %v5123
      %v5125 = vpop.f32.mrf.mxu0
      %v5126 = vadd.f32 0.0, %v5125
      %5127 = vmatmul.bf16.gmra.mxu0 %v4987
      %v5128 = vpop.f32.mrf.mxu0
      %v5129 = vadd.f32 0.0, %v5128
      %v5130 = vpop.f32.mrf.mxu0
      %v5131 = vadd.f32 0.0, %v5130
      %5132 = vmatmul.bf16.gmra.mxu0 %v4988
      %v5133 = vpop.f32.mrf.mxu0
      %v5134 = vadd.f32 0.0, %v5133
      %v5135 = vpop.f32.mrf.mxu0
      %v5136 = vadd.f32 0.0, %v5135
      %5137 = vmatmul.bf16.gmra.mxu0 %v4989
      %v5138 = vpop.f32.mrf.mxu0
      %v5139 = vadd.f32 0.0, %v5138
      %v5140 = vpop.f32.mrf.mxu0
      %v5141 = vadd.f32 0.0, %v5140
      %5142 = vdwg.mxu0
      %v5143 = vadd.f32 %v4717, %v5064
      %v5144 = vadd.f32 %v4718, %v5066
      %v5145 = vadd.f32 %v4719, %v5069
      %v5146 = vadd.f32 %v4720, %v5071
      %v5147 = vadd.f32 %v4721, %v5074
      %v5148 = vadd.f32 %v4722, %v5076
      %v5149 = vadd.f32 %v4723, %v5079
      %v5150 = vadd.f32 %v4724, %v5081
      %v5151 = vadd.f32 %v4725, %v5084
      %v5152 = vadd.f32 %v4726, %v5086
      %v5153 = vadd.f32 %v4727, %v5089
      %v5154 = vadd.f32 %v4728, %v5091
      %v5155 = vadd.f32 %v4729, %v5094
      %v5156 = vadd.f32 %v4730, %v5096
      %v5157 = vadd.f32 %v4731, %v5099
      %v5158 = vadd.f32 %v4732, %v5101
      %v5159 = vadd.f32 %v4733, %v5104
      %v5160 = vadd.f32 %v4734, %v5106
      %v5161 = vadd.f32 %v4735, %v5109
      %v5162 = vadd.f32 %v4736, %v5111
      %v5163 = vadd.f32 %v4737, %v5114
      %v5164 = vadd.f32 %v4738, %v5116
      %v5165 = vadd.f32 %v4739, %v5119
      %v5166 = vadd.f32 %v4740, %v5121
      %v5167 = vadd.f32 %v4741, %v5124
      %v5168 = vadd.f32 %v4742, %v5126
      %v5169 = vadd.f32 %v4743, %v5129
      %v5170 = vadd.f32 %v4744, %v5131
      %v5171 = vadd.f32 %v4745, %v5134
      %v5172 = vadd.f32 %v4746, %v5136
      %v5173 = vadd.f32 %v4747, %v5139
      %v5174 = vadd.f32 %v4748, %v5141
      %v5175 = vpack.c.bf16 %v5143, %v5143
      %v5176 = vpack.c.bf16 %v5144, %v5144
      %v5177 = vpack.c.bf16 %v5145, %v5145
      %v5178 = vpack.c.bf16 %v5146, %v5146
      %v5179 = vpack.c.bf16 %v5147, %v5147
      %v5180 = vpack.c.bf16 %v5148, %v5148
      %v5181 = vpack.c.bf16 %v5149, %v5149
      %v5182 = vpack.c.bf16 %v5150, %v5150
      %v5183 = vpack.c.bf16 %v5151, %v5151
      %v5184 = vpack.c.bf16 %v5152, %v5152
      %v5185 = vpack.c.bf16 %v5153, %v5153
      %v5186 = vpack.c.bf16 %v5154, %v5154
      %v5187 = vpack.c.bf16 %v5155, %v5155
      %v5188 = vpack.c.bf16 %v5156, %v5156
      %v5189 = vpack.c.bf16 %v5157, %v5157
      %v5190 = vpack.c.bf16 %v5158, %v5158
      %v5191 = vpack.c.bf16 %v5159, %v5159
      %v5192 = vpack.c.bf16 %v5160, %v5160
      %v5193 = vpack.c.bf16 %v5161, %v5161
      %v5194 = vpack.c.bf16 %v5162, %v5162
      %v5195 = vpack.c.bf16 %v5163, %v5163
      %v5196 = vpack.c.bf16 %v5164, %v5164
      %v5197 = vpack.c.bf16 %v5165, %v5165
      %v5198 = vpack.c.bf16 %v5166, %v5166
      %v5199 = vpack.c.bf16 %v5167, %v5167
      %v5200 = vpack.c.bf16 %v5168, %v5168
      %v5201 = vpack.c.bf16 %v5169, %v5169
      %v5202 = vpack.c.bf16 %v5170, %v5170
      %v5203 = vpack.c.bf16 %v5171, %v5171
      %v5204 = vpack.c.bf16 %v5172, %v5172
      %v5205 = vpack.c.bf16 %v5173, %v5173
      %v5206 = vpack.c.bf16 %v5174, %v5174
      %5207 = vst [vmem:[%s262] sm:$0xf] %v5175
      %5208 = vst [vmem:[%s262 + $0x4] sm:$0xf] %v5176
      %5209 = vst [vmem:[%s262 + $0x8] sm:$0xf] %v5177
      %5210 = vst [vmem:[%s262 + $0xc] sm:$0xf] %v5178
      %5211 = vst [vmem:[%s262 + $0x10] sm:$0xf] %v5179
      %5212 = vst [vmem:[%s262 + $0x14] sm:$0xf] %v5180
      %5213 = vst [vmem:[%s262 + $0x18] sm:$0xf] %v5181
      %5214 = vst [vmem:[%s262 + $0x1c] sm:$0xf] %v5182
      %5215 = vst [vmem:[%s262 + $0x20] sm:$0xf] %v5183
      %5216 = vst [vmem:[%s262 + $0x24] sm:$0xf] %v5184
      %5217 = vst [vmem:[%s262 + $0x28] sm:$0xf] %v5185
      %5218 = vst [vmem:[%s262 + $0x2c] sm:$0xf] %v5186
      %5219 = vst [vmem:[%s262 + $0x30] sm:$0xf] %v5187
      %5220 = vst [vmem:[%s262 + $0x34] sm:$0xf] %v5188
      %5221 = vst [vmem:[%s262 + $0x38] sm:$0xf] %v5189
      %5222 = vst [vmem:[%s262 + $0x3c] sm:$0xf] %v5190
      %5223 = vst [vmem:[%s262 + $0x40] sm:$0xf] %v5191
      %5224 = vst [vmem:[%s262 + $0x44] sm:$0xf] %v5192
      %5225 = vst [vmem:[%s262 + $0x48] sm:$0xf] %v5193
      %5226 = vst [vmem:[%s262 + $0x4c] sm:$0xf] %v5194
      %5227 = vst [vmem:[%s262 + $0x50] sm:$0xf] %v5195
      %5228 = vst [vmem:[%s262 + $0x54] sm:$0xf] %v5196
      %5229 = vst [vmem:[%s262 + $0x58] sm:$0xf] %v5197
      %5230 = vst [vmem:[%s262 + $0x5c] sm:$0xf] %v5198
      %5231 = vst [vmem:[%s262 + $0x60] sm:$0xf] %v5199
      %5232 = vst [vmem:[%s262 + $0x64] sm:$0xf] %v5200
      %5233 = vst [vmem:[%s262 + $0x68] sm:$0xf] %v5201
      %5234 = vst [vmem:[%s262 + $0x6c] sm:$0xf] %v5202
      %5235 = vst [vmem:[%s262 + $0x70] sm:$0xf] %v5203
      %5236 = vst [vmem:[%s262 + $0x74] sm:$0xf] %v5204
      %5237 = vst [vmem:[%s262 + $0x78] sm:$0xf] %v5205
      %5238 = vst [vmem:[%s262 + $0x7c] sm:$0xf] %v5206
      %v5239 = vadd.f32 %v5143, %v5144
      %v5240 = vadd.f32 %v5239, %v5145
      %v5241 = vadd.f32 %v5240, %v5146
      %v5242 = vadd.f32 %v5241, %v5147
      %v5243 = vadd.f32 %v5242, %v5148
      %v5244 = vadd.f32 %v5243, %v5149
      %v5245 = vadd.f32 %v5244, %v5150
      %v5246 = vadd.f32 %v5245, %v5151
      %v5247 = vadd.f32 %v5246, %v5152
      %v5248 = vadd.f32 %v5247, %v5153
      %v5249 = vadd.f32 %v5248, %v5154
      %v5250 = vadd.f32 %v5249, %v5155
      %v5251 = vadd.f32 %v5250, %v5156
      %v5252 = vadd.f32 %v5251, %v5157
      %v5253 = vadd.f32 %v5252, %v5158
      %v5254 = vadd.f32 %v5253, %v5159
      %v5255 = vadd.f32 %v5254, %v5160
      %v5256 = vadd.f32 %v5255, %v5161
      %v5257 = vadd.f32 %v5256, %v5162
      %v5258 = vadd.f32 %v5257, %v5163
      %v5259 = vadd.f32 %v5258, %v5164
      %v5260 = vadd.f32 %v5259, %v5165
      %v5261 = vadd.f32 %v5260, %v5166
      %v5262 = vadd.f32 %v5261, %v5167
      %v5263 = vadd.f32 %v5262, %v5168
      %v5264 = vadd.f32 %v5263, %v5169
      %v5265 = vadd.f32 %v5264, %v5170
      %v5266 = vadd.f32 %v5265, %v5171
      %v5267 = vadd.f32 %v5266, %v5172
      %v5268 = vadd.f32 %v5267, %v5173
      %v5269 = vadd.f32 %v5268, %v5174
      %v5270 = vrot.slane %v5269, 4
      %v5271 = vadd.f32 %v5269, %v5270
      %v5272 = vrot.slane %v5271, 2
      %v5273 = vadd.f32 %v5271, %v5272
      %v5274 = vrot.slane %v5273, 1
      %v5275 = vadd.f32 %v5273, %v5274
      %5276 = vst [vmem:[%s265] sm:$0x1] %v5275
      %v5277 = vmul.f32 %v5143, %v5143
      %v5278 = vmul.f32 %v5144, %v5144
      %v5279 = vmul.f32 %v5145, %v5145
      %v5280 = vmul.f32 %v5146, %v5146
      %v5281 = vmul.f32 %v5147, %v5147
      %v5282 = vmul.f32 %v5148, %v5148
      %v5283 = vmul.f32 %v5149, %v5149
      %v5284 = vmul.f32 %v5150, %v5150
      %v5285 = vmul.f32 %v5151, %v5151
      %v5286 = vmul.f32 %v5152, %v5152
      %v5287 = vmul.f32 %v5153, %v5153
      %v5288 = vmul.f32 %v5154, %v5154
      %v5289 = vmul.f32 %v5155, %v5155
      %v5290 = vmul.f32 %v5156, %v5156
      %v5291 = vmul.f32 %v5157, %v5157
      %v5292 = vmul.f32 %v5158, %v5158
      %v5293 = vmul.f32 %v5159, %v5159
      %v5294 = vmul.f32 %v5160, %v5160
      %v5295 = vmul.f32 %v5161, %v5161
      %v5296 = vmul.f32 %v5162, %v5162
      %v5297 = vmul.f32 %v5163, %v5163
      %v5298 = vmul.f32 %v5164, %v5164
      %v5299 = vmul.f32 %v5165, %v5165
      %v5300 = vmul.f32 %v5166, %v5166
      %v5301 = vmul.f32 %v5167, %v5167
      %v5302 = vmul.f32 %v5168, %v5168
      %v5303 = vmul.f32 %v5169, %v5169
      %v5304 = vmul.f32 %v5170, %v5170
      %v5305 = vmul.f32 %v5171, %v5171
      %v5306 = vmul.f32 %v5172, %v5172
      %v5307 = vmul.f32 %v5173, %v5173
      %v5308 = vmul.f32 %v5174, %v5174
      %v5309 = vadd.f32 %v5277, %v5278
      %v5310 = vadd.f32 %v5309, %v5279
      %v5311 = vadd.f32 %v5310, %v5280
      %v5312 = vadd.f32 %v5311, %v5281
      %v5313 = vadd.f32 %v5312, %v5282
      %v5314 = vadd.f32 %v5313, %v5283
      %v5315 = vadd.f32 %v5314, %v5284
      %v5316 = vadd.f32 %v5315, %v5285
      %v5317 = vadd.f32 %v5316, %v5286
      %v5318 = vadd.f32 %v5317, %v5287
      %v5319 = vadd.f32 %v5318, %v5288
      %v5320 = vadd.f32 %v5319, %v5289
      %v5321 = vadd.f32 %v5320, %v5290
      %v5322 = vadd.f32 %v5321, %v5291
      %v5323 = vadd.f32 %v5322, %v5292
      %v5324 = vadd.f32 %v5323, %v5293
      %v5325 = vadd.f32 %v5324, %v5294
      %v5326 = vadd.f32 %v5325, %v5295
      %v5327 = vadd.f32 %v5326, %v5296
      %v5328 = vadd.f32 %v5327, %v5297
      %v5329 = vadd.f32 %v5328, %v5298
      %v5330 = vadd.f32 %v5329, %v5299
      %v5331 = vadd.f32 %v5330, %v5300
      %v5332 = vadd.f32 %v5331, %v5301
      %v5333 = vadd.f32 %v5332, %v5302
      %v5334 = vadd.f32 %v5333, %v5303
      %v5335 = vadd.f32 %v5334, %v5304
      %v5336 = vadd.f32 %v5335, %v5305
      %v5337 = vadd.f32 %v5336, %v5306
      %v5338 = vadd.f32 %v5337, %v5307
      %v5339 = vadd.f32 %v5338, %v5308
      %v5340 = vrot.slane %v5339, 4
      %v5341 = vadd.f32 %v5339, %v5340
      %v5342 = vrot.slane %v5341, 2
      %v5343 = vadd.f32 %v5341, %v5342
      %v5344 = vrot.slane %v5343, 1
      %v5345 = vadd.f32 %v5343, %v5344
      %5346 = vst [vmem:[%s268] sm:$0x1] %v5345
      %p5347 = scmp.lt.s32.totalorder %s18, 1
      %s5348 = scalar_select %p5347, %s18, 1
      %s5349 = smul.addr %s5348, 32
      %s5350 = smul.addr %s5349, 4
      %s5351 = scalar_lea.vmem %s4, %s5350
      %p5352 = scmp.lt.s32.totalorder %s18, 1
      %s5353 = scalar_select %p5352, %s18, 1
      %s5354 = scalar_lea.vmem %s5, %s5353
      %p5355 = scmp.lt.s32.totalorder %s18, 1
      %s5356 = scalar_select %p5355, %s18, 1
      %s5357 = scalar_lea.vmem %s6, %s5356
      // Predicated region
      $region37: #{decoder_bottleneck_layer.4} parent=35 // pred_check
        %p5358 = pneg %p125
      $region38: #{decoder_bottleneck_layer.4} parent=35 // pred_check_branch
        %5360 = sbr.rel (%p5358) target = $region40
      $region39: #{decoder_bottleneck_layer.4} parent=35 // pred_region
        _
      $region40: #{decoder_bottleneck_layer.4} parent=35 // pred_fallthru
        _
      // Predicated region
      $region41: #{decoder_bottleneck_layer.4} parent=35 // pred_check
        %p5361 = pneg %p151
      $region42: #{decoder_bottleneck_layer.4} parent=35 // pred_check_branch
        %5363 = sbr.rel (%p5361) target = $region44
      $region43: #{decoder_bottleneck_layer.4} parent=35 // pred_region
        _
      $region44: #{decoder_bottleneck_layer.4} parent=35 // pred_fallthru
        _
      // Predicated region
      $region45: #{decoder_bottleneck_layer.4} parent=35 // pred_check
        %p5364 = pneg %p177
      $region46: #{decoder_bottleneck_layer.4} parent=35 // pred_check_branch
        %5366 = sbr.rel (%p5364) target = $region48
      $region47: #{decoder_bottleneck_layer.4} parent=35 // pred_region
        _
      $region48: #{decoder_bottleneck_layer.4} parent=35 // pred_fallthru
        _
    $region36: #{decoder_bottleneck_layer.4} parent=5 // pred_fallthru
      _
    %p5367 = scmp.le.s32.totalorder 2, %s13
    // Predicated region
    $region49: #{decoder_bottleneck_layer.4} parent=5 // pred_check
      %p5368 = pneg %p5367
    $region50: #{decoder_bottleneck_layer.4} parent=5 // pred_check_branch
      %5370 = sbr.rel (%p5368) target = $region52
    $region51: #{decoder_bottleneck_layer.4} parent=5 // pred_region
      %s5371 = ssub.s32 %s13, 2
      // Predicated region
      $region53: #{decoder_bottleneck_layer.4} parent=51 // pred_check
        %p5372 = pneg %p131
      $region54: #{decoder_bottleneck_layer.4} parent=51 // pred_check_branch
        %5374 = sbr.rel (%p5372) target = $region56
      $region55: #{decoder_bottleneck_layer.4} parent=51 // pred_region
        %p5375 = scmp.lt.s32.totalorder %s19, 1
        %s5376 = scalar_select %p5375, %s19, 1
        %s5377 = smul.addr %s5376, 32
        %s5378 = smul.addr %s5377, 4
        %s5379 = scalar_lea.vmem %s4, %s5378
      $region56: #{decoder_bottleneck_layer.4} parent=51 // pred_fallthru
        _
      // Predicated region
      $region57: #{decoder_bottleneck_layer.4} parent=51 // pred_check
        %p5380 = pneg %p157
      $region58: #{decoder_bottleneck_layer.4} parent=51 // pred_check_branch
        %5382 = sbr.rel (%p5380) target = $region60
      $region59: #{decoder_bottleneck_layer.4} parent=51 // pred_region
        %p5383 = scmp.lt.s32.totalorder %s19, 1
        %s5384 = scalar_select %p5383, %s19, 1
        %s5385 = scalar_lea.vmem %s5, %s5384
      $region60: #{decoder_bottleneck_layer.4} parent=51 // pred_fallthru
        _
      // Predicated region
      $region61: #{decoder_bottleneck_layer.4} parent=51 // pred_check
        %p5386 = pneg %p183
      $region62: #{decoder_bottleneck_layer.4} parent=51 // pred_check_branch
        %5388 = sbr.rel (%p5386) target = $region64
      $region63: #{decoder_bottleneck_layer.4} parent=51 // pred_region
        %p5389 = scmp.lt.s32.totalorder %s19, 1
        %s5390 = scalar_select %p5389, %s19, 1
        %s5391 = scalar_lea.vmem %s6, %s5390
      $region64: #{decoder_bottleneck_layer.4} parent=51 // pred_fallthru
        _
    $region52: #{decoder_bottleneck_layer.4} parent=5 // pred_fallthru
      _
  $region6: #{decoder_bottleneck_layer.4} parent=0 // loop_footer
    %s17 = sadd.s32 1, %s13
  $region7: #{decoder_bottleneck_layer.4} parent=0 // loop_footer_branch
    %12 = sbr.rel target = $region3
  $region8: #{decoder_bottleneck_layer.4} parent=0 // loop_exit
    _

// kernel: decoder_bottleneck_layer.3
$region0: #{decoder_bottleneck_layer.3}
  #allocation0 [shape = 'u32[]', space=smem, size = 0x4, offset = 0x4, fixed_abs, tag = 'smem constant byte address 0x4 - core index']
  #allocation1 [shape = 'u32[72,128]{1,0:T(1,128)}', space=vmem, size = 0x9000, scoped, tag = 'internal scratch']
  #allocation2 [shape = 'bf16[1,18,18,128]{3,2,1,0:T(8,128)(2,1)}', space=vmem, size = 0x1b000, scoped, tag = 'scratch operand']
  %s0 = inlined_call_operand.vmem [shape: bf16[2,16,16,128], index: 0, kind: input, shape index: {}]
  %s1 = inlined_call_operand.vmem [shape: bf16[9,128,128], index: 1, kind: input, shape index: {}]
  %s2 = inlined_call_operand.vmem [shape: bf16[2,256,128], index: 2, kind: output, shape index: {0}]
  %s3 = inlined_call_operand.vmem [shape: f32[2,1,128], index: 3, kind: output, shape index: {1}]
  %s4 = inlined_call_operand.vmem [shape: f32[2,1,128], index: 4, kind: output, shape index: {2}]
  %5 = xla_tuple %s2, %s3, %s4
  %s6 = sld [smem:[#allocation0]]
  $region57: #{decoder_bottleneck_layer.3} parent=0
    _
  %s8 = ssub.s32 1, %s6
  %s9 = scalar_select 0, %s8, %s6
  loop: start=0, step=1, limit=4
  $region2: #{decoder_bottleneck_layer.3} parent=0 // loop_pre_header
    _
  $region3: #{decoder_bottleneck_layer.3} parent=0 // loop_header
    %s11 = sphi 0, %s15
    %p12 = scmp.ge.s32.totalorder %s11, 4
    %s21 = sphi 0, %s23
    %s24 = sphi 0, %s21
    %s25 = sphi 0, %s24
    %s41 = sphi 0, %s25
    %s45 = sphi 0, %s45
    %s47 = sphi 0, %s45
    %s48 = sphi 0, %s47
    %s62 = sphi 0, %s48
    %s68 = sphi 0, %s70
    %s71 = sphi 0, %s68
    %s72 = sphi 0, %s71
    %s88 = sphi 0, %s72
    %s94 = sphi 0, %s96
    %s97 = sphi 0, %s94
    %s98 = sphi 0, %s97
    %s114 = sphi 0, %s98
    %s120 = sphi 0, %s122
    %s123 = sphi 0, %s120
    %s124 = sphi 0, %s123
    %s140 = sphi 0, %s124
  $region4: #{decoder_bottleneck_layer.3} parent=0 // loop_header_branch
    %14 = sbr.rel (%p12) target = $region8
  $region5: #{decoder_bottleneck_layer.3} parent=0 // loop_body
    %s16 = ssub.s32 %s11, 1
    %s17 = ssub.s32 %s11, 2
    %s18 = sadd.s32 %s11, 1
    %s19 = ssub.s32 %s11, %s18
    %p20 = scmp.eq.s32.totalorder %s19, 0
    %s22 = sadd.s32 %s21, 1
    %s23 = scalar_select %p20, %s21, %s22
    %p26 = pneg %p20
    %p27 = scmp.eq.s32.totalorder %s11, 1
    %p28 = por %p26, %p27
    %p29 = scmp.ne.s32.totalorder %s21, %s24
    %p30 = scmp.eq.s32.totalorder %s11, 0
    %p31 = por %p29, %p30
    %p32 = scmp.ne.s32.totalorder %s21, %s24
    %p33 = scmp.eq.s32.totalorder %s16, 1
    %p34 = por %p32, %p33
    %p35 = scmp.ne.s32.totalorder %s24, %s25
    %p36 = scmp.eq.s32.totalorder %s16, 0
    %p37 = por %p35, %p36
    %p38 = scmp.ne.s32.totalorder %s24, %s25
    %p39 = scmp.eq.s32.totalorder %s17, 1
    %p40 = por %p38, %p39
    %p42 = scmp.ne.s32.totalorder %s25, %s41
    %p43 = scmp.eq.s32.totalorder %s17, 0
    %p44 = por %p42, %p43
    %s46 = sadd.s32 %s45, 1
    %p49 = scmp.eq.s32.totalorder %s11, 1
    %p50 = scmp.ne.s32.totalorder %s45, %s47
    %p51 = scmp.eq.s32.totalorder %s11, 0
    %p52 = por %p50, %p51
    %p53 = scmp.ne.s32.totalorder %s45, %s47
    %p54 = scmp.eq.s32.totalorder %s16, 1
    %p55 = por %p53, %p54
    %p56 = scmp.ne.s32.totalorder %s47, %s48
    %p57 = scmp.eq.s32.totalorder %s16, 0
    %p58 = por %p56, %p57
    %p59 = scmp.ne.s32.totalorder %s47, %s48
    %p60 = scmp.eq.s32.totalorder %s17, 1
    %p61 = por %p59, %p60
    %p63 = scmp.ne.s32.totalorder %s48, %s62
    %p64 = scmp.eq.s32.totalorder %s17, 0
    %p65 = por %p63, %p64
    %s66 = ssub.s32 %s11, %s18
    %p67 = scmp.eq.s32.totalorder %s66, 0
    %s69 = sadd.s32 %s68, 1
    %s70 = scalar_select %p67, %s68, %s69
    %p73 = pneg %p67
    %p74 = scmp.eq.s32.totalorder %s11, 1
    %p75 = por %p73, %p74
    %p76 = scmp.ne.s32.totalorder %s68, %s71
    %p77 = scmp.eq.s32.totalorder %s11, 0
    %p78 = por %p76, %p77
    %p79 = scmp.ne.s32.totalorder %s68, %s71
    %p80 = scmp.eq.s32.totalorder %s16, 1
    %p81 = por %p79, %p80
    %p82 = scmp.ne.s32.totalorder %s71, %s72
    %p83 = scmp.eq.s32.totalorder %s16, 0
    %p84 = por %p82, %p83
    %p85 = scmp.ne.s32.totalorder %s71, %s72
    %p86 = scmp.eq.s32.totalorder %s17, 1
    %p87 = por %p85, %p86
    %p89 = scmp.ne.s32.totalorder %s72, %s88
    %p90 = scmp.eq.s32.totalorder %s17, 0
    %p91 = por %p89, %p90
    %s92 = ssub.s32 %s11, %s18
    %p93 = scmp.eq.s32.totalorder %s92, 0
    %s95 = sadd.s32 %s94, 1
    %s96 = scalar_select %p93, %s94, %s95
    %p99 = pneg %p93
    %p100 = scmp.eq.s32.totalorder %s11, 1
    %p101 = por %p99, %p100
    %p102 = scmp.ne.s32.totalorder %s94, %s97
    %p103 = scmp.eq.s32.totalorder %s11, 0
    %p104 = por %p102, %p103
    %p105 = scmp.ne.s32.totalorder %s94, %s97
    %p106 = scmp.eq.s32.totalorder %s16, 1
    %p107 = por %p105, %p106
    %p108 = scmp.ne.s32.totalorder %s97, %s98
    %p109 = scmp.eq.s32.totalorder %s16, 0
    %p110 = por %p108, %p109
    %p111 = scmp.ne.s32.totalorder %s97, %s98
    %p112 = scmp.eq.s32.totalorder %s17, 1
    %p113 = por %p111, %p112
    %p115 = scmp.ne.s32.totalorder %s98, %s114
    %p116 = scmp.eq.s32.totalorder %s17, 0
    %p117 = por %p115, %p116
    %s118 = ssub.s32 %s11, %s18
    %p119 = scmp.eq.s32.totalorder %s118, 0
    %s121 = sadd.s32 %s120, 1
    %s122 = scalar_select %p119, %s120, %s121
    %p125 = pneg %p119
    %p126 = scmp.eq.s32.totalorder %s11, 1
    %p127 = por %p125, %p126
    %p128 = scmp.ne.s32.totalorder %s120, %s123
    %p129 = scmp.eq.s32.totalorder %s11, 0
    %p130 = por %p128, %p129
    %p131 = scmp.ne.s32.totalorder %s120, %s123
    %p132 = scmp.eq.s32.totalorder %s16, 1
    %p133 = por %p131, %p132
    %p134 = scmp.ne.s32.totalorder %s123, %s124
    %p135 = scmp.eq.s32.totalorder %s16, 0
    %p136 = por %p134, %p135
    %p137 = scmp.ne.s32.totalorder %s123, %s124
    %p138 = scmp.eq.s32.totalorder %s17, 1
    %p139 = por %p137, %p138
    %p141 = scmp.ne.s32.totalorder %s124, %s140
    %p142 = scmp.eq.s32.totalorder %s17, 0
    %p143 = por %p141, %p142
    %p144 = scmp.le.s32.totalorder 1, %s11
    %p145 = scmp.lt.s32.totalorder %s11, 3
    %p146 = pnand %p144, %p145
    %p147 = pneg %p146
    // Predicated region
    $region9: #{decoder_bottleneck_layer.3} parent=5 // pred_check
      _
    $region10: #{decoder_bottleneck_layer.3} parent=5 // pred_check_branch
      %149 = sbr.rel (%p146) target = $region12
    $region11: #{decoder_bottleneck_layer.3} parent=5 // pred_region
      %s150 = ssub.s32 %s11, 1
      // Predicated region
      $region13: #{decoder_bottleneck_layer.3} parent=11 // pred_check
        %p151 = pneg %p58
      $region14: #{decoder_bottleneck_layer.3} parent=11 // pred_check_branch
        %153 = sbr.rel (%p151) target = $region16
      $region15: #{decoder_bottleneck_layer.3} parent=11 // pred_region
        _
      $region16: #{decoder_bottleneck_layer.3} parent=11 // pred_fallthru
        _
    $region12: #{decoder_bottleneck_layer.3} parent=5 // pred_fallthru
      _
    %p154 = scmp.lt.s32.totalorder %s11, 2
    // Predicated region
    $region17: #{decoder_bottleneck_layer.3} parent=5 // pred_check
      %p155 = pneg %p154
    $region18: #{decoder_bottleneck_layer.3} parent=5 // pred_check_branch
      %157 = sbr.rel (%p155) target = $region20
    $region19: #{decoder_bottleneck_layer.3} parent=5 // pred_region
      // Predicated region
      $region21: #{decoder_bottleneck_layer.3} parent=19 // pred_check
        %p158 = pneg %p31
      $region22: #{decoder_bottleneck_layer.3} parent=19 // pred_check_branch
        %160 = sbr.rel (%p158) target = $region24
      $region23: #{decoder_bottleneck_layer.3} parent=19 // pred_region
        %p161 = scmp.lt.s32.totalorder %s11, 1
        %s162 = scalar_select %p161, %s11, 1
        %s163 = smul.addr %s162, 32
        %s164 = smul.addr %s163, 4
        %s165 = scalar_lea.vmem %s0, %s164
      $region24: #{decoder_bottleneck_layer.3} parent=19 // pred_fallthru
        _
    $region20: #{decoder_bottleneck_layer.3} parent=5 // pred_fallthru
      _
    %p166 = scmp.le.s32.totalorder 1, %s11
    %p167 = scmp.lt.s32.totalorder %s11, 3
    %p168 = pnand %p166, %p167
    %p169 = pneg %p168
    // Predicated region
    $region25: #{decoder_bottleneck_layer.3} parent=5 // pred_check
      _
    $region26: #{decoder_bottleneck_layer.3} parent=5 // pred_check_branch
      %171 = sbr.rel (%p168) target = $region28
    $region27: #{decoder_bottleneck_layer.3} parent=5 // pred_region
      %s172 = ssub.s32 %s11, 1
      %p173 = scmp.lt.s32.totalorder %s16, 1
      %s174 = scalar_select %p173, %s16, 1
      %s175 = smul.addr %s174, 32
      %s176 = smul.addr %s175, 4
      %s177 = scalar_lea.vmem %s0, %s176
      %p178 = pneg %p37
      %p179 = pneg %p34
      %p180 = pneg %p58
      %p181 = pneg %p55
      %p182 = pneg %p84
      %p183 = pneg %p81
      %p184 = scmp.lt.s32.totalorder %s16, 1
      %s185 = scalar_select %p184, %s16, 1
      %s186 = smul.addr %s185, 32
      %s187 = smul.addr %s186, 4
      %s188 = scalar_lea.vmem %s2, %s187
      %p189 = pneg %p110
      %p190 = pneg %p107
      %p191 = scmp.lt.s32.totalorder %s16, 1
      %s192 = scalar_select %p191, %s16, 1
      %s193 = scalar_lea.vmem %s3, %s192
      %p194 = pneg %p136
      %p195 = pneg %p133
      %p196 = scmp.lt.s32.totalorder %s16, 1
      %s197 = scalar_select %p196, %s16, 1
      %s198 = scalar_lea.vmem %s4, %s197
      %p199 = scmp.lt.s32.totalorder %s16, 1
      %s200 = scalar_select %p199, %s16, 1
      %s201 = smul.addr %s200, 32
      %s202 = smul.addr %s201, 4
      %s203 = scalar_lea.vmem %s0, %s202
      %p204 = scmp.lt.s32.totalorder %s16, 1
      %s205 = scalar_select %p204, %s16, 1
      %s206 = smul.addr %s205, 32
      %s207 = smul.addr %s206, 4
      %s208 = scalar_lea.vmem %s2, %s207
      %p209 = scmp.lt.s32.totalorder %s16, 1
      %s210 = scalar_select %p209, %s16, 1
      %s211 = scalar_lea.vmem %s3, %s210
      %p212 = scmp.lt.s32.totalorder %s16, 1
      %s213 = scalar_select %p212, %s16, 1
      %s214 = scalar_lea.vmem %s4, %s213
      %216 = vst [vmem:[#allocation2] sm:$0xf] 0
      %217 = vst [vmem:[#allocation2 + $0x4] sm:$0xf] 0
      %218 = vst [vmem:[#allocation2 + $0x8] sm:$0x1] 0
      %s219 = scalar_lea.vmem [#allocation2], 204
      %220 = vst [vmem:[%s219] sm:$0xf] 0
      %221 = vst [vmem:[%s219 + $0x4] sm:$0xf] 0
      %222 = vst [vmem:[%s219 + $0x8] sm:$0x1] 0
      %s223 = scalar_lea.vmem [#allocation2], 12
      %vm224 = vcmask 1040384
      %vm225 = vsmask.f32 256
      %vm226 = vmand %vm224, %vm225
      %v227 = vld [vmem:[%s223] sm:$0x1]
      %v228 = vsel %vm226, 0, %v227
      %229 = vst [vmem:[%s223] sm:$0x1] %v228
      %v230 = vld [vmem:[%s223 + $0xc] sm:$0x1]
      %v231 = vsel %vm226, 0, %v230
      %232 = vst [vmem:[%s223 + $0xc] sm:$0x1] %v231
      %v233 = vld [vmem:[%s223 + $0x18] sm:$0x1]
      %v234 = vsel %vm226, 0, %v233
      %235 = vst [vmem:[%s223 + $0x18] sm:$0x1] %v234
      %v236 = vld [vmem:[%s223 + $0x24] sm:$0x1]
      %v237 = vsel %vm226, 0, %v236
      %238 = vst [vmem:[%s223 + $0x24] sm:$0x1] %v237
      %v239 = vld [vmem:[%s223 + $0x30] sm:$0x1]
      %v240 = vsel %vm226, 0, %v239
      %241 = vst [vmem:[%s223 + $0x30] sm:$0x1] %v240
      %v242 = vld [vmem:[%s223 + $0x3c] sm:$0x1]
      %v243 = vsel %vm226, 0, %v242
      %244 = vst [vmem:[%s223 + $0x3c] sm:$0x1] %v243
      %v245 = vld [vmem:[%s223 + $0x48] sm:$0x1]
      %v246 = vsel %vm226, 0, %v245
      %247 = vst [vmem:[%s223 + $0x48] sm:$0x1] %v246
      %v248 = vld [vmem:[%s223 + $0x54] sm:$0x1]
      %v249 = vsel %vm226, 0, %v248
      %250 = vst [vmem:[%s223 + $0x54] sm:$0x1] %v249
      %v251 = vld [vmem:[%s223 + $0x60] sm:$0x1]
      %v252 = vsel %vm226, 0, %v251
      %253 = vst [vmem:[%s223 + $0x60] sm:$0x1] %v252
      %v254 = vld [vmem:[%s223 + $0x6c] sm:$0x1]
      %v255 = vsel %vm226, 0, %v254
      %256 = vst [vmem:[%s223 + $0x6c] sm:$0x1] %v255
      %v257 = vld [vmem:[%s223 + $0x78] sm:$0x1]
      %v258 = vsel %vm226, 0, %v257
      %259 = vst [vmem:[%s223 + $0x78] sm:$0x1] %v258
      %v260 = vld [vmem:[%s223 + $0x84] sm:$0x1]
      %v261 = vsel %vm226, 0, %v260
      %262 = vst [vmem:[%s223 + $0x84] sm:$0x1] %v261
      %v263 = vld [vmem:[%s223 + $0x90] sm:$0x1]
      %v264 = vsel %vm226, 0, %v263
      %265 = vst [vmem:[%s223 + $0x90] sm:$0x1] %v264
      %v266 = vld [vmem:[%s223 + $0x9c] sm:$0x1]
      %v267 = vsel %vm226, 0, %v266
      %268 = vst [vmem:[%s223 + $0x9c] sm:$0x1] %v267
      %v269 = vld [vmem:[%s223 + $0xa8] sm:$0x1]
      %v270 = vsel %vm226, 0, %v269
      %271 = vst [vmem:[%s223 + $0xa8] sm:$0x1] %v270
      %v272 = vld [vmem:[%s223 + $0xb4] sm:$0x1]
      %v273 = vsel %vm226, 0, %v272
      %274 = vst [vmem:[%s223 + $0xb4] sm:$0x1] %v273
      %vm275 = vsmask.f32 7938
      %vm276 = vmand %vm224, %vm275
      %v277 = vld [vmem:[%s223 + $0x8] sm:$0x1]
      %v278 = vsel %vm276, 0, %v277
      %279 = vst [vmem:[%s223 + $0x8] sm:$0x1] %v278
      %v280 = vld [vmem:[%s223 + $0x14] sm:$0x1]
      %v281 = vsel %vm276, 0, %v280
      %282 = vst [vmem:[%s223 + $0x14] sm:$0x1] %v281
      %v283 = vld [vmem:[%s223 + $0x20] sm:$0x1]
      %v284 = vsel %vm276, 0, %v283
      %285 = vst [vmem:[%s223 + $0x20] sm:$0x1] %v284
      %v286 = vld [vmem:[%s223 + $0x2c] sm:$0x1]
      %v287 = vsel %vm276, 0, %v286
      %288 = vst [vmem:[%s223 + $0x2c] sm:$0x1] %v287
      %v289 = vld [vmem:[%s223 + $0x38] sm:$0x1]
      %v290 = vsel %vm276, 0, %v289
      %291 = vst [vmem:[%s223 + $0x38] sm:$0x1] %v290
      %v292 = vld [vmem:[%s223 + $0x44] sm:$0x1]
      %v293 = vsel %vm276, 0, %v292
      %294 = vst [vmem:[%s223 + $0x44] sm:$0x1] %v293
      %v295 = vld [vmem:[%s223 + $0x50] sm:$0x1]
      %v296 = vsel %vm276, 0, %v295
      %297 = vst [vmem:[%s223 + $0x50] sm:$0x1] %v296
      %v298 = vld [vmem:[%s223 + $0x5c] sm:$0x1]
      %v299 = vsel %vm276, 0, %v298
      %300 = vst [vmem:[%s223 + $0x5c] sm:$0x1] %v299
      %v301 = vld [vmem:[%s223 + $0x68] sm:$0x1]
      %v302 = vsel %vm276, 0, %v301
      %303 = vst [vmem:[%s223 + $0x68] sm:$0x1] %v302
      %v304 = vld [vmem:[%s223 + $0x74] sm:$0x1]
      %v305 = vsel %vm276, 0, %v304
      %306 = vst [vmem:[%s223 + $0x74] sm:$0x1] %v305
      %v307 = vld [vmem:[%s223 + $0x80] sm:$0x1]
      %v308 = vsel %vm276, 0, %v307
      %309 = vst [vmem:[%s223 + $0x80] sm:$0x1] %v308
      %v310 = vld [vmem:[%s223 + $0x8c] sm:$0x1]
      %v311 = vsel %vm276, 0, %v310
      %312 = vst [vmem:[%s223 + $0x8c] sm:$0x1] %v311
      %v313 = vld [vmem:[%s223 + $0x98] sm:$0x1]
      %v314 = vsel %vm276, 0, %v313
      %315 = vst [vmem:[%s223 + $0x98] sm:$0x1] %v314
      %v316 = vld [vmem:[%s223 + $0xa4] sm:$0x1]
      %v317 = vsel %vm276, 0, %v316
      %318 = vst [vmem:[%s223 + $0xa4] sm:$0x1] %v317
      %v319 = vld [vmem:[%s223 + $0xb0] sm:$0x1]
      %v320 = vsel %vm276, 0, %v319
      %321 = vst [vmem:[%s223 + $0xb0] sm:$0x1] %v320
      %v322 = vld [vmem:[%s223 + $0xbc] sm:$0x1]
      %v323 = vsel %vm276, 0, %v322
      %324 = vst [vmem:[%s223 + $0xbc] sm:$0x1] %v323
      %v325 = vld [vmem:[%s203] sm:$0xf]
      %v326 = vld [vmem:[%s203 + $0x4] sm:$0xf]
      %v327 = vld [vmem:[%s203 + $0x8] sm:$0xf]
      %v328 = vld [vmem:[%s203 + $0xc] sm:$0xf]
      %v329 = vld [vmem:[%s203 + $0x10] sm:$0xf]
      %v330 = vld [vmem:[%s203 + $0x14] sm:$0xf]
      %v331 = vld [vmem:[%s203 + $0x18] sm:$0xf]
      %v332 = vld [vmem:[%s203 + $0x1c] sm:$0xf]
      %v333 = vld [vmem:[%s203 + $0x20] sm:$0xf]
      %v334 = vld [vmem:[%s203 + $0x24] sm:$0xf]
      %v335 = vld [vmem:[%s203 + $0x28] sm:$0xf]
      %v336 = vld [vmem:[%s203 + $0x2c] sm:$0xf]
      %v337 = vld [vmem:[%s203 + $0x30] sm:$0xf]
      %v338 = vld [vmem:[%s203 + $0x34] sm:$0xf]
      %v339 = vld [vmem:[%s203 + $0x38] sm:$0xf]
      %v340 = vld [vmem:[%s203 + $0x3c] sm:$0xf]
      %v341 = vld [vmem:[%s203 + $0x40] sm:$0xf]
      %v342 = vld [vmem:[%s203 + $0x44] sm:$0xf]
      %v343 = vld [vmem:[%s203 + $0x48] sm:$0xf]
      %v344 = vld [vmem:[%s203 + $0x4c] sm:$0xf]
      %v345 = vld [vmem:[%s203 + $0x50] sm:$0xf]
      %v346 = vld [vmem:[%s203 + $0x54] sm:$0xf]
      %v347 = vld [vmem:[%s203 + $0x58] sm:$0xf]
      %v348 = vld [vmem:[%s203 + $0x5c] sm:$0xf]
      %v349 = vld [vmem:[%s203 + $0x60] sm:$0xf]
      %v350 = vld [vmem:[%s203 + $0x64] sm:$0xf]
      %v351 = vld [vmem:[%s203 + $0x68] sm:$0xf]
      %v352 = vld [vmem:[%s203 + $0x6c] sm:$0xf]
      %v353 = vld [vmem:[%s203 + $0x70] sm:$0xf]
      %v354 = vld [vmem:[%s203 + $0x74] sm:$0xf]
      %v355 = vld [vmem:[%s203 + $0x78] sm:$0xf]
      %v356 = vld [vmem:[%s203 + $0x7c] sm:$0xf]
      %vm357 = vsmask.f32 4368
      %vm358 = vmor %vm225, %vm357
      %v360 = vshrl.u32 %v325, 16
      %v362 = vrot.slane %v360, 7
      %v363 = vshll.u32 %v325, 16
      %v365 = vor.u32 %v362, %v363
      %v366 = vrot.slane %v362, 4
      %v368 = vshrl.u32 %v326, 16
      %v370 = vrot.slane %v368, 7
      %v371 = vshll.u32 %v326, 16
      %v373 = vor.u32 %v370, %v371
      %v374 = vsel %vm358, %v366, %v373
      %v375 = vrot.slane %v370, 4
      %v377 = vshrl.u32 %v327, 16
      %v379 = vrot.slane %v377, 7
      %v380 = vshll.u32 %v327, 16
      %v382 = vor.u32 %v379, %v380
      %v383 = vrot.slane %v379, 4
      %v385 = vshrl.u32 %v328, 16
      %v387 = vrot.slane %v385, 7
      %v388 = vshll.u32 %v328, 16
      %v390 = vor.u32 %v387, %v388
      %v391 = vsel %vm358, %v383, %v390
      %v392 = vrot.slane %v387, 4
      %v394 = vshrl.u32 %v329, 16
      %v396 = vrot.slane %v394, 7
      %v397 = vshll.u32 %v329, 16
      %v399 = vor.u32 %v396, %v397
      %v400 = vrot.slane %v396, 4
      %v402 = vshrl.u32 %v330, 16
      %v404 = vrot.slane %v402, 7
      %v405 = vshll.u32 %v330, 16
      %v407 = vor.u32 %v404, %v405
      %v408 = vsel %vm358, %v400, %v407
      %v409 = vrot.slane %v404, 4
      %v411 = vshrl.u32 %v331, 16
      %v413 = vrot.slane %v411, 7
      %v414 = vshll.u32 %v331, 16
      %v416 = vor.u32 %v413, %v414
      %v417 = vrot.slane %v413, 4
      %v419 = vshrl.u32 %v332, 16
      %v421 = vrot.slane %v419, 7
      %v422 = vshll.u32 %v332, 16
      %v424 = vor.u32 %v421, %v422
      %v425 = vsel %vm358, %v417, %v424
      %v426 = vrot.slane %v421, 4
      %v428 = vshrl.u32 %v333, 16
      %v430 = vrot.slane %v428, 7
      %v431 = vshll.u32 %v333, 16
      %v433 = vor.u32 %v430, %v431
      %v434 = vrot.slane %v430, 4
      %v436 = vshrl.u32 %v334, 16
      %v438 = vrot.slane %v436, 7
      %v439 = vshll.u32 %v334, 16
      %v441 = vor.u32 %v438, %v439
      %v442 = vsel %vm358, %v434, %v441
      %v443 = vrot.slane %v438, 4
      %v445 = vshrl.u32 %v335, 16
      %v447 = vrot.slane %v445, 7
      %v448 = vshll.u32 %v335, 16
      %v450 = vor.u32 %v447, %v448
      %v451 = vrot.slane %v447, 4
      %v453 = vshrl.u32 %v336, 16
      %v455 = vrot.slane %v453, 7
      %v456 = vshll.u32 %v336, 16
      %v458 = vor.u32 %v455, %v456
      %v459 = vsel %vm358, %v451, %v458
      %v460 = vrot.slane %v455, 4
      %v462 = vshrl.u32 %v337, 16
      %v464 = vrot.slane %v462, 7
      %v465 = vshll.u32 %v337, 16
      %v467 = vor.u32 %v464, %v465
      %v468 = vrot.slane %v464, 4
      %v470 = vshrl.u32 %v338, 16
      %v472 = vrot.slane %v470, 7
      %v473 = vshll.u32 %v338, 16
      %v475 = vor.u32 %v472, %v473
      %v476 = vsel %vm358, %v468, %v475
      %v477 = vrot.slane %v472, 4
      %v479 = vshrl.u32 %v339, 16
      %v481 = vrot.slane %v479, 7
      %v482 = vshll.u32 %v339, 16
      %v484 = vor.u32 %v481, %v482
      %v485 = vrot.slane %v481, 4
      %v487 = vshrl.u32 %v340, 16
      %v489 = vrot.slane %v487, 7
      %v490 = vshll.u32 %v340, 16
      %v492 = vor.u32 %v489, %v490
      %v493 = vsel %vm358, %v485, %v492
      %v494 = vrot.slane %v489, 4
      %v496 = vshrl.u32 %v341, 16
      %v498 = vrot.slane %v496, 7
      %v499 = vshll.u32 %v341, 16
      %v501 = vor.u32 %v498, %v499
      %v502 = vrot.slane %v498, 4
      %v504 = vshrl.u32 %v342, 16
      %v506 = vrot.slane %v504, 7
      %v507 = vshll.u32 %v342, 16
      %v509 = vor.u32 %v506, %v507
      %v510 = vsel %vm358, %v502, %v509
      %v511 = vrot.slane %v506, 4
      %v513 = vshrl.u32 %v343, 16
      %v515 = vrot.slane %v513, 7
      %v516 = vshll.u32 %v343, 16
      %v518 = vor.u32 %v515, %v516
      %v519 = vrot.slane %v515, 4
      %v521 = vshrl.u32 %v344, 16
      %v523 = vrot.slane %v521, 7
      %v524 = vshll.u32 %v344, 16
      %v526 = vor.u32 %v523, %v524
      %v527 = vsel %vm358, %v519, %v526
      %v528 = vrot.slane %v523, 4
      %v530 = vshrl.u32 %v345, 16
      %v532 = vrot.slane %v530, 7
      %v533 = vshll.u32 %v345, 16
      %v535 = vor.u32 %v532, %v533
      %v536 = vrot.slane %v532, 4
      %v538 = vshrl.u32 %v346, 16
      %v540 = vrot.slane %v538, 7
      %v541 = vshll.u32 %v346, 16
      %v543 = vor.u32 %v540, %v541
      %v544 = vsel %vm358, %v536, %v543
      %v545 = vrot.slane %v540, 4
      %v547 = vshrl.u32 %v347, 16
      %v549 = vrot.slane %v547, 7
      %v550 = vshll.u32 %v347, 16
      %v552 = vor.u32 %v549, %v550
      %v553 = vrot.slane %v549, 4
      %v555 = vshrl.u32 %v348, 16
      %v557 = vrot.slane %v555, 7
      %v558 = vshll.u32 %v348, 16
      %v560 = vor.u32 %v557, %v558
      %v561 = vsel %vm358, %v553, %v560
      %v562 = vrot.slane %v557, 4
      %v564 = vshrl.u32 %v349, 16
      %v566 = vrot.slane %v564, 7
      %v567 = vshll.u32 %v349, 16
      %v569 = vor.u32 %v566, %v567
      %v570 = vrot.slane %v566, 4
      %v572 = vshrl.u32 %v350, 16
      %v574 = vrot.slane %v572, 7
      %v575 = vshll.u32 %v350, 16
      %v577 = vor.u32 %v574, %v575
      %v578 = vsel %vm358, %v570, %v577
      %v579 = vrot.slane %v574, 4
      %v581 = vshrl.u32 %v351, 16
      %v583 = vrot.slane %v581, 7
      %v584 = vshll.u32 %v351, 16
      %v586 = vor.u32 %v583, %v584
      %v587 = vrot.slane %v583, 4
      %v589 = vshrl.u32 %v352, 16
      %v591 = vrot.slane %v589, 7
      %v592 = vshll.u32 %v352, 16
      %v594 = vor.u32 %v591, %v592
      %v595 = vsel %vm358, %v587, %v594
      %v596 = vrot.slane %v591, 4
      %v598 = vshrl.u32 %v353, 16
      %v600 = vrot.slane %v598, 7
      %v601 = vshll.u32 %v353, 16
      %v603 = vor.u32 %v600, %v601
      %v604 = vrot.slane %v600, 4
      %v606 = vshrl.u32 %v354, 16
      %v608 = vrot.slane %v606, 7
      %v609 = vshll.u32 %v354, 16
      %v611 = vor.u32 %v608, %v609
      %v612 = vsel %vm358, %v604, %v611
      %v613 = vrot.slane %v608, 4
      %v615 = vshrl.u32 %v355, 16
      %v617 = vrot.slane %v615, 7
      %v618 = vshll.u32 %v355, 16
      %v620 = vor.u32 %v617, %v618
      %v621 = vrot.slane %v617, 4
      %v623 = vshrl.u32 %v356, 16
      %v625 = vrot.slane %v623, 7
      %v626 = vshll.u32 %v356, 16
      %v628 = vor.u32 %v625, %v626
      %v629 = vsel %vm358, %v621, %v628
      %v630 = vrot.slane %v625, 4
      %vm679 = vcmask 1043456
      %vm680 = vmand %vm679, %vm275
      %v681 = vld [vmem:[%s223] sm:$0xf]
      %v682 = vsel %vm680, %v365, %v681
      %683 = vst [vmem:[%s223] sm:$0xf] %v682
      %684 = vst [vmem:[%s223 + $0x4] sm:$0xf] %v374
      %v685 = vld [vmem:[%s223 + $0x8] sm:$0x1]
      %v686 = vsel %vm226, %v375, %v685
      %687 = vst [vmem:[%s223 + $0x8] sm:$0x1] %v686
      %v688 = vld [vmem:[%s223 + $0xc] sm:$0xf]
      %v689 = vsel %vm680, %v382, %v688
      %690 = vst [vmem:[%s223 + $0xc] sm:$0xf] %v689
      %691 = vst [vmem:[%s223 + $0x10] sm:$0xf] %v391
      %v692 = vld [vmem:[%s223 + $0x14] sm:$0x1]
      %v693 = vsel %vm226, %v392, %v692
      %694 = vst [vmem:[%s223 + $0x14] sm:$0x1] %v693
      %v695 = vld [vmem:[%s223 + $0x18] sm:$0xf]
      %v696 = vsel %vm680, %v399, %v695
      %697 = vst [vmem:[%s223 + $0x18] sm:$0xf] %v696
      %698 = vst [vmem:[%s223 + $0x1c] sm:$0xf] %v408
      %v699 = vld [vmem:[%s223 + $0x20] sm:$0x1]
      %v700 = vsel %vm226, %v409, %v699
      %701 = vst [vmem:[%s223 + $0x20] sm:$0x1] %v700
      %v702 = vld [vmem:[%s223 + $0x24] sm:$0xf]
      %v703 = vsel %vm680, %v416, %v702
      %704 = vst [vmem:[%s223 + $0x24] sm:$0xf] %v703
      %705 = vst [vmem:[%s223 + $0x28] sm:$0xf] %v425
      %v706 = vld [vmem:[%s223 + $0x2c] sm:$0x1]
      %v707 = vsel %vm226, %v426, %v706
      %708 = vst [vmem:[%s223 + $0x2c] sm:$0x1] %v707
      %v709 = vld [vmem:[%s223 + $0x30] sm:$0xf]
      %v710 = vsel %vm680, %v433, %v709
      %711 = vst [vmem:[%s223 + $0x30] sm:$0xf] %v710
      %712 = vst [vmem:[%s223 + $0x34] sm:$0xf] %v442
      %v713 = vld [vmem:[%s223 + $0x38] sm:$0x1]
      %v714 = vsel %vm226, %v443, %v713
      %715 = vst [vmem:[%s223 + $0x38] sm:$0x1] %v714
      %v716 = vld [vmem:[%s223 + $0x3c] sm:$0xf]
      %v717 = vsel %vm680, %v450, %v716
      %718 = vst [vmem:[%s223 + $0x3c] sm:$0xf] %v717
      %719 = vst [vmem:[%s223 + $0x40] sm:$0xf] %v459
      %v720 = vld [vmem:[%s223 + $0x44] sm:$0x1]
      %v721 = vsel %vm226, %v460, %v720
      %722 = vst [vmem:[%s223 + $0x44] sm:$0x1] %v721
      %v723 = vld [vmem:[%s223 + $0x48] sm:$0xf]
      %v724 = vsel %vm680, %v467, %v723
      %725 = vst [vmem:[%s223 + $0x48] sm:$0xf] %v724
      %726 = vst [vmem:[%s223 + $0x4c] sm:$0xf] %v476
      %v727 = vld [vmem:[%s223 + $0x50] sm:$0x1]
      %v728 = vsel %vm226, %v477, %v727
      %729 = vst [vmem:[%s223 + $0x50] sm:$0x1] %v728
      %v730 = vld [vmem:[%s223 + $0x54] sm:$0xf]
      %v731 = vsel %vm680, %v484, %v730
      %732 = vst [vmem:[%s223 + $0x54] sm:$0xf] %v731
      %733 = vst [vmem:[%s223 + $0x58] sm:$0xf] %v493
      %v734 = vld [vmem:[%s223 + $0x5c] sm:$0x1]
      %v735 = vsel %vm226, %v494, %v734
      %736 = vst [vmem:[%s223 + $0x5c] sm:$0x1] %v735
      %v737 = vld [vmem:[%s223 + $0x60] sm:$0xf]
      %v738 = vsel %vm680, %v501, %v737
      %739 = vst [vmem:[%s223 + $0x60] sm:$0xf] %v738
      %740 = vst [vmem:[%s223 + $0x64] sm:$0xf] %v510
      %v741 = vld [vmem:[%s223 + $0x68] sm:$0x1]
      %v742 = vsel %vm226, %v511, %v741
      %743 = vst [vmem:[%s223 + $0x68] sm:$0x1] %v742
      %v744 = vld [vmem:[%s223 + $0x6c] sm:$0xf]
      %v745 = vsel %vm680, %v518, %v744
      %746 = vst [vmem:[%s223 + $0x6c] sm:$0xf] %v745
      %747 = vst [vmem:[%s223 + $0x70] sm:$0xf] %v527
      %v748 = vld [vmem:[%s223 + $0x74] sm:$0x1]
      %v749 = vsel %vm226, %v528, %v748
      %750 = vst [vmem:[%s223 + $0x74] sm:$0x1] %v749
      %v751 = vld [vmem:[%s223 + $0x78] sm:$0xf]
      %v752 = vsel %vm680, %v535, %v751
      %753 = vst [vmem:[%s223 + $0x78] sm:$0xf] %v752
      %754 = vst [vmem:[%s223 + $0x7c] sm:$0xf] %v544
      %v755 = vld [vmem:[%s223 + $0x80] sm:$0x1]
      %v756 = vsel %vm226, %v545, %v755
      %757 = vst [vmem:[%s223 + $0x80] sm:$0x1] %v756
      %v758 = vld [vmem:[%s223 + $0x84] sm:$0xf]
      %v759 = vsel %vm680, %v552, %v758
      %760 = vst [vmem:[%s223 + $0x84] sm:$0xf] %v759
      %761 = vst [vmem:[%s223 + $0x88] sm:$0xf] %v561
      %v762 = vld [vmem:[%s223 + $0x8c] sm:$0x1]
      %v763 = vsel %vm226, %v562, %v762
      %764 = vst [vmem:[%s223 + $0x8c] sm:$0x1] %v763
      %v765 = vld [vmem:[%s223 + $0x90] sm:$0xf]
      %v766 = vsel %vm680, %v569, %v765
      %767 = vst [vmem:[%s223 + $0x90] sm:$0xf] %v766
      %768 = vst [vmem:[%s223 + $0x94] sm:$0xf] %v578
      %v769 = vld [vmem:[%s223 + $0x98] sm:$0x1]
      %v770 = vsel %vm226, %v579, %v769
      %771 = vst [vmem:[%s223 + $0x98] sm:$0x1] %v770
      %v772 = vld [vmem:[%s223 + $0x9c] sm:$0xf]
      %v773 = vsel %vm680, %v586, %v772
      %774 = vst [vmem:[%s223 + $0x9c] sm:$0xf] %v773
      %775 = vst [vmem:[%s223 + $0xa0] sm:$0xf] %v595
      %v776 = vld [vmem:[%s223 + $0xa4] sm:$0x1]
      %v777 = vsel %vm226, %v596, %v776
      %778 = vst [vmem:[%s223 + $0xa4] sm:$0x1] %v777
      %v779 = vld [vmem:[%s223 + $0xa8] sm:$0xf]
      %v780 = vsel %vm680, %v603, %v779
      %781 = vst [vmem:[%s223 + $0xa8] sm:$0xf] %v780
      %782 = vst [vmem:[%s223 + $0xac] sm:$0xf] %v612
      %v783 = vld [vmem:[%s223 + $0xb0] sm:$0x1]
      %v784 = vsel %vm226, %v613, %v783
      %785 = vst [vmem:[%s223 + $0xb0] sm:$0x1] %v784
      %v786 = vld [vmem:[%s223 + $0xb4] sm:$0xf]
      %v787 = vsel %vm680, %v620, %v786
      %788 = vst [vmem:[%s223 + $0xb4] sm:$0xf] %v787
      %789 = vst [vmem:[%s223 + $0xb8] sm:$0xf] %v629
      %v790 = vld [vmem:[%s223 + $0xbc] sm:$0x1]
      %v791 = vsel %vm226, %v630, %v790
      %792 = vst [vmem:[%s223 + $0xbc] sm:$0x1] %v791
      %v793 = vld [vmem:[#allocation2] sm:$0xf]
      %v794 = vld [vmem:[#allocation2 + $0x4] sm:$0xf]
      %v795 = vld [vmem:[#allocation2 + $0xc] sm:$0xf]
      %v796 = vld [vmem:[#allocation2 + $0x10] sm:$0xf]
      %v797 = vld [vmem:[#allocation2 + $0x18] sm:$0xf]
      %v798 = vld [vmem:[#allocation2 + $0x1c] sm:$0xf]
      %v799 = vld [vmem:[#allocation2 + $0x24] sm:$0xf]
      %v800 = vld [vmem:[#allocation2 + $0x28] sm:$0xf]
      %v801 = vld [vmem:[#allocation2 + $0x30] sm:$0xf]
      %v802 = vld [vmem:[#allocation2 + $0x34] sm:$0xf]
      %v803 = vld [vmem:[#allocation2 + $0x3c] sm:$0xf]
      %v804 = vld [vmem:[#allocation2 + $0x40] sm:$0xf]
      %v805 = vld [vmem:[#allocation2 + $0x48] sm:$0xf]
      %v806 = vld [vmem:[#allocation2 + $0x4c] sm:$0xf]
      %v807 = vld [vmem:[#allocation2 + $0x54] sm:$0xf]
      %v808 = vld [vmem:[#allocation2 + $0x58] sm:$0xf]
      %v809 = vld [vmem:[#allocation2 + $0x60] sm:$0xf]
      %v810 = vld [vmem:[#allocation2 + $0x64] sm:$0xf]
      %v811 = vld [vmem:[#allocation2 + $0x6c] sm:$0xf]
      %v812 = vld [vmem:[#allocation2 + $0x70] sm:$0xf]
      %v813 = vld [vmem:[#allocation2 + $0x78] sm:$0xf]
      %v814 = vld [vmem:[#allocation2 + $0x7c] sm:$0xf]
      %v815 = vld [vmem:[#allocation2 + $0x84] sm:$0xf]
      %v816 = vld [vmem:[#allocation2 + $0x88] sm:$0xf]
      %v817 = vld [vmem:[#allocation2 + $0x90] sm:$0xf]
      %v818 = vld [vmem:[#allocation2 + $0x94] sm:$0xf]
      %v819 = vld [vmem:[#allocation2 + $0x9c] sm:$0xf]
      %v820 = vld [vmem:[#allocation2 + $0xa0] sm:$0xf]
      %v821 = vld [vmem:[#allocation2 + $0xa8] sm:$0xf]
      %v822 = vld [vmem:[#allocation2 + $0xac] sm:$0xf]
      %v823 = vld [vmem:[#allocation2 + $0xb4] sm:$0xf]
      %v824 = vld [vmem:[#allocation2 + $0xb8] sm:$0xf]
      %v825 = vld [vmem:[%s1] sm:$0xf]
      %v826 = vld [vmem:[%s1 + $0x4] sm:$0xf]
      %v827 = vld [vmem:[%s1 + $0x8] sm:$0xf]
      %v828 = vld [vmem:[%s1 + $0xc] sm:$0xf]
      %v829 = vld [vmem:[%s1 + $0x10] sm:$0xf]
      %v830 = vld [vmem:[%s1 + $0x14] sm:$0xf]
      %v831 = vld [vmem:[%s1 + $0x18] sm:$0xf]
      %v832 = vld [vmem:[%s1 + $0x1c] sm:$0xf]
      %v833 = vld [vmem:[%s1 + $0x20] sm:$0xf]
      %v834 = vld [vmem:[%s1 + $0x24] sm:$0xf]
      %v835 = vld [vmem:[%s1 + $0x28] sm:$0xf]
      %v836 = vld [vmem:[%s1 + $0x2c] sm:$0xf]
      %v837 = vld [vmem:[%s1 + $0x30] sm:$0xf]
      %v838 = vld [vmem:[%s1 + $0x34] sm:$0xf]
      %v839 = vld [vmem:[%s1 + $0x38] sm:$0xf]
      %v840 = vld [vmem:[%s1 + $0x3c] sm:$0xf]
      %v841 = vld [vmem:[#allocation2 + $0x8] sm:$0x1]
      %v842 = vld [vmem:[#allocation2 + $0x14] sm:$0x1]
      %v843 = vld [vmem:[#allocation2 + $0x20] sm:$0x1]
      %v844 = vld [vmem:[#allocation2 + $0x2c] sm:$0x1]
      %v845 = vld [vmem:[#allocation2 + $0x38] sm:$0x1]
      %v846 = vld [vmem:[#allocation2 + $0x44] sm:$0x1]
      %v847 = vld [vmem:[#allocation2 + $0x50] sm:$0x1]
      %v848 = vld [vmem:[#allocation2 + $0x5c] sm:$0x1]
      %v849 = vld [vmem:[#allocation2 + $0x68] sm:$0x1]
      %v850 = vld [vmem:[#allocation2 + $0x74] sm:$0x1]
      %v851 = vld [vmem:[#allocation2 + $0x80] sm:$0x1]
      %v852 = vld [vmem:[#allocation2 + $0x8c] sm:$0x1]
      %v853 = vld [vmem:[#allocation2 + $0x98] sm:$0x1]
      %v854 = vld [vmem:[#allocation2 + $0xa4] sm:$0x1]
      %v855 = vld [vmem:[#allocation2 + $0xb0] sm:$0x1]
      %v856 = vld [vmem:[#allocation2 + $0xbc] sm:$0x1]
      %vm857 = vsmask.f32 3328
      %vm858 = vsmask.f32 7440
      %vm859 = vmor %vm857, %vm858
      %v861 = vshrl.u32 %v793, 16
      %v863 = vrot.slane %v861, 4
      %v864 = vshll.u32 %v793, 16
      %v866 = vrot.slane %v864, 5
      %v867 = vor.u32 %v863, %v866
      %v868 = vrot.slane %v867, 4
      %v870 = vshll.u32 %v794, 16
      %v872 = vrot.slane %v870, 5
      %v873 = vsel %vm859, %v868, %v872
      %v874 = vshrl.u32 %v794, 16
      %v876 = vrot.slane %v874, 4
      %v877 = vor.u32 %v876, %v872
      %v878 = vrot.slane %v877, 4
      %v880 = vshll.u32 %v841, 16
      %v882 = vrot.slane %v880, 5
      %v883 = vsel %vm859, %v878, %v882
      %v885 = vshrl.u32 %v795, 16
      %v887 = vrot.slane %v885, 4
      %v888 = vshll.u32 %v795, 16
      %v890 = vrot.slane %v888, 5
      %v891 = vor.u32 %v887, %v890
      %v892 = vrot.slane %v891, 4
      %v894 = vshll.u32 %v796, 16
      %v896 = vrot.slane %v894, 5
      %v897 = vsel %vm859, %v892, %v896
      %v898 = vshrl.u32 %v796, 16
      %v900 = vrot.slane %v898, 4
      %v901 = vor.u32 %v900, %v896
      %v902 = vrot.slane %v901, 4
      %v904 = vshll.u32 %v842, 16
      %v906 = vrot.slane %v904, 5
      %v907 = vsel %vm859, %v902, %v906
      %v909 = vshrl.u32 %v797, 16
      %v911 = vrot.slane %v909, 4
      %v912 = vshll.u32 %v797, 16
      %v914 = vrot.slane %v912, 5
      %v915 = vor.u32 %v911, %v914
      %v916 = vrot.slane %v915, 4
      %v918 = vshll.u32 %v798, 16
      %v920 = vrot.slane %v918, 5
      %v921 = vsel %vm859, %v916, %v920
      %v922 = vshrl.u32 %v798, 16
      %v924 = vrot.slane %v922, 4
      %v925 = vor.u32 %v924, %v920
      %v926 = vrot.slane %v925, 4
      %v928 = vshll.u32 %v843, 16
      %v930 = vrot.slane %v928, 5
      %v931 = vsel %vm859, %v926, %v930
      %v933 = vshrl.u32 %v799, 16
      %v935 = vrot.slane %v933, 4
      %v936 = vshll.u32 %v799, 16
      %v938 = vrot.slane %v936, 5
      %v939 = vor.u32 %v935, %v938
      %v940 = vrot.slane %v939, 4
      %v942 = vshll.u32 %v800, 16
      %v944 = vrot.slane %v942, 5
      %v945 = vsel %vm859, %v940, %v944
      %v946 = vshrl.u32 %v800, 16
      %v948 = vrot.slane %v946, 4
      %v949 = vor.u32 %v948, %v944
      %v950 = vrot.slane %v949, 4
      %v952 = vshll.u32 %v844, 16
      %v954 = vrot.slane %v952, 5
      %v955 = vsel %vm859, %v950, %v954
      %v957 = vshrl.u32 %v801, 16
      %v959 = vrot.slane %v957, 4
      %v960 = vshll.u32 %v801, 16
      %v962 = vrot.slane %v960, 5
      %v963 = vor.u32 %v959, %v962
      %v964 = vrot.slane %v963, 4
      %v966 = vshll.u32 %v802, 16
      %v968 = vrot.slane %v966, 5
      %v969 = vsel %vm859, %v964, %v968
      %v970 = vshrl.u32 %v802, 16
      %v972 = vrot.slane %v970, 4
      %v973 = vor.u32 %v972, %v968
      %v974 = vrot.slane %v973, 4
      %v976 = vshll.u32 %v845, 16
      %v978 = vrot.slane %v976, 5
      %v979 = vsel %vm859, %v974, %v978
      %v981 = vshrl.u32 %v803, 16
      %v983 = vrot.slane %v981, 4
      %v984 = vshll.u32 %v803, 16
      %v986 = vrot.slane %v984, 5
      %v987 = vor.u32 %v983, %v986
      %v988 = vrot.slane %v987, 4
      %v990 = vshll.u32 %v804, 16
      %v992 = vrot.slane %v990, 5
      %v993 = vsel %vm859, %v988, %v992
      %v994 = vshrl.u32 %v804, 16
      %v996 = vrot.slane %v994, 4
      %v997 = vor.u32 %v996, %v992
      %v998 = vrot.slane %v997, 4
      %v1000 = vshll.u32 %v846, 16
      %v1002 = vrot.slane %v1000, 5
      %v1003 = vsel %vm859, %v998, %v1002
      %v1005 = vshrl.u32 %v805, 16
      %v1007 = vrot.slane %v1005, 4
      %v1008 = vshll.u32 %v805, 16
      %v1010 = vrot.slane %v1008, 5
      %v1011 = vor.u32 %v1007, %v1010
      %v1012 = vrot.slane %v1011, 4
      %v1014 = vshll.u32 %v806, 16
      %v1016 = vrot.slane %v1014, 5
      %v1017 = vsel %vm859, %v1012, %v1016
      %v1018 = vshrl.u32 %v806, 16
      %v1020 = vrot.slane %v1018, 4
      %v1021 = vor.u32 %v1020, %v1016
      %v1022 = vrot.slane %v1021, 4
      %v1024 = vshll.u32 %v847, 16
      %v1026 = vrot.slane %v1024, 5
      %v1027 = vsel %vm859, %v1022, %v1026
      %v1029 = vshrl.u32 %v807, 16
      %v1031 = vrot.slane %v1029, 4
      %v1032 = vshll.u32 %v807, 16
      %v1034 = vrot.slane %v1032, 5
      %v1035 = vor.u32 %v1031, %v1034
      %v1036 = vrot.slane %v1035, 4
      %v1038 = vshll.u32 %v808, 16
      %v1040 = vrot.slane %v1038, 5
      %v1041 = vsel %vm859, %v1036, %v1040
      %v1042 = vshrl.u32 %v808, 16
      %v1044 = vrot.slane %v1042, 4
      %v1045 = vor.u32 %v1044, %v1040
      %v1046 = vrot.slane %v1045, 4
      %v1048 = vshll.u32 %v848, 16
      %v1050 = vrot.slane %v1048, 5
      %v1051 = vsel %vm859, %v1046, %v1050
      %v1053 = vshrl.u32 %v809, 16
      %v1055 = vrot.slane %v1053, 4
      %v1056 = vshll.u32 %v809, 16
      %v1058 = vrot.slane %v1056, 5
      %v1059 = vor.u32 %v1055, %v1058
      %v1060 = vrot.slane %v1059, 4
      %v1062 = vshll.u32 %v810, 16
      %v1064 = vrot.slane %v1062, 5
      %v1065 = vsel %vm859, %v1060, %v1064
      %v1066 = vshrl.u32 %v810, 16
      %v1068 = vrot.slane %v1066, 4
      %v1069 = vor.u32 %v1068, %v1064
      %v1070 = vrot.slane %v1069, 4
      %v1072 = vshll.u32 %v849, 16
      %v1074 = vrot.slane %v1072, 5
      %v1075 = vsel %vm859, %v1070, %v1074
      %v1077 = vshrl.u32 %v811, 16
      %v1079 = vrot.slane %v1077, 4
      %v1080 = vshll.u32 %v811, 16
      %v1082 = vrot.slane %v1080, 5
      %v1083 = vor.u32 %v1079, %v1082
      %v1084 = vrot.slane %v1083, 4
      %v1086 = vshll.u32 %v812, 16
      %v1088 = vrot.slane %v1086, 5
      %v1089 = vsel %vm859, %v1084, %v1088
      %v1090 = vshrl.u32 %v812, 16
      %v1092 = vrot.slane %v1090, 4
      %v1093 = vor.u32 %v1092, %v1088
      %v1094 = vrot.slane %v1093, 4
      %v1096 = vshll.u32 %v850, 16
      %v1098 = vrot.slane %v1096, 5
      %v1099 = vsel %vm859, %v1094, %v1098
      %v1101 = vshrl.u32 %v813, 16
      %v1103 = vrot.slane %v1101, 4
      %v1104 = vshll.u32 %v813, 16
      %v1106 = vrot.slane %v1104, 5
      %v1107 = vor.u32 %v1103, %v1106
      %v1108 = vrot.slane %v1107, 4
      %v1110 = vshll.u32 %v814, 16
      %v1112 = vrot.slane %v1110, 5
      %v1113 = vsel %vm859, %v1108, %v1112
      %v1114 = vshrl.u32 %v814, 16
      %v1116 = vrot.slane %v1114, 4
      %v1117 = vor.u32 %v1116, %v1112
      %v1118 = vrot.slane %v1117, 4
      %v1120 = vshll.u32 %v851, 16
      %v1122 = vrot.slane %v1120, 5
      %v1123 = vsel %vm859, %v1118, %v1122
      %v1125 = vshrl.u32 %v815, 16
      %v1127 = vrot.slane %v1125, 4
      %v1128 = vshll.u32 %v815, 16
      %v1130 = vrot.slane %v1128, 5
      %v1131 = vor.u32 %v1127, %v1130
      %v1132 = vrot.slane %v1131, 4
      %v1134 = vshll.u32 %v816, 16
      %v1136 = vrot.slane %v1134, 5
      %v1137 = vsel %vm859, %v1132, %v1136
      %v1138 = vshrl.u32 %v816, 16
      %v1140 = vrot.slane %v1138, 4
      %v1141 = vor.u32 %v1140, %v1136
      %v1142 = vrot.slane %v1141, 4
      %v1144 = vshll.u32 %v852, 16
      %v1146 = vrot.slane %v1144, 5
      %v1147 = vsel %vm859, %v1142, %v1146
      %v1149 = vshrl.u32 %v817, 16
      %v1151 = vrot.slane %v1149, 4
      %v1152 = vshll.u32 %v817, 16
      %v1154 = vrot.slane %v1152, 5
      %v1155 = vor.u32 %v1151, %v1154
      %v1156 = vrot.slane %v1155, 4
      %v1158 = vshll.u32 %v818, 16
      %v1160 = vrot.slane %v1158, 5
      %v1161 = vsel %vm859, %v1156, %v1160
      %v1162 = vshrl.u32 %v818, 16
      %v1164 = vrot.slane %v1162, 4
      %v1165 = vor.u32 %v1164, %v1160
      %v1166 = vrot.slane %v1165, 4
      %v1168 = vshll.u32 %v853, 16
      %v1170 = vrot.slane %v1168, 5
      %v1171 = vsel %vm859, %v1166, %v1170
      %v1173 = vshrl.u32 %v819, 16
      %v1175 = vrot.slane %v1173, 4
      %v1176 = vshll.u32 %v819, 16
      %v1178 = vrot.slane %v1176, 5
      %v1179 = vor.u32 %v1175, %v1178
      %v1180 = vrot.slane %v1179, 4
      %v1182 = vshll.u32 %v820, 16
      %v1184 = vrot.slane %v1182, 5
      %v1185 = vsel %vm859, %v1180, %v1184
      %v1186 = vshrl.u32 %v820, 16
      %v1188 = vrot.slane %v1186, 4
      %v1189 = vor.u32 %v1188, %v1184
      %v1190 = vrot.slane %v1189, 4
      %v1192 = vshll.u32 %v854, 16
      %v1194 = vrot.slane %v1192, 5
      %v1195 = vsel %vm859, %v1190, %v1194
      %v1197 = vshrl.u32 %v821, 16
      %v1199 = vrot.slane %v1197, 4
      %v1200 = vshll.u32 %v821, 16
      %v1202 = vrot.slane %v1200, 5
      %v1203 = vor.u32 %v1199, %v1202
      %v1204 = vrot.slane %v1203, 4
      %v1206 = vshll.u32 %v822, 16
      %v1208 = vrot.slane %v1206, 5
      %v1209 = vsel %vm859, %v1204, %v1208
      %v1210 = vshrl.u32 %v822, 16
      %v1212 = vrot.slane %v1210, 4
      %v1213 = vor.u32 %v1212, %v1208
      %v1214 = vrot.slane %v1213, 4
      %v1216 = vshll.u32 %v855, 16
      %v1218 = vrot.slane %v1216, 5
      %v1219 = vsel %vm859, %v1214, %v1218
      %v1221 = vshrl.u32 %v823, 16
      %v1223 = vrot.slane %v1221, 4
      %v1224 = vshll.u32 %v823, 16
      %v1226 = vrot.slane %v1224, 5
      %v1227 = vor.u32 %v1223, %v1226
      %v1228 = vrot.slane %v1227, 4
      %v1230 = vshll.u32 %v824, 16
      %v1232 = vrot.slane %v1230, 5
      %v1233 = vsel %vm859, %v1228, %v1232
      %v1234 = vshrl.u32 %v824, 16
      %v1236 = vrot.slane %v1234, 4
      %v1237 = vor.u32 %v1236, %v1232
      %v1238 = vrot.slane %v1237, 4
      %v1240 = vshll.u32 %v856, 16
      %v1242 = vrot.slane %v1240, 5
      %v1243 = vsel %vm859, %v1238, %v1242
      %s1244 = scalar_lea.vmem %s1, 64
      %v1245 = vld [vmem:[%s1244] sm:$0xf]
      %v1246 = vld [vmem:[%s1244 + $0x4] sm:$0xf]
      %v1247 = vld [vmem:[%s1244 + $0x8] sm:$0xf]
      %v1248 = vld [vmem:[%s1244 + $0xc] sm:$0xf]
      %v1249 = vld [vmem:[%s1244 + $0x10] sm:$0xf]
      %v1250 = vld [vmem:[%s1244 + $0x14] sm:$0xf]
      %v1251 = vld [vmem:[%s1244 + $0x18] sm:$0xf]
      %v1252 = vld [vmem:[%s1244 + $0x1c] sm:$0xf]
      %v1253 = vld [vmem:[%s1244 + $0x20] sm:$0xf]
      %v1254 = vld [vmem:[%s1244 + $0x24] sm:$0xf]
      %v1255 = vld [vmem:[%s1244 + $0x28] sm:$0xf]
      %v1256 = vld [vmem:[%s1244 + $0x2c] sm:$0xf]
      %v1257 = vld [vmem:[%s1244 + $0x30] sm:$0xf]
      %v1258 = vld [vmem:[%s1244 + $0x34] sm:$0xf]
      %v1259 = vld [vmem:[%s1244 + $0x38] sm:$0xf]
      %v1260 = vld [vmem:[%s1244 + $0x3c] sm:$0xf]
      %v1261 = vunpack.c.l.b16 %v873
      %v1262 = vunpack.c.l.b16 %v883
      %v1263 = vunpack.c.l.b16 %v897
      %v1264 = vunpack.c.l.b16 %v907
      %v1265 = vunpack.c.l.b16 %v921
      %v1266 = vunpack.c.l.b16 %v931
      %v1267 = vunpack.c.l.b16 %v945
      %v1268 = vunpack.c.l.b16 %v955
      %v1269 = vunpack.c.l.b16 %v969
      %v1270 = vunpack.c.l.b16 %v979
      %v1271 = vunpack.c.l.b16 %v993
      %v1272 = vunpack.c.l.b16 %v1003
      %v1273 = vunpack.c.l.b16 %v1017
      %v1274 = vunpack.c.l.b16 %v1027
      %v1275 = vunpack.c.l.b16 %v1041
      %v1276 = vunpack.c.l.b16 %v1051
      %v1277 = vunpack.c.l.b16 %v1065
      %v1278 = vunpack.c.l.b16 %v1075
      %v1279 = vunpack.c.l.b16 %v1089
      %v1280 = vunpack.c.l.b16 %v1099
      %v1281 = vunpack.c.l.b16 %v1113
      %v1282 = vunpack.c.l.b16 %v1123
      %v1283 = vunpack.c.l.b16 %v1137
      %v1284 = vunpack.c.l.b16 %v1147
      %v1285 = vunpack.c.l.b16 %v1161
      %v1286 = vunpack.c.l.b16 %v1171
      %v1287 = vunpack.c.l.b16 %v1185
      %v1288 = vunpack.c.l.b16 %v1195
      %v1289 = vunpack.c.l.b16 %v1209
      %v1290 = vunpack.c.l.b16 %v1219
      %v1291 = vunpack.c.l.b16 %v1233
      %v1292 = vunpack.c.l.b16 %v1243
      %v1293 = vpack.c.b16 %v1262, %v1261
      %v1294 = vpack.c.b16 %v1264, %v1263
      %v1295 = vpack.c.b16 %v1266, %v1265
      %v1296 = vpack.c.b16 %v1268, %v1267
      %v1297 = vpack.c.b16 %v1270, %v1269
      %v1298 = vpack.c.b16 %v1272, %v1271
      %v1299 = vpack.c.b16 %v1274, %v1273
      %v1300 = vpack.c.b16 %v1276, %v1275
      %v1301 = vpack.c.b16 %v1278, %v1277
      %v1302 = vpack.c.b16 %v1280, %v1279
      %v1303 = vpack.c.b16 %v1282, %v1281
      %v1304 = vpack.c.b16 %v1284, %v1283
      %v1305 = vpack.c.b16 %v1286, %v1285
      %v1306 = vpack.c.b16 %v1288, %v1287
      %v1307 = vpack.c.b16 %v1290, %v1289
      %v1308 = vpack.c.b16 %v1292, %v1291
      %v1341 = vunpack.c.l.b16 %v1245
      %v1342 = vunpack.c.l.b16 %v1246
      %v1343 = vunpack.c.l.b16 %v1247
      %v1344 = vunpack.c.l.b16 %v1248
      %v1345 = vunpack.c.l.b16 %v1249
      %v1346 = vunpack.c.l.b16 %v1250
      %v1347 = vunpack.c.l.b16 %v1251
      %v1348 = vunpack.c.l.b16 %v1252
      %v1349 = vunpack.c.l.b16 %v1253
      %v1350 = vunpack.c.l.b16 %v1254
      %v1351 = vunpack.c.l.b16 %v1255
      %v1352 = vunpack.c.l.b16 %v1256
      %v1353 = vunpack.c.l.b16 %v1257
      %v1354 = vunpack.c.l.b16 %v1258
      %v1355 = vunpack.c.l.b16 %v1259
      %v1356 = vunpack.c.l.b16 %v1260
      %v1357 = vpack.c.b16 %v1342, %v1341
      %v1358 = vpack.c.b16 %v1344, %v1343
      %v1359 = vpack.c.b16 %v1346, %v1345
      %v1360 = vpack.c.b16 %v1348, %v1347
      %v1361 = vpack.c.b16 %v1350, %v1349
      %v1362 = vpack.c.b16 %v1352, %v1351
      %v1363 = vpack.c.b16 %v1354, %v1353
      %v1364 = vpack.c.b16 %v1356, %v1355
      %1373 = vmatpush.bf16.msra.mxu0 %v1364
      %1374 = vmatpush.bf16.msra.mxu0 %v1363
      %1375 = vmatpush.bf16.msra.mxu0 %v1362
      %1376 = vmatpush.bf16.msra.mxu0 %v1361
      %1377 = vmatpush.bf16.msra.mxu0 %v1360
      %1378 = vmatpush.bf16.msra.mxu0 %v1359
      %1379 = vmatpush.bf16.msra.mxu0 %v1358
      %1380 = vmatpush.bf16.msra.mxu0 %v1357
      %1381 = vmatmul.bf16.gmra.mxu0 %v1293
      %v1382 = vpop.f32.mrf.mxu0
      %v1383 = vadd.f32 0.0, %v1382
      %v1384 = vpop.f32.mrf.mxu0
      %v1385 = vadd.f32 0.0, %v1384
      %1386 = vmatmul.bf16.gmra.mxu0 %v1294
      %v1387 = vpop.f32.mrf.mxu0
      %v1388 = vadd.f32 0.0, %v1387
      %v1389 = vpop.f32.mrf.mxu0
      %v1390 = vadd.f32 0.0, %v1389
      %1391 = vmatmul.bf16.gmra.mxu0 %v1295
      %v1392 = vpop.f32.mrf.mxu0
      %v1393 = vadd.f32 0.0, %v1392
      %v1394 = vpop.f32.mrf.mxu0
      %v1395 = vadd.f32 0.0, %v1394
      %1396 = vmatmul.bf16.gmra.mxu0 %v1296
      %v1397 = vpop.f32.mrf.mxu0
      %v1398 = vadd.f32 0.0, %v1397
      %v1399 = vpop.f32.mrf.mxu0
      %v1400 = vadd.f32 0.0, %v1399
      %1401 = vmatmul.bf16.gmra.mxu0 %v1297
      %v1402 = vpop.f32.mrf.mxu0
      %v1403 = vadd.f32 0.0, %v1402
      %v1404 = vpop.f32.mrf.mxu0
      %v1405 = vadd.f32 0.0, %v1404
      %1406 = vmatmul.bf16.gmra.mxu0 %v1298
      %v1407 = vpop.f32.mrf.mxu0
      %v1408 = vadd.f32 0.0, %v1407
      %v1409 = vpop.f32.mrf.mxu0
      %v1410 = vadd.f32 0.0, %v1409
      %1411 = vmatmul.bf16.gmra.mxu0 %v1299
      %v1412 = vpop.f32.mrf.mxu0
      %v1413 = vadd.f32 0.0, %v1412
      %v1414 = vpop.f32.mrf.mxu0
      %v1415 = vadd.f32 0.0, %v1414
      %1416 = vmatmul.bf16.gmra.mxu0 %v1300
      %v1417 = vpop.f32.mrf.mxu0
      %v1418 = vadd.f32 0.0, %v1417
      %v1419 = vpop.f32.mrf.mxu0
      %v1420 = vadd.f32 0.0, %v1419
      %1421 = vmatmul.bf16.gmra.mxu0 %v1301
      %v1422 = vpop.f32.mrf.mxu0
      %v1423 = vadd.f32 0.0, %v1422
      %v1424 = vpop.f32.mrf.mxu0
      %v1425 = vadd.f32 0.0, %v1424
      %1426 = vmatmul.bf16.gmra.mxu0 %v1302
      %v1427 = vpop.f32.mrf.mxu0
      %v1428 = vadd.f32 0.0, %v1427
      %v1429 = vpop.f32.mrf.mxu0
      %v1430 = vadd.f32 0.0, %v1429
      %1431 = vmatmul.bf16.gmra.mxu0 %v1303
      %v1432 = vpop.f32.mrf.mxu0
      %v1433 = vadd.f32 0.0, %v1432
      %v1434 = vpop.f32.mrf.mxu0
      %v1435 = vadd.f32 0.0, %v1434
      %1436 = vmatmul.bf16.gmra.mxu0 %v1304
      %v1437 = vpop.f32.mrf.mxu0
      %v1438 = vadd.f32 0.0, %v1437
      %v1439 = vpop.f32.mrf.mxu0
      %v1440 = vadd.f32 0.0, %v1439
      %1441 = vmatmul.bf16.gmra.mxu0 %v1305
      %v1442 = vpop.f32.mrf.mxu0
      %v1443 = vadd.f32 0.0, %v1442
      %v1444 = vpop.f32.mrf.mxu0
      %v1445 = vadd.f32 0.0, %v1444
      %1446 = vmatmul.bf16.gmra.mxu0 %v1306
      %v1447 = vpop.f32.mrf.mxu0
      %v1448 = vadd.f32 0.0, %v1447
      %v1449 = vpop.f32.mrf.mxu0
      %v1450 = vadd.f32 0.0, %v1449
      %1451 = vmatmul.bf16.gmra.mxu0 %v1307
      %v1452 = vpop.f32.mrf.mxu0
      %v1453 = vadd.f32 0.0, %v1452
      %v1454 = vpop.f32.mrf.mxu0
      %v1455 = vadd.f32 0.0, %v1454
      %1456 = vmatmul.bf16.gmra.mxu0 %v1308
      %v1457 = vpop.f32.mrf.mxu0
      %v1458 = vadd.f32 0.0, %v1457
      %v1459 = vpop.f32.mrf.mxu0
      %v1460 = vadd.f32 0.0, %v1459
      %1461 = vdwg.mxu0
      %v1494 = vunpack.c.l.b16 %v793
      %v1495 = vunpack.c.l.b16 %v794
      %v1496 = vunpack.c.l.b16 %v795
      %v1497 = vunpack.c.l.b16 %v796
      %v1498 = vunpack.c.l.b16 %v797
      %v1499 = vunpack.c.l.b16 %v798
      %v1500 = vunpack.c.l.b16 %v799
      %v1501 = vunpack.c.l.b16 %v800
      %v1502 = vunpack.c.l.b16 %v801
      %v1503 = vunpack.c.l.b16 %v802
      %v1504 = vunpack.c.l.b16 %v803
      %v1505 = vunpack.c.l.b16 %v804
      %v1506 = vunpack.c.l.b16 %v805
      %v1507 = vunpack.c.l.b16 %v806
      %v1508 = vunpack.c.l.b16 %v807
      %v1509 = vunpack.c.l.b16 %v808
      %v1510 = vunpack.c.l.b16 %v809
      %v1511 = vunpack.c.l.b16 %v810
      %v1512 = vunpack.c.l.b16 %v811
      %v1513 = vunpack.c.l.b16 %v812
      %v1514 = vunpack.c.l.b16 %v813
      %v1515 = vunpack.c.l.b16 %v814
      %v1516 = vunpack.c.l.b16 %v815
      %v1517 = vunpack.c.l.b16 %v816
      %v1518 = vunpack.c.l.b16 %v817
      %v1519 = vunpack.c.l.b16 %v818
      %v1520 = vunpack.c.l.b16 %v819
      %v1521 = vunpack.c.l.b16 %v820
      %v1522 = vunpack.c.l.b16 %v821
      %v1523 = vunpack.c.l.b16 %v822
      %v1524 = vunpack.c.l.b16 %v823
      %v1525 = vunpack.c.l.b16 %v824
      %v1526 = vpack.c.b16 %v1495, %v1494
      %v1527 = vpack.c.b16 %v1497, %v1496
      %v1528 = vpack.c.b16 %v1499, %v1498
      %v1529 = vpack.c.b16 %v1501, %v1500
      %v1530 = vpack.c.b16 %v1503, %v1502
      %v1531 = vpack.c.b16 %v1505, %v1504
      %v1532 = vpack.c.b16 %v1507, %v1506
      %v1533 = vpack.c.b16 %v1509, %v1508
      %v1534 = vpack.c.b16 %v1511, %v1510
      %v1535 = vpack.c.b16 %v1513, %v1512
      %v1536 = vpack.c.b16 %v1515, %v1514
      %v1537 = vpack.c.b16 %v1517, %v1516
      %v1538 = vpack.c.b16 %v1519, %v1518
      %v1539 = vpack.c.b16 %v1521, %v1520
      %v1540 = vpack.c.b16 %v1523, %v1522
      %v1541 = vpack.c.b16 %v1525, %v1524
      %v1574 = vunpack.c.l.b16 %v825
      %v1575 = vunpack.c.l.b16 %v826
      %v1576 = vunpack.c.l.b16 %v827
      %v1577 = vunpack.c.l.b16 %v828
      %v1578 = vunpack.c.l.b16 %v829
      %v1579 = vunpack.c.l.b16 %v830
      %v1580 = vunpack.c.l.b16 %v831
      %v1581 = vunpack.c.l.b16 %v832
      %v1582 = vunpack.c.l.b16 %v833
      %v1583 = vunpack.c.l.b16 %v834
      %v1584 = vunpack.c.l.b16 %v835
      %v1585 = vunpack.c.l.b16 %v836
      %v1586 = vunpack.c.l.b16 %v837
      %v1587 = vunpack.c.l.b16 %v838
      %v1588 = vunpack.c.l.b16 %v839
      %v1589 = vunpack.c.l.b16 %v840
      %v1590 = vpack.c.b16 %v1575, %v1574
      %v1591 = vpack.c.b16 %v1577, %v1576
      %v1592 = vpack.c.b16 %v1579, %v1578
      %v1593 = vpack.c.b16 %v1581, %v1580
      %v1594 = vpack.c.b16 %v1583, %v1582
      %v1595 = vpack.c.b16 %v1585, %v1584
      %v1596 = vpack.c.b16 %v1587, %v1586
      %v1597 = vpack.c.b16 %v1589, %v1588
      %1606 = vmatpush.bf16.msra.mxu0 %v1597
      %1607 = vmatpush.bf16.msra.mxu0 %v1596
      %1608 = vmatpush.bf16.msra.mxu0 %v1595
      %1609 = vmatpush.bf16.msra.mxu0 %v1594
      %1610 = vmatpush.bf16.msra.mxu0 %v1593
      %1611 = vmatpush.bf16.msra.mxu0 %v1592
      %1612 = vmatpush.bf16.msra.mxu0 %v1591
      %1613 = vmatpush.bf16.msra.mxu0 %v1590
      %1614 = vmatmul.bf16.gmra.mxu0 %v1526
      %v1615 = vpop.f32.mrf.mxu0
      %v1616 = vadd.f32 %v1383, %v1615
      %v1617 = vpop.f32.mrf.mxu0
      %v1618 = vadd.f32 %v1385, %v1617
      %1619 = vmatmul.bf16.gmra.mxu0 %v1527
      %v1620 = vpop.f32.mrf.mxu0
      %v1621 = vadd.f32 %v1388, %v1620
      %v1622 = vpop.f32.mrf.mxu0
      %v1623 = vadd.f32 %v1390, %v1622
      %1624 = vmatmul.bf16.gmra.mxu0 %v1528
      %v1625 = vpop.f32.mrf.mxu0
      %v1626 = vadd.f32 %v1393, %v1625
      %v1627 = vpop.f32.mrf.mxu0
      %v1628 = vadd.f32 %v1395, %v1627
      %1629 = vmatmul.bf16.gmra.mxu0 %v1529
      %v1630 = vpop.f32.mrf.mxu0
      %v1631 = vadd.f32 %v1398, %v1630
      %v1632 = vpop.f32.mrf.mxu0
      %v1633 = vadd.f32 %v1400, %v1632
      %1634 = vmatmul.bf16.gmra.mxu0 %v1530
      %v1635 = vpop.f32.mrf.mxu0
      %v1636 = vadd.f32 %v1403, %v1635
      %v1637 = vpop.f32.mrf.mxu0
      %v1638 = vadd.f32 %v1405, %v1637
      %1639 = vmatmul.bf16.gmra.mxu0 %v1531
      %v1640 = vpop.f32.mrf.mxu0
      %v1641 = vadd.f32 %v1408, %v1640
      %v1642 = vpop.f32.mrf.mxu0
      %v1643 = vadd.f32 %v1410, %v1642
      %1644 = vmatmul.bf16.gmra.mxu0 %v1532
      %v1645 = vpop.f32.mrf.mxu0
      %v1646 = vadd.f32 %v1413, %v1645
      %v1647 = vpop.f32.mrf.mxu0
      %v1648 = vadd.f32 %v1415, %v1647
      %1649 = vmatmul.bf16.gmra.mxu0 %v1533
      %v1650 = vpop.f32.mrf.mxu0
      %v1651 = vadd.f32 %v1418, %v1650
      %v1652 = vpop.f32.mrf.mxu0
      %v1653 = vadd.f32 %v1420, %v1652
      %1654 = vmatmul.bf16.gmra.mxu0 %v1534
      %v1655 = vpop.f32.mrf.mxu0
      %v1656 = vadd.f32 %v1423, %v1655
      %v1657 = vpop.f32.mrf.mxu0
      %v1658 = vadd.f32 %v1425, %v1657
      %1659 = vmatmul.bf16.gmra.mxu0 %v1535
      %v1660 = vpop.f32.mrf.mxu0
      %v1661 = vadd.f32 %v1428, %v1660
      %v1662 = vpop.f32.mrf.mxu0
      %v1663 = vadd.f32 %v1430, %v1662
      %1664 = vmatmul.bf16.gmra.mxu0 %v1536
      %v1665 = vpop.f32.mrf.mxu0
      %v1666 = vadd.f32 %v1433, %v1665
      %v1667 = vpop.f32.mrf.mxu0
      %v1668 = vadd.f32 %v1435, %v1667
      %1669 = vmatmul.bf16.gmra.mxu0 %v1537
      %v1670 = vpop.f32.mrf.mxu0
      %v1671 = vadd.f32 %v1438, %v1670
      %v1672 = vpop.f32.mrf.mxu0
      %v1673 = vadd.f32 %v1440, %v1672
      %1674 = vmatmul.bf16.gmra.mxu0 %v1538
      %v1675 = vpop.f32.mrf.mxu0
      %v1676 = vadd.f32 %v1443, %v1675
      %v1677 = vpop.f32.mrf.mxu0
      %v1678 = vadd.f32 %v1445, %v1677
      %1679 = vmatmul.bf16.gmra.mxu0 %v1539
      %v1680 = vpop.f32.mrf.mxu0
      %v1681 = vadd.f32 %v1448, %v1680
      %v1682 = vpop.f32.mrf.mxu0
      %v1683 = vadd.f32 %v1450, %v1682
      %1684 = vmatmul.bf16.gmra.mxu0 %v1540
      %v1685 = vpop.f32.mrf.mxu0
      %v1686 = vadd.f32 %v1453, %v1685
      %v1687 = vpop.f32.mrf.mxu0
      %v1688 = vadd.f32 %v1455, %v1687
      %1689 = vmatmul.bf16.gmra.mxu0 %v1541
      %v1690 = vpop.f32.mrf.mxu0
      %v1691 = vadd.f32 %v1458, %v1690
      %v1692 = vpop.f32.mrf.mxu0
      %v1693 = vadd.f32 %v1460, %v1692
      %1694 = vdwg.mxu0
      %v1695 = vld [vmem:[#allocation2] sm:$0xe]
      %v1696 = vld [vmem:[#allocation2 + $0xc] sm:$0xe]
      %v1697 = vld [vmem:[#allocation2 + $0x18] sm:$0xe]
      %v1698 = vld [vmem:[#allocation2 + $0x24] sm:$0xe]
      %v1699 = vld [vmem:[#allocation2 + $0x30] sm:$0xe]
      %v1700 = vld [vmem:[#allocation2 + $0x3c] sm:$0xe]
      %v1701 = vld [vmem:[#allocation2 + $0x48] sm:$0xe]
      %v1702 = vld [vmem:[#allocation2 + $0x54] sm:$0xe]
      %v1703 = vld [vmem:[#allocation2 + $0x60] sm:$0xe]
      %v1704 = vld [vmem:[#allocation2 + $0x6c] sm:$0xe]
      %v1705 = vld [vmem:[#allocation2 + $0x78] sm:$0xe]
      %v1706 = vld [vmem:[#allocation2 + $0x84] sm:$0xe]
      %v1707 = vld [vmem:[#allocation2 + $0x90] sm:$0xe]
      %v1708 = vld [vmem:[#allocation2 + $0x9c] sm:$0xe]
      %v1709 = vld [vmem:[#allocation2 + $0xa8] sm:$0xe]
      %v1710 = vld [vmem:[#allocation2 + $0xb4] sm:$0xe]
      %vm1743 = vcmask 1042432
      %vm1744 = vcmask 1046532
      %vm1745 = vmor %vm1743, %vm1744
      %v1746 = vrot.slane %v1695, 5
      %v1747 = vrot.slane %v1746, 4
      %v1748 = vrot.slane %v794, 5
      %v1749 = vsel %vm1745, %v1747, %v1748
      %v1750 = vrot.slane %v1748, 4
      %v1751 = vrot.slane %v841, 5
      %v1752 = vsel %vm1745, %v1750, %v1751
      %v1753 = vrot.slane %v1696, 5
      %v1754 = vrot.slane %v1753, 4
      %v1755 = vrot.slane %v796, 5
      %v1756 = vsel %vm1745, %v1754, %v1755
      %v1757 = vrot.slane %v1755, 4
      %v1758 = vrot.slane %v842, 5
      %v1759 = vsel %vm1745, %v1757, %v1758
      %v1760 = vrot.slane %v1697, 5
      %v1761 = vrot.slane %v1760, 4
      %v1762 = vrot.slane %v798, 5
      %v1763 = vsel %vm1745, %v1761, %v1762
      %v1764 = vrot.slane %v1762, 4
      %v1765 = vrot.slane %v843, 5
      %v1766 = vsel %vm1745, %v1764, %v1765
      %v1767 = vrot.slane %v1698, 5
      %v1768 = vrot.slane %v1767, 4
      %v1769 = vrot.slane %v800, 5
      %v1770 = vsel %vm1745, %v1768, %v1769
      %v1771 = vrot.slane %v1769, 4
      %v1772 = vrot.slane %v844, 5
      %v1773 = vsel %vm1745, %v1771, %v1772
      %v1774 = vrot.slane %v1699, 5
      %v1775 = vrot.slane %v1774, 4
      %v1776 = vrot.slane %v802, 5
      %v1777 = vsel %vm1745, %v1775, %v1776
      %v1778 = vrot.slane %v1776, 4
      %v1779 = vrot.slane %v845, 5
      %v1780 = vsel %vm1745, %v1778, %v1779
      %v1781 = vrot.slane %v1700, 5
      %v1782 = vrot.slane %v1781, 4
      %v1783 = vrot.slane %v804, 5
      %v1784 = vsel %vm1745, %v1782, %v1783
      %v1785 = vrot.slane %v1783, 4
      %v1786 = vrot.slane %v846, 5
      %v1787 = vsel %vm1745, %v1785, %v1786
      %v1788 = vrot.slane %v1701, 5
      %v1789 = vrot.slane %v1788, 4
      %v1790 = vrot.slane %v806, 5
      %v1791 = vsel %vm1745, %v1789, %v1790
      %v1792 = vrot.slane %v1790, 4
      %v1793 = vrot.slane %v847, 5
      %v1794 = vsel %vm1745, %v1792, %v1793
      %v1795 = vrot.slane %v1702, 5
      %v1796 = vrot.slane %v1795, 4
      %v1797 = vrot.slane %v808, 5
      %v1798 = vsel %vm1745, %v1796, %v1797
      %v1799 = vrot.slane %v1797, 4
      %v1800 = vrot.slane %v848, 5
      %v1801 = vsel %vm1745, %v1799, %v1800
      %v1802 = vrot.slane %v1703, 5
      %v1803 = vrot.slane %v1802, 4
      %v1804 = vrot.slane %v810, 5
      %v1805 = vsel %vm1745, %v1803, %v1804
      %v1806 = vrot.slane %v1804, 4
      %v1807 = vrot.slane %v849, 5
      %v1808 = vsel %vm1745, %v1806, %v1807
      %v1809 = vrot.slane %v1704, 5
      %v1810 = vrot.slane %v1809, 4
      %v1811 = vrot.slane %v812, 5
      %v1812 = vsel %vm1745, %v1810, %v1811
      %v1813 = vrot.slane %v1811, 4
      %v1814 = vrot.slane %v850, 5
      %v1815 = vsel %vm1745, %v1813, %v1814
      %v1816 = vrot.slane %v1705, 5
      %v1817 = vrot.slane %v1816, 4
      %v1818 = vrot.slane %v814, 5
      %v1819 = vsel %vm1745, %v1817, %v1818
      %v1820 = vrot.slane %v1818, 4
      %v1821 = vrot.slane %v851, 5
      %v1822 = vsel %vm1745, %v1820, %v1821
      %v1823 = vrot.slane %v1706, 5
      %v1824 = vrot.slane %v1823, 4
      %v1825 = vrot.slane %v816, 5
      %v1826 = vsel %vm1745, %v1824, %v1825
      %v1827 = vrot.slane %v1825, 4
      %v1828 = vrot.slane %v852, 5
      %v1829 = vsel %vm1745, %v1827, %v1828
      %v1830 = vrot.slane %v1707, 5
      %v1831 = vrot.slane %v1830, 4
      %v1832 = vrot.slane %v818, 5
      %v1833 = vsel %vm1745, %v1831, %v1832
      %v1834 = vrot.slane %v1832, 4
      %v1835 = vrot.slane %v853, 5
      %v1836 = vsel %vm1745, %v1834, %v1835
      %v1837 = vrot.slane %v1708, 5
      %v1838 = vrot.slane %v1837, 4
      %v1839 = vrot.slane %v820, 5
      %v1840 = vsel %vm1745, %v1838, %v1839
      %v1841 = vrot.slane %v1839, 4
      %v1842 = vrot.slane %v854, 5
      %v1843 = vsel %vm1745, %v1841, %v1842
      %v1844 = vrot.slane %v1709, 5
      %v1845 = vrot.slane %v1844, 4
      %v1846 = vrot.slane %v822, 5
      %v1847 = vsel %vm1745, %v1845, %v1846
      %v1848 = vrot.slane %v1846, 4
      %v1849 = vrot.slane %v855, 5
      %v1850 = vsel %vm1745, %v1848, %v1849
      %v1851 = vrot.slane %v1710, 5
      %v1852 = vrot.slane %v1851, 4
      %v1853 = vrot.slane %v824, 5
      %v1854 = vsel %vm1745, %v1852, %v1853
      %v1855 = vrot.slane %v1853, 4
      %v1856 = vrot.slane %v856, 5
      %v1857 = vsel %vm1745, %v1855, %v1856
      %s1858 = scalar_lea.vmem %s1, 128
      %v1859 = vld [vmem:[%s1858] sm:$0xf]
      %v1860 = vld [vmem:[%s1858 + $0x4] sm:$0xf]
      %v1861 = vld [vmem:[%s1858 + $0x8] sm:$0xf]
      %v1862 = vld [vmem:[%s1858 + $0xc] sm:$0xf]
      %v1863 = vld [vmem:[%s1858 + $0x10] sm:$0xf]
      %v1864 = vld [vmem:[%s1858 + $0x14] sm:$0xf]
      %v1865 = vld [vmem:[%s1858 + $0x18] sm:$0xf]
      %v1866 = vld [vmem:[%s1858 + $0x1c] sm:$0xf]
      %v1867 = vld [vmem:[%s1858 + $0x20] sm:$0xf]
      %v1868 = vld [vmem:[%s1858 + $0x24] sm:$0xf]
      %v1869 = vld [vmem:[%s1858 + $0x28] sm:$0xf]
      %v1870 = vld [vmem:[%s1858 + $0x2c] sm:$0xf]
      %v1871 = vld [vmem:[%s1858 + $0x30] sm:$0xf]
      %v1872 = vld [vmem:[%s1858 + $0x34] sm:$0xf]
      %v1873 = vld [vmem:[%s1858 + $0x38] sm:$0xf]
      %v1874 = vld [vmem:[%s1858 + $0x3c] sm:$0xf]
      %v1875 = vunpack.c.l.b16 %v1749
      %v1876 = vunpack.c.l.b16 %v1752
      %v1877 = vunpack.c.l.b16 %v1756
      %v1878 = vunpack.c.l.b16 %v1759
      %v1879 = vunpack.c.l.b16 %v1763
      %v1880 = vunpack.c.l.b16 %v1766
      %v1881 = vunpack.c.l.b16 %v1770
      %v1882 = vunpack.c.l.b16 %v1773
      %v1883 = vunpack.c.l.b16 %v1777
      %v1884 = vunpack.c.l.b16 %v1780
      %v1885 = vunpack.c.l.b16 %v1784
      %v1886 = vunpack.c.l.b16 %v1787
      %v1887 = vunpack.c.l.b16 %v1791
      %v1888 = vunpack.c.l.b16 %v1794
      %v1889 = vunpack.c.l.b16 %v1798
      %v1890 = vunpack.c.l.b16 %v1801
      %v1891 = vunpack.c.l.b16 %v1805
      %v1892 = vunpack.c.l.b16 %v1808
      %v1893 = vunpack.c.l.b16 %v1812
      %v1894 = vunpack.c.l.b16 %v1815
      %v1895 = vunpack.c.l.b16 %v1819
      %v1896 = vunpack.c.l.b16 %v1822
      %v1897 = vunpack.c.l.b16 %v1826
      %v1898 = vunpack.c.l.b16 %v1829
      %v1899 = vunpack.c.l.b16 %v1833
      %v1900 = vunpack.c.l.b16 %v1836
      %v1901 = vunpack.c.l.b16 %v1840
      %v1902 = vunpack.c.l.b16 %v1843
      %v1903 = vunpack.c.l.b16 %v1847
      %v1904 = vunpack.c.l.b16 %v1850
      %v1905 = vunpack.c.l.b16 %v1854
      %v1906 = vunpack.c.l.b16 %v1857
      %v1907 = vpack.c.b16 %v1876, %v1875
      %v1908 = vpack.c.b16 %v1878, %v1877
      %v1909 = vpack.c.b16 %v1880, %v1879
      %v1910 = vpack.c.b16 %v1882, %v1881
      %v1911 = vpack.c.b16 %v1884, %v1883
      %v1912 = vpack.c.b16 %v1886, %v1885
      %v1913 = vpack.c.b16 %v1888, %v1887
      %v1914 = vpack.c.b16 %v1890, %v1889
      %v1915 = vpack.c.b16 %v1892, %v1891
      %v1916 = vpack.c.b16 %v1894, %v1893
      %v1917 = vpack.c.b16 %v1896, %v1895
      %v1918 = vpack.c.b16 %v1898, %v1897
      %v1919 = vpack.c.b16 %v1900, %v1899
      %v1920 = vpack.c.b16 %v1902, %v1901
      %v1921 = vpack.c.b16 %v1904, %v1903
      %v1922 = vpack.c.b16 %v1906, %v1905
      %v1955 = vunpack.c.l.b16 %v1859
      %v1956 = vunpack.c.l.b16 %v1860
      %v1957 = vunpack.c.l.b16 %v1861
      %v1958 = vunpack.c.l.b16 %v1862
      %v1959 = vunpack.c.l.b16 %v1863
      %v1960 = vunpack.c.l.b16 %v1864
      %v1961 = vunpack.c.l.b16 %v1865
      %v1962 = vunpack.c.l.b16 %v1866
      %v1963 = vunpack.c.l.b16 %v1867
      %v1964 = vunpack.c.l.b16 %v1868
      %v1965 = vunpack.c.l.b16 %v1869
      %v1966 = vunpack.c.l.b16 %v1870
      %v1967 = vunpack.c.l.b16 %v1871
      %v1968 = vunpack.c.l.b16 %v1872
      %v1969 = vunpack.c.l.b16 %v1873
      %v1970 = vunpack.c.l.b16 %v1874
      %v1971 = vpack.c.b16 %v1956, %v1955
      %v1972 = vpack.c.b16 %v1958, %v1957
      %v1973 = vpack.c.b16 %v1960, %v1959
      %v1974 = vpack.c.b16 %v1962, %v1961
      %v1975 = vpack.c.b16 %v1964, %v1963
      %v1976 = vpack.c.b16 %v1966, %v1965
      %v1977 = vpack.c.b16 %v1968, %v1967
      %v1978 = vpack.c.b16 %v1970, %v1969
      %1987 = vmatpush.bf16.msra.mxu0 %v1978
      %1988 = vmatpush.bf16.msra.mxu0 %v1977
      %1989 = vmatpush.bf16.msra.mxu0 %v1976
      %1990 = vmatpush.bf16.msra.mxu0 %v1975
      %1991 = vmatpush.bf16.msra.mxu0 %v1974
      %1992 = vmatpush.bf16.msra.mxu0 %v1973
      %1993 = vmatpush.bf16.msra.mxu0 %v1972
      %1994 = vmatpush.bf16.msra.mxu0 %v1971
      %1995 = vmatmul.bf16.gmra.mxu0 %v1907
      %v1996 = vpop.f32.mrf.mxu0
      %v1997 = vadd.f32 0.0, %v1996
      %v1998 = vpop.f32.mrf.mxu0
      %v1999 = vadd.f32 0.0, %v1998
      %2000 = vmatmul.bf16.gmra.mxu0 %v1908
      %v2001 = vpop.f32.mrf.mxu0
      %v2002 = vadd.f32 0.0, %v2001
      %v2003 = vpop.f32.mrf.mxu0
      %v2004 = vadd.f32 0.0, %v2003
      %2005 = vmatmul.bf16.gmra.mxu0 %v1909
      %v2006 = vpop.f32.mrf.mxu0
      %v2007 = vadd.f32 0.0, %v2006
      %v2008 = vpop.f32.mrf.mxu0
      %v2009 = vadd.f32 0.0, %v2008
      %2010 = vmatmul.bf16.gmra.mxu0 %v1910
      %v2011 = vpop.f32.mrf.mxu0
      %v2012 = vadd.f32 0.0, %v2011
      %v2013 = vpop.f32.mrf.mxu0
      %v2014 = vadd.f32 0.0, %v2013
      %2015 = vmatmul.bf16.gmra.mxu0 %v1911
      %v2016 = vpop.f32.mrf.mxu0
      %v2017 = vadd.f32 0.0, %v2016
      %v2018 = vpop.f32.mrf.mxu0
      %v2019 = vadd.f32 0.0, %v2018
      %2020 = vmatmul.bf16.gmra.mxu0 %v1912
      %v2021 = vpop.f32.mrf.mxu0
      %v2022 = vadd.f32 0.0, %v2021
      %v2023 = vpop.f32.mrf.mxu0
      %v2024 = vadd.f32 0.0, %v2023
      %2025 = vmatmul.bf16.gmra.mxu0 %v1913
      %v2026 = vpop.f32.mrf.mxu0
      %v2027 = vadd.f32 0.0, %v2026
      %v2028 = vpop.f32.mrf.mxu0
      %v2029 = vadd.f32 0.0, %v2028
      %2030 = vmatmul.bf16.gmra.mxu0 %v1914
      %v2031 = vpop.f32.mrf.mxu0
      %v2032 = vadd.f32 0.0, %v2031
      %v2033 = vpop.f32.mrf.mxu0
      %v2034 = vadd.f32 0.0, %v2033
      %2035 = vmatmul.bf16.gmra.mxu0 %v1915
      %v2036 = vpop.f32.mrf.mxu0
      %v2037 = vadd.f32 0.0, %v2036
      %v2038 = vpop.f32.mrf.mxu0
      %v2039 = vadd.f32 0.0, %v2038
      %2040 = vmatmul.bf16.gmra.mxu0 %v1916
      %v2041 = vpop.f32.mrf.mxu0
      %v2042 = vadd.f32 0.0, %v2041
      %v2043 = vpop.f32.mrf.mxu0
      %v2044 = vadd.f32 0.0, %v2043
      %2045 = vmatmul.bf16.gmra.mxu0 %v1917
      %v2046 = vpop.f32.mrf.mxu0
      %v2047 = vadd.f32 0.0, %v2046
      %v2048 = vpop.f32.mrf.mxu0
      %v2049 = vadd.f32 0.0, %v2048
      %2050 = vmatmul.bf16.gmra.mxu0 %v1918
      %v2051 = vpop.f32.mrf.mxu0
      %v2052 = vadd.f32 0.0, %v2051
      %v2053 = vpop.f32.mrf.mxu0
      %v2054 = vadd.f32 0.0, %v2053
      %2055 = vmatmul.bf16.gmra.mxu0 %v1919
      %v2056 = vpop.f32.mrf.mxu0
      %v2057 = vadd.f32 0.0, %v2056
      %v2058 = vpop.f32.mrf.mxu0
      %v2059 = vadd.f32 0.0, %v2058
      %2060 = vmatmul.bf16.gmra.mxu0 %v1920
      %v2061 = vpop.f32.mrf.mxu0
      %v2062 = vadd.f32 0.0, %v2061
      %v2063 = vpop.f32.mrf.mxu0
      %v2064 = vadd.f32 0.0, %v2063
      %2065 = vmatmul.bf16.gmra.mxu0 %v1921
      %v2066 = vpop.f32.mrf.mxu0
      %v2067 = vadd.f32 0.0, %v2066
      %v2068 = vpop.f32.mrf.mxu0
      %v2069 = vadd.f32 0.0, %v2068
      %2070 = vmatmul.bf16.gmra.mxu0 %v1922
      %v2071 = vpop.f32.mrf.mxu0
      %v2072 = vadd.f32 0.0, %v2071
      %v2073 = vpop.f32.mrf.mxu0
      %v2074 = vadd.f32 0.0, %v2073
      %2075 = vdwg.mxu0
      %v2076 = vadd.f32 %v1616, %v1997
      %v2077 = vadd.f32 %v1618, %v1999
      %v2078 = vadd.f32 %v1621, %v2002
      %v2079 = vadd.f32 %v1623, %v2004
      %v2080 = vadd.f32 %v1626, %v2007
      %v2081 = vadd.f32 %v1628, %v2009
      %v2082 = vadd.f32 %v1631, %v2012
      %v2083 = vadd.f32 %v1633, %v2014
      %v2084 = vadd.f32 %v1636, %v2017
      %v2085 = vadd.f32 %v1638, %v2019
      %v2086 = vadd.f32 %v1641, %v2022
      %v2087 = vadd.f32 %v1643, %v2024
      %v2088 = vadd.f32 %v1646, %v2027
      %v2089 = vadd.f32 %v1648, %v2029
      %v2090 = vadd.f32 %v1651, %v2032
      %v2091 = vadd.f32 %v1653, %v2034
      %v2092 = vadd.f32 %v1656, %v2037
      %v2093 = vadd.f32 %v1658, %v2039
      %v2094 = vadd.f32 %v1661, %v2042
      %v2095 = vadd.f32 %v1663, %v2044
      %v2096 = vadd.f32 %v1666, %v2047
      %v2097 = vadd.f32 %v1668, %v2049
      %v2098 = vadd.f32 %v1671, %v2052
      %v2099 = vadd.f32 %v1673, %v2054
      %v2100 = vadd.f32 %v1676, %v2057
      %v2101 = vadd.f32 %v1678, %v2059
      %v2102 = vadd.f32 %v1681, %v2062
      %v2103 = vadd.f32 %v1683, %v2064
      %v2104 = vadd.f32 %v1686, %v2067
      %v2105 = vadd.f32 %v1688, %v2069
      %v2106 = vadd.f32 %v1691, %v2072
      %v2107 = vadd.f32 %v1693, %v2074
      %v2108 = vld [vmem:[%s223] sm:$0xf]
      %v2109 = vld [vmem:[%s223 + $0x4] sm:$0xf]
      %v2110 = vld [vmem:[%s223 + $0xc] sm:$0xf]
      %v2111 = vld [vmem:[%s223 + $0x10] sm:$0xf]
      %v2112 = vld [vmem:[%s223 + $0x18] sm:$0xf]
      %v2113 = vld [vmem:[%s223 + $0x1c] sm:$0xf]
      %v2114 = vld [vmem:[%s223 + $0x24] sm:$0xf]
      %v2115 = vld [vmem:[%s223 + $0x28] sm:$0xf]
      %v2116 = vld [vmem:[%s223 + $0x30] sm:$0xf]
      %v2117 = vld [vmem:[%s223 + $0x34] sm:$0xf]
      %v2118 = vld [vmem:[%s223 + $0x3c] sm:$0xf]
      %v2119 = vld [vmem:[%s223 + $0x40] sm:$0xf]
      %v2120 = vld [vmem:[%s223 + $0x48] sm:$0xf]
      %v2121 = vld [vmem:[%s223 + $0x4c] sm:$0xf]
      %v2122 = vld [vmem:[%s223 + $0x54] sm:$0xf]
      %v2123 = vld [vmem:[%s223 + $0x58] sm:$0xf]
      %v2124 = vld [vmem:[%s223 + $0x60] sm:$0xf]
      %v2125 = vld [vmem:[%s223 + $0x64] sm:$0xf]
      %v2126 = vld [vmem:[%s223 + $0x6c] sm:$0xf]
      %v2127 = vld [vmem:[%s223 + $0x70] sm:$0xf]
      %v2128 = vld [vmem:[%s223 + $0x78] sm:$0xf]
      %v2129 = vld [vmem:[%s223 + $0x7c] sm:$0xf]
      %v2130 = vld [vmem:[%s223 + $0x84] sm:$0xf]
      %v2131 = vld [vmem:[%s223 + $0x88] sm:$0xf]
      %v2132 = vld [vmem:[%s223 + $0x90] sm:$0xf]
      %v2133 = vld [vmem:[%s223 + $0x94] sm:$0xf]
      %v2134 = vld [vmem:[%s223 + $0x9c] sm:$0xf]
      %v2135 = vld [vmem:[%s223 + $0xa0] sm:$0xf]
      %v2136 = vld [vmem:[%s223 + $0xa8] sm:$0xf]
      %v2137 = vld [vmem:[%s223 + $0xac] sm:$0xf]
      %v2138 = vld [vmem:[%s223 + $0xb4] sm:$0xf]
      %v2139 = vld [vmem:[%s223 + $0xb8] sm:$0xf]
      %s2140 = scalar_lea.vmem %s1, 192
      %v2141 = vld [vmem:[%s2140] sm:$0xf]
      %v2142 = vld [vmem:[%s2140 + $0x4] sm:$0xf]
      %v2143 = vld [vmem:[%s2140 + $0x8] sm:$0xf]
      %v2144 = vld [vmem:[%s2140 + $0xc] sm:$0xf]
      %v2145 = vld [vmem:[%s2140 + $0x10] sm:$0xf]
      %v2146 = vld [vmem:[%s2140 + $0x14] sm:$0xf]
      %v2147 = vld [vmem:[%s2140 + $0x18] sm:$0xf]
      %v2148 = vld [vmem:[%s2140 + $0x1c] sm:$0xf]
      %v2149 = vld [vmem:[%s2140 + $0x20] sm:$0xf]
      %v2150 = vld [vmem:[%s2140 + $0x24] sm:$0xf]
      %v2151 = vld [vmem:[%s2140 + $0x28] sm:$0xf]
      %v2152 = vld [vmem:[%s2140 + $0x2c] sm:$0xf]
      %v2153 = vld [vmem:[%s2140 + $0x30] sm:$0xf]
      %v2154 = vld [vmem:[%s2140 + $0x34] sm:$0xf]
      %v2155 = vld [vmem:[%s2140 + $0x38] sm:$0xf]
      %v2156 = vld [vmem:[%s2140 + $0x3c] sm:$0xf]
      %v2189 = vunpack.c.l.b16 %v2108
      %v2190 = vunpack.c.l.b16 %v2109
      %v2191 = vunpack.c.l.b16 %v2110
      %v2192 = vunpack.c.l.b16 %v2111
      %v2193 = vunpack.c.l.b16 %v2112
      %v2194 = vunpack.c.l.b16 %v2113
      %v2195 = vunpack.c.l.b16 %v2114
      %v2196 = vunpack.c.l.b16 %v2115
      %v2197 = vunpack.c.l.b16 %v2116
      %v2198 = vunpack.c.l.b16 %v2117
      %v2199 = vunpack.c.l.b16 %v2118
      %v2200 = vunpack.c.l.b16 %v2119
      %v2201 = vunpack.c.l.b16 %v2120
      %v2202 = vunpack.c.l.b16 %v2121
      %v2203 = vunpack.c.l.b16 %v2122
      %v2204 = vunpack.c.l.b16 %v2123
      %v2205 = vunpack.c.l.b16 %v2124
      %v2206 = vunpack.c.l.b16 %v2125
      %v2207 = vunpack.c.l.b16 %v2126
      %v2208 = vunpack.c.l.b16 %v2127
      %v2209 = vunpack.c.l.b16 %v2128
      %v2210 = vunpack.c.l.b16 %v2129
      %v2211 = vunpack.c.l.b16 %v2130
      %v2212 = vunpack.c.l.b16 %v2131
      %v2213 = vunpack.c.l.b16 %v2132
      %v2214 = vunpack.c.l.b16 %v2133
      %v2215 = vunpack.c.l.b16 %v2134
      %v2216 = vunpack.c.l.b16 %v2135
      %v2217 = vunpack.c.l.b16 %v2136
      %v2218 = vunpack.c.l.b16 %v2137
      %v2219 = vunpack.c.l.b16 %v2138
      %v2220 = vunpack.c.l.b16 %v2139
      %v2221 = vpack.c.b16 %v2190, %v2189
      %v2222 = vpack.c.b16 %v2192, %v2191
      %v2223 = vpack.c.b16 %v2194, %v2193
      %v2224 = vpack.c.b16 %v2196, %v2195
      %v2225 = vpack.c.b16 %v2198, %v2197
      %v2226 = vpack.c.b16 %v2200, %v2199
      %v2227 = vpack.c.b16 %v2202, %v2201
      %v2228 = vpack.c.b16 %v2204, %v2203
      %v2229 = vpack.c.b16 %v2206, %v2205
      %v2230 = vpack.c.b16 %v2208, %v2207
      %v2231 = vpack.c.b16 %v2210, %v2209
      %v2232 = vpack.c.b16 %v2212, %v2211
      %v2233 = vpack.c.b16 %v2214, %v2213
      %v2234 = vpack.c.b16 %v2216, %v2215
      %v2235 = vpack.c.b16 %v2218, %v2217
      %v2236 = vpack.c.b16 %v2220, %v2219
      %v2269 = vunpack.c.l.b16 %v2141
      %v2270 = vunpack.c.l.b16 %v2142
      %v2271 = vunpack.c.l.b16 %v2143
      %v2272 = vunpack.c.l.b16 %v2144
      %v2273 = vunpack.c.l.b16 %v2145
      %v2274 = vunpack.c.l.b16 %v2146
      %v2275 = vunpack.c.l.b16 %v2147
      %v2276 = vunpack.c.l.b16 %v2148
      %v2277 = vunpack.c.l.b16 %v2149
      %v2278 = vunpack.c.l.b16 %v2150
      %v2279 = vunpack.c.l.b16 %v2151
      %v2280 = vunpack.c.l.b16 %v2152
      %v2281 = vunpack.c.l.b16 %v2153
      %v2282 = vunpack.c.l.b16 %v2154
      %v2283 = vunpack.c.l.b16 %v2155
      %v2284 = vunpack.c.l.b16 %v2156
      %v2285 = vpack.c.b16 %v2270, %v2269
      %v2286 = vpack.c.b16 %v2272, %v2271
      %v2287 = vpack.c.b16 %v2274, %v2273
      %v2288 = vpack.c.b16 %v2276, %v2275
      %v2289 = vpack.c.b16 %v2278, %v2277
      %v2290 = vpack.c.b16 %v2280, %v2279
      %v2291 = vpack.c.b16 %v2282, %v2281
      %v2292 = vpack.c.b16 %v2284, %v2283
      %2301 = vmatpush.bf16.msra.mxu0 %v2292
      %2302 = vmatpush.bf16.msra.mxu0 %v2291
      %2303 = vmatpush.bf16.msra.mxu0 %v2290
      %2304 = vmatpush.bf16.msra.mxu0 %v2289
      %2305 = vmatpush.bf16.msra.mxu0 %v2288
      %2306 = vmatpush.bf16.msra.mxu0 %v2287
      %2307 = vmatpush.bf16.msra.mxu0 %v2286
      %2308 = vmatpush.bf16.msra.mxu0 %v2285
      %2309 = vmatmul.bf16.gmra.mxu0 %v2221
      %v2310 = vpop.f32.mrf.mxu0
      %v2311 = vadd.f32 0.0, %v2310
      %v2312 = vpop.f32.mrf.mxu0
      %v2313 = vadd.f32 0.0, %v2312
      %2314 = vmatmul.bf16.gmra.mxu0 %v2222
      %v2315 = vpop.f32.mrf.mxu0
      %v2316 = vadd.f32 0.0, %v2315
      %v2317 = vpop.f32.mrf.mxu0
      %v2318 = vadd.f32 0.0, %v2317
      %2319 = vmatmul.bf16.gmra.mxu0 %v2223
      %v2320 = vpop.f32.mrf.mxu0
      %v2321 = vadd.f32 0.0, %v2320
      %v2322 = vpop.f32.mrf.mxu0
      %v2323 = vadd.f32 0.0, %v2322
      %2324 = vmatmul.bf16.gmra.mxu0 %v2224
      %v2325 = vpop.f32.mrf.mxu0
      %v2326 = vadd.f32 0.0, %v2325
      %v2327 = vpop.f32.mrf.mxu0
      %v2328 = vadd.f32 0.0, %v2327
      %2329 = vmatmul.bf16.gmra.mxu0 %v2225
      %v2330 = vpop.f32.mrf.mxu0
      %v2331 = vadd.f32 0.0, %v2330
      %v2332 = vpop.f32.mrf.mxu0
      %v2333 = vadd.f32 0.0, %v2332
      %2334 = vmatmul.bf16.gmra.mxu0 %v2226
      %v2335 = vpop.f32.mrf.mxu0
      %v2336 = vadd.f32 0.0, %v2335
      %v2337 = vpop.f32.mrf.mxu0
      %v2338 = vadd.f32 0.0, %v2337
      %2339 = vmatmul.bf16.gmra.mxu0 %v2227
      %v2340 = vpop.f32.mrf.mxu0
      %v2341 = vadd.f32 0.0, %v2340
      %v2342 = vpop.f32.mrf.mxu0
      %v2343 = vadd.f32 0.0, %v2342
      %2344 = vmatmul.bf16.gmra.mxu0 %v2228
      %v2345 = vpop.f32.mrf.mxu0
      %v2346 = vadd.f32 0.0, %v2345
      %v2347 = vpop.f32.mrf.mxu0
      %v2348 = vadd.f32 0.0, %v2347
      %2349 = vmatmul.bf16.gmra.mxu0 %v2229
      %v2350 = vpop.f32.mrf.mxu0
      %v2351 = vadd.f32 0.0, %v2350
      %v2352 = vpop.f32.mrf.mxu0
      %v2353 = vadd.f32 0.0, %v2352
      %2354 = vmatmul.bf16.gmra.mxu0 %v2230
      %v2355 = vpop.f32.mrf.mxu0
      %v2356 = vadd.f32 0.0, %v2355
      %v2357 = vpop.f32.mrf.mxu0
      %v2358 = vadd.f32 0.0, %v2357
      %2359 = vmatmul.bf16.gmra.mxu0 %v2231
      %v2360 = vpop.f32.mrf.mxu0
      %v2361 = vadd.f32 0.0, %v2360
      %v2362 = vpop.f32.mrf.mxu0
      %v2363 = vadd.f32 0.0, %v2362
      %2364 = vmatmul.bf16.gmra.mxu0 %v2232
      %v2365 = vpop.f32.mrf.mxu0
      %v2366 = vadd.f32 0.0, %v2365
      %v2367 = vpop.f32.mrf.mxu0
      %v2368 = vadd.f32 0.0, %v2367
      %2369 = vmatmul.bf16.gmra.mxu0 %v2233
      %v2370 = vpop.f32.mrf.mxu0
      %v2371 = vadd.f32 0.0, %v2370
      %v2372 = vpop.f32.mrf.mxu0
      %v2373 = vadd.f32 0.0, %v2372
      %2374 = vmatmul.bf16.gmra.mxu0 %v2234
      %v2375 = vpop.f32.mrf.mxu0
      %v2376 = vadd.f32 0.0, %v2375
      %v2377 = vpop.f32.mrf.mxu0
      %v2378 = vadd.f32 0.0, %v2377
      %2379 = vmatmul.bf16.gmra.mxu0 %v2235
      %v2380 = vpop.f32.mrf.mxu0
      %v2381 = vadd.f32 0.0, %v2380
      %v2382 = vpop.f32.mrf.mxu0
      %v2383 = vadd.f32 0.0, %v2382
      %2384 = vmatmul.bf16.gmra.mxu0 %v2236
      %v2385 = vpop.f32.mrf.mxu0
      %v2386 = vadd.f32 0.0, %v2385
      %v2387 = vpop.f32.mrf.mxu0
      %v2388 = vadd.f32 0.0, %v2387
      %2389 = vdwg.mxu0
      %v2390 = vadd.f32 %v2076, %v2311
      %v2391 = vadd.f32 %v2077, %v2313
      %v2392 = vadd.f32 %v2078, %v2316
      %v2393 = vadd.f32 %v2079, %v2318
      %v2394 = vadd.f32 %v2080, %v2321
      %v2395 = vadd.f32 %v2081, %v2323
      %v2396 = vadd.f32 %v2082, %v2326
      %v2397 = vadd.f32 %v2083, %v2328
      %v2398 = vadd.f32 %v2084, %v2331
      %v2399 = vadd.f32 %v2085, %v2333
      %v2400 = vadd.f32 %v2086, %v2336
      %v2401 = vadd.f32 %v2087, %v2338
      %v2402 = vadd.f32 %v2088, %v2341
      %v2403 = vadd.f32 %v2089, %v2343
      %v2404 = vadd.f32 %v2090, %v2346
      %v2405 = vadd.f32 %v2091, %v2348
      %v2406 = vadd.f32 %v2092, %v2351
      %v2407 = vadd.f32 %v2093, %v2353
      %v2408 = vadd.f32 %v2094, %v2356
      %v2409 = vadd.f32 %v2095, %v2358
      %v2410 = vadd.f32 %v2096, %v2361
      %v2411 = vadd.f32 %v2097, %v2363
      %v2412 = vadd.f32 %v2098, %v2366
      %v2413 = vadd.f32 %v2099, %v2368
      %v2414 = vadd.f32 %v2100, %v2371
      %v2415 = vadd.f32 %v2101, %v2373
      %v2416 = vadd.f32 %v2102, %v2376
      %v2417 = vadd.f32 %v2103, %v2378
      %v2418 = vadd.f32 %v2104, %v2381
      %v2419 = vadd.f32 %v2105, %v2383
      %v2420 = vadd.f32 %v2106, %v2386
      %v2421 = vadd.f32 %v2107, %v2388
      %v2422 = vld [vmem:[%s223] sm:$0xf]
      %v2423 = vld [vmem:[%s223 + $0x4] sm:$0xf]
      %v2424 = vld [vmem:[%s223 + $0x8] sm:$0x1]
      %v2425 = vld [vmem:[%s223 + $0xc] sm:$0xf]
      %v2426 = vld [vmem:[%s223 + $0x10] sm:$0xf]
      %v2427 = vld [vmem:[%s223 + $0x14] sm:$0x1]
      %v2428 = vld [vmem:[%s223 + $0x18] sm:$0xf]
      %v2429 = vld [vmem:[%s223 + $0x1c] sm:$0xf]
      %v2430 = vld [vmem:[%s223 + $0x20] sm:$0x1]
      %v2431 = vld [vmem:[%s223 + $0x24] sm:$0xf]
      %v2432 = vld [vmem:[%s223 + $0x28] sm:$0xf]
      %v2433 = vld [vmem:[%s223 + $0x2c] sm:$0x1]
      %v2434 = vld [vmem:[%s223 + $0x30] sm:$0xf]
      %v2435 = vld [vmem:[%s223 + $0x34] sm:$0xf]
      %v2436 = vld [vmem:[%s223 + $0x38] sm:$0x1]
      %v2437 = vld [vmem:[%s223 + $0x3c] sm:$0xf]
      %v2438 = vld [vmem:[%s223 + $0x40] sm:$0xf]
      %v2439 = vld [vmem:[%s223 + $0x44] sm:$0x1]
      %v2440 = vld [vmem:[%s223 + $0x48] sm:$0xf]
      %v2441 = vld [vmem:[%s223 + $0x4c] sm:$0xf]
      %v2442 = vld [vmem:[%s223 + $0x50] sm:$0x1]
      %v2443 = vld [vmem:[%s223 + $0x54] sm:$0xf]
      %v2444 = vld [vmem:[%s223 + $0x58] sm:$0xf]
      %v2445 = vld [vmem:[%s223 + $0x5c] sm:$0x1]
      %v2446 = vld [vmem:[%s223 + $0x60] sm:$0xf]
      %v2447 = vld [vmem:[%s223 + $0x64] sm:$0xf]
      %v2448 = vld [vmem:[%s223 + $0x68] sm:$0x1]
      %v2449 = vld [vmem:[%s223 + $0x6c] sm:$0xf]
      %v2450 = vld [vmem:[%s223 + $0x70] sm:$0xf]
      %v2451 = vld [vmem:[%s223 + $0x74] sm:$0x1]
      %v2452 = vld [vmem:[%s223 + $0x78] sm:$0xf]
      %v2453 = vld [vmem:[%s223 + $0x7c] sm:$0xf]
      %v2454 = vld [vmem:[%s223 + $0x80] sm:$0x1]
      %v2455 = vld [vmem:[%s223 + $0x84] sm:$0xf]
      %v2456 = vld [vmem:[%s223 + $0x88] sm:$0xf]
      %v2457 = vld [vmem:[%s223 + $0x8c] sm:$0x1]
      %v2458 = vld [vmem:[%s223 + $0x90] sm:$0xf]
      %v2459 = vld [vmem:[%s223 + $0x94] sm:$0xf]
      %v2460 = vld [vmem:[%s223 + $0x98] sm:$0x1]
      %v2461 = vld [vmem:[%s223 + $0x9c] sm:$0xf]
      %v2462 = vld [vmem:[%s223 + $0xa0] sm:$0xf]
      %v2463 = vld [vmem:[%s223 + $0xa4] sm:$0x1]
      %v2464 = vld [vmem:[%s223 + $0xa8] sm:$0xf]
      %v2465 = vld [vmem:[%s223 + $0xac] sm:$0xf]
      %v2466 = vld [vmem:[%s223 + $0xb0] sm:$0x1]
      %v2467 = vld [vmem:[%s223 + $0xb4] sm:$0xf]
      %v2468 = vld [vmem:[%s223 + $0xb8] sm:$0xf]
      %v2469 = vld [vmem:[%s223 + $0xbc] sm:$0x1]
      %v2471 = vshrl.u32 %v2422, 16
      %v2473 = vrot.slane %v2471, 4
      %v2474 = vshll.u32 %v2422, 16
      %v2476 = vrot.slane %v2474, 5
      %v2477 = vor.u32 %v2473, %v2476
      %v2478 = vrot.slane %v2477, 4
      %v2480 = vshll.u32 %v2423, 16
      %v2482 = vrot.slane %v2480, 5
      %v2483 = vsel %vm859, %v2478, %v2482
      %v2484 = vshrl.u32 %v2423, 16
      %v2486 = vrot.slane %v2484, 4
      %v2487 = vor.u32 %v2486, %v2482
      %v2488 = vrot.slane %v2487, 4
      %v2490 = vshll.u32 %v2424, 16
      %v2492 = vrot.slane %v2490, 5
      %v2493 = vsel %vm859, %v2488, %v2492
      %v2495 = vshrl.u32 %v2425, 16
      %v2497 = vrot.slane %v2495, 4
      %v2498 = vshll.u32 %v2425, 16
      %v2500 = vrot.slane %v2498, 5
      %v2501 = vor.u32 %v2497, %v2500
      %v2502 = vrot.slane %v2501, 4
      %v2504 = vshll.u32 %v2426, 16
      %v2506 = vrot.slane %v2504, 5
      %v2507 = vsel %vm859, %v2502, %v2506
      %v2508 = vshrl.u32 %v2426, 16
      %v2510 = vrot.slane %v2508, 4
      %v2511 = vor.u32 %v2510, %v2506
      %v2512 = vrot.slane %v2511, 4
      %v2514 = vshll.u32 %v2427, 16
      %v2516 = vrot.slane %v2514, 5
      %v2517 = vsel %vm859, %v2512, %v2516
      %v2519 = vshrl.u32 %v2428, 16
      %v2521 = vrot.slane %v2519, 4
      %v2522 = vshll.u32 %v2428, 16
      %v2524 = vrot.slane %v2522, 5
      %v2525 = vor.u32 %v2521, %v2524
      %v2526 = vrot.slane %v2525, 4
      %v2528 = vshll.u32 %v2429, 16
      %v2530 = vrot.slane %v2528, 5
      %v2531 = vsel %vm859, %v2526, %v2530
      %v2532 = vshrl.u32 %v2429, 16
      %v2534 = vrot.slane %v2532, 4
      %v2535 = vor.u32 %v2534, %v2530
      %v2536 = vrot.slane %v2535, 4
      %v2538 = vshll.u32 %v2430, 16
      %v2540 = vrot.slane %v2538, 5
      %v2541 = vsel %vm859, %v2536, %v2540
      %v2543 = vshrl.u32 %v2431, 16
      %v2545 = vrot.slane %v2543, 4
      %v2546 = vshll.u32 %v2431, 16
      %v2548 = vrot.slane %v2546, 5
      %v2549 = vor.u32 %v2545, %v2548
      %v2550 = vrot.slane %v2549, 4
      %v2552 = vshll.u32 %v2432, 16
      %v2554 = vrot.slane %v2552, 5
      %v2555 = vsel %vm859, %v2550, %v2554
      %v2556 = vshrl.u32 %v2432, 16
      %v2558 = vrot.slane %v2556, 4
      %v2559 = vor.u32 %v2558, %v2554
      %v2560 = vrot.slane %v2559, 4
      %v2562 = vshll.u32 %v2433, 16
      %v2564 = vrot.slane %v2562, 5
      %v2565 = vsel %vm859, %v2560, %v2564
      %v2567 = vshrl.u32 %v2434, 16
      %v2569 = vrot.slane %v2567, 4
      %v2570 = vshll.u32 %v2434, 16
      %v2572 = vrot.slane %v2570, 5
      %v2573 = vor.u32 %v2569, %v2572
      %v2574 = vrot.slane %v2573, 4
      %v2576 = vshll.u32 %v2435, 16
      %v2578 = vrot.slane %v2576, 5
      %v2579 = vsel %vm859, %v2574, %v2578
      %v2580 = vshrl.u32 %v2435, 16
      %v2582 = vrot.slane %v2580, 4
      %v2583 = vor.u32 %v2582, %v2578
      %v2584 = vrot.slane %v2583, 4
      %v2586 = vshll.u32 %v2436, 16
      %v2588 = vrot.slane %v2586, 5
      %v2589 = vsel %vm859, %v2584, %v2588
      %v2591 = vshrl.u32 %v2437, 16
      %v2593 = vrot.slane %v2591, 4
      %v2594 = vshll.u32 %v2437, 16
      %v2596 = vrot.slane %v2594, 5
      %v2597 = vor.u32 %v2593, %v2596
      %v2598 = vrot.slane %v2597, 4
      %v2600 = vshll.u32 %v2438, 16
      %v2602 = vrot.slane %v2600, 5
      %v2603 = vsel %vm859, %v2598, %v2602
      %v2604 = vshrl.u32 %v2438, 16
      %v2606 = vrot.slane %v2604, 4
      %v2607 = vor.u32 %v2606, %v2602
      %v2608 = vrot.slane %v2607, 4
      %v2610 = vshll.u32 %v2439, 16
      %v2612 = vrot.slane %v2610, 5
      %v2613 = vsel %vm859, %v2608, %v2612
      %v2615 = vshrl.u32 %v2440, 16
      %v2617 = vrot.slane %v2615, 4
      %v2618 = vshll.u32 %v2440, 16
      %v2620 = vrot.slane %v2618, 5
      %v2621 = vor.u32 %v2617, %v2620
      %v2622 = vrot.slane %v2621, 4
      %v2624 = vshll.u32 %v2441, 16
      %v2626 = vrot.slane %v2624, 5
      %v2627 = vsel %vm859, %v2622, %v2626
      %v2628 = vshrl.u32 %v2441, 16
      %v2630 = vrot.slane %v2628, 4
      %v2631 = vor.u32 %v2630, %v2626
      %v2632 = vrot.slane %v2631, 4
      %v2634 = vshll.u32 %v2442, 16
      %v2636 = vrot.slane %v2634, 5
      %v2637 = vsel %vm859, %v2632, %v2636
      %v2639 = vshrl.u32 %v2443, 16
      %v2641 = vrot.slane %v2639, 4
      %v2642 = vshll.u32 %v2443, 16
      %v2644 = vrot.slane %v2642, 5
      %v2645 = vor.u32 %v2641, %v2644
      %v2646 = vrot.slane %v2645, 4
      %v2648 = vshll.u32 %v2444, 16
      %v2650 = vrot.slane %v2648, 5
      %v2651 = vsel %vm859, %v2646, %v2650
      %v2652 = vshrl.u32 %v2444, 16
      %v2654 = vrot.slane %v2652, 4
      %v2655 = vor.u32 %v2654, %v2650
      %v2656 = vrot.slane %v2655, 4
      %v2658 = vshll.u32 %v2445, 16
      %v2660 = vrot.slane %v2658, 5
      %v2661 = vsel %vm859, %v2656, %v2660
      %v2663 = vshrl.u32 %v2446, 16
      %v2665 = vrot.slane %v2663, 4
      %v2666 = vshll.u32 %v2446, 16
      %v2668 = vrot.slane %v2666, 5
      %v2669 = vor.u32 %v2665, %v2668
      %v2670 = vrot.slane %v2669, 4
      %v2672 = vshll.u32 %v2447, 16
      %v2674 = vrot.slane %v2672, 5
      %v2675 = vsel %vm859, %v2670, %v2674
      %v2676 = vshrl.u32 %v2447, 16
      %v2678 = vrot.slane %v2676, 4
      %v2679 = vor.u32 %v2678, %v2674
      %v2680 = vrot.slane %v2679, 4
      %v2682 = vshll.u32 %v2448, 16
      %v2684 = vrot.slane %v2682, 5
      %v2685 = vsel %vm859, %v2680, %v2684
      %v2687 = vshrl.u32 %v2449, 16
      %v2689 = vrot.slane %v2687, 4
      %v2690 = vshll.u32 %v2449, 16
      %v2692 = vrot.slane %v2690, 5
      %v2693 = vor.u32 %v2689, %v2692
      %v2694 = vrot.slane %v2693, 4
      %v2696 = vshll.u32 %v2450, 16
      %v2698 = vrot.slane %v2696, 5
      %v2699 = vsel %vm859, %v2694, %v2698
      %v2700 = vshrl.u32 %v2450, 16
      %v2702 = vrot.slane %v2700, 4
      %v2703 = vor.u32 %v2702, %v2698
      %v2704 = vrot.slane %v2703, 4
      %v2706 = vshll.u32 %v2451, 16
      %v2708 = vrot.slane %v2706, 5
      %v2709 = vsel %vm859, %v2704, %v2708
      %v2711 = vshrl.u32 %v2452, 16
      %v2713 = vrot.slane %v2711, 4
      %v2714 = vshll.u32 %v2452, 16
      %v2716 = vrot.slane %v2714, 5
      %v2717 = vor.u32 %v2713, %v2716
      %v2718 = vrot.slane %v2717, 4
      %v2720 = vshll.u32 %v2453, 16
      %v2722 = vrot.slane %v2720, 5
      %v2723 = vsel %vm859, %v2718, %v2722
      %v2724 = vshrl.u32 %v2453, 16
      %v2726 = vrot.slane %v2724, 4
      %v2727 = vor.u32 %v2726, %v2722
      %v2728 = vrot.slane %v2727, 4
      %v2730 = vshll.u32 %v2454, 16
      %v2732 = vrot.slane %v2730, 5
      %v2733 = vsel %vm859, %v2728, %v2732
      %v2735 = vshrl.u32 %v2455, 16
      %v2737 = vrot.slane %v2735, 4
      %v2738 = vshll.u32 %v2455, 16
      %v2740 = vrot.slane %v2738, 5
      %v2741 = vor.u32 %v2737, %v2740
      %v2742 = vrot.slane %v2741, 4
      %v2744 = vshll.u32 %v2456, 16
      %v2746 = vrot.slane %v2744, 5
      %v2747 = vsel %vm859, %v2742, %v2746
      %v2748 = vshrl.u32 %v2456, 16
      %v2750 = vrot.slane %v2748, 4
      %v2751 = vor.u32 %v2750, %v2746
      %v2752 = vrot.slane %v2751, 4
      %v2754 = vshll.u32 %v2457, 16
      %v2756 = vrot.slane %v2754, 5
      %v2757 = vsel %vm859, %v2752, %v2756
      %v2759 = vshrl.u32 %v2458, 16
      %v2761 = vrot.slane %v2759, 4
      %v2762 = vshll.u32 %v2458, 16
      %v2764 = vrot.slane %v2762, 5
      %v2765 = vor.u32 %v2761, %v2764
      %v2766 = vrot.slane %v2765, 4
      %v2768 = vshll.u32 %v2459, 16
      %v2770 = vrot.slane %v2768, 5
      %v2771 = vsel %vm859, %v2766, %v2770
      %v2772 = vshrl.u32 %v2459, 16
      %v2774 = vrot.slane %v2772, 4
      %v2775 = vor.u32 %v2774, %v2770
      %v2776 = vrot.slane %v2775, 4
      %v2778 = vshll.u32 %v2460, 16
      %v2780 = vrot.slane %v2778, 5
      %v2781 = vsel %vm859, %v2776, %v2780
      %v2783 = vshrl.u32 %v2461, 16
      %v2785 = vrot.slane %v2783, 4
      %v2786 = vshll.u32 %v2461, 16
      %v2788 = vrot.slane %v2786, 5
      %v2789 = vor.u32 %v2785, %v2788
      %v2790 = vrot.slane %v2789, 4
      %v2792 = vshll.u32 %v2462, 16
      %v2794 = vrot.slane %v2792, 5
      %v2795 = vsel %vm859, %v2790, %v2794
      %v2796 = vshrl.u32 %v2462, 16
      %v2798 = vrot.slane %v2796, 4
      %v2799 = vor.u32 %v2798, %v2794
      %v2800 = vrot.slane %v2799, 4
      %v2802 = vshll.u32 %v2463, 16
      %v2804 = vrot.slane %v2802, 5
      %v2805 = vsel %vm859, %v2800, %v2804
      %v2807 = vshrl.u32 %v2464, 16
      %v2809 = vrot.slane %v2807, 4
      %v2810 = vshll.u32 %v2464, 16
      %v2812 = vrot.slane %v2810, 5
      %v2813 = vor.u32 %v2809, %v2812
      %v2814 = vrot.slane %v2813, 4
      %v2816 = vshll.u32 %v2465, 16
      %v2818 = vrot.slane %v2816, 5
      %v2819 = vsel %vm859, %v2814, %v2818
      %v2820 = vshrl.u32 %v2465, 16
      %v2822 = vrot.slane %v2820, 4
      %v2823 = vor.u32 %v2822, %v2818
      %v2824 = vrot.slane %v2823, 4
      %v2826 = vshll.u32 %v2466, 16
      %v2828 = vrot.slane %v2826, 5
      %v2829 = vsel %vm859, %v2824, %v2828
      %v2831 = vshrl.u32 %v2467, 16
      %v2833 = vrot.slane %v2831, 4
      %v2834 = vshll.u32 %v2467, 16
      %v2836 = vrot.slane %v2834, 5
      %v2837 = vor.u32 %v2833, %v2836
      %v2838 = vrot.slane %v2837, 4
      %v2840 = vshll.u32 %v2468, 16
      %v2842 = vrot.slane %v2840, 5
      %v2843 = vsel %vm859, %v2838, %v2842
      %v2844 = vshrl.u32 %v2468, 16
      %v2846 = vrot.slane %v2844, 4
      %v2847 = vor.u32 %v2846, %v2842
      %v2848 = vrot.slane %v2847, 4
      %v2850 = vshll.u32 %v2469, 16
      %v2852 = vrot.slane %v2850, 5
      %v2853 = vsel %vm859, %v2848, %v2852
      %s2854 = scalar_lea.vmem %s1, 256
      %v2855 = vld [vmem:[%s2854] sm:$0xf]
      %v2856 = vld [vmem:[%s2854 + $0x4] sm:$0xf]
      %v2857 = vld [vmem:[%s2854 + $0x8] sm:$0xf]
      %v2858 = vld [vmem:[%s2854 + $0xc] sm:$0xf]
      %v2859 = vld [vmem:[%s2854 + $0x10] sm:$0xf]
      %v2860 = vld [vmem:[%s2854 + $0x14] sm:$0xf]
      %v2861 = vld [vmem:[%s2854 + $0x18] sm:$0xf]
      %v2862 = vld [vmem:[%s2854 + $0x1c] sm:$0xf]
      %v2863 = vld [vmem:[%s2854 + $0x20] sm:$0xf]
      %v2864 = vld [vmem:[%s2854 + $0x24] sm:$0xf]
      %v2865 = vld [vmem:[%s2854 + $0x28] sm:$0xf]
      %v2866 = vld [vmem:[%s2854 + $0x2c] sm:$0xf]
      %v2867 = vld [vmem:[%s2854 + $0x30] sm:$0xf]
      %v2868 = vld [vmem:[%s2854 + $0x34] sm:$0xf]
      %v2869 = vld [vmem:[%s2854 + $0x38] sm:$0xf]
      %v2870 = vld [vmem:[%s2854 + $0x3c] sm:$0xf]
      %v2871 = vunpack.c.l.b16 %v2483
      %v2872 = vunpack.c.l.b16 %v2493
      %v2873 = vunpack.c.l.b16 %v2507
      %v2874 = vunpack.c.l.b16 %v2517
      %v2875 = vunpack.c.l.b16 %v2531
      %v2876 = vunpack.c.l.b16 %v2541
      %v2877 = vunpack.c.l.b16 %v2555
      %v2878 = vunpack.c.l.b16 %v2565
      %v2879 = vunpack.c.l.b16 %v2579
      %v2880 = vunpack.c.l.b16 %v2589
      %v2881 = vunpack.c.l.b16 %v2603
      %v2882 = vunpack.c.l.b16 %v2613
      %v2883 = vunpack.c.l.b16 %v2627
      %v2884 = vunpack.c.l.b16 %v2637
      %v2885 = vunpack.c.l.b16 %v2651
      %v2886 = vunpack.c.l.b16 %v2661
      %v2887 = vunpack.c.l.b16 %v2675
      %v2888 = vunpack.c.l.b16 %v2685
      %v2889 = vunpack.c.l.b16 %v2699
      %v2890 = vunpack.c.l.b16 %v2709
      %v2891 = vunpack.c.l.b16 %v2723
      %v2892 = vunpack.c.l.b16 %v2733
      %v2893 = vunpack.c.l.b16 %v2747
      %v2894 = vunpack.c.l.b16 %v2757
      %v2895 = vunpack.c.l.b16 %v2771
      %v2896 = vunpack.c.l.b16 %v2781
      %v2897 = vunpack.c.l.b16 %v2795
      %v2898 = vunpack.c.l.b16 %v2805
      %v2899 = vunpack.c.l.b16 %v2819
      %v2900 = vunpack.c.l.b16 %v2829
      %v2901 = vunpack.c.l.b16 %v2843
      %v2902 = vunpack.c.l.b16 %v2853
      %v2903 = vpack.c.b16 %v2872, %v2871
      %v2904 = vpack.c.b16 %v2874, %v2873
      %v2905 = vpack.c.b16 %v2876, %v2875
      %v2906 = vpack.c.b16 %v2878, %v2877
      %v2907 = vpack.c.b16 %v2880, %v2879
      %v2908 = vpack.c.b16 %v2882, %v2881
      %v2909 = vpack.c.b16 %v2884, %v2883
      %v2910 = vpack.c.b16 %v2886, %v2885
      %v2911 = vpack.c.b16 %v2888, %v2887
      %v2912 = vpack.c.b16 %v2890, %v2889
      %v2913 = vpack.c.b16 %v2892, %v2891
      %v2914 = vpack.c.b16 %v2894, %v2893
      %v2915 = vpack.c.b16 %v2896, %v2895
      %v2916 = vpack.c.b16 %v2898, %v2897
      %v2917 = vpack.c.b16 %v2900, %v2899
      %v2918 = vpack.c.b16 %v2902, %v2901
      %v2951 = vunpack.c.l.b16 %v2855
      %v2952 = vunpack.c.l.b16 %v2856
      %v2953 = vunpack.c.l.b16 %v2857
      %v2954 = vunpack.c.l.b16 %v2858
      %v2955 = vunpack.c.l.b16 %v2859
      %v2956 = vunpack.c.l.b16 %v2860
      %v2957 = vunpack.c.l.b16 %v2861
      %v2958 = vunpack.c.l.b16 %v2862
      %v2959 = vunpack.c.l.b16 %v2863
      %v2960 = vunpack.c.l.b16 %v2864
      %v2961 = vunpack.c.l.b16 %v2865
      %v2962 = vunpack.c.l.b16 %v2866
      %v2963 = vunpack.c.l.b16 %v2867
      %v2964 = vunpack.c.l.b16 %v2868
      %v2965 = vunpack.c.l.b16 %v2869
      %v2966 = vunpack.c.l.b16 %v2870
      %v2967 = vpack.c.b16 %v2952, %v2951
      %v2968 = vpack.c.b16 %v2954, %v2953
      %v2969 = vpack.c.b16 %v2956, %v2955
      %v2970 = vpack.c.b16 %v2958, %v2957
      %v2971 = vpack.c.b16 %v2960, %v2959
      %v2972 = vpack.c.b16 %v2962, %v2961
      %v2973 = vpack.c.b16 %v2964, %v2963
      %v2974 = vpack.c.b16 %v2966, %v2965
      %2983 = vmatpush.bf16.msra.mxu0 %v2974
      %2984 = vmatpush.bf16.msra.mxu0 %v2973
      %2985 = vmatpush.bf16.msra.mxu0 %v2972
      %2986 = vmatpush.bf16.msra.mxu0 %v2971
      %2987 = vmatpush.bf16.msra.mxu0 %v2970
      %2988 = vmatpush.bf16.msra.mxu0 %v2969
      %2989 = vmatpush.bf16.msra.mxu0 %v2968
      %2990 = vmatpush.bf16.msra.mxu0 %v2967
      %2991 = vmatmul.bf16.gmra.mxu0 %v2903
      %v2992 = vpop.f32.mrf.mxu0
      %v2993 = vadd.f32 0.0, %v2992
      %v2994 = vpop.f32.mrf.mxu0
      %v2995 = vadd.f32 0.0, %v2994
      %2996 = vmatmul.bf16.gmra.mxu0 %v2904
      %v2997 = vpop.f32.mrf.mxu0
      %v2998 = vadd.f32 0.0, %v2997
      %v2999 = vpop.f32.mrf.mxu0
      %v3000 = vadd.f32 0.0, %v2999
      %3001 = vmatmul.bf16.gmra.mxu0 %v2905
      %v3002 = vpop.f32.mrf.mxu0
      %v3003 = vadd.f32 0.0, %v3002
      %v3004 = vpop.f32.mrf.mxu0
      %v3005 = vadd.f32 0.0, %v3004
      %3006 = vmatmul.bf16.gmra.mxu0 %v2906
      %v3007 = vpop.f32.mrf.mxu0
      %v3008 = vadd.f32 0.0, %v3007
      %v3009 = vpop.f32.mrf.mxu0
      %v3010 = vadd.f32 0.0, %v3009
      %3011 = vmatmul.bf16.gmra.mxu0 %v2907
      %v3012 = vpop.f32.mrf.mxu0
      %v3013 = vadd.f32 0.0, %v3012
      %v3014 = vpop.f32.mrf.mxu0
      %v3015 = vadd.f32 0.0, %v3014
      %3016 = vmatmul.bf16.gmra.mxu0 %v2908
      %v3017 = vpop.f32.mrf.mxu0
      %v3018 = vadd.f32 0.0, %v3017
      %v3019 = vpop.f32.mrf.mxu0
      %v3020 = vadd.f32 0.0, %v3019
      %3021 = vmatmul.bf16.gmra.mxu0 %v2909
      %v3022 = vpop.f32.mrf.mxu0
      %v3023 = vadd.f32 0.0, %v3022
      %v3024 = vpop.f32.mrf.mxu0
      %v3025 = vadd.f32 0.0, %v3024
      %3026 = vmatmul.bf16.gmra.mxu0 %v2910
      %v3027 = vpop.f32.mrf.mxu0
      %v3028 = vadd.f32 0.0, %v3027
      %v3029 = vpop.f32.mrf.mxu0
      %v3030 = vadd.f32 0.0, %v3029
      %3031 = vmatmul.bf16.gmra.mxu0 %v2911
      %v3032 = vpop.f32.mrf.mxu0
      %v3033 = vadd.f32 0.0, %v3032
      %v3034 = vpop.f32.mrf.mxu0
      %v3035 = vadd.f32 0.0, %v3034
      %3036 = vmatmul.bf16.gmra.mxu0 %v2912
      %v3037 = vpop.f32.mrf.mxu0
      %v3038 = vadd.f32 0.0, %v3037
      %v3039 = vpop.f32.mrf.mxu0
      %v3040 = vadd.f32 0.0, %v3039
      %3041 = vmatmul.bf16.gmra.mxu0 %v2913
      %v3042 = vpop.f32.mrf.mxu0
      %v3043 = vadd.f32 0.0, %v3042
      %v3044 = vpop.f32.mrf.mxu0
      %v3045 = vadd.f32 0.0, %v3044
      %3046 = vmatmul.bf16.gmra.mxu0 %v2914
      %v3047 = vpop.f32.mrf.mxu0
      %v3048 = vadd.f32 0.0, %v3047
      %v3049 = vpop.f32.mrf.mxu0
      %v3050 = vadd.f32 0.0, %v3049
      %3051 = vmatmul.bf16.gmra.mxu0 %v2915
      %v3052 = vpop.f32.mrf.mxu0
      %v3053 = vadd.f32 0.0, %v3052
      %v3054 = vpop.f32.mrf.mxu0
      %v3055 = vadd.f32 0.0, %v3054
      %3056 = vmatmul.bf16.gmra.mxu0 %v2916
      %v3057 = vpop.f32.mrf.mxu0
      %v3058 = vadd.f32 0.0, %v3057
      %v3059 = vpop.f32.mrf.mxu0
      %v3060 = vadd.f32 0.0, %v3059
      %3061 = vmatmul.bf16.gmra.mxu0 %v2917
      %v3062 = vpop.f32.mrf.mxu0
      %v3063 = vadd.f32 0.0, %v3062
      %v3064 = vpop.f32.mrf.mxu0
      %v3065 = vadd.f32 0.0, %v3064
      %3066 = vmatmul.bf16.gmra.mxu0 %v2918
      %v3067 = vpop.f32.mrf.mxu0
      %v3068 = vadd.f32 0.0, %v3067
      %v3069 = vpop.f32.mrf.mxu0
      %v3070 = vadd.f32 0.0, %v3069
      %3071 = vdwg.mxu0
      %v3072 = vadd.f32 %v2390, %v2993
      %v3073 = vadd.f32 %v2391, %v2995
      %v3074 = vadd.f32 %v2392, %v2998
      %v3075 = vadd.f32 %v2393, %v3000
      %v3076 = vadd.f32 %v2394, %v3003
      %v3077 = vadd.f32 %v2395, %v3005
      %v3078 = vadd.f32 %v2396, %v3008
      %v3079 = vadd.f32 %v2397, %v3010
      %v3080 = vadd.f32 %v2398, %v3013
      %v3081 = vadd.f32 %v2399, %v3015
      %v3082 = vadd.f32 %v2400, %v3018
      %v3083 = vadd.f32 %v2401, %v3020
      %v3084 = vadd.f32 %v2402, %v3023
      %v3085 = vadd.f32 %v2403, %v3025
      %v3086 = vadd.f32 %v2404, %v3028
      %v3087 = vadd.f32 %v2405, %v3030
      %v3088 = vadd.f32 %v2406, %v3033
      %v3089 = vadd.f32 %v2407, %v3035
      %v3090 = vadd.f32 %v2408, %v3038
      %v3091 = vadd.f32 %v2409, %v3040
      %v3092 = vadd.f32 %v2410, %v3043
      %v3093 = vadd.f32 %v2411, %v3045
      %v3094 = vadd.f32 %v2412, %v3048
      %v3095 = vadd.f32 %v2413, %v3050
      %v3096 = vadd.f32 %v2414, %v3053
      %v3097 = vadd.f32 %v2415, %v3055
      %v3098 = vadd.f32 %v2416, %v3058
      %v3099 = vadd.f32 %v2417, %v3060
      %v3100 = vadd.f32 %v2418, %v3063
      %v3101 = vadd.f32 %v2419, %v3065
      %v3102 = vadd.f32 %v2420, %v3068
      %v3103 = vadd.f32 %v2421, %v3070
      %v3104 = vld [vmem:[%s223] sm:$0xe]
      %v3105 = vld [vmem:[%s223 + $0xc] sm:$0xe]
      %v3106 = vld [vmem:[%s223 + $0x18] sm:$0xe]
      %v3107 = vld [vmem:[%s223 + $0x24] sm:$0xe]
      %v3108 = vld [vmem:[%s223 + $0x30] sm:$0xe]
      %v3109 = vld [vmem:[%s223 + $0x3c] sm:$0xe]
      %v3110 = vld [vmem:[%s223 + $0x48] sm:$0xe]
      %v3111 = vld [vmem:[%s223 + $0x54] sm:$0xe]
      %v3112 = vld [vmem:[%s223 + $0x60] sm:$0xe]
      %v3113 = vld [vmem:[%s223 + $0x6c] sm:$0xe]
      %v3114 = vld [vmem:[%s223 + $0x78] sm:$0xe]
      %v3115 = vld [vmem:[%s223 + $0x84] sm:$0xe]
      %v3116 = vld [vmem:[%s223 + $0x90] sm:$0xe]
      %v3117 = vld [vmem:[%s223 + $0x9c] sm:$0xe]
      %v3118 = vld [vmem:[%s223 + $0xa8] sm:$0xe]
      %v3119 = vld [vmem:[%s223 + $0xb4] sm:$0xe]
      %v3168 = vrot.slane %v3104, 5
      %v3169 = vrot.slane %v3168, 4
      %v3170 = vrot.slane %v2423, 5
      %v3171 = vsel %vm1745, %v3169, %v3170
      %v3172 = vrot.slane %v3170, 4
      %v3173 = vrot.slane %v2424, 5
      %v3174 = vsel %vm1745, %v3172, %v3173
      %v3175 = vrot.slane %v3105, 5
      %v3176 = vrot.slane %v3175, 4
      %v3177 = vrot.slane %v2426, 5
      %v3178 = vsel %vm1745, %v3176, %v3177
      %v3179 = vrot.slane %v3177, 4
      %v3180 = vrot.slane %v2427, 5
      %v3181 = vsel %vm1745, %v3179, %v3180
      %v3182 = vrot.slane %v3106, 5
      %v3183 = vrot.slane %v3182, 4
      %v3184 = vrot.slane %v2429, 5
      %v3185 = vsel %vm1745, %v3183, %v3184
      %v3186 = vrot.slane %v3184, 4
      %v3187 = vrot.slane %v2430, 5
      %v3188 = vsel %vm1745, %v3186, %v3187
      %v3189 = vrot.slane %v3107, 5
      %v3190 = vrot.slane %v3189, 4
      %v3191 = vrot.slane %v2432, 5
      %v3192 = vsel %vm1745, %v3190, %v3191
      %v3193 = vrot.slane %v3191, 4
      %v3194 = vrot.slane %v2433, 5
      %v3195 = vsel %vm1745, %v3193, %v3194
      %v3196 = vrot.slane %v3108, 5
      %v3197 = vrot.slane %v3196, 4
      %v3198 = vrot.slane %v2435, 5
      %v3199 = vsel %vm1745, %v3197, %v3198
      %v3200 = vrot.slane %v3198, 4
      %v3201 = vrot.slane %v2436, 5
      %v3202 = vsel %vm1745, %v3200, %v3201
      %v3203 = vrot.slane %v3109, 5
      %v3204 = vrot.slane %v3203, 4
      %v3205 = vrot.slane %v2438, 5
      %v3206 = vsel %vm1745, %v3204, %v3205
      %v3207 = vrot.slane %v3205, 4
      %v3208 = vrot.slane %v2439, 5
      %v3209 = vsel %vm1745, %v3207, %v3208
      %v3210 = vrot.slane %v3110, 5
      %v3211 = vrot.slane %v3210, 4
      %v3212 = vrot.slane %v2441, 5
      %v3213 = vsel %vm1745, %v3211, %v3212
      %v3214 = vrot.slane %v3212, 4
      %v3215 = vrot.slane %v2442, 5
      %v3216 = vsel %vm1745, %v3214, %v3215
      %v3217 = vrot.slane %v3111, 5
      %v3218 = vrot.slane %v3217, 4
      %v3219 = vrot.slane %v2444, 5
      %v3220 = vsel %vm1745, %v3218, %v3219
      %v3221 = vrot.slane %v3219, 4
      %v3222 = vrot.slane %v2445, 5
      %v3223 = vsel %vm1745, %v3221, %v3222
      %v3224 = vrot.slane %v3112, 5
      %v3225 = vrot.slane %v3224, 4
      %v3226 = vrot.slane %v2447, 5
      %v3227 = vsel %vm1745, %v3225, %v3226
      %v3228 = vrot.slane %v3226, 4
      %v3229 = vrot.slane %v2448, 5
      %v3230 = vsel %vm1745, %v3228, %v3229
      %v3231 = vrot.slane %v3113, 5
      %v3232 = vrot.slane %v3231, 4
      %v3233 = vrot.slane %v2450, 5
      %v3234 = vsel %vm1745, %v3232, %v3233
      %v3235 = vrot.slane %v3233, 4
      %v3236 = vrot.slane %v2451, 5
      %v3237 = vsel %vm1745, %v3235, %v3236
      %v3238 = vrot.slane %v3114, 5
      %v3239 = vrot.slane %v3238, 4
      %v3240 = vrot.slane %v2453, 5
      %v3241 = vsel %vm1745, %v3239, %v3240
      %v3242 = vrot.slane %v3240, 4
      %v3243 = vrot.slane %v2454, 5
      %v3244 = vsel %vm1745, %v3242, %v3243
      %v3245 = vrot.slane %v3115, 5
      %v3246 = vrot.slane %v3245, 4
      %v3247 = vrot.slane %v2456, 5
      %v3248 = vsel %vm1745, %v3246, %v3247
      %v3249 = vrot.slane %v3247, 4
      %v3250 = vrot.slane %v2457, 5
      %v3251 = vsel %vm1745, %v3249, %v3250
      %v3252 = vrot.slane %v3116, 5
      %v3253 = vrot.slane %v3252, 4
      %v3254 = vrot.slane %v2459, 5
      %v3255 = vsel %vm1745, %v3253, %v3254
      %v3256 = vrot.slane %v3254, 4
      %v3257 = vrot.slane %v2460, 5
      %v3258 = vsel %vm1745, %v3256, %v3257
      %v3259 = vrot.slane %v3117, 5
      %v3260 = vrot.slane %v3259, 4
      %v3261 = vrot.slane %v2462, 5
      %v3262 = vsel %vm1745, %v3260, %v3261
      %v3263 = vrot.slane %v3261, 4
      %v3264 = vrot.slane %v2463, 5
      %v3265 = vsel %vm1745, %v3263, %v3264
      %v3266 = vrot.slane %v3118, 5
      %v3267 = vrot.slane %v3266, 4
      %v3268 = vrot.slane %v2465, 5
      %v3269 = vsel %vm1745, %v3267, %v3268
      %v3270 = vrot.slane %v3268, 4
      %v3271 = vrot.slane %v2466, 5
      %v3272 = vsel %vm1745, %v3270, %v3271
      %v3273 = vrot.slane %v3119, 5
      %v3274 = vrot.slane %v3273, 4
      %v3275 = vrot.slane %v2468, 5
      %v3276 = vsel %vm1745, %v3274, %v3275
      %v3277 = vrot.slane %v3275, 4
      %v3278 = vrot.slane %v2469, 5
      %v3279 = vsel %vm1745, %v3277, %v3278
      %s3280 = scalar_lea.vmem %s1, 320
      %v3281 = vld [vmem:[%s3280] sm:$0xf]
      %v3282 = vld [vmem:[%s3280 + $0x4] sm:$0xf]
      %v3283 = vld [vmem:[%s3280 + $0x8] sm:$0xf]
      %v3284 = vld [vmem:[%s3280 + $0xc] sm:$0xf]
      %v3285 = vld [vmem:[%s3280 + $0x10] sm:$0xf]
      %v3286 = vld [vmem:[%s3280 + $0x14] sm:$0xf]
      %v3287 = vld [vmem:[%s3280 + $0x18] sm:$0xf]
      %v3288 = vld [vmem:[%s3280 + $0x1c] sm:$0xf]
      %v3289 = vld [vmem:[%s3280 + $0x20] sm:$0xf]
      %v3290 = vld [vmem:[%s3280 + $0x24] sm:$0xf]
      %v3291 = vld [vmem:[%s3280 + $0x28] sm:$0xf]
      %v3292 = vld [vmem:[%s3280 + $0x2c] sm:$0xf]
      %v3293 = vld [vmem:[%s3280 + $0x30] sm:$0xf]
      %v3294 = vld [vmem:[%s3280 + $0x34] sm:$0xf]
      %v3295 = vld [vmem:[%s3280 + $0x38] sm:$0xf]
      %v3296 = vld [vmem:[%s3280 + $0x3c] sm:$0xf]
      %v3297 = vunpack.c.l.b16 %v3171
      %v3298 = vunpack.c.l.b16 %v3174
      %v3299 = vunpack.c.l.b16 %v3178
      %v3300 = vunpack.c.l.b16 %v3181
      %v3301 = vunpack.c.l.b16 %v3185
      %v3302 = vunpack.c.l.b16 %v3188
      %v3303 = vunpack.c.l.b16 %v3192
      %v3304 = vunpack.c.l.b16 %v3195
      %v3305 = vunpack.c.l.b16 %v3199
      %v3306 = vunpack.c.l.b16 %v3202
      %v3307 = vunpack.c.l.b16 %v3206
      %v3308 = vunpack.c.l.b16 %v3209
      %v3309 = vunpack.c.l.b16 %v3213
      %v3310 = vunpack.c.l.b16 %v3216
      %v3311 = vunpack.c.l.b16 %v3220
      %v3312 = vunpack.c.l.b16 %v3223
      %v3313 = vunpack.c.l.b16 %v3227
      %v3314 = vunpack.c.l.b16 %v3230
      %v3315 = vunpack.c.l.b16 %v3234
      %v3316 = vunpack.c.l.b16 %v3237
      %v3317 = vunpack.c.l.b16 %v3241
      %v3318 = vunpack.c.l.b16 %v3244
      %v3319 = vunpack.c.l.b16 %v3248
      %v3320 = vunpack.c.l.b16 %v3251
      %v3321 = vunpack.c.l.b16 %v3255
      %v3322 = vunpack.c.l.b16 %v3258
      %v3323 = vunpack.c.l.b16 %v3262
      %v3324 = vunpack.c.l.b16 %v3265
      %v3325 = vunpack.c.l.b16 %v3269
      %v3326 = vunpack.c.l.b16 %v3272
      %v3327 = vunpack.c.l.b16 %v3276
      %v3328 = vunpack.c.l.b16 %v3279
      %v3329 = vpack.c.b16 %v3298, %v3297
      %v3330 = vpack.c.b16 %v3300, %v3299
      %v3331 = vpack.c.b16 %v3302, %v3301
      %v3332 = vpack.c.b16 %v3304, %v3303
      %v3333 = vpack.c.b16 %v3306, %v3305
      %v3334 = vpack.c.b16 %v3308, %v3307
      %v3335 = vpack.c.b16 %v3310, %v3309
      %v3336 = vpack.c.b16 %v3312, %v3311
      %v3337 = vpack.c.b16 %v3314, %v3313
      %v3338 = vpack.c.b16 %v3316, %v3315
      %v3339 = vpack.c.b16 %v3318, %v3317
      %v3340 = vpack.c.b16 %v3320, %v3319
      %v3341 = vpack.c.b16 %v3322, %v3321
      %v3342 = vpack.c.b16 %v3324, %v3323
      %v3343 = vpack.c.b16 %v3326, %v3325
      %v3344 = vpack.c.b16 %v3328, %v3327
      %v3377 = vunpack.c.l.b16 %v3281
      %v3378 = vunpack.c.l.b16 %v3282
      %v3379 = vunpack.c.l.b16 %v3283
      %v3380 = vunpack.c.l.b16 %v3284
      %v3381 = vunpack.c.l.b16 %v3285
      %v3382 = vunpack.c.l.b16 %v3286
      %v3383 = vunpack.c.l.b16 %v3287
      %v3384 = vunpack.c.l.b16 %v3288
      %v3385 = vunpack.c.l.b16 %v3289
      %v3386 = vunpack.c.l.b16 %v3290
      %v3387 = vunpack.c.l.b16 %v3291
      %v3388 = vunpack.c.l.b16 %v3292
      %v3389 = vunpack.c.l.b16 %v3293
      %v3390 = vunpack.c.l.b16 %v3294
      %v3391 = vunpack.c.l.b16 %v3295
      %v3392 = vunpack.c.l.b16 %v3296
      %v3393 = vpack.c.b16 %v3378, %v3377
      %v3394 = vpack.c.b16 %v3380, %v3379
      %v3395 = vpack.c.b16 %v3382, %v3381
      %v3396 = vpack.c.b16 %v3384, %v3383
      %v3397 = vpack.c.b16 %v3386, %v3385
      %v3398 = vpack.c.b16 %v3388, %v3387
      %v3399 = vpack.c.b16 %v3390, %v3389
      %v3400 = vpack.c.b16 %v3392, %v3391
      %3409 = vmatpush.bf16.msra.mxu0 %v3400
      %3410 = vmatpush.bf16.msra.mxu0 %v3399
      %3411 = vmatpush.bf16.msra.mxu0 %v3398
      %3412 = vmatpush.bf16.msra.mxu0 %v3397
      %3413 = vmatpush.bf16.msra.mxu0 %v3396
      %3414 = vmatpush.bf16.msra.mxu0 %v3395
      %3415 = vmatpush.bf16.msra.mxu0 %v3394
      %3416 = vmatpush.bf16.msra.mxu0 %v3393
      %3417 = vmatmul.bf16.gmra.mxu0 %v3329
      %v3418 = vpop.f32.mrf.mxu0
      %v3419 = vadd.f32 0.0, %v3418
      %v3420 = vpop.f32.mrf.mxu0
      %v3421 = vadd.f32 0.0, %v3420
      %3422 = vmatmul.bf16.gmra.mxu0 %v3330
      %v3423 = vpop.f32.mrf.mxu0
      %v3424 = vadd.f32 0.0, %v3423
      %v3425 = vpop.f32.mrf.mxu0
      %v3426 = vadd.f32 0.0, %v3425
      %3427 = vmatmul.bf16.gmra.mxu0 %v3331
      %v3428 = vpop.f32.mrf.mxu0
      %v3429 = vadd.f32 0.0, %v3428
      %v3430 = vpop.f32.mrf.mxu0
      %v3431 = vadd.f32 0.0, %v3430
      %3432 = vmatmul.bf16.gmra.mxu0 %v3332
      %v3433 = vpop.f32.mrf.mxu0
      %v3434 = vadd.f32 0.0, %v3433
      %v3435 = vpop.f32.mrf.mxu0
      %v3436 = vadd.f32 0.0, %v3435
      %3437 = vmatmul.bf16.gmra.mxu0 %v3333
      %v3438 = vpop.f32.mrf.mxu0
      %v3439 = vadd.f32 0.0, %v3438
      %v3440 = vpop.f32.mrf.mxu0
      %v3441 = vadd.f32 0.0, %v3440
      %3442 = vmatmul.bf16.gmra.mxu0 %v3334
      %v3443 = vpop.f32.mrf.mxu0
      %v3444 = vadd.f32 0.0, %v3443
      %v3445 = vpop.f32.mrf.mxu0
      %v3446 = vadd.f32 0.0, %v3445
      %3447 = vmatmul.bf16.gmra.mxu0 %v3335
      %v3448 = vpop.f32.mrf.mxu0
      %v3449 = vadd.f32 0.0, %v3448
      %v3450 = vpop.f32.mrf.mxu0
      %v3451 = vadd.f32 0.0, %v3450
      %3452 = vmatmul.bf16.gmra.mxu0 %v3336
      %v3453 = vpop.f32.mrf.mxu0
      %v3454 = vadd.f32 0.0, %v3453
      %v3455 = vpop.f32.mrf.mxu0
      %v3456 = vadd.f32 0.0, %v3455
      %3457 = vmatmul.bf16.gmra.mxu0 %v3337
      %v3458 = vpop.f32.mrf.mxu0
      %v3459 = vadd.f32 0.0, %v3458
      %v3460 = vpop.f32.mrf.mxu0
      %v3461 = vadd.f32 0.0, %v3460
      %3462 = vmatmul.bf16.gmra.mxu0 %v3338
      %v3463 = vpop.f32.mrf.mxu0
      %v3464 = vadd.f32 0.0, %v3463
      %v3465 = vpop.f32.mrf.mxu0
      %v3466 = vadd.f32 0.0, %v3465
      %3467 = vmatmul.bf16.gmra.mxu0 %v3339
      %v3468 = vpop.f32.mrf.mxu0
      %v3469 = vadd.f32 0.0, %v3468
      %v3470 = vpop.f32.mrf.mxu0
      %v3471 = vadd.f32 0.0, %v3470
      %3472 = vmatmul.bf16.gmra.mxu0 %v3340
      %v3473 = vpop.f32.mrf.mxu0
      %v3474 = vadd.f32 0.0, %v3473
      %v3475 = vpop.f32.mrf.mxu0
      %v3476 = vadd.f32 0.0, %v3475
      %3477 = vmatmul.bf16.gmra.mxu0 %v3341
      %v3478 = vpop.f32.mrf.mxu0
      %v3479 = vadd.f32 0.0, %v3478
      %v3480 = vpop.f32.mrf.mxu0
      %v3481 = vadd.f32 0.0, %v3480
      %3482 = vmatmul.bf16.gmra.mxu0 %v3342
      %v3483 = vpop.f32.mrf.mxu0
      %v3484 = vadd.f32 0.0, %v3483
      %v3485 = vpop.f32.mrf.mxu0
      %v3486 = vadd.f32 0.0, %v3485
      %3487 = vmatmul.bf16.gmra.mxu0 %v3343
      %v3488 = vpop.f32.mrf.mxu0
      %v3489 = vadd.f32 0.0, %v3488
      %v3490 = vpop.f32.mrf.mxu0
      %v3491 = vadd.f32 0.0, %v3490
      %3492 = vmatmul.bf16.gmra.mxu0 %v3344
      %v3493 = vpop.f32.mrf.mxu0
      %v3494 = vadd.f32 0.0, %v3493
      %v3495 = vpop.f32.mrf.mxu0
      %v3496 = vadd.f32 0.0, %v3495
      %3497 = vdwg.mxu0
      %v3498 = vadd.f32 %v3072, %v3419
      %v3499 = vadd.f32 %v3073, %v3421
      %v3500 = vadd.f32 %v3074, %v3424
      %v3501 = vadd.f32 %v3075, %v3426
      %v3502 = vadd.f32 %v3076, %v3429
      %v3503 = vadd.f32 %v3077, %v3431
      %v3504 = vadd.f32 %v3078, %v3434
      %v3505 = vadd.f32 %v3079, %v3436
      %v3506 = vadd.f32 %v3080, %v3439
      %v3507 = vadd.f32 %v3081, %v3441
      %v3508 = vadd.f32 %v3082, %v3444
      %v3509 = vadd.f32 %v3083, %v3446
      %v3510 = vadd.f32 %v3084, %v3449
      %v3511 = vadd.f32 %v3085, %v3451
      %v3512 = vadd.f32 %v3086, %v3454
      %v3513 = vadd.f32 %v3087, %v3456
      %v3514 = vadd.f32 %v3088, %v3459
      %v3515 = vadd.f32 %v3089, %v3461
      %v3516 = vadd.f32 %v3090, %v3464
      %v3517 = vadd.f32 %v3091, %v3466
      %v3518 = vadd.f32 %v3092, %v3469
      %v3519 = vadd.f32 %v3093, %v3471
      %v3520 = vadd.f32 %v3094, %v3474
      %v3521 = vadd.f32 %v3095, %v3476
      %v3522 = vadd.f32 %v3096, %v3479
      %v3523 = vadd.f32 %v3097, %v3481
      %v3524 = vadd.f32 %v3098, %v3484
      %v3525 = vadd.f32 %v3099, %v3486
      %v3526 = vadd.f32 %v3100, %v3489
      %v3527 = vadd.f32 %v3101, %v3491
      %v3528 = vadd.f32 %v3102, %v3494
      %v3529 = vadd.f32 %v3103, %v3496
      %s3530 = scalar_lea.vmem [#allocation2], 24
      %v3531 = vld [vmem:[%s3530] sm:$0xf]
      %v3532 = vld [vmem:[%s3530 + $0x4] sm:$0xf]
      %v3533 = vld [vmem:[%s3530 + $0xc] sm:$0xf]
      %v3534 = vld [vmem:[%s3530 + $0x10] sm:$0xf]
      %v3535 = vld [vmem:[%s3530 + $0x18] sm:$0xf]
      %v3536 = vld [vmem:[%s3530 + $0x1c] sm:$0xf]
      %v3537 = vld [vmem:[%s3530 + $0x24] sm:$0xf]
      %v3538 = vld [vmem:[%s3530 + $0x28] sm:$0xf]
      %v3539 = vld [vmem:[%s3530 + $0x30] sm:$0xf]
      %v3540 = vld [vmem:[%s3530 + $0x34] sm:$0xf]
      %v3541 = vld [vmem:[%s3530 + $0x3c] sm:$0xf]
      %v3542 = vld [vmem:[%s3530 + $0x40] sm:$0xf]
      %v3543 = vld [vmem:[%s3530 + $0x48] sm:$0xf]
      %v3544 = vld [vmem:[%s3530 + $0x4c] sm:$0xf]
      %v3545 = vld [vmem:[%s3530 + $0x54] sm:$0xf]
      %v3546 = vld [vmem:[%s3530 + $0x58] sm:$0xf]
      %v3547 = vld [vmem:[%s3530 + $0x60] sm:$0xf]
      %v3548 = vld [vmem:[%s3530 + $0x64] sm:$0xf]
      %v3549 = vld [vmem:[%s3530 + $0x6c] sm:$0xf]
      %v3550 = vld [vmem:[%s3530 + $0x70] sm:$0xf]
      %v3551 = vld [vmem:[%s3530 + $0x78] sm:$0xf]
      %v3552 = vld [vmem:[%s3530 + $0x7c] sm:$0xf]
      %v3553 = vld [vmem:[%s3530 + $0x84] sm:$0xf]
      %v3554 = vld [vmem:[%s3530 + $0x88] sm:$0xf]
      %v3555 = vld [vmem:[%s3530 + $0x90] sm:$0xf]
      %v3556 = vld [vmem:[%s3530 + $0x94] sm:$0xf]
      %v3557 = vld [vmem:[%s3530 + $0x9c] sm:$0xf]
      %v3558 = vld [vmem:[%s3530 + $0xa0] sm:$0xf]
      %v3559 = vld [vmem:[%s3530 + $0xa8] sm:$0xf]
      %v3560 = vld [vmem:[%s3530 + $0xac] sm:$0xf]
      %v3561 = vld [vmem:[%s3530 + $0xb4] sm:$0xf]
      %v3562 = vld [vmem:[%s3530 + $0xb8] sm:$0xf]
      %s3563 = scalar_lea.vmem %s1, 384
      %v3564 = vld [vmem:[%s3563] sm:$0xf]
      %v3565 = vld [vmem:[%s3563 + $0x4] sm:$0xf]
      %v3566 = vld [vmem:[%s3563 + $0x8] sm:$0xf]
      %v3567 = vld [vmem:[%s3563 + $0xc] sm:$0xf]
      %v3568 = vld [vmem:[%s3563 + $0x10] sm:$0xf]
      %v3569 = vld [vmem:[%s3563 + $0x14] sm:$0xf]
      %v3570 = vld [vmem:[%s3563 + $0x18] sm:$0xf]
      %v3571 = vld [vmem:[%s3563 + $0x1c] sm:$0xf]
      %v3572 = vld [vmem:[%s3563 + $0x20] sm:$0xf]
      %v3573 = vld [vmem:[%s3563 + $0x24] sm:$0xf]
      %v3574 = vld [vmem:[%s3563 + $0x28] sm:$0xf]
      %v3575 = vld [vmem:[%s3563 + $0x2c] sm:$0xf]
      %v3576 = vld [vmem:[%s3563 + $0x30] sm:$0xf]
      %v3577 = vld [vmem:[%s3563 + $0x34] sm:$0xf]
      %v3578 = vld [vmem:[%s3563 + $0x38] sm:$0xf]
      %v3579 = vld [vmem:[%s3563 + $0x3c] sm:$0xf]
      %v3612 = vunpack.c.l.b16 %v3531
      %v3613 = vunpack.c.l.b16 %v3532
      %v3614 = vunpack.c.l.b16 %v3533
      %v3615 = vunpack.c.l.b16 %v3534
      %v3616 = vunpack.c.l.b16 %v3535
      %v3617 = vunpack.c.l.b16 %v3536
      %v3618 = vunpack.c.l.b16 %v3537
      %v3619 = vunpack.c.l.b16 %v3538
      %v3620 = vunpack.c.l.b16 %v3539
      %v3621 = vunpack.c.l.b16 %v3540
      %v3622 = vunpack.c.l.b16 %v3541
      %v3623 = vunpack.c.l.b16 %v3542
      %v3624 = vunpack.c.l.b16 %v3543
      %v3625 = vunpack.c.l.b16 %v3544
      %v3626 = vunpack.c.l.b16 %v3545
      %v3627 = vunpack.c.l.b16 %v3546
      %v3628 = vunpack.c.l.b16 %v3547
      %v3629 = vunpack.c.l.b16 %v3548
      %v3630 = vunpack.c.l.b16 %v3549
      %v3631 = vunpack.c.l.b16 %v3550
      %v3632 = vunpack.c.l.b16 %v3551
      %v3633 = vunpack.c.l.b16 %v3552
      %v3634 = vunpack.c.l.b16 %v3553
      %v3635 = vunpack.c.l.b16 %v3554
      %v3636 = vunpack.c.l.b16 %v3555
      %v3637 = vunpack.c.l.b16 %v3556
      %v3638 = vunpack.c.l.b16 %v3557
      %v3639 = vunpack.c.l.b16 %v3558
      %v3640 = vunpack.c.l.b16 %v3559
      %v3641 = vunpack.c.l.b16 %v3560
      %v3642 = vunpack.c.l.b16 %v3561
      %v3643 = vunpack.c.l.b16 %v3562
      %v3644 = vpack.c.b16 %v3613, %v3612
      %v3645 = vpack.c.b16 %v3615, %v3614
      %v3646 = vpack.c.b16 %v3617, %v3616
      %v3647 = vpack.c.b16 %v3619, %v3618
      %v3648 = vpack.c.b16 %v3621, %v3620
      %v3649 = vpack.c.b16 %v3623, %v3622
      %v3650 = vpack.c.b16 %v3625, %v3624
      %v3651 = vpack.c.b16 %v3627, %v3626
      %v3652 = vpack.c.b16 %v3629, %v3628
      %v3653 = vpack.c.b16 %v3631, %v3630
      %v3654 = vpack.c.b16 %v3633, %v3632
      %v3655 = vpack.c.b16 %v3635, %v3634
      %v3656 = vpack.c.b16 %v3637, %v3636
      %v3657 = vpack.c.b16 %v3639, %v3638
      %v3658 = vpack.c.b16 %v3641, %v3640
      %v3659 = vpack.c.b16 %v3643, %v3642
      %v3692 = vunpack.c.l.b16 %v3564
      %v3693 = vunpack.c.l.b16 %v3565
      %v3694 = vunpack.c.l.b16 %v3566
      %v3695 = vunpack.c.l.b16 %v3567
      %v3696 = vunpack.c.l.b16 %v3568
      %v3697 = vunpack.c.l.b16 %v3569
      %v3698 = vunpack.c.l.b16 %v3570
      %v3699 = vunpack.c.l.b16 %v3571
      %v3700 = vunpack.c.l.b16 %v3572
      %v3701 = vunpack.c.l.b16 %v3573
      %v3702 = vunpack.c.l.b16 %v3574
      %v3703 = vunpack.c.l.b16 %v3575
      %v3704 = vunpack.c.l.b16 %v3576
      %v3705 = vunpack.c.l.b16 %v3577
      %v3706 = vunpack.c.l.b16 %v3578
      %v3707 = vunpack.c.l.b16 %v3579
      %v3708 = vpack.c.b16 %v3693, %v3692
      %v3709 = vpack.c.b16 %v3695, %v3694
      %v3710 = vpack.c.b16 %v3697, %v3696
      %v3711 = vpack.c.b16 %v3699, %v3698
      %v3712 = vpack.c.b16 %v3701, %v3700
      %v3713 = vpack.c.b16 %v3703, %v3702
      %v3714 = vpack.c.b16 %v3705, %v3704
      %v3715 = vpack.c.b16 %v3707, %v3706
      %3724 = vmatpush.bf16.msra.mxu0 %v3715
      %3725 = vmatpush.bf16.msra.mxu0 %v3714
      %3726 = vmatpush.bf16.msra.mxu0 %v3713
      %3727 = vmatpush.bf16.msra.mxu0 %v3712
      %3728 = vmatpush.bf16.msra.mxu0 %v3711
      %3729 = vmatpush.bf16.msra.mxu0 %v3710
      %3730 = vmatpush.bf16.msra.mxu0 %v3709
      %3731 = vmatpush.bf16.msra.mxu0 %v3708
      %3732 = vmatmul.bf16.gmra.mxu0 %v3644
      %v3733 = vpop.f32.mrf.mxu0
      %v3734 = vadd.f32 0.0, %v3733
      %v3735 = vpop.f32.mrf.mxu0
      %v3736 = vadd.f32 0.0, %v3735
      %3737 = vmatmul.bf16.gmra.mxu0 %v3645
      %v3738 = vpop.f32.mrf.mxu0
      %v3739 = vadd.f32 0.0, %v3738
      %v3740 = vpop.f32.mrf.mxu0
      %v3741 = vadd.f32 0.0, %v3740
      %3742 = vmatmul.bf16.gmra.mxu0 %v3646
      %v3743 = vpop.f32.mrf.mxu0
      %v3744 = vadd.f32 0.0, %v3743
      %v3745 = vpop.f32.mrf.mxu0
      %v3746 = vadd.f32 0.0, %v3745
      %3747 = vmatmul.bf16.gmra.mxu0 %v3647
      %v3748 = vpop.f32.mrf.mxu0
      %v3749 = vadd.f32 0.0, %v3748
      %v3750 = vpop.f32.mrf.mxu0
      %v3751 = vadd.f32 0.0, %v3750
      %3752 = vmatmul.bf16.gmra.mxu0 %v3648
      %v3753 = vpop.f32.mrf.mxu0
      %v3754 = vadd.f32 0.0, %v3753
      %v3755 = vpop.f32.mrf.mxu0
      %v3756 = vadd.f32 0.0, %v3755
      %3757 = vmatmul.bf16.gmra.mxu0 %v3649
      %v3758 = vpop.f32.mrf.mxu0
      %v3759 = vadd.f32 0.0, %v3758
      %v3760 = vpop.f32.mrf.mxu0
      %v3761 = vadd.f32 0.0, %v3760
      %3762 = vmatmul.bf16.gmra.mxu0 %v3650
      %v3763 = vpop.f32.mrf.mxu0
      %v3764 = vadd.f32 0.0, %v3763
      %v3765 = vpop.f32.mrf.mxu0
      %v3766 = vadd.f32 0.0, %v3765
      %3767 = vmatmul.bf16.gmra.mxu0 %v3651
      %v3768 = vpop.f32.mrf.mxu0
      %v3769 = vadd.f32 0.0, %v3768
      %v3770 = vpop.f32.mrf.mxu0
      %v3771 = vadd.f32 0.0, %v3770
      %3772 = vmatmul.bf16.gmra.mxu0 %v3652
      %v3773 = vpop.f32.mrf.mxu0
      %v3774 = vadd.f32 0.0, %v3773
      %v3775 = vpop.f32.mrf.mxu0
      %v3776 = vadd.f32 0.0, %v3775
      %3777 = vmatmul.bf16.gmra.mxu0 %v3653
      %v3778 = vpop.f32.mrf.mxu0
      %v3779 = vadd.f32 0.0, %v3778
      %v3780 = vpop.f32.mrf.mxu0
      %v3781 = vadd.f32 0.0, %v3780
      %3782 = vmatmul.bf16.gmra.mxu0 %v3654
      %v3783 = vpop.f32.mrf.mxu0
      %v3784 = vadd.f32 0.0, %v3783
      %v3785 = vpop.f32.mrf.mxu0
      %v3786 = vadd.f32 0.0, %v3785
      %3787 = vmatmul.bf16.gmra.mxu0 %v3655
      %v3788 = vpop.f32.mrf.mxu0
      %v3789 = vadd.f32 0.0, %v3788
      %v3790 = vpop.f32.mrf.mxu0
      %v3791 = vadd.f32 0.0, %v3790
      %3792 = vmatmul.bf16.gmra.mxu0 %v3656
      %v3793 = vpop.f32.mrf.mxu0
      %v3794 = vadd.f32 0.0, %v3793
      %v3795 = vpop.f32.mrf.mxu0
      %v3796 = vadd.f32 0.0, %v3795
      %3797 = vmatmul.bf16.gmra.mxu0 %v3657
      %v3798 = vpop.f32.mrf.mxu0
      %v3799 = vadd.f32 0.0, %v3798
      %v3800 = vpop.f32.mrf.mxu0
      %v3801 = vadd.f32 0.0, %v3800
      %3802 = vmatmul.bf16.gmra.mxu0 %v3658
      %v3803 = vpop.f32.mrf.mxu0
      %v3804 = vadd.f32 0.0, %v3803
      %v3805 = vpop.f32.mrf.mxu0
      %v3806 = vadd.f32 0.0, %v3805
      %3807 = vmatmul.bf16.gmra.mxu0 %v3659
      %v3808 = vpop.f32.mrf.mxu0
      %v3809 = vadd.f32 0.0, %v3808
      %v3810 = vpop.f32.mrf.mxu0
      %v3811 = vadd.f32 0.0, %v3810
      %3812 = vdwg.mxu0
      %v3813 = vadd.f32 %v3498, %v3734
      %v3814 = vadd.f32 %v3499, %v3736
      %v3815 = vadd.f32 %v3500, %v3739
      %v3816 = vadd.f32 %v3501, %v3741
      %v3817 = vadd.f32 %v3502, %v3744
      %v3818 = vadd.f32 %v3503, %v3746
      %v3819 = vadd.f32 %v3504, %v3749
      %v3820 = vadd.f32 %v3505, %v3751
      %v3821 = vadd.f32 %v3506, %v3754
      %v3822 = vadd.f32 %v3507, %v3756
      %v3823 = vadd.f32 %v3508, %v3759
      %v3824 = vadd.f32 %v3509, %v3761
      %v3825 = vadd.f32 %v3510, %v3764
      %v3826 = vadd.f32 %v3511, %v3766
      %v3827 = vadd.f32 %v3512, %v3769
      %v3828 = vadd.f32 %v3513, %v3771
      %v3829 = vadd.f32 %v3514, %v3774
      %v3830 = vadd.f32 %v3515, %v3776
      %v3831 = vadd.f32 %v3516, %v3779
      %v3832 = vadd.f32 %v3517, %v3781
      %v3833 = vadd.f32 %v3518, %v3784
      %v3834 = vadd.f32 %v3519, %v3786
      %v3835 = vadd.f32 %v3520, %v3789
      %v3836 = vadd.f32 %v3521, %v3791
      %v3837 = vadd.f32 %v3522, %v3794
      %v3838 = vadd.f32 %v3523, %v3796
      %v3839 = vadd.f32 %v3524, %v3799
      %v3840 = vadd.f32 %v3525, %v3801
      %v3841 = vadd.f32 %v3526, %v3804
      %v3842 = vadd.f32 %v3527, %v3806
      %v3843 = vadd.f32 %v3528, %v3809
      %v3844 = vadd.f32 %v3529, %v3811
      %v3845 = vld [vmem:[%s3530] sm:$0xf]
      %v3846 = vld [vmem:[%s3530 + $0x4] sm:$0xf]
      %v3847 = vld [vmem:[%s3530 + $0x8] sm:$0x1]
      %v3848 = vld [vmem:[%s3530 + $0xc] sm:$0xf]
      %v3849 = vld [vmem:[%s3530 + $0x10] sm:$0xf]
      %v3850 = vld [vmem:[%s3530 + $0x14] sm:$0x1]
      %v3851 = vld [vmem:[%s3530 + $0x18] sm:$0xf]
      %v3852 = vld [vmem:[%s3530 + $0x1c] sm:$0xf]
      %v3853 = vld [vmem:[%s3530 + $0x20] sm:$0x1]
      %v3854 = vld [vmem:[%s3530 + $0x24] sm:$0xf]
      %v3855 = vld [vmem:[%s3530 + $0x28] sm:$0xf]
      %v3856 = vld [vmem:[%s3530 + $0x2c] sm:$0x1]
      %v3857 = vld [vmem:[%s3530 + $0x30] sm:$0xf]
      %v3858 = vld [vmem:[%s3530 + $0x34] sm:$0xf]
      %v3859 = vld [vmem:[%s3530 + $0x38] sm:$0x1]
      %v3860 = vld [vmem:[%s3530 + $0x3c] sm:$0xf]
      %v3861 = vld [vmem:[%s3530 + $0x40] sm:$0xf]
      %v3862 = vld [vmem:[%s3530 + $0x44] sm:$0x1]
      %v3863 = vld [vmem:[%s3530 + $0x48] sm:$0xf]
      %v3864 = vld [vmem:[%s3530 + $0x4c] sm:$0xf]
      %v3865 = vld [vmem:[%s3530 + $0x50] sm:$0x1]
      %v3866 = vld [vmem:[%s3530 + $0x54] sm:$0xf]
      %v3867 = vld [vmem:[%s3530 + $0x58] sm:$0xf]
      %v3868 = vld [vmem:[%s3530 + $0x5c] sm:$0x1]
      %v3869 = vld [vmem:[%s3530 + $0x60] sm:$0xf]
      %v3870 = vld [vmem:[%s3530 + $0x64] sm:$0xf]
      %v3871 = vld [vmem:[%s3530 + $0x68] sm:$0x1]
      %v3872 = vld [vmem:[%s3530 + $0x6c] sm:$0xf]
      %v3873 = vld [vmem:[%s3530 + $0x70] sm:$0xf]
      %v3874 = vld [vmem:[%s3530 + $0x74] sm:$0x1]
      %v3875 = vld [vmem:[%s3530 + $0x78] sm:$0xf]
      %v3876 = vld [vmem:[%s3530 + $0x7c] sm:$0xf]
      %v3877 = vld [vmem:[%s3530 + $0x80] sm:$0x1]
      %v3878 = vld [vmem:[%s3530 + $0x84] sm:$0xf]
      %v3879 = vld [vmem:[%s3530 + $0x88] sm:$0xf]
      %v3880 = vld [vmem:[%s3530 + $0x8c] sm:$0x1]
      %v3881 = vld [vmem:[%s3530 + $0x90] sm:$0xf]
      %v3882 = vld [vmem:[%s3530 + $0x94] sm:$0xf]
      %v3883 = vld [vmem:[%s3530 + $0x98] sm:$0x1]
      %v3884 = vld [vmem:[%s3530 + $0x9c] sm:$0xf]
      %v3885 = vld [vmem:[%s3530 + $0xa0] sm:$0xf]
      %v3886 = vld [vmem:[%s3530 + $0xa4] sm:$0x1]
      %v3887 = vld [vmem:[%s3530 + $0xa8] sm:$0xf]
      %v3888 = vld [vmem:[%s3530 + $0xac] sm:$0xf]
      %v3889 = vld [vmem:[%s3530 + $0xb0] sm:$0x1]
      %v3890 = vld [vmem:[%s3530 + $0xb4] sm:$0xf]
      %v3891 = vld [vmem:[%s3530 + $0xb8] sm:$0xf]
      %v3892 = vld [vmem:[%s3530 + $0xbc] sm:$0x1]
      %v3894 = vshrl.u32 %v3845, 16
      %v3896 = vrot.slane %v3894, 4
      %v3897 = vshll.u32 %v3845, 16
      %v3899 = vrot.slane %v3897, 5
      %v3900 = vor.u32 %v3896, %v3899
      %v3901 = vrot.slane %v3900, 4
      %v3903 = vshll.u32 %v3846, 16
      %v3905 = vrot.slane %v3903, 5
      %v3906 = vsel %vm859, %v3901, %v3905
      %v3907 = vshrl.u32 %v3846, 16
      %v3909 = vrot.slane %v3907, 4
      %v3910 = vor.u32 %v3909, %v3905
      %v3911 = vrot.slane %v3910, 4
      %v3913 = vshll.u32 %v3847, 16
      %v3915 = vrot.slane %v3913, 5
      %v3916 = vsel %vm859, %v3911, %v3915
      %v3918 = vshrl.u32 %v3848, 16
      %v3920 = vrot.slane %v3918, 4
      %v3921 = vshll.u32 %v3848, 16
      %v3923 = vrot.slane %v3921, 5
      %v3924 = vor.u32 %v3920, %v3923
      %v3925 = vrot.slane %v3924, 4
      %v3927 = vshll.u32 %v3849, 16
      %v3929 = vrot.slane %v3927, 5
      %v3930 = vsel %vm859, %v3925, %v3929
      %v3931 = vshrl.u32 %v3849, 16
      %v3933 = vrot.slane %v3931, 4
      %v3934 = vor.u32 %v3933, %v3929
      %v3935 = vrot.slane %v3934, 4
      %v3937 = vshll.u32 %v3850, 16
      %v3939 = vrot.slane %v3937, 5
      %v3940 = vsel %vm859, %v3935, %v3939
      %v3942 = vshrl.u32 %v3851, 16
      %v3944 = vrot.slane %v3942, 4
      %v3945 = vshll.u32 %v3851, 16
      %v3947 = vrot.slane %v3945, 5
      %v3948 = vor.u32 %v3944, %v3947
      %v3949 = vrot.slane %v3948, 4
      %v3951 = vshll.u32 %v3852, 16
      %v3953 = vrot.slane %v3951, 5
      %v3954 = vsel %vm859, %v3949, %v3953
      %v3955 = vshrl.u32 %v3852, 16
      %v3957 = vrot.slane %v3955, 4
      %v3958 = vor.u32 %v3957, %v3953
      %v3959 = vrot.slane %v3958, 4
      %v3961 = vshll.u32 %v3853, 16
      %v3963 = vrot.slane %v3961, 5
      %v3964 = vsel %vm859, %v3959, %v3963
      %v3966 = vshrl.u32 %v3854, 16
      %v3968 = vrot.slane %v3966, 4
      %v3969 = vshll.u32 %v3854, 16
      %v3971 = vrot.slane %v3969, 5
      %v3972 = vor.u32 %v3968, %v3971
      %v3973 = vrot.slane %v3972, 4
      %v3975 = vshll.u32 %v3855, 16
      %v3977 = vrot.slane %v3975, 5
      %v3978 = vsel %vm859, %v3973, %v3977
      %v3979 = vshrl.u32 %v3855, 16
      %v3981 = vrot.slane %v3979, 4
      %v3982 = vor.u32 %v3981, %v3977
      %v3983 = vrot.slane %v3982, 4
      %v3985 = vshll.u32 %v3856, 16
      %v3987 = vrot.slane %v3985, 5
      %v3988 = vsel %vm859, %v3983, %v3987
      %v3990 = vshrl.u32 %v3857, 16
      %v3992 = vrot.slane %v3990, 4
      %v3993 = vshll.u32 %v3857, 16
      %v3995 = vrot.slane %v3993, 5
      %v3996 = vor.u32 %v3992, %v3995
      %v3997 = vrot.slane %v3996, 4
      %v3999 = vshll.u32 %v3858, 16
      %v4001 = vrot.slane %v3999, 5
      %v4002 = vsel %vm859, %v3997, %v4001
      %v4003 = vshrl.u32 %v3858, 16
      %v4005 = vrot.slane %v4003, 4
      %v4006 = vor.u32 %v4005, %v4001
      %v4007 = vrot.slane %v4006, 4
      %v4009 = vshll.u32 %v3859, 16
      %v4011 = vrot.slane %v4009, 5
      %v4012 = vsel %vm859, %v4007, %v4011
      %v4014 = vshrl.u32 %v3860, 16
      %v4016 = vrot.slane %v4014, 4
      %v4017 = vshll.u32 %v3860, 16
      %v4019 = vrot.slane %v4017, 5
      %v4020 = vor.u32 %v4016, %v4019
      %v4021 = vrot.slane %v4020, 4
      %v4023 = vshll.u32 %v3861, 16
      %v4025 = vrot.slane %v4023, 5
      %v4026 = vsel %vm859, %v4021, %v4025
      %v4027 = vshrl.u32 %v3861, 16
      %v4029 = vrot.slane %v4027, 4
      %v4030 = vor.u32 %v4029, %v4025
      %v4031 = vrot.slane %v4030, 4
      %v4033 = vshll.u32 %v3862, 16
      %v4035 = vrot.slane %v4033, 5
      %v4036 = vsel %vm859, %v4031, %v4035
      %v4038 = vshrl.u32 %v3863, 16
      %v4040 = vrot.slane %v4038, 4
      %v4041 = vshll.u32 %v3863, 16
      %v4043 = vrot.slane %v4041, 5
      %v4044 = vor.u32 %v4040, %v4043
      %v4045 = vrot.slane %v4044, 4
      %v4047 = vshll.u32 %v3864, 16
      %v4049 = vrot.slane %v4047, 5
      %v4050 = vsel %vm859, %v4045, %v4049
      %v4051 = vshrl.u32 %v3864, 16
      %v4053 = vrot.slane %v4051, 4
      %v4054 = vor.u32 %v4053, %v4049
      %v4055 = vrot.slane %v4054, 4
      %v4057 = vshll.u32 %v3865, 16
      %v4059 = vrot.slane %v4057, 5
      %v4060 = vsel %vm859, %v4055, %v4059
      %v4062 = vshrl.u32 %v3866, 16
      %v4064 = vrot.slane %v4062, 4
      %v4065 = vshll.u32 %v3866, 16
      %v4067 = vrot.slane %v4065, 5
      %v4068 = vor.u32 %v4064, %v4067
      %v4069 = vrot.slane %v4068, 4
      %v4071 = vshll.u32 %v3867, 16
      %v4073 = vrot.slane %v4071, 5
      %v4074 = vsel %vm859, %v4069, %v4073
      %v4075 = vshrl.u32 %v3867, 16
      %v4077 = vrot.slane %v4075, 4
      %v4078 = vor.u32 %v4077, %v4073
      %v4079 = vrot.slane %v4078, 4
      %v4081 = vshll.u32 %v3868, 16
      %v4083 = vrot.slane %v4081, 5
      %v4084 = vsel %vm859, %v4079, %v4083
      %v4086 = vshrl.u32 %v3869, 16
      %v4088 = vrot.slane %v4086, 4
      %v4089 = vshll.u32 %v3869, 16
      %v4091 = vrot.slane %v4089, 5
      %v4092 = vor.u32 %v4088, %v4091
      %v4093 = vrot.slane %v4092, 4
      %v4095 = vshll.u32 %v3870, 16
      %v4097 = vrot.slane %v4095, 5
      %v4098 = vsel %vm859, %v4093, %v4097
      %v4099 = vshrl.u32 %v3870, 16
      %v4101 = vrot.slane %v4099, 4
      %v4102 = vor.u32 %v4101, %v4097
      %v4103 = vrot.slane %v4102, 4
      %v4105 = vshll.u32 %v3871, 16
      %v4107 = vrot.slane %v4105, 5
      %v4108 = vsel %vm859, %v4103, %v4107
      %v4110 = vshrl.u32 %v3872, 16
      %v4112 = vrot.slane %v4110, 4
      %v4113 = vshll.u32 %v3872, 16
      %v4115 = vrot.slane %v4113, 5
      %v4116 = vor.u32 %v4112, %v4115
      %v4117 = vrot.slane %v4116, 4
      %v4119 = vshll.u32 %v3873, 16
      %v4121 = vrot.slane %v4119, 5
      %v4122 = vsel %vm859, %v4117, %v4121
      %v4123 = vshrl.u32 %v3873, 16
      %v4125 = vrot.slane %v4123, 4
      %v4126 = vor.u32 %v4125, %v4121
      %v4127 = vrot.slane %v4126, 4
      %v4129 = vshll.u32 %v3874, 16
      %v4131 = vrot.slane %v4129, 5
      %v4132 = vsel %vm859, %v4127, %v4131
      %v4134 = vshrl.u32 %v3875, 16
      %v4136 = vrot.slane %v4134, 4
      %v4137 = vshll.u32 %v3875, 16
      %v4139 = vrot.slane %v4137, 5
      %v4140 = vor.u32 %v4136, %v4139
      %v4141 = vrot.slane %v4140, 4
      %v4143 = vshll.u32 %v3876, 16
      %v4145 = vrot.slane %v4143, 5
      %v4146 = vsel %vm859, %v4141, %v4145
      %v4147 = vshrl.u32 %v3876, 16
      %v4149 = vrot.slane %v4147, 4
      %v4150 = vor.u32 %v4149, %v4145
      %v4151 = vrot.slane %v4150, 4
      %v4153 = vshll.u32 %v3877, 16
      %v4155 = vrot.slane %v4153, 5
      %v4156 = vsel %vm859, %v4151, %v4155
      %v4158 = vshrl.u32 %v3878, 16
      %v4160 = vrot.slane %v4158, 4
      %v4161 = vshll.u32 %v3878, 16
      %v4163 = vrot.slane %v4161, 5
      %v4164 = vor.u32 %v4160, %v4163
      %v4165 = vrot.slane %v4164, 4
      %v4167 = vshll.u32 %v3879, 16
      %v4169 = vrot.slane %v4167, 5
      %v4170 = vsel %vm859, %v4165, %v4169
      %v4171 = vshrl.u32 %v3879, 16
      %v4173 = vrot.slane %v4171, 4
      %v4174 = vor.u32 %v4173, %v4169
      %v4175 = vrot.slane %v4174, 4
      %v4177 = vshll.u32 %v3880, 16
      %v4179 = vrot.slane %v4177, 5
      %v4180 = vsel %vm859, %v4175, %v4179
      %v4182 = vshrl.u32 %v3881, 16
      %v4184 = vrot.slane %v4182, 4
      %v4185 = vshll.u32 %v3881, 16
      %v4187 = vrot.slane %v4185, 5
      %v4188 = vor.u32 %v4184, %v4187
      %v4189 = vrot.slane %v4188, 4
      %v4191 = vshll.u32 %v3882, 16
      %v4193 = vrot.slane %v4191, 5
      %v4194 = vsel %vm859, %v4189, %v4193
      %v4195 = vshrl.u32 %v3882, 16
      %v4197 = vrot.slane %v4195, 4
      %v4198 = vor.u32 %v4197, %v4193
      %v4199 = vrot.slane %v4198, 4
      %v4201 = vshll.u32 %v3883, 16
      %v4203 = vrot.slane %v4201, 5
      %v4204 = vsel %vm859, %v4199, %v4203
      %v4206 = vshrl.u32 %v3884, 16
      %v4208 = vrot.slane %v4206, 4
      %v4209 = vshll.u32 %v3884, 16
      %v4211 = vrot.slane %v4209, 5
      %v4212 = vor.u32 %v4208, %v4211
      %v4213 = vrot.slane %v4212, 4
      %v4215 = vshll.u32 %v3885, 16
      %v4217 = vrot.slane %v4215, 5
      %v4218 = vsel %vm859, %v4213, %v4217
      %v4219 = vshrl.u32 %v3885, 16
      %v4221 = vrot.slane %v4219, 4
      %v4222 = vor.u32 %v4221, %v4217
      %v4223 = vrot.slane %v4222, 4
      %v4225 = vshll.u32 %v3886, 16
      %v4227 = vrot.slane %v4225, 5
      %v4228 = vsel %vm859, %v4223, %v4227
      %v4230 = vshrl.u32 %v3887, 16
      %v4232 = vrot.slane %v4230, 4
      %v4233 = vshll.u32 %v3887, 16
      %v4235 = vrot.slane %v4233, 5
      %v4236 = vor.u32 %v4232, %v4235
      %v4237 = vrot.slane %v4236, 4
      %v4239 = vshll.u32 %v3888, 16
      %v4241 = vrot.slane %v4239, 5
      %v4242 = vsel %vm859, %v4237, %v4241
      %v4243 = vshrl.u32 %v3888, 16
      %v4245 = vrot.slane %v4243, 4
      %v4246 = vor.u32 %v4245, %v4241
      %v4247 = vrot.slane %v4246, 4
      %v4249 = vshll.u32 %v3889, 16
      %v4251 = vrot.slane %v4249, 5
      %v4252 = vsel %vm859, %v4247, %v4251
      %v4254 = vshrl.u32 %v3890, 16
      %v4256 = vrot.slane %v4254, 4
      %v4257 = vshll.u32 %v3890, 16
      %v4259 = vrot.slane %v4257, 5
      %v4260 = vor.u32 %v4256, %v4259
      %v4261 = vrot.slane %v4260, 4
      %v4263 = vshll.u32 %v3891, 16
      %v4265 = vrot.slane %v4263, 5
      %v4266 = vsel %vm859, %v4261, %v4265
      %v4267 = vshrl.u32 %v3891, 16
      %v4269 = vrot.slane %v4267, 4
      %v4270 = vor.u32 %v4269, %v4265
      %v4271 = vrot.slane %v4270, 4
      %v4273 = vshll.u32 %v3892, 16
      %v4275 = vrot.slane %v4273, 5
      %v4276 = vsel %vm859, %v4271, %v4275
      %s4277 = scalar_lea.vmem %s1, 448
      %v4278 = vld [vmem:[%s4277] sm:$0xf]
      %v4279 = vld [vmem:[%s4277 + $0x4] sm:$0xf]
      %v4280 = vld [vmem:[%s4277 + $0x8] sm:$0xf]
      %v4281 = vld [vmem:[%s4277 + $0xc] sm:$0xf]
      %v4282 = vld [vmem:[%s4277 + $0x10] sm:$0xf]
      %v4283 = vld [vmem:[%s4277 + $0x14] sm:$0xf]
      %v4284 = vld [vmem:[%s4277 + $0x18] sm:$0xf]
      %v4285 = vld [vmem:[%s4277 + $0x1c] sm:$0xf]
      %v4286 = vld [vmem:[%s4277 + $0x20] sm:$0xf]
      %v4287 = vld [vmem:[%s4277 + $0x24] sm:$0xf]
      %v4288 = vld [vmem:[%s4277 + $0x28] sm:$0xf]
      %v4289 = vld [vmem:[%s4277 + $0x2c] sm:$0xf]
      %v4290 = vld [vmem:[%s4277 + $0x30] sm:$0xf]
      %v4291 = vld [vmem:[%s4277 + $0x34] sm:$0xf]
      %v4292 = vld [vmem:[%s4277 + $0x38] sm:$0xf]
      %v4293 = vld [vmem:[%s4277 + $0x3c] sm:$0xf]
      %v4294 = vunpack.c.l.b16 %v3906
      %v4295 = vunpack.c.l.b16 %v3916
      %v4296 = vunpack.c.l.b16 %v3930
      %v4297 = vunpack.c.l.b16 %v3940
      %v4298 = vunpack.c.l.b16 %v3954
      %v4299 = vunpack.c.l.b16 %v3964
      %v4300 = vunpack.c.l.b16 %v3978
      %v4301 = vunpack.c.l.b16 %v3988
      %v4302 = vunpack.c.l.b16 %v4002
      %v4303 = vunpack.c.l.b16 %v4012
      %v4304 = vunpack.c.l.b16 %v4026
      %v4305 = vunpack.c.l.b16 %v4036
      %v4306 = vunpack.c.l.b16 %v4050
      %v4307 = vunpack.c.l.b16 %v4060
      %v4308 = vunpack.c.l.b16 %v4074
      %v4309 = vunpack.c.l.b16 %v4084
      %v4310 = vunpack.c.l.b16 %v4098
      %v4311 = vunpack.c.l.b16 %v4108
      %v4312 = vunpack.c.l.b16 %v4122
      %v4313 = vunpack.c.l.b16 %v4132
      %v4314 = vunpack.c.l.b16 %v4146
      %v4315 = vunpack.c.l.b16 %v4156
      %v4316 = vunpack.c.l.b16 %v4170
      %v4317 = vunpack.c.l.b16 %v4180
      %v4318 = vunpack.c.l.b16 %v4194
      %v4319 = vunpack.c.l.b16 %v4204
      %v4320 = vunpack.c.l.b16 %v4218
      %v4321 = vunpack.c.l.b16 %v4228
      %v4322 = vunpack.c.l.b16 %v4242
      %v4323 = vunpack.c.l.b16 %v4252
      %v4324 = vunpack.c.l.b16 %v4266
      %v4325 = vunpack.c.l.b16 %v4276
      %v4326 = vpack.c.b16 %v4295, %v4294
      %v4327 = vpack.c.b16 %v4297, %v4296
      %v4328 = vpack.c.b16 %v4299, %v4298
      %v4329 = vpack.c.b16 %v4301, %v4300
      %v4330 = vpack.c.b16 %v4303, %v4302
      %v4331 = vpack.c.b16 %v4305, %v4304
      %v4332 = vpack.c.b16 %v4307, %v4306
      %v4333 = vpack.c.b16 %v4309, %v4308
      %v4334 = vpack.c.b16 %v4311, %v4310
      %v4335 = vpack.c.b16 %v4313, %v4312
      %v4336 = vpack.c.b16 %v4315, %v4314
      %v4337 = vpack.c.b16 %v4317, %v4316
      %v4338 = vpack.c.b16 %v4319, %v4318
      %v4339 = vpack.c.b16 %v4321, %v4320
      %v4340 = vpack.c.b16 %v4323, %v4322
      %v4341 = vpack.c.b16 %v4325, %v4324
      %v4374 = vunpack.c.l.b16 %v4278
      %v4375 = vunpack.c.l.b16 %v4279
      %v4376 = vunpack.c.l.b16 %v4280
      %v4377 = vunpack.c.l.b16 %v4281
      %v4378 = vunpack.c.l.b16 %v4282
      %v4379 = vunpack.c.l.b16 %v4283
      %v4380 = vunpack.c.l.b16 %v4284
      %v4381 = vunpack.c.l.b16 %v4285
      %v4382 = vunpack.c.l.b16 %v4286
      %v4383 = vunpack.c.l.b16 %v4287
      %v4384 = vunpack.c.l.b16 %v4288
      %v4385 = vunpack.c.l.b16 %v4289
      %v4386 = vunpack.c.l.b16 %v4290
      %v4387 = vunpack.c.l.b16 %v4291
      %v4388 = vunpack.c.l.b16 %v4292
      %v4389 = vunpack.c.l.b16 %v4293
      %v4390 = vpack.c.b16 %v4375, %v4374
      %v4391 = vpack.c.b16 %v4377, %v4376
      %v4392 = vpack.c.b16 %v4379, %v4378
      %v4393 = vpack.c.b16 %v4381, %v4380
      %v4394 = vpack.c.b16 %v4383, %v4382
      %v4395 = vpack.c.b16 %v4385, %v4384
      %v4396 = vpack.c.b16 %v4387, %v4386
      %v4397 = vpack.c.b16 %v4389, %v4388
      %4406 = vmatpush.bf16.msra.mxu0 %v4397
      %4407 = vmatpush.bf16.msra.mxu0 %v4396
      %4408 = vmatpush.bf16.msra.mxu0 %v4395
      %4409 = vmatpush.bf16.msra.mxu0 %v4394
      %4410 = vmatpush.bf16.msra.mxu0 %v4393
      %4411 = vmatpush.bf16.msra.mxu0 %v4392
      %4412 = vmatpush.bf16.msra.mxu0 %v4391
      %4413 = vmatpush.bf16.msra.mxu0 %v4390
      %4414 = vmatmul.bf16.gmra.mxu0 %v4326
      %v4415 = vpop.f32.mrf.mxu0
      %v4416 = vadd.f32 0.0, %v4415
      %v4417 = vpop.f32.mrf.mxu0
      %v4418 = vadd.f32 0.0, %v4417
      %4419 = vmatmul.bf16.gmra.mxu0 %v4327
      %v4420 = vpop.f32.mrf.mxu0
      %v4421 = vadd.f32 0.0, %v4420
      %v4422 = vpop.f32.mrf.mxu0
      %v4423 = vadd.f32 0.0, %v4422
      %4424 = vmatmul.bf16.gmra.mxu0 %v4328
      %v4425 = vpop.f32.mrf.mxu0
      %v4426 = vadd.f32 0.0, %v4425
      %v4427 = vpop.f32.mrf.mxu0
      %v4428 = vadd.f32 0.0, %v4427
      %4429 = vmatmul.bf16.gmra.mxu0 %v4329
      %v4430 = vpop.f32.mrf.mxu0
      %v4431 = vadd.f32 0.0, %v4430
      %v4432 = vpop.f32.mrf.mxu0
      %v4433 = vadd.f32 0.0, %v4432
      %4434 = vmatmul.bf16.gmra.mxu0 %v4330
      %v4435 = vpop.f32.mrf.mxu0
      %v4436 = vadd.f32 0.0, %v4435
      %v4437 = vpop.f32.mrf.mxu0
      %v4438 = vadd.f32 0.0, %v4437
      %4439 = vmatmul.bf16.gmra.mxu0 %v4331
      %v4440 = vpop.f32.mrf.mxu0
      %v4441 = vadd.f32 0.0, %v4440
      %v4442 = vpop.f32.mrf.mxu0
      %v4443 = vadd.f32 0.0, %v4442
      %4444 = vmatmul.bf16.gmra.mxu0 %v4332
      %v4445 = vpop.f32.mrf.mxu0
      %v4446 = vadd.f32 0.0, %v4445
      %v4447 = vpop.f32.mrf.mxu0
      %v4448 = vadd.f32 0.0, %v4447
      %4449 = vmatmul.bf16.gmra.mxu0 %v4333
      %v4450 = vpop.f32.mrf.mxu0
      %v4451 = vadd.f32 0.0, %v4450
      %v4452 = vpop.f32.mrf.mxu0
      %v4453 = vadd.f32 0.0, %v4452
      %4454 = vmatmul.bf16.gmra.mxu0 %v4334
      %v4455 = vpop.f32.mrf.mxu0
      %v4456 = vadd.f32 0.0, %v4455
      %v4457 = vpop.f32.mrf.mxu0
      %v4458 = vadd.f32 0.0, %v4457
      %4459 = vmatmul.bf16.gmra.mxu0 %v4335
      %v4460 = vpop.f32.mrf.mxu0
      %v4461 = vadd.f32 0.0, %v4460
      %v4462 = vpop.f32.mrf.mxu0
      %v4463 = vadd.f32 0.0, %v4462
      %4464 = vmatmul.bf16.gmra.mxu0 %v4336
      %v4465 = vpop.f32.mrf.mxu0
      %v4466 = vadd.f32 0.0, %v4465
      %v4467 = vpop.f32.mrf.mxu0
      %v4468 = vadd.f32 0.0, %v4467
      %4469 = vmatmul.bf16.gmra.mxu0 %v4337
      %v4470 = vpop.f32.mrf.mxu0
      %v4471 = vadd.f32 0.0, %v4470
      %v4472 = vpop.f32.mrf.mxu0
      %v4473 = vadd.f32 0.0, %v4472
      %4474 = vmatmul.bf16.gmra.mxu0 %v4338
      %v4475 = vpop.f32.mrf.mxu0
      %v4476 = vadd.f32 0.0, %v4475
      %v4477 = vpop.f32.mrf.mxu0
      %v4478 = vadd.f32 0.0, %v4477
      %4479 = vmatmul.bf16.gmra.mxu0 %v4339
      %v4480 = vpop.f32.mrf.mxu0
      %v4481 = vadd.f32 0.0, %v4480
      %v4482 = vpop.f32.mrf.mxu0
      %v4483 = vadd.f32 0.0, %v4482
      %4484 = vmatmul.bf16.gmra.mxu0 %v4340
      %v4485 = vpop.f32.mrf.mxu0
      %v4486 = vadd.f32 0.0, %v4485
      %v4487 = vpop.f32.mrf.mxu0
      %v4488 = vadd.f32 0.0, %v4487
      %4489 = vmatmul.bf16.gmra.mxu0 %v4341
      %v4490 = vpop.f32.mrf.mxu0
      %v4491 = vadd.f32 0.0, %v4490
      %v4492 = vpop.f32.mrf.mxu0
      %v4493 = vadd.f32 0.0, %v4492
      %4494 = vdwg.mxu0
      %v4495 = vadd.f32 %v3813, %v4416
      %v4496 = vadd.f32 %v3814, %v4418
      %v4497 = vadd.f32 %v3815, %v4421
      %v4498 = vadd.f32 %v3816, %v4423
      %v4499 = vadd.f32 %v3817, %v4426
      %v4500 = vadd.f32 %v3818, %v4428
      %v4501 = vadd.f32 %v3819, %v4431
      %v4502 = vadd.f32 %v3820, %v4433
      %v4503 = vadd.f32 %v3821, %v4436
      %v4504 = vadd.f32 %v3822, %v4438
      %v4505 = vadd.f32 %v3823, %v4441
      %v4506 = vadd.f32 %v3824, %v4443
      %v4507 = vadd.f32 %v3825, %v4446
      %v4508 = vadd.f32 %v3826, %v4448
      %v4509 = vadd.f32 %v3827, %v4451
      %v4510 = vadd.f32 %v3828, %v4453
      %v4511 = vadd.f32 %v3829, %v4456
      %v4512 = vadd.f32 %v3830, %v4458
      %v4513 = vadd.f32 %v3831, %v4461
      %v4514 = vadd.f32 %v3832, %v4463
      %v4515 = vadd.f32 %v3833, %v4466
      %v4516 = vadd.f32 %v3834, %v4468
      %v4517 = vadd.f32 %v3835, %v4471
      %v4518 = vadd.f32 %v3836, %v4473
      %v4519 = vadd.f32 %v3837, %v4476
      %v4520 = vadd.f32 %v3838, %v4478
      %v4521 = vadd.f32 %v3839, %v4481
      %v4522 = vadd.f32 %v3840, %v4483
      %v4523 = vadd.f32 %v3841, %v4486
      %v4524 = vadd.f32 %v3842, %v4488
      %v4525 = vadd.f32 %v3843, %v4491
      %v4526 = vadd.f32 %v3844, %v4493
      %v4527 = vld [vmem:[%s3530] sm:$0xe]
      %v4528 = vld [vmem:[%s3530 + $0xc] sm:$0xe]
      %v4529 = vld [vmem:[%s3530 + $0x18] sm:$0xe]
      %v4530 = vld [vmem:[%s3530 + $0x24] sm:$0xe]
      %v4531 = vld [vmem:[%s3530 + $0x30] sm:$0xe]
      %v4532 = vld [vmem:[%s3530 + $0x3c] sm:$0xe]
      %v4533 = vld [vmem:[%s3530 + $0x48] sm:$0xe]
      %v4534 = vld [vmem:[%s3530 + $0x54] sm:$0xe]
      %v4535 = vld [vmem:[%s3530 + $0x60] sm:$0xe]
      %v4536 = vld [vmem:[%s3530 + $0x6c] sm:$0xe]
      %v4537 = vld [vmem:[%s3530 + $0x78] sm:$0xe]
      %v4538 = vld [vmem:[%s3530 + $0x84] sm:$0xe]
      %v4539 = vld [vmem:[%s3530 + $0x90] sm:$0xe]
      %v4540 = vld [vmem:[%s3530 + $0x9c] sm:$0xe]
      %v4541 = vld [vmem:[%s3530 + $0xa8] sm:$0xe]
      %v4542 = vld [vmem:[%s3530 + $0xb4] sm:$0xe]
      %v4591 = vrot.slane %v4527, 5
      %v4592 = vrot.slane %v4591, 4
      %v4593 = vrot.slane %v3846, 5
      %v4594 = vsel %vm1745, %v4592, %v4593
      %v4595 = vrot.slane %v4593, 4
      %v4596 = vrot.slane %v3847, 5
      %v4597 = vsel %vm1745, %v4595, %v4596
      %v4598 = vrot.slane %v4528, 5
      %v4599 = vrot.slane %v4598, 4
      %v4600 = vrot.slane %v3849, 5
      %v4601 = vsel %vm1745, %v4599, %v4600
      %v4602 = vrot.slane %v4600, 4
      %v4603 = vrot.slane %v3850, 5
      %v4604 = vsel %vm1745, %v4602, %v4603
      %v4605 = vrot.slane %v4529, 5
      %v4606 = vrot.slane %v4605, 4
      %v4607 = vrot.slane %v3852, 5
      %v4608 = vsel %vm1745, %v4606, %v4607
      %v4609 = vrot.slane %v4607, 4
      %v4610 = vrot.slane %v3853, 5
      %v4611 = vsel %vm1745, %v4609, %v4610
      %v4612 = vrot.slane %v4530, 5
      %v4613 = vrot.slane %v4612, 4
      %v4614 = vrot.slane %v3855, 5
      %v4615 = vsel %vm1745, %v4613, %v4614
      %v4616 = vrot.slane %v4614, 4
      %v4617 = vrot.slane %v3856, 5
      %v4618 = vsel %vm1745, %v4616, %v4617
      %v4619 = vrot.slane %v4531, 5
      %v4620 = vrot.slane %v4619, 4
      %v4621 = vrot.slane %v3858, 5
      %v4622 = vsel %vm1745, %v4620, %v4621
      %v4623 = vrot.slane %v4621, 4
      %v4624 = vrot.slane %v3859, 5
      %v4625 = vsel %vm1745, %v4623, %v4624
      %v4626 = vrot.slane %v4532, 5
      %v4627 = vrot.slane %v4626, 4
      %v4628 = vrot.slane %v3861, 5
      %v4629 = vsel %vm1745, %v4627, %v4628
      %v4630 = vrot.slane %v4628, 4
      %v4631 = vrot.slane %v3862, 5
      %v4632 = vsel %vm1745, %v4630, %v4631
      %v4633 = vrot.slane %v4533, 5
      %v4634 = vrot.slane %v4633, 4
      %v4635 = vrot.slane %v3864, 5
      %v4636 = vsel %vm1745, %v4634, %v4635
      %v4637 = vrot.slane %v4635, 4
      %v4638 = vrot.slane %v3865, 5
      %v4639 = vsel %vm1745, %v4637, %v4638
      %v4640 = vrot.slane %v4534, 5
      %v4641 = vrot.slane %v4640, 4
      %v4642 = vrot.slane %v3867, 5
      %v4643 = vsel %vm1745, %v4641, %v4642
      %v4644 = vrot.slane %v4642, 4
      %v4645 = vrot.slane %v3868, 5
      %v4646 = vsel %vm1745, %v4644, %v4645
      %v4647 = vrot.slane %v4535, 5
      %v4648 = vrot.slane %v4647, 4
      %v4649 = vrot.slane %v3870, 5
      %v4650 = vsel %vm1745, %v4648, %v4649
      %v4651 = vrot.slane %v4649, 4
      %v4652 = vrot.slane %v3871, 5
      %v4653 = vsel %vm1745, %v4651, %v4652
      %v4654 = vrot.slane %v4536, 5
      %v4655 = vrot.slane %v4654, 4
      %v4656 = vrot.slane %v3873, 5
      %v4657 = vsel %vm1745, %v4655, %v4656
      %v4658 = vrot.slane %v4656, 4
      %v4659 = vrot.slane %v3874, 5
      %v4660 = vsel %vm1745, %v4658, %v4659
      %v4661 = vrot.slane %v4537, 5
      %v4662 = vrot.slane %v4661, 4
      %v4663 = vrot.slane %v3876, 5
      %v4664 = vsel %vm1745, %v4662, %v4663
      %v4665 = vrot.slane %v4663, 4
      %v4666 = vrot.slane %v3877, 5
      %v4667 = vsel %vm1745, %v4665, %v4666
      %v4668 = vrot.slane %v4538, 5
      %v4669 = vrot.slane %v4668, 4
      %v4670 = vrot.slane %v3879, 5
      %v4671 = vsel %vm1745, %v4669, %v4670
      %v4672 = vrot.slane %v4670, 4
      %v4673 = vrot.slane %v3880, 5
      %v4674 = vsel %vm1745, %v4672, %v4673
      %v4675 = vrot.slane %v4539, 5
      %v4676 = vrot.slane %v4675, 4
      %v4677 = vrot.slane %v3882, 5
      %v4678 = vsel %vm1745, %v4676, %v4677
      %v4679 = vrot.slane %v4677, 4
      %v4680 = vrot.slane %v3883, 5
      %v4681 = vsel %vm1745, %v4679, %v4680
      %v4682 = vrot.slane %v4540, 5
      %v4683 = vrot.slane %v4682, 4
      %v4684 = vrot.slane %v3885, 5
      %v4685 = vsel %vm1745, %v4683, %v4684
      %v4686 = vrot.slane %v4684, 4
      %v4687 = vrot.slane %v3886, 5
      %v4688 = vsel %vm1745, %v4686, %v4687
      %v4689 = vrot.slane %v4541, 5
      %v4690 = vrot.slane %v4689, 4
      %v4691 = vrot.slane %v3888, 5
      %v4692 = vsel %vm1745, %v4690, %v4691
      %v4693 = vrot.slane %v4691, 4
      %v4694 = vrot.slane %v3889, 5
      %v4695 = vsel %vm1745, %v4693, %v4694
      %v4696 = vrot.slane %v4542, 5
      %v4697 = vrot.slane %v4696, 4
      %v4698 = vrot.slane %v3891, 5
      %v4699 = vsel %vm1745, %v4697, %v4698
      %v4700 = vrot.slane %v4698, 4
      %v4701 = vrot.slane %v3892, 5
      %v4702 = vsel %vm1745, %v4700, %v4701
      %s4703 = scalar_lea.vmem %s1, 512
      %v4704 = vld [vmem:[%s4703] sm:$0xf]
      %v4705 = vld [vmem:[%s4703 + $0x4] sm:$0xf]
      %v4706 = vld [vmem:[%s4703 + $0x8] sm:$0xf]
      %v4707 = vld [vmem:[%s4703 + $0xc] sm:$0xf]
      %v4708 = vld [vmem:[%s4703 + $0x10] sm:$0xf]
      %v4709 = vld [vmem:[%s4703 + $0x14] sm:$0xf]
      %v4710 = vld [vmem:[%s4703 + $0x18] sm:$0xf]
      %v4711 = vld [vmem:[%s4703 + $0x1c] sm:$0xf]
      %v4712 = vld [vmem:[%s4703 + $0x20] sm:$0xf]
      %v4713 = vld [vmem:[%s4703 + $0x24] sm:$0xf]
      %v4714 = vld [vmem:[%s4703 + $0x28] sm:$0xf]
      %v4715 = vld [vmem:[%s4703 + $0x2c] sm:$0xf]
      %v4716 = vld [vmem:[%s4703 + $0x30] sm:$0xf]
      %v4717 = vld [vmem:[%s4703 + $0x34] sm:$0xf]
      %v4718 = vld [vmem:[%s4703 + $0x38] sm:$0xf]
      %v4719 = vld [vmem:[%s4703 + $0x3c] sm:$0xf]
      %v4720 = vunpack.c.l.b16 %v4594
      %v4721 = vunpack.c.l.b16 %v4597
      %v4722 = vunpack.c.l.b16 %v4601
      %v4723 = vunpack.c.l.b16 %v4604
      %v4724 = vunpack.c.l.b16 %v4608
      %v4725 = vunpack.c.l.b16 %v4611
      %v4726 = vunpack.c.l.b16 %v4615
      %v4727 = vunpack.c.l.b16 %v4618
      %v4728 = vunpack.c.l.b16 %v4622
      %v4729 = vunpack.c.l.b16 %v4625
      %v4730 = vunpack.c.l.b16 %v4629
      %v4731 = vunpack.c.l.b16 %v4632
      %v4732 = vunpack.c.l.b16 %v4636
      %v4733 = vunpack.c.l.b16 %v4639
      %v4734 = vunpack.c.l.b16 %v4643
      %v4735 = vunpack.c.l.b16 %v4646
      %v4736 = vunpack.c.l.b16 %v4650
      %v4737 = vunpack.c.l.b16 %v4653
      %v4738 = vunpack.c.l.b16 %v4657
      %v4739 = vunpack.c.l.b16 %v4660
      %v4740 = vunpack.c.l.b16 %v4664
      %v4741 = vunpack.c.l.b16 %v4667
      %v4742 = vunpack.c.l.b16 %v4671
      %v4743 = vunpack.c.l.b16 %v4674
      %v4744 = vunpack.c.l.b16 %v4678
      %v4745 = vunpack.c.l.b16 %v4681
      %v4746 = vunpack.c.l.b16 %v4685
      %v4747 = vunpack.c.l.b16 %v4688
      %v4748 = vunpack.c.l.b16 %v4692
      %v4749 = vunpack.c.l.b16 %v4695
      %v4750 = vunpack.c.l.b16 %v4699
      %v4751 = vunpack.c.l.b16 %v4702
      %v4752 = vpack.c.b16 %v4721, %v4720
      %v4753 = vpack.c.b16 %v4723, %v4722
      %v4754 = vpack.c.b16 %v4725, %v4724
      %v4755 = vpack.c.b16 %v4727, %v4726
      %v4756 = vpack.c.b16 %v4729, %v4728
      %v4757 = vpack.c.b16 %v4731, %v4730
      %v4758 = vpack.c.b16 %v4733, %v4732
      %v4759 = vpack.c.b16 %v4735, %v4734
      %v4760 = vpack.c.b16 %v4737, %v4736
      %v4761 = vpack.c.b16 %v4739, %v4738
      %v4762 = vpack.c.b16 %v4741, %v4740
      %v4763 = vpack.c.b16 %v4743, %v4742
      %v4764 = vpack.c.b16 %v4745, %v4744
      %v4765 = vpack.c.b16 %v4747, %v4746
      %v4766 = vpack.c.b16 %v4749, %v4748
      %v4767 = vpack.c.b16 %v4751, %v4750
      %v4800 = vunpack.c.l.b16 %v4704
      %v4801 = vunpack.c.l.b16 %v4705
      %v4802 = vunpack.c.l.b16 %v4706
      %v4803 = vunpack.c.l.b16 %v4707
      %v4804 = vunpack.c.l.b16 %v4708
      %v4805 = vunpack.c.l.b16 %v4709
      %v4806 = vunpack.c.l.b16 %v4710
      %v4807 = vunpack.c.l.b16 %v4711
      %v4808 = vunpack.c.l.b16 %v4712
      %v4809 = vunpack.c.l.b16 %v4713
      %v4810 = vunpack.c.l.b16 %v4714
      %v4811 = vunpack.c.l.b16 %v4715
      %v4812 = vunpack.c.l.b16 %v4716
      %v4813 = vunpack.c.l.b16 %v4717
      %v4814 = vunpack.c.l.b16 %v4718
      %v4815 = vunpack.c.l.b16 %v4719
      %v4816 = vpack.c.b16 %v4801, %v4800
      %v4817 = vpack.c.b16 %v4803, %v4802
      %v4818 = vpack.c.b16 %v4805, %v4804
      %v4819 = vpack.c.b16 %v4807, %v4806
      %v4820 = vpack.c.b16 %v4809, %v4808
      %v4821 = vpack.c.b16 %v4811, %v4810
      %v4822 = vpack.c.b16 %v4813, %v4812
      %v4823 = vpack.c.b16 %v4815, %v4814
      %4832 = vmatpush.bf16.msra.mxu0 %v4823
      %4833 = vmatpush.bf16.msra.mxu0 %v4822
      %4834 = vmatpush.bf16.msra.mxu0 %v4821
      %4835 = vmatpush.bf16.msra.mxu0 %v4820
      %4836 = vmatpush.bf16.msra.mxu0 %v4819
      %4837 = vmatpush.bf16.msra.mxu0 %v4818
      %4838 = vmatpush.bf16.msra.mxu0 %v4817
      %4839 = vmatpush.bf16.msra.mxu0 %v4816
      %4840 = vmatmul.bf16.gmra.mxu0 %v4752
      %v4841 = vpop.f32.mrf.mxu0
      %v4842 = vadd.f32 0.0, %v4841
      %v4843 = vpop.f32.mrf.mxu0
      %v4844 = vadd.f32 0.0, %v4843
      %4845 = vmatmul.bf16.gmra.mxu0 %v4753
      %v4846 = vpop.f32.mrf.mxu0
      %v4847 = vadd.f32 0.0, %v4846
      %v4848 = vpop.f32.mrf.mxu0
      %v4849 = vadd.f32 0.0, %v4848
      %4850 = vmatmul.bf16.gmra.mxu0 %v4754
      %v4851 = vpop.f32.mrf.mxu0
      %v4852 = vadd.f32 0.0, %v4851
      %v4853 = vpop.f32.mrf.mxu0
      %v4854 = vadd.f32 0.0, %v4853
      %4855 = vmatmul.bf16.gmra.mxu0 %v4755
      %v4856 = vpop.f32.mrf.mxu0
      %v4857 = vadd.f32 0.0, %v4856
      %v4858 = vpop.f32.mrf.mxu0
      %v4859 = vadd.f32 0.0, %v4858
      %4860 = vmatmul.bf16.gmra.mxu0 %v4756
      %v4861 = vpop.f32.mrf.mxu0
      %v4862 = vadd.f32 0.0, %v4861
      %v4863 = vpop.f32.mrf.mxu0
      %v4864 = vadd.f32 0.0, %v4863
      %4865 = vmatmul.bf16.gmra.mxu0 %v4757
      %v4866 = vpop.f32.mrf.mxu0
      %v4867 = vadd.f32 0.0, %v4866
      %v4868 = vpop.f32.mrf.mxu0
      %v4869 = vadd.f32 0.0, %v4868
      %4870 = vmatmul.bf16.gmra.mxu0 %v4758
      %v4871 = vpop.f32.mrf.mxu0
      %v4872 = vadd.f32 0.0, %v4871
      %v4873 = vpop.f32.mrf.mxu0
      %v4874 = vadd.f32 0.0, %v4873
      %4875 = vmatmul.bf16.gmra.mxu0 %v4759
      %v4876 = vpop.f32.mrf.mxu0
      %v4877 = vadd.f32 0.0, %v4876
      %v4878 = vpop.f32.mrf.mxu0
      %v4879 = vadd.f32 0.0, %v4878
      %4880 = vmatmul.bf16.gmra.mxu0 %v4760
      %v4881 = vpop.f32.mrf.mxu0
      %v4882 = vadd.f32 0.0, %v4881
      %v4883 = vpop.f32.mrf.mxu0
      %v4884 = vadd.f32 0.0, %v4883
      %4885 = vmatmul.bf16.gmra.mxu0 %v4761
      %v4886 = vpop.f32.mrf.mxu0
      %v4887 = vadd.f32 0.0, %v4886
      %v4888 = vpop.f32.mrf.mxu0
      %v4889 = vadd.f32 0.0, %v4888
      %4890 = vmatmul.bf16.gmra.mxu0 %v4762
      %v4891 = vpop.f32.mrf.mxu0
      %v4892 = vadd.f32 0.0, %v4891
      %v4893 = vpop.f32.mrf.mxu0
      %v4894 = vadd.f32 0.0, %v4893
      %4895 = vmatmul.bf16.gmra.mxu0 %v4763
      %v4896 = vpop.f32.mrf.mxu0
      %v4897 = vadd.f32 0.0, %v4896
      %v4898 = vpop.f32.mrf.mxu0
      %v4899 = vadd.f32 0.0, %v4898
      %4900 = vmatmul.bf16.gmra.mxu0 %v4764
      %v4901 = vpop.f32.mrf.mxu0
      %v4902 = vadd.f32 0.0, %v4901
      %v4903 = vpop.f32.mrf.mxu0
      %v4904 = vadd.f32 0.0, %v4903
      %4905 = vmatmul.bf16.gmra.mxu0 %v4765
      %v4906 = vpop.f32.mrf.mxu0
      %v4907 = vadd.f32 0.0, %v4906
      %v4908 = vpop.f32.mrf.mxu0
      %v4909 = vadd.f32 0.0, %v4908
      %4910 = vmatmul.bf16.gmra.mxu0 %v4766
      %v4911 = vpop.f32.mrf.mxu0
      %v4912 = vadd.f32 0.0, %v4911
      %v4913 = vpop.f32.mrf.mxu0
      %v4914 = vadd.f32 0.0, %v4913
      %4915 = vmatmul.bf16.gmra.mxu0 %v4767
      %v4916 = vpop.f32.mrf.mxu0
      %v4917 = vadd.f32 0.0, %v4916
      %v4918 = vpop.f32.mrf.mxu0
      %v4919 = vadd.f32 0.0, %v4918
      %4920 = vdwg.mxu0
      %v4921 = vadd.f32 %v4495, %v4842
      %v4922 = vadd.f32 %v4496, %v4844
      %v4923 = vadd.f32 %v4497, %v4847
      %v4924 = vadd.f32 %v4498, %v4849
      %v4925 = vadd.f32 %v4499, %v4852
      %v4926 = vadd.f32 %v4500, %v4854
      %v4927 = vadd.f32 %v4501, %v4857
      %v4928 = vadd.f32 %v4502, %v4859
      %v4929 = vadd.f32 %v4503, %v4862
      %v4930 = vadd.f32 %v4504, %v4864
      %v4931 = vadd.f32 %v4505, %v4867
      %v4932 = vadd.f32 %v4506, %v4869
      %v4933 = vadd.f32 %v4507, %v4872
      %v4934 = vadd.f32 %v4508, %v4874
      %v4935 = vadd.f32 %v4509, %v4877
      %v4936 = vadd.f32 %v4510, %v4879
      %v4937 = vadd.f32 %v4511, %v4882
      %v4938 = vadd.f32 %v4512, %v4884
      %v4939 = vadd.f32 %v4513, %v4887
      %v4940 = vadd.f32 %v4514, %v4889
      %v4941 = vadd.f32 %v4515, %v4892
      %v4942 = vadd.f32 %v4516, %v4894
      %v4943 = vadd.f32 %v4517, %v4897
      %v4944 = vadd.f32 %v4518, %v4899
      %v4945 = vadd.f32 %v4519, %v4902
      %v4946 = vadd.f32 %v4520, %v4904
      %v4947 = vadd.f32 %v4521, %v4907
      %v4948 = vadd.f32 %v4522, %v4909
      %v4949 = vadd.f32 %v4523, %v4912
      %v4950 = vadd.f32 %v4524, %v4914
      %v4951 = vadd.f32 %v4525, %v4917
      %v4952 = vadd.f32 %v4526, %v4919
      %v4953 = vpack.c.bf16 %v4921, %v4921
      %v4954 = vpack.c.bf16 %v4922, %v4922
      %v4955 = vpack.c.bf16 %v4923, %v4923
      %v4956 = vpack.c.bf16 %v4924, %v4924
      %v4957 = vpack.c.bf16 %v4925, %v4925
      %v4958 = vpack.c.bf16 %v4926, %v4926
      %v4959 = vpack.c.bf16 %v4927, %v4927
      %v4960 = vpack.c.bf16 %v4928, %v4928
      %v4961 = vpack.c.bf16 %v4929, %v4929
      %v4962 = vpack.c.bf16 %v4930, %v4930
      %v4963 = vpack.c.bf16 %v4931, %v4931
      %v4964 = vpack.c.bf16 %v4932, %v4932
      %v4965 = vpack.c.bf16 %v4933, %v4933
      %v4966 = vpack.c.bf16 %v4934, %v4934
      %v4967 = vpack.c.bf16 %v4935, %v4935
      %v4968 = vpack.c.bf16 %v4936, %v4936
      %v4969 = vpack.c.bf16 %v4937, %v4937
      %v4970 = vpack.c.bf16 %v4938, %v4938
      %v4971 = vpack.c.bf16 %v4939, %v4939
      %v4972 = vpack.c.bf16 %v4940, %v4940
      %v4973 = vpack.c.bf16 %v4941, %v4941
      %v4974 = vpack.c.bf16 %v4942, %v4942
      %v4975 = vpack.c.bf16 %v4943, %v4943
      %v4976 = vpack.c.bf16 %v4944, %v4944
      %v4977 = vpack.c.bf16 %v4945, %v4945
      %v4978 = vpack.c.bf16 %v4946, %v4946
      %v4979 = vpack.c.bf16 %v4947, %v4947
      %v4980 = vpack.c.bf16 %v4948, %v4948
      %v4981 = vpack.c.bf16 %v4949, %v4949
      %v4982 = vpack.c.bf16 %v4950, %v4950
      %v4983 = vpack.c.bf16 %v4951, %v4951
      %v4984 = vpack.c.bf16 %v4952, %v4952
      %4985 = vst [vmem:[%s208] sm:$0xf] %v4953
      %4986 = vst [vmem:[%s208 + $0x4] sm:$0xf] %v4954
      %4987 = vst [vmem:[%s208 + $0x8] sm:$0xf] %v4955
      %4988 = vst [vmem:[%s208 + $0xc] sm:$0xf] %v4956
      %4989 = vst [vmem:[%s208 + $0x10] sm:$0xf] %v4957
      %4990 = vst [vmem:[%s208 + $0x14] sm:$0xf] %v4958
      %4991 = vst [vmem:[%s208 + $0x18] sm:$0xf] %v4959
      %4992 = vst [vmem:[%s208 + $0x1c] sm:$0xf] %v4960
      %4993 = vst [vmem:[%s208 + $0x20] sm:$0xf] %v4961
      %4994 = vst [vmem:[%s208 + $0x24] sm:$0xf] %v4962
      %4995 = vst [vmem:[%s208 + $0x28] sm:$0xf] %v4963
      %4996 = vst [vmem:[%s208 + $0x2c] sm:$0xf] %v4964
      %4997 = vst [vmem:[%s208 + $0x30] sm:$0xf] %v4965
      %4998 = vst [vmem:[%s208 + $0x34] sm:$0xf] %v4966
      %4999 = vst [vmem:[%s208 + $0x38] sm:$0xf] %v4967
      %5000 = vst [vmem:[%s208 + $0x3c] sm:$0xf] %v4968
      %5001 = vst [vmem:[%s208 + $0x40] sm:$0xf] %v4969
      %5002 = vst [vmem:[%s208 + $0x44] sm:$0xf] %v4970
      %5003 = vst [vmem:[%s208 + $0x48] sm:$0xf] %v4971
      %5004 = vst [vmem:[%s208 + $0x4c] sm:$0xf] %v4972
      %5005 = vst [vmem:[%s208 + $0x50] sm:$0xf] %v4973
      %5006 = vst [vmem:[%s208 + $0x54] sm:$0xf] %v4974
      %5007 = vst [vmem:[%s208 + $0x58] sm:$0xf] %v4975
      %5008 = vst [vmem:[%s208 + $0x5c] sm:$0xf] %v4976
      %5009 = vst [vmem:[%s208 + $0x60] sm:$0xf] %v4977
      %5010 = vst [vmem:[%s208 + $0x64] sm:$0xf] %v4978
      %5011 = vst [vmem:[%s208 + $0x68] sm:$0xf] %v4979
      %5012 = vst [vmem:[%s208 + $0x6c] sm:$0xf] %v4980
      %5013 = vst [vmem:[%s208 + $0x70] sm:$0xf] %v4981
      %5014 = vst [vmem:[%s208 + $0x74] sm:$0xf] %v4982
      %5015 = vst [vmem:[%s208 + $0x78] sm:$0xf] %v4983
      %5016 = vst [vmem:[%s208 + $0x7c] sm:$0xf] %v4984
      %v5017 = vadd.f32 %v4921, %v4922
      %v5018 = vadd.f32 %v5017, %v4923
      %v5019 = vadd.f32 %v5018, %v4924
      %v5020 = vadd.f32 %v5019, %v4925
      %v5021 = vadd.f32 %v5020, %v4926
      %v5022 = vadd.f32 %v5021, %v4927
      %v5023 = vadd.f32 %v5022, %v4928
      %v5024 = vadd.f32 %v5023, %v4929
      %v5025 = vadd.f32 %v5024, %v4930
      %v5026 = vadd.f32 %v5025, %v4931
      %v5027 = vadd.f32 %v5026, %v4932
      %v5028 = vadd.f32 %v5027, %v4933
      %v5029 = vadd.f32 %v5028, %v4934
      %v5030 = vadd.f32 %v5029, %v4935
      %v5031 = vadd.f32 %v5030, %v4936
      %v5032 = vadd.f32 %v5031, %v4937
      %v5033 = vadd.f32 %v5032, %v4938
      %v5034 = vadd.f32 %v5033, %v4939
      %v5035 = vadd.f32 %v5034, %v4940
      %v5036 = vadd.f32 %v5035, %v4941
      %v5037 = vadd.f32 %v5036, %v4942
      %v5038 = vadd.f32 %v5037, %v4943
      %v5039 = vadd.f32 %v5038, %v4944
      %v5040 = vadd.f32 %v5039, %v4945
      %v5041 = vadd.f32 %v5040, %v4946
      %v5042 = vadd.f32 %v5041, %v4947
      %v5043 = vadd.f32 %v5042, %v4948
      %v5044 = vadd.f32 %v5043, %v4949
      %v5045 = vadd.f32 %v5044, %v4950
      %v5046 = vadd.f32 %v5045, %v4951
      %v5047 = vadd.f32 %v5046, %v4952
      %v5048 = vrot.slane %v5047, 4
      %v5049 = vadd.f32 %v5047, %v5048
      %v5050 = vrot.slane %v5049, 2
      %v5051 = vadd.f32 %v5049, %v5050
      %v5052 = vrot.slane %v5051, 1
      %v5053 = vadd.f32 %v5051, %v5052
      %5054 = vst [vmem:[%s211] sm:$0x1] %v5053
      %v5055 = vmul.f32 %v4921, %v4921
      %v5056 = vmul.f32 %v4922, %v4922
      %v5057 = vmul.f32 %v4923, %v4923
      %v5058 = vmul.f32 %v4924, %v4924
      %v5059 = vmul.f32 %v4925, %v4925
      %v5060 = vmul.f32 %v4926, %v4926
      %v5061 = vmul.f32 %v4927, %v4927
      %v5062 = vmul.f32 %v4928, %v4928
      %v5063 = vmul.f32 %v4929, %v4929
      %v5064 = vmul.f32 %v4930, %v4930
      %v5065 = vmul.f32 %v4931, %v4931
      %v5066 = vmul.f32 %v4932, %v4932
      %v5067 = vmul.f32 %v4933, %v4933
      %v5068 = vmul.f32 %v4934, %v4934
      %v5069 = vmul.f32 %v4935, %v4935
      %v5070 = vmul.f32 %v4936, %v4936
      %v5071 = vmul.f32 %v4937, %v4937
      %v5072 = vmul.f32 %v4938, %v4938
      %v5073 = vmul.f32 %v4939, %v4939
      %v5074 = vmul.f32 %v4940, %v4940
      %v5075 = vmul.f32 %v4941, %v4941
      %v5076 = vmul.f32 %v4942, %v4942
      %v5077 = vmul.f32 %v4943, %v4943
      %v5078 = vmul.f32 %v4944, %v4944
      %v5079 = vmul.f32 %v4945, %v4945
      %v5080 = vmul.f32 %v4946, %v4946
      %v5081 = vmul.f32 %v4947, %v4947
      %v5082 = vmul.f32 %v4948, %v4948
      %v5083 = vmul.f32 %v4949, %v4949
      %v5084 = vmul.f32 %v4950, %v4950
      %v5085 = vmul.f32 %v4951, %v4951
      %v5086 = vmul.f32 %v4952, %v4952
      %v5087 = vadd.f32 %v5055, %v5056
      %v5088 = vadd.f32 %v5087, %v5057
      %v5089 = vadd.f32 %v5088, %v5058
      %v5090 = vadd.f32 %v5089, %v5059
      %v5091 = vadd.f32 %v5090, %v5060
      %v5092 = vadd.f32 %v5091, %v5061
      %v5093 = vadd.f32 %v5092, %v5062
      %v5094 = vadd.f32 %v5093, %v5063
      %v5095 = vadd.f32 %v5094, %v5064
      %v5096 = vadd.f32 %v5095, %v5065
      %v5097 = vadd.f32 %v5096, %v5066
      %v5098 = vadd.f32 %v5097, %v5067
      %v5099 = vadd.f32 %v5098, %v5068
      %v5100 = vadd.f32 %v5099, %v5069
      %v5101 = vadd.f32 %v5100, %v5070
      %v5102 = vadd.f32 %v5101, %v5071
      %v5103 = vadd.f32 %v5102, %v5072
      %v5104 = vadd.f32 %v5103, %v5073
      %v5105 = vadd.f32 %v5104, %v5074
      %v5106 = vadd.f32 %v5105, %v5075
      %v5107 = vadd.f32 %v5106, %v5076
      %v5108 = vadd.f32 %v5107, %v5077
      %v5109 = vadd.f32 %v5108, %v5078
      %v5110 = vadd.f32 %v5109, %v5079
      %v5111 = vadd.f32 %v5110, %v5080
      %v5112 = vadd.f32 %v5111, %v5081
      %v5113 = vadd.f32 %v5112, %v5082
      %v5114 = vadd.f32 %v5113, %v5083
      %v5115 = vadd.f32 %v5114, %v5084
      %v5116 = vadd.f32 %v5115, %v5085
      %v5117 = vadd.f32 %v5116, %v5086
      %v5118 = vrot.slane %v5117, 4
      %v5119 = vadd.f32 %v5117, %v5118
      %v5120 = vrot.slane %v5119, 2
      %v5121 = vadd.f32 %v5119, %v5120
      %v5122 = vrot.slane %v5121, 1
      %v5123 = vadd.f32 %v5121, %v5122
      %5124 = vst [vmem:[%s214] sm:$0x1] %v5123
      %p5125 = scmp.lt.s32.totalorder %s16, 1
      %s5126 = scalar_select %p5125, %s16, 1
      %s5127 = smul.addr %s5126, 32
      %s5128 = smul.addr %s5127, 4
      %s5129 = scalar_lea.vmem %s2, %s5128
      %p5130 = scmp.lt.s32.totalorder %s16, 1
      %s5131 = scalar_select %p5130, %s16, 1
      %s5132 = scalar_lea.vmem %s3, %s5131
      %p5133 = scmp.lt.s32.totalorder %s16, 1
      %s5134 = scalar_select %p5133, %s16, 1
      %s5135 = scalar_lea.vmem %s4, %s5134
      // Predicated region
      $region29: #{decoder_bottleneck_layer.3} parent=27 // pred_check
        %p5136 = pneg %p81
      $region30: #{decoder_bottleneck_layer.3} parent=27 // pred_check_branch
        %5138 = sbr.rel (%p5136) target = $region32
      $region31: #{decoder_bottleneck_layer.3} parent=27 // pred_region
        _
      $region32: #{decoder_bottleneck_layer.3} parent=27 // pred_fallthru
        _
      // Predicated region
      $region33: #{decoder_bottleneck_layer.3} parent=27 // pred_check
        %p5139 = pneg %p107
      $region34: #{decoder_bottleneck_layer.3} parent=27 // pred_check_branch
        %5141 = sbr.rel (%p5139) target = $region36
      $region35: #{decoder_bottleneck_layer.3} parent=27 // pred_region
        _
      $region36: #{decoder_bottleneck_layer.3} parent=27 // pred_fallthru
        _
      // Predicated region
      $region37: #{decoder_bottleneck_layer.3} parent=27 // pred_check
        %p5142 = pneg %p133
      $region38: #{decoder_bottleneck_layer.3} parent=27 // pred_check_branch
        %5144 = sbr.rel (%p5142) target = $region40
      $region39: #{decoder_bottleneck_layer.3} parent=27 // pred_region
        _
      $region40: #{decoder_bottleneck_layer.3} parent=27 // pred_fallthru
        _
    $region28: #{decoder_bottleneck_layer.3} parent=5 // pred_fallthru
      _
    %p5145 = scmp.le.s32.totalorder 2, %s11
    // Predicated region
    $region41: #{decoder_bottleneck_layer.3} parent=5 // pred_check
      %p5146 = pneg %p5145
    $region42: #{decoder_bottleneck_layer.3} parent=5 // pred_check_branch
      %5148 = sbr.rel (%p5146) target = $region44
    $region43: #{decoder_bottleneck_layer.3} parent=5 // pred_region
      %s5149 = ssub.s32 %s11, 2
      // Predicated region
      $region45: #{decoder_bottleneck_layer.3} parent=43 // pred_check
        %p5150 = pneg %p87
      $region46: #{decoder_bottleneck_layer.3} parent=43 // pred_check_branch
        %5152 = sbr.rel (%p5150) target = $region48
      $region47: #{decoder_bottleneck_layer.3} parent=43 // pred_region
        %p5153 = scmp.lt.s32.totalorder %s17, 1
        %s5154 = scalar_select %p5153, %s17, 1
        %s5155 = smul.addr %s5154, 32
        %s5156 = smul.addr %s5155, 4
        %s5157 = scalar_lea.vmem %s2, %s5156
      $region48: #{decoder_bottleneck_layer.3} parent=43 // pred_fallthru
        _
      // Predicated region
      $region49: #{decoder_bottleneck_layer.3} parent=43 // pred_check
        %p5158 = pneg %p113
      $region50: #{decoder_bottleneck_layer.3} parent=43 // pred_check_branch
        %5160 = sbr.rel (%p5158) target = $region52
      $region51: #{decoder_bottleneck_layer.3} parent=43 // pred_region
        %p5161 = scmp.lt.s32.totalorder %s17, 1
        %s5162 = scalar_select %p5161, %s17, 1
        %s5163 = scalar_lea.vmem %s3, %s5162
      $region52: #{decoder_bottleneck_layer.3} parent=43 // pred_fallthru
        _
      // Predicated region
      $region53: #{decoder_bottleneck_layer.3} parent=43 // pred_check
        %p5164 = pneg %p139
      $region54: #{decoder_bottleneck_layer.3} parent=43 // pred_check_branch
        %5166 = sbr.rel (%p5164) target = $region56
      $region55: #{decoder_bottleneck_layer.3} parent=43 // pred_region
        %p5167 = scmp.lt.s32.totalorder %s17, 1
        %s5168 = scalar_select %p5167, %s17, 1
        %s5169 = scalar_lea.vmem %s4, %s5168
      $region56: #{decoder_bottleneck_layer.3} parent=43 // pred_fallthru
        _
    $region44: #{decoder_bottleneck_layer.3} parent=5 // pred_fallthru
      _
  $region6: #{decoder_bottleneck_layer.3} parent=0 // loop_footer
    %s15 = sadd.s32 1, %s11
  $region7: #{decoder_bottleneck_layer.3} parent=0 // loop_footer_branch
    %10 = sbr.rel target = $region3
  $region8: #{decoder_bottleneck_layer.3} parent=0 // loop_exit
    _

</llo_original>
